<compile_context>
chip_gen: v5e
topology: v5e:2x2
jax: 0.10.0
libtpu: 0.0.40
codegen_flags: <defaults>
</compile_context>

<pallas_src>
import functools

import jax
import jax.numpy as jnp
from jax.experimental import pallas as pl
from jax.experimental.pallas import tpu as pltpu

H = 768  # hidden size fixed by the nn.Linear(768, 768) layers


def _rea_kernel(x_ref, mask_ref, w12_ref, b12_ref, w3_ref, b3_ref,
                w4_ref, b4_ref, out_ref, *, approx_recip=True):
    bt, s, h = x_ref.shape
    cdt = w12_ref.dtype                      # MXU-input (compute) dtype

    # Cast x to the MXU dtype here (not in the wrapper): the VPU cast is
    # hidden under the MXU-bound body, and the HBM read stays f32-once.
    x3 = x_ref[...].astype(cdt)              # (Bt, S, H)
    x2 = x3.reshape(bt * s, h)               # (Bt*S, H): big-M projections

    # Fused f1|f2 projection; the f1 half already carries the 1/28 scale.
    h12 = jnp.dot(x2, w12_ref[...], preferred_element_type=jnp.float32)
    h12 = h12 + b12_ref[...]
    h1 = h12[:, :h].astype(cdt).reshape(bt, s, h)   # scaled f1(x)
    h2 = h12[:, h:].astype(cdt).reshape(bt, s, h)   # f2(x)

    # att[b] = (f1(x)[b] @ f2(x)[b]^T) / 28   (scale folded into h1)
    att = jnp.einsum("bqh,bkh->bqk", h1, h2,
                     preferred_element_type=jnp.float32)

    # g_x1 = f3(att @ x)
    g1 = jnp.einsum("bqk,bkh->bqh", att.astype(cdt), x3,
                    preferred_element_type=jnp.float32)
    g_x1 = jnp.dot(g1.reshape(bt * s, h).astype(cdt), w3_ref[...],
                   preferred_element_type=jnp.float32) + b3_ref[...]

    # p = softmax(att.masked_fill(mask == 1, -1e9), dim=2)
    # mask_ref already holds (section_mask == 1) as int8, so != 0 is exact.
    att_m = jnp.where(mask_ref[...] != 0, jnp.float32(-1e9), att)
    e = jnp.exp(att_m - jnp.max(att_m, axis=-1, keepdims=True))
    denom = jnp.sum(e, axis=-1, keepdims=True)
    if approx_recip:
        p = e * pl.reciprocal(denom, approx=True)
    else:
        p = e / denom

    # g_x2 = f4(p @ g_x1)
    g2 = jnp.einsum("bqk,bkh->bqh", p.astype(cdt),
                    g_x1.astype(cdt).reshape(bt, s, h),
                    preferred_element_type=jnp.float32)
    g_x2 = jnp.dot(g2.reshape(bt * s, h).astype(cdt), w4_ref[...],
                   preferred_element_type=jnp.float32) + b4_ref[...]

    out_ref[...] = (g_x1 + g_x2).reshape(bt, s, h).astype(out_ref.dtype)


def _tpu_generation():
    """Return (vmem_limit_bytes, target_rows, min_rows, num_cores)."""
    vmem_cap = None
    try:
        vmem_cap = pltpu.get_tpu_info().vmem_capacity_bytes
    except Exception:
        pass
    kind = ""
    try:
        kind = jax.devices()[0].device_kind.lower()
    except Exception:
        pass
    if vmem_cap is None:
        if any(g in kind for g in ("v5", "v6")):
            vmem_cap = 128 << 20
        else:                       # v7x (or unknown): be conservative
            vmem_cap = 64 << 20

    # Leave headroom below physical VMEM for the compiler's own scratch.
    vmem_limit = (100 << 20) if vmem_cap >= (96 << 20) else (48 << 20)

    if "v5" in kind:                # 4x128^2 MXU: 128 rows fill a tile height
        target_rows, min_rows = 256, 128
    else:                           # v6e/v7x: 2x256^2 MXU, want M >= 512
        target_rows, min_rows = 512, 256

    num_cores = 2 if "v7" in kind else 1
    return vmem_limit, target_rows, min_rows, num_cores


def _pick_batch_block(B, S, Hd, cbytes, obytes):
    """Batch-block size: fill the MXU M dim, keep both v7x cores busy, and
    bound per-step VMEM against a generation-aware budget."""
    vmem_limit, target_rows, min_rows, num_cores = _tpu_generation()

    # Resident, single-buffered weights + biases (f1|f2 fused + f3 + f4).
    weight_bytes = 4 * Hd * Hd * cbytes + 4 * Hd * 4

    # Per-batch-element bytes of one grid step: pipeline-double-buffered
    # inputs/outputs plus the kernel-internal temporaries.
    per_n = (2 * S * Hd * 4                   # x block (f32), 2 bufs
             + 2 * S * S * 1                  # int8 mask, 2 bufs
             + 2 * S * Hd * obytes            # output block, 2 bufs
             + S * S * (3 * 4 + 2 * cbytes)   # att / exp / p (+ cdt casts)
             + S * Hd * (7 * 4 + 5 * cbytes)) # projection intermediates
    budget = vmem_limit - weight_bytes - (4 << 20)
    bt_vmem = max(1, budget // per_n)

    bt = int(min(B, max(1, -(-target_rows // S)), bt_vmem))

    if num_cores > 1 and B >= num_cores:
        # Guarantee >= num_cores grid steps so no TensorCore idles; prefer an
        # even step count so the split is balanced.
        bt = min(bt, -(-B // num_cores))
        steps = -(-B // bt)
        if steps % num_cores:
            bt_alt = -(-B // (steps + 1))
            if bt_alt >= 1 and bt_alt * S >= min_rows:
                bt = bt_alt

    return max(1, int(bt)), vmem_limit


def prepare_rea_params(params, *, compute_dtype=jnp.bfloat16):
    """One-time parameter prep (hoisted out of the per-call forward):
    fuse f1|f2 into one (H, 2H) weight with the 1/28 scale folded into the
    f1 half, pre-transpose so the kernel does plain x @ W, pre-cast."""
    (w1, b1), (w2, b2), (w3, b3), (w4, b4) = params
    w12 = jnp.concatenate([w1.T / 28.0, w2.T], axis=1).astype(compute_dtype)
    b12 = jnp.concatenate([b1 / 28.0, b2]).reshape(1, 2 * H).astype(jnp.float32)
    w3t = w3.T.astype(compute_dtype)
    w4t = w4.T.astype(compute_dtype)
    b3r = b3.reshape(1, H).astype(jnp.float32)
    b4r = b4.reshape(1, H).astype(jnp.float32)
    return (w12, b12, w3t, b3r, w4t, b4r)


def rea_forward(x, section_mask, prepped, *, out_dtype=jnp.float32):
    """x: (B, S, H) f32, section_mask: (B, S, S) with 1 marking masked slots.
    `prepped` comes from prepare_rea_params()."""
    B, S, H_in = x.shape
    assert H_in == H
    w12, b12, w3t, b3r, w4t, b4r = prepped
    cdt = w12.dtype
    cbytes = jnp.dtype(cdt).itemsize
    obytes = jnp.dtype(out_dtype).itemsize

    # masked_fill(mask == 1, ...): pre-binarize so the int8 compare in-kernel
    # is exactly the reference semantics (and 4x less HBM than f32 mask).
    mask_i8 = (section_mask == 1).astype(jnp.int8)

    bt, vmem_limit = _pick_batch_block(B, S, H, cbytes, obytes)
    n_steps = -(-B // bt)
    B_pad = n_steps * bt
    if B_pad != B:
        # Pad the batch (zero rows are numerically benign: att = 0, mask = 0,
        # softmax is uniform) instead of shrinking bt to a divisor of B.
        pad = ((0, B_pad - B), (0, 0), (0, 0))
        x = jnp.pad(x, pad)
        mask_i8 = jnp.pad(mask_i8, pad)

    resident = pl.Buffered(1)   # grid-invariant operands: no double-buffering

    def w_spec(shape):
        return pl.BlockSpec(shape, lambda b: (0, 0), pipeline_mode=resident)

    kernel = functools.partial(_rea_kernel,
                               approx_recip=(cdt != jnp.float32))

    out = pl.pallas_call(
        kernel,
        out_shape=jax.ShapeDtypeStruct((B_pad, S, H), out_dtype),
        grid_spec=pltpu.PrefetchScalarGridSpec(
            num_scalar_prefetch=0,
            grid=(n_steps,),
            in_specs=[
                pl.BlockSpec((bt, S, H), lambda b: (b, 0, 0)),   # x (f32)
                pl.BlockSpec((bt, S, S), lambda b: (b, 0, 0)),   # mask (int8)
                w_spec((H, 2 * H)), w_spec((1, 2 * H)),          # fused f1|f2
                w_spec((H, H)), w_spec((1, H)),                  # f3
                w_spec((H, H)), w_spec((1, H)),                  # f4
            ],
            out_specs=pl.BlockSpec((bt, S, H), lambda b: (b, 0, 0)),
        ),
        compiler_params=pltpu.CompilerParams(
            dimension_semantics=("parallel",),
            vmem_limit_bytes=vmem_limit,
        ),
    )(x, mask_i8, w12, b12, w3t, b3r, w4t, b4r)

    return out[:B] if B_pad != B else out


def rea_reference(x, section_mask, params):
    (w1, b1), (w2, b2), (w3, b3), (w4, b4) = params
    h1 = x @ w1.T + b1
    h2 = x @ w2.T + b2
    att = jnp.einsum("bsh,bth->bst", h1, h2) / 28.0
    g_x1 = jnp.einsum("bst,bth->bsh", att, x) @ w3.T + b3
    att_masked = jnp.where(section_mask == 1.0, -1e9, att)
    p = jax.nn.softmax(att_masked, axis=2)
    g_x2 = jnp.einsum("bst,bth->bsh", p, g_x1) @ w4.T + b4
    return g_x1 + g_x2


def init_params(key):
    # PyTorch nn.Linear default init: U(-1/sqrt(fan_in), 1/sqrt(fan_in))
    bound = 1.0 / jnp.sqrt(jnp.float32(H))
    params = []
    for i in range(4):
        kw, kb = jax.random.split(jax.random.fold_in(key, i))
        w = jax.random.uniform(kw, (H, H), jnp.float32, -bound, bound)
        b = jax.random.uniform(kb, (H,), jnp.float32, -bound, bound)
        params.append((w, b))
    return tuple(params)


if __name__ == "__main__":
    key = jax.random.PRNGKey(0)
    k_x, k_p = jax.random.split(key, 2)

    B, S = 2, 8
    x = jax.random.normal(k_x, (B, S, H), jnp.float32)
    # section mask: 1.0 on the diagonal (mask self-attention)
    section_mask = jnp.broadcast_to(jnp.eye(S, dtype=jnp.float32), (B, S, S))
    params = init_params(k_p)

    ref = rea_reference(x, section_mask, params)

    # Exact-precision path (f32 MXU inputs, exact softmax reciprocal): tight
    # check of kernel mechanics. Tolerance covers fused/folded rounding only.
    prep_f32 = prepare_rea_params(params, compute_dtype=jnp.float32)
    out_f32 = jax.block_until_ready(rea_forward(x, section_mask, prep_f32))
    assert out_f32.shape == (B, S, H)
    assert jnp.allclose(out_f32, ref, atol=5e-3, rtol=5e-3), "f32 path mismatch"

    # Fast path (default): bf16 MXU inputs with f32 accumulation + EUP recip.
    prep_bf16 = prepare_rea_params(params, compute_dtype=jnp.bfloat16)
    out_bf16 = jax.block_until_ready(rea_forward(x, section_mask, prep_bf16))
    assert out_bf16.shape == (B, S, H)
    assert jnp.allclose(out_bf16, ref, atol=5e-2, rtol=5e-2), "bf16 path mismatch"

    print("KERNEL_OK")
</pallas_src>

<mosaic_0001>
module attributes {stable_mosaic.version = 11 : i64} {
  func.func @_rea_kernel(%arg0: i32, %arg1: memref<2x8x768xf32, #tpu.memory_space<vmem>>, %arg2: memref<2x8x8xi8, #tpu.memory_space<vmem>>, %arg3: memref<768x1536xf32, #tpu.memory_space<vmem>>, %arg4: memref<1x1536xf32, #tpu.memory_space<vmem>>, %arg5: memref<768x768xf32, #tpu.memory_space<vmem>>, %arg6: memref<1x768xf32, #tpu.memory_space<vmem>>, %arg7: memref<768x768xf32, #tpu.memory_space<vmem>>, %arg8: memref<1x768xf32, #tpu.memory_space<vmem>>, %arg9: memref<2x8x768xf32, #tpu.memory_space<vmem>>) attributes {dimension_semantics = [#tpu.dimension_semantics<parallel>], iteration_bounds = array<i64: 1>, scalar_prefetch = 0 : i64, scratch_operands = 0 : i64, tpu.core_type = #tpu.core_type<tc>, window_params = [{transform_indices = @transform_0, window_bounds = array<i64: 2, 8, 768>}, {transform_indices = @transform_1, window_bounds = array<i64: 2, 8, 8>}, {pipeline_mode = #tpu.pipeline_mode<synchronous>, transform_indices = @transform_2, window_bounds = array<i64: 768, 1536>}, {pipeline_mode = #tpu.pipeline_mode<synchronous>, transform_indices = @transform_3, window_bounds = array<i64: 1, 1536>}, {pipeline_mode = #tpu.pipeline_mode<synchronous>, transform_indices = @transform_4, window_bounds = array<i64: 768, 768>}, {pipeline_mode = #tpu.pipeline_mode<synchronous>, transform_indices = @transform_5, window_bounds = array<i64: 1, 768>}, {pipeline_mode = #tpu.pipeline_mode<synchronous>, transform_indices = @transform_6, window_bounds = array<i64: 768, 768>}, {pipeline_mode = #tpu.pipeline_mode<synchronous>, transform_indices = @transform_7, window_bounds = array<i64: 1, 768>}, {transform_indices = @transform_8, window_bounds = array<i64: 2, 8, 768>}]} {
    %c0 = arith.constant 0 : index
    %c0_0 = arith.constant 0 : index
    %c0_1 = arith.constant 0 : index
    %0 = vector.load %arg1[%c0, %c0_0, %c0_1] : memref<2x8x768xf32, #tpu.memory_space<vmem>>, vector<2x8x768xf32>
    %1 = vector.shape_cast %0 : vector<2x8x768xf32> to vector<16x768xf32>
    %c0_2 = arith.constant 0 : index
    %c0_3 = arith.constant 0 : index
    %2 = vector.load %arg3[%c0_2, %c0_3] : memref<768x1536xf32, #tpu.memory_space<vmem>>, vector<768x1536xf32>
    %cst = arith.constant dense<0.000000e+00> : vector<16x1536xf32>
    %3 = tpu.matmul %1, %2, %cst {dimension_numbers = #tpu.dot_dimension_numbers<[1], [0], [0], [1], [0, 0, 1, 1], [], []>} : vector<16x768xf32>, vector<768x1536xf32>, vector<16x1536xf32> -> vector<16x1536xf32>
    %c0_4 = arith.constant 0 : index
    %c0_5 = arith.constant 0 : index
    %4 = vector.load %arg4[%c0_4, %c0_5] : memref<1x1536xf32, #tpu.memory_space<vmem>>, vector<1x1536xf32>
    %5 = vector.broadcast %4 : vector<1x1536xf32> to vector<16x1536xf32>
    %6 = arith.addf %3, %5 : vector<16x1536xf32>
    %7 = vector.extract_strided_slice %6 {offsets = [0, 0], sizes = [16, 768], strides = [1, 1]} : vector<16x1536xf32> to vector<16x768xf32>
    %8 = vector.shape_cast %7 : vector<16x768xf32> to vector<2x8x768xf32>
    %9 = vector.extract_strided_slice %6 {offsets = [0, 768], sizes = [16, 768], strides = [1, 1]} : vector<16x1536xf32> to vector<16x768xf32>
    %10 = vector.shape_cast %9 : vector<16x768xf32> to vector<2x8x768xf32>
    "tpu.trace_start"() <{level = 10 : i32, message = "bqh,bkh->bqk"}> : () -> ()
    %cst_6 = arith.constant dense<0.000000e+00> : vector<2x8x8xf32>
    %11 = tpu.matmul %8, %10, %cst_6 {dimension_numbers = #tpu.dot_dimension_numbers<[2], [2], [1], [1], [0, 0, 0, 1, 1, 1], [0], [0]>} : vector<2x8x768xf32>, vector<2x8x768xf32>, vector<2x8x8xf32> -> vector<2x8x8xf32>
    "tpu.trace_stop"() : () -> ()
    "tpu.trace_start"() <{level = 10 : i32, message = "bqk,bkh->bqh"}> : () -> ()
    %cst_7 = arith.constant dense<0.000000e+00> : vector<2x8x768xf32>
    %12 = tpu.matmul %11, %0, %cst_7 {dimension_numbers = #tpu.dot_dimension_numbers<[2], [1], [1], [2], [0, 0, 0, 1, 1, 2], [0], [0]>} : vector<2x8x8xf32>, vector<2x8x768xf32>, vector<2x8x768xf32> -> vector<2x8x768xf32>
    "tpu.trace_stop"() : () -> ()
    %13 = vector.shape_cast %12 : vector<2x8x768xf32> to vector<16x768xf32>
    %c0_8 = arith.constant 0 : index
    %c0_9 = arith.constant 0 : index
    %14 = vector.load %arg5[%c0_8, %c0_9] : memref<768x768xf32, #tpu.memory_space<vmem>>, vector<768x768xf32>
    %cst_10 = arith.constant dense<0.000000e+00> : vector<16x768xf32>
    %15 = tpu.matmul %13, %14, %cst_10 {dimension_numbers = #tpu.dot_dimension_numbers<[1], [0], [0], [1], [0, 0, 1, 1], [], []>} : vector<16x768xf32>, vector<768x768xf32>, vector<16x768xf32> -> vector<16x768xf32>
    %c0_11 = arith.constant 0 : index
    %c0_12 = arith.constant 0 : index
    %16 = vector.load %arg6[%c0_11, %c0_12] : memref<1x768xf32, #tpu.memory_space<vmem>>, vector<1x768xf32>
    %17 = vector.broadcast %16 : vector<1x768xf32> to vector<16x768xf32>
    %18 = arith.addf %15, %17 : vector<16x768xf32>
    %c0_13 = arith.constant 0 : index
    %c0_14 = arith.constant 0 : index
    %c0_15 = arith.constant 0 : index
    %19 = vector.load %arg2[%c0_13, %c0_14, %c0_15] : memref<2x8x8xi8, #tpu.memory_space<vmem>>, vector<2x8x8xi8>
    %c0_i8 = arith.constant 0 : i8
    %20 = vector.broadcast %c0_i8 : i8 to vector<2x8x8xi8>
    %21 = arith.cmpi ne, %19, %20 : vector<2x8x8xi8>
    %cst_16 = arith.constant -1.000000e+09 : f32
    %22 = vector.broadcast %cst_16 : f32 to vector<2x8x8xf32>
    %23 = arith.select %21, %22, %11 : vector<2x8x8xi1>, vector<2x8x8xf32>
    %cst_17 = arith.constant dense<0xFF800000> : vector<2x8xf32>
    %24 = vector.multi_reduction <maximumf>, %23, %cst_17 [2] : vector<2x8x8xf32> to vector<2x8xf32>
    %25 = vector.shape_cast %24 : vector<2x8xf32> to vector<2x8x1xf32>
    %26 = vector.broadcast %25 : vector<2x8x1xf32> to vector<2x8x8xf32>
    %27 = arith.subf %23, %26 : vector<2x8x8xf32>
    %28 = math.exp %27 : vector<2x8x8xf32>
    %cst_18 = arith.constant dense<0.000000e+00> : vector<2x8xf32>
    %29 = vector.multi_reduction <add>, %28, %cst_18 [2] : vector<2x8x8xf32> to vector<2x8xf32>
    %30 = vector.shape_cast %29 : vector<2x8xf32> to vector<2x8x1xf32>
    %31 = vector.broadcast %30 : vector<2x8x1xf32> to vector<2x8x8xf32>
    %32 = arith.divf %28, %31 : vector<2x8x8xf32>
    %33 = vector.shape_cast %18 : vector<16x768xf32> to vector<2x8x768xf32>
    "tpu.trace_start"() <{level = 10 : i32, message = "bqk,bkh->bqh"}> : () -> ()
    %cst_19 = arith.constant dense<0.000000e+00> : vector<2x8x768xf32>
    %34 = tpu.matmul %32, %33, %cst_19 {dimension_numbers = #tpu.dot_dimension_numbers<[2], [1], [1], [2], [0, 0, 0, 1, 1, 2], [0], [0]>} : vector<2x8x8xf32>, vector<2x8x768xf32>, vector<2x8x768xf32> -> vector<2x8x768xf32>
    "tpu.trace_stop"() : () -> ()
    %35 = vector.shape_cast %34 : vector<2x8x768xf32> to vector<16x768xf32>
    %c0_20 = arith.constant 0 : index
    %c0_21 = arith.constant 0 : index
    %36 = vector.load %arg7[%c0_20, %c0_21] : memref<768x768xf32, #tpu.memory_space<vmem>>, vector<768x768xf32>
    %cst_22 = arith.constant dense<0.000000e+00> : vector<16x768xf32>
    %37 = tpu.matmul %35, %36, %cst_22 {dimension_numbers = #tpu.dot_dimension_numbers<[1], [0], [0], [1], [0, 0, 1, 1], [], []>} : vector<16x768xf32>, vector<768x768xf32>, vector<16x768xf32> -> vector<16x768xf32>
    %c0_23 = arith.constant 0 : index
    %c0_24 = arith.constant 0 : index
    %38 = vector.load %arg8[%c0_23, %c0_24] : memref<1x768xf32, #tpu.memory_space<vmem>>, vector<1x768xf32>
    %39 = vector.broadcast %38 : vector<1x768xf32> to vector<16x768xf32>
    %40 = arith.addf %37, %39 : vector<16x768xf32>
    %41 = arith.addf %18, %40 : vector<16x768xf32>
    %42 = vector.shape_cast %41 : vector<16x768xf32> to vector<2x8x768xf32>
    %c0_25 = arith.constant 0 : index
    %c0_26 = arith.constant 0 : index
    %c0_27 = arith.constant 0 : index
    %43 = vector.load %arg9[%c0_25, %c0_26, %c0_27] : memref<2x8x768xf32, #tpu.memory_space<vmem>>, vector<2x8x768xf32>
    tpu.vector_store %arg9[%c0_25, %c0_26, %c0_27], %42 {strides = array<i32>} : memref<2x8x768xf32, #tpu.memory_space<vmem>>, vector<2x8x768xf32>,
    return
  }
  func.func @transform_0(%arg0: i32) -> (i32, i32, i32) {
    %c0_i32 = arith.constant 0 : i32
    %c0_i32_0 = arith.constant 0 : i32
    %c0_i32_1 = arith.constant 0 : i32
    return %arg0, %c0_i32, %c0_i32_0 : i32, i32, i32
  }
  func.func @transform_1(%arg0: i32) -> (i32, i32, i32) {
    %c0_i32 = arith.constant 0 : i32
    %c0_i32_0 = arith.constant 0 : i32
    %c0_i32_1 = arith.constant 0 : i32
    return %arg0, %c0_i32, %c0_i32_0 : i32, i32, i32
  }
  func.func @transform_2(%arg0: i32) -> (i32, i32) {
    %c0_i32 = arith.constant 0 : i32
    %c0_i32_0 = arith.constant 0 : i32
    %c0_i32_1 = arith.constant 0 : i32
    return %c0_i32, %c0_i32_0 : i32, i32
  }
  func.func @transform_3(%arg0: i32) -> (i32, i32) {
    %c0_i32 = arith.constant 0 : i32
    %c0_i32_0 = arith.constant 0 : i32
    %c0_i32_1 = arith.constant 0 : i32
    return %c0_i32, %c0_i32_0 : i32, i32
  }
  func.func @transform_4(%arg0: i32) -> (i32, i32) {
    %c0_i32 = arith.constant 0 : i32
    %c0_i32_0 = arith.constant 0 : i32
    %c0_i32_1 = arith.constant 0 : i32
    return %c0_i32, %c0_i32_0 : i32, i32
  }
  func.func @transform_5(%arg0: i32) -> (i32, i32) {
    %c0_i32 = arith.constant 0 : i32
    %c0_i32_0 = arith.constant 0 : i32
    %c0_i32_1 = arith.constant 0 : i32
    return %c0_i32, %c0_i32_0 : i32, i32
  }
  func.func @transform_6(%arg0: i32) -> (i32, i32) {
    %c0_i32 = arith.constant 0 : i32
    %c0_i32_0 = arith.constant 0 : i32
    %c0_i32_1 = arith.constant 0 : i32
    return %c0_i32, %c0_i32_0 : i32, i32
  }
  func.func @transform_7(%arg0: i32) -> (i32, i32) {
    %c0_i32 = arith.constant 0 : i32
    %c0_i32_0 = arith.constant 0 : i32
    %c0_i32_1 = arith.constant 0 : i32
    return %c0_i32, %c0_i32_0 : i32, i32
  }
  func.func @transform_8(%arg0: i32) -> (i32, i32, i32) {
    %c0_i32 = arith.constant 0 : i32
    %c0_i32_0 = arith.constant 0 : i32
    %c0_i32_1 = arith.constant 0 : i32
    return %arg0, %c0_i32, %c0_i32_0 : i32, i32, i32
  }
}

</mosaic_0001>

<llo_original>
// kernel: tpu_custom_call.1
$region0: #{tpu_custom_call.1}
  #allocation0 [shape = 'u32[]', space=smem, size = 0x4, offset = 0x4, fixed_abs, tag = 'smem constant byte address 0x4 - core index']
  #allocation1 [shape = 'u32[72,128]{1,0:T(1,128)}', space=vmem, size = 0x9000, scoped, tag = 'internal scratch']
  %s0 = inlined_call_operand.hbm [shape: f32[2,8,768], index: 0, kind: input, shape index: {}]
  %s1 = inlined_call_operand.hbm [shape: s8[2,8,8], index: 1, kind: input, shape index: {}]
  %s2 = inlined_call_operand.hbm [shape: f32[768,1536], index: 2, kind: input, shape index: {}]
  %s3 = inlined_call_operand.hbm [shape: f32[1,1536], index: 3, kind: input, shape index: {}]
  %s4 = inlined_call_operand.hbm [shape: f32[768,768], index: 4, kind: input, shape index: {}]
  %s5 = inlined_call_operand.hbm [shape: f32[1,768], index: 5, kind: input, shape index: {}]
  %s6 = inlined_call_operand.hbm [shape: f32[768,768], index: 6, kind: input, shape index: {}]
  %s7 = inlined_call_operand.hbm [shape: f32[1,768], index: 7, kind: input, shape index: {}]
  %s8 = inlined_call_operand.hbm [shape: f32[2,8,768], index: 8, kind: output, shape index: {}]
  %s9 = sld [smem:[#allocation0]]
  $region74: #{tpu_custom_call.1} parent=0
    _
  %s11 = ssub.s32 1, %s9
  %s12 = scalar_select 0, %s11, %s9
  $region1: #{tpu_custom_call.1} parent=0
    #allocation2 [shape = 'u8[49152]{0}', space=vmem, size = 0xc000, scoped, tag = 'input window, operand 0, single buffered']
    #allocation3 [shape = 's32[1]{0}', space=sflag, size = 0x4, scoped, tag = 'scoped memory for tpu_custom_call.1']
    #allocation4 [shape = 's32[1]{0}', space=sflag, size = 0x4, scoped, tag = 'scoped memory for tpu_custom_call.1']
    #allocation5 [shape = 'u8[2048]{0}', space=vmem, size = 0x800, scoped, tag = 'input window, operand 1, single buffered']
    #allocation6 [shape = 's32[1]{0}', space=sflag, size = 0x4, scoped, tag = 'scoped memory for tpu_custom_call.1']
    #allocation7 [shape = 'u8[4718592]{0}', space=vmem, size = 0x480000, scoped, tag = 'input window, operand 2, single buffered']
    #allocation8 [shape = 'u8[6144]{0}', space=vmem, size = 0x1800, scoped, tag = 'input window, operand 3, single buffered']
    #allocation9 [shape = 's32[1]{0}', space=sflag, size = 0x4, scoped, tag = 'scoped memory for tpu_custom_call.1']
    #allocation10 [shape = 'u8[2359296]{0}', space=vmem, size = 0x240000, scoped, tag = 'input window, operand 4, single buffered']
    #allocation11 [shape = 'u8[3072]{0}', space=vmem, size = 0xc00, scoped, tag = 'input window, operand 5, single buffered']
    #allocation12 [shape = 's32[1]{0}', space=sflag, size = 0x4, scoped, tag = 'scoped memory for tpu_custom_call.1']
    #allocation13 [shape = 'u8[2359296]{0}', space=vmem, size = 0x240000, scoped, tag = 'input window, operand 6, single buffered']
    #allocation14 [shape = 'u8[3072]{0}', space=vmem, size = 0xc00, scoped, tag = 'input window, operand 7, single buffered']
    #allocation15 [shape = 's32[1]{0}', space=sflag, size = 0x4, scoped, tag = 'scoped memory for tpu_custom_call.1']
    #allocation16 [shape = 'u8[49152]{0}', space=vmem, size = 0xc000, scoped, tag = 'output window, operand 0, single buffered']
    %13 = vsyncpa [#allocation3], 0
    %14 = vsyncpa [#allocation6], 0
    %15 = vsyncpa [#allocation9], 0
    %16 = vsyncpa [#allocation12], 0
    %17 = vsyncpa [#allocation15], 0
    %18 = vsyncpa [#allocation4], 0
    // Predicated region
    $region2: #{tpu_custom_call.1} parent=1 // pred_check
      _
    $region3: #{tpu_custom_call.1} parent=1 // pred_check_branch
      %20 = sbr.rel (0) target = $region5
    $region4: #{tpu_custom_call.1} parent=1 // pred_region
      %22 = vsyncadd [#allocation3], 0
      %s23 = sshll.u32 %s0, 4
      %s24 = int_to_ptr.hbm [resolvable:$true] %s23
      %s25 = sshll.u32 [#allocation2], 4
      %s26 = int_to_ptr.vmem [resolvable:$true] %s25
      %31 = dma.hbm_to_vmem [thread:$0]  %s24, 1536, %s26, [#allocation3], 768, 768, 48
    $region5: #{tpu_custom_call.1} parent=1 // pred_fallthru
      _
    // Predicated region
    $region6: #{tpu_custom_call.1} parent=1 // pred_check
      _
    $region7: #{tpu_custom_call.1} parent=1 // pred_check_branch
      %33 = sbr.rel (0) target = $region9
    $region8: #{tpu_custom_call.1} parent=1 // pred_region
      %35 = vsyncadd [#allocation6], 0
      %s36 = sshll.u32 %s1, 4
      %s37 = int_to_ptr.hbm [resolvable:$true] %s36
      %s38 = sshll.u32 [#allocation5], 4
      %s39 = int_to_ptr.vmem [resolvable:$true] %s38
      %44 = dma.hbm_to_vmem [thread:$0]  %s37, 64, %s39, [#allocation6], 32, 32, 2
    $region9: #{tpu_custom_call.1} parent=1 // pred_fallthru
      _
    // Predicated region
    $region10: #{tpu_custom_call.1} parent=1 // pred_check
      _
    $region11: #{tpu_custom_call.1} parent=1 // pred_check_branch
      %46 = sbr.rel (0) target = $region13
    $region12: #{tpu_custom_call.1} parent=1 // pred_region
      %48 = vsyncadd [#allocation6], 0
      %s49 = sshll.u32 %s2, 4
      %s50 = int_to_ptr.hbm [resolvable:$true] %s49
      %s51 = sshll.u32 [#allocation7], 4
      %s52 = int_to_ptr.vmem [resolvable:$true] %s51
      %57 = dma.hbm_to_vmem [thread:$0]  %s50, 147456, %s52, [#allocation6], 1536, 1536, 96
    $region13: #{tpu_custom_call.1} parent=1 // pred_fallthru
      _
    // Predicated region
    $region14: #{tpu_custom_call.1} parent=1 // pred_check
      _
    $region15: #{tpu_custom_call.1} parent=1 // pred_check_branch
      %59 = sbr.rel (0) target = $region17
    $region16: #{tpu_custom_call.1} parent=1 // pred_region
      %61 = vsyncadd [#allocation9], 0
      %s63 = sshll.u32 %s3, 4
      %s64 = int_to_ptr.hbm [resolvable:$true] %s63
      %s65 = sshll.u32 [#allocation8], 4
      %s66 = int_to_ptr.vmem [resolvable:$true] %s65
      %68 = dma.hbm_to_vmem [thread:$0]  %s64, 192, %s66, [#allocation9]
    $region17: #{tpu_custom_call.1} parent=1 // pred_fallthru
      _
    // Predicated region
    $region18: #{tpu_custom_call.1} parent=1 // pred_check
      _
    $region19: #{tpu_custom_call.1} parent=1 // pred_check_branch
      %70 = sbr.rel (0) target = $region21
    $region20: #{tpu_custom_call.1} parent=1 // pred_region
      %72 = vsyncadd [#allocation9], 0
      %s73 = sshll.u32 %s4, 4
      %s74 = int_to_ptr.hbm [resolvable:$true] %s73
      %s75 = sshll.u32 [#allocation10], 4
      %s76 = int_to_ptr.vmem [resolvable:$true] %s75
      %81 = dma.hbm_to_vmem [thread:$0]  %s74, 73728, %s76, [#allocation9], 768, 768, 48
    $region21: #{tpu_custom_call.1} parent=1 // pred_fallthru
      _
    // Predicated region
    $region22: #{tpu_custom_call.1} parent=1 // pred_check
      _
    $region23: #{tpu_custom_call.1} parent=1 // pred_check_branch
      %83 = sbr.rel (0) target = $region25
    $region24: #{tpu_custom_call.1} parent=1 // pred_region
      %85 = vsyncadd [#allocation12], 0
      %s87 = sshll.u32 %s5, 4
      %s88 = int_to_ptr.hbm [resolvable:$true] %s87
      %s89 = sshll.u32 [#allocation11], 4
      %s90 = int_to_ptr.vmem [resolvable:$true] %s89
      %92 = dma.hbm_to_vmem [thread:$0]  %s88, 96, %s90, [#allocation12]
    $region25: #{tpu_custom_call.1} parent=1 // pred_fallthru
      _
    // Predicated region
    $region26: #{tpu_custom_call.1} parent=1 // pred_check
      _
    $region27: #{tpu_custom_call.1} parent=1 // pred_check_branch
      %94 = sbr.rel (0) target = $region29
    $region28: #{tpu_custom_call.1} parent=1 // pred_region
      %96 = vsyncadd [#allocation12], 0
      %s97 = sshll.u32 %s6, 4
      %s98 = int_to_ptr.hbm [resolvable:$true] %s97
      %s99 = sshll.u32 [#allocation13], 4
      %s100 = int_to_ptr.vmem [resolvable:$true] %s99
      %105 = dma.hbm_to_vmem [thread:$0]  %s98, 73728, %s100, [#allocation12], 768, 768, 48
    $region29: #{tpu_custom_call.1} parent=1 // pred_fallthru
      _
    // Predicated region
    $region30: #{tpu_custom_call.1} parent=1 // pred_check
      _
    $region31: #{tpu_custom_call.1} parent=1 // pred_check_branch
      %107 = sbr.rel (0) target = $region33
    $region32: #{tpu_custom_call.1} parent=1 // pred_region
      %109 = vsyncadd [#allocation15], 0
      %s111 = sshll.u32 %s7, 4
      %s112 = int_to_ptr.hbm [resolvable:$true] %s111
      %s113 = sshll.u32 [#allocation14], 4
      %s114 = int_to_ptr.vmem [resolvable:$true] %s113
      %116 = dma.hbm_to_vmem [thread:$0]  %s112, 96, %s114, [#allocation15]
    $region33: #{tpu_custom_call.1} parent=1 // pred_fallthru
      _
    // Predicated region
    $region34: #{tpu_custom_call.1} parent=1 // pred_check
      _
    $region35: #{tpu_custom_call.1} parent=1 // pred_check_branch
      %118 = sbr.rel (0) target = $region37
    $region36: #{tpu_custom_call.1} parent=1 // pred_region
      %120 = dma.done [#allocation3], 1536
    $region37: #{tpu_custom_call.1} parent=1 // pred_fallthru
      _
    // Predicated region
    $region38: #{tpu_custom_call.1} parent=1 // pred_check
      _
    $region39: #{tpu_custom_call.1} parent=1 // pred_check_branch
      %122 = sbr.rel (0) target = $region41
    $region40: #{tpu_custom_call.1} parent=1 // pred_region
      %124 = dma.done [#allocation6], 64
    $region41: #{tpu_custom_call.1} parent=1 // pred_fallthru
      _
    // Predicated region
    $region42: #{tpu_custom_call.1} parent=1 // pred_check
      _
    $region43: #{tpu_custom_call.1} parent=1 // pred_check_branch
      %126 = sbr.rel (0) target = $region45
    $region44: #{tpu_custom_call.1} parent=1 // pred_region
      %128 = dma.done [#allocation6], 147456
    $region45: #{tpu_custom_call.1} parent=1 // pred_fallthru
      _
    // Predicated region
    $region46: #{tpu_custom_call.1} parent=1 // pred_check
      _
    $region47: #{tpu_custom_call.1} parent=1 // pred_check_branch
      %130 = sbr.rel (0) target = $region49
    $region48: #{tpu_custom_call.1} parent=1 // pred_region
      %132 = dma.done [#allocation9], 192
    $region49: #{tpu_custom_call.1} parent=1 // pred_fallthru
      _
    // Predicated region
    $region50: #{tpu_custom_call.1} parent=1 // pred_check
      _
    $region51: #{tpu_custom_call.1} parent=1 // pred_check_branch
      %134 = sbr.rel (0) target = $region53
    $region52: #{tpu_custom_call.1} parent=1 // pred_region
      %136 = dma.done [#allocation9], 73728
    $region53: #{tpu_custom_call.1} parent=1 // pred_fallthru
      _
    // Predicated region
    $region54: #{tpu_custom_call.1} parent=1 // pred_check
      _
    $region55: #{tpu_custom_call.1} parent=1 // pred_check_branch
      %138 = sbr.rel (0) target = $region57
    $region56: #{tpu_custom_call.1} parent=1 // pred_region
      %140 = dma.done [#allocation12], 96
    $region57: #{tpu_custom_call.1} parent=1 // pred_fallthru
      _
    // Predicated region
    $region58: #{tpu_custom_call.1} parent=1 // pred_check
      _
    $region59: #{tpu_custom_call.1} parent=1 // pred_check_branch
      %142 = sbr.rel (0) target = $region61
    $region60: #{tpu_custom_call.1} parent=1 // pred_region
      %144 = dma.done [#allocation12], 73728
    $region61: #{tpu_custom_call.1} parent=1 // pred_fallthru
      _
    // Predicated region
    $region62: #{tpu_custom_call.1} parent=1 // pred_check
      _
    $region63: #{tpu_custom_call.1} parent=1 // pred_check_branch
      %146 = sbr.rel (0) target = $region65
    $region64: #{tpu_custom_call.1} parent=1 // pred_region
      %148 = dma.done [#allocation15], 96
    $region65: #{tpu_custom_call.1} parent=1 // pred_fallthru
      _
    %v151 = vld [vmem:[#allocation2] sm:$0xff]
    %v152 = vld [vmem:[#allocation2 + $0x8] sm:$0xff]
    %v153 = vld [vmem:[#allocation2 + $0x10] sm:$0xff]
    %v154 = vld [vmem:[#allocation2 + $0x18] sm:$0xff]
    %v155 = vld [vmem:[#allocation2 + $0x20] sm:$0xff]
    %v156 = vld [vmem:[#allocation2 + $0x28] sm:$0xff]
    %v157 = vld [vmem:[#allocation2 + $0x30] sm:$0xff]
    %v158 = vld [vmem:[#allocation2 + $0x38] sm:$0xff]
    %v159 = vld [vmem:[#allocation2 + $0x40] sm:$0xff]
    %v160 = vld [vmem:[#allocation2 + $0x48] sm:$0xff]
    %v161 = vld [vmem:[#allocation2 + $0x50] sm:$0xff]
    %v162 = vld [vmem:[#allocation2 + $0x58] sm:$0xff]
    %v163 = vld [vmem:[#allocation7] sm:$0xff]
    %v164 = vld [vmem:[#allocation7 + $0x8] sm:$0xff]
    %v165 = vld [vmem:[#allocation7 + $0x10] sm:$0xff]
    %v166 = vld [vmem:[#allocation7 + $0x18] sm:$0xff]
    %v167 = vld [vmem:[#allocation7 + $0x20] sm:$0xff]
    %v168 = vld [vmem:[#allocation7 + $0x28] sm:$0xff]
    %v169 = vld [vmem:[#allocation7 + $0x30] sm:$0xff]
    %v170 = vld [vmem:[#allocation7 + $0x38] sm:$0xff]
    %v171 = vld [vmem:[#allocation7 + $0x40] sm:$0xff]
    %v172 = vld [vmem:[#allocation7 + $0x48] sm:$0xff]
    %v173 = vld [vmem:[#allocation7 + $0x50] sm:$0xff]
    %v174 = vld [vmem:[#allocation7 + $0x58] sm:$0xff]
    %v175 = vld [vmem:[#allocation7 + $0x60] sm:$0xff]
    %v176 = vld [vmem:[#allocation7 + $0x68] sm:$0xff]
    %v177 = vld [vmem:[#allocation7 + $0x70] sm:$0xff]
    %v178 = vld [vmem:[#allocation7 + $0x78] sm:$0xff]
    %v179 = vld [vmem:[#allocation7 + $0x80] sm:$0xff]
    %v180 = vld [vmem:[#allocation7 + $0x88] sm:$0xff]
    %v181 = vld [vmem:[#allocation7 + $0x90] sm:$0xff]
    %v182 = vld [vmem:[#allocation7 + $0x98] sm:$0xff]
    %v183 = vld [vmem:[#allocation7 + $0xa0] sm:$0xff]
    %v184 = vld [vmem:[#allocation7 + $0xa8] sm:$0xff]
    %v185 = vld [vmem:[#allocation7 + $0xb0] sm:$0xff]
    %v186 = vld [vmem:[#allocation7 + $0xb8] sm:$0xff]
    %v187 = vld [vmem:[#allocation7 + $0xc0] sm:$0xff]
    %v188 = vld [vmem:[#allocation7 + $0xc8] sm:$0xff]
    %v189 = vld [vmem:[#allocation7 + $0xd0] sm:$0xff]
    %v190 = vld [vmem:[#allocation7 + $0xd8] sm:$0xff]
    %v191 = vld [vmem:[#allocation7 + $0xe0] sm:$0xff]
    %v192 = vld [vmem:[#allocation7 + $0xe8] sm:$0xff]
    %v193 = vld [vmem:[#allocation7 + $0xf0] sm:$0xff]
    %v194 = vld [vmem:[#allocation7 + $0xf8] sm:$0xff]
    %v195 = vld [vmem:[#allocation7 + $0x100] sm:$0xff]
    %v196 = vld [vmem:[#allocation7 + $0x108] sm:$0xff]
    %v197 = vld [vmem:[#allocation7 + $0x110] sm:$0xff]
    %v198 = vld [vmem:[#allocation7 + $0x118] sm:$0xff]
    %v199 = vld [vmem:[#allocation7 + $0x120] sm:$0xff]
    %v200 = vld [vmem:[#allocation7 + $0x128] sm:$0xff]
    %v201 = vld [vmem:[#allocation7 + $0x130] sm:$0xff]
    %v202 = vld [vmem:[#allocation7 + $0x138] sm:$0xff]
    %v203 = vld [vmem:[#allocation7 + $0x140] sm:$0xff]
    %v204 = vld [vmem:[#allocation7 + $0x148] sm:$0xff]
    %v205 = vld [vmem:[#allocation7 + $0x150] sm:$0xff]
    %v206 = vld [vmem:[#allocation7 + $0x158] sm:$0xff]
    %v207 = vld [vmem:[#allocation7 + $0x160] sm:$0xff]
    %v208 = vld [vmem:[#allocation7 + $0x168] sm:$0xff]
    %v209 = vld [vmem:[#allocation7 + $0x170] sm:$0xff]
    %v210 = vld [vmem:[#allocation7 + $0x178] sm:$0xff]
    %v211 = vld [vmem:[#allocation7 + $0x180] sm:$0xff]
    %v212 = vld [vmem:[#allocation7 + $0x188] sm:$0xff]
    %v213 = vld [vmem:[#allocation7 + $0x190] sm:$0xff]
    %v214 = vld [vmem:[#allocation7 + $0x198] sm:$0xff]
    %v215 = vld [vmem:[#allocation7 + $0x1a0] sm:$0xff]
    %v216 = vld [vmem:[#allocation7 + $0x1a8] sm:$0xff]
    %v217 = vld [vmem:[#allocation7 + $0x1b0] sm:$0xff]
    %v218 = vld [vmem:[#allocation7 + $0x1b8] sm:$0xff]
    %v219 = vld [vmem:[#allocation7 + $0x1c0] sm:$0xff]
    %v220 = vld [vmem:[#allocation7 + $0x1c8] sm:$0xff]
    %v221 = vld [vmem:[#allocation7 + $0x1d0] sm:$0xff]
    %v222 = vld [vmem:[#allocation7 + $0x1d8] sm:$0xff]
    %v223 = vld [vmem:[#allocation7 + $0x1e0] sm:$0xff]
    %v224 = vld [vmem:[#allocation7 + $0x1e8] sm:$0xff]
    %v225 = vld [vmem:[#allocation7 + $0x1f0] sm:$0xff]
    %v226 = vld [vmem:[#allocation7 + $0x1f8] sm:$0xff]
    %v227 = vld [vmem:[#allocation7 + $0x200] sm:$0xff]
    %v228 = vld [vmem:[#allocation7 + $0x208] sm:$0xff]
    %v229 = vld [vmem:[#allocation7 + $0x210] sm:$0xff]
    %v230 = vld [vmem:[#allocation7 + $0x218] sm:$0xff]
    %v231 = vld [vmem:[#allocation7 + $0x220] sm:$0xff]
    %v232 = vld [vmem:[#allocation7 + $0x228] sm:$0xff]
    %v233 = vld [vmem:[#allocation7 + $0x230] sm:$0xff]
    %v234 = vld [vmem:[#allocation7 + $0x238] sm:$0xff]
    %v235 = vld [vmem:[#allocation7 + $0x240] sm:$0xff]
    %v236 = vld [vmem:[#allocation7 + $0x248] sm:$0xff]
    %v237 = vld [vmem:[#allocation7 + $0x250] sm:$0xff]
    %v238 = vld [vmem:[#allocation7 + $0x258] sm:$0xff]
    %v239 = vld [vmem:[#allocation7 + $0x260] sm:$0xff]
    %v240 = vld [vmem:[#allocation7 + $0x268] sm:$0xff]
    %v241 = vld [vmem:[#allocation7 + $0x270] sm:$0xff]
    %v242 = vld [vmem:[#allocation7 + $0x278] sm:$0xff]
    %v243 = vld [vmem:[#allocation7 + $0x280] sm:$0xff]
    %v244 = vld [vmem:[#allocation7 + $0x288] sm:$0xff]
    %v245 = vld [vmem:[#allocation7 + $0x290] sm:$0xff]
    %v246 = vld [vmem:[#allocation7 + $0x298] sm:$0xff]
    %v247 = vld [vmem:[#allocation7 + $0x2a0] sm:$0xff]
    %v248 = vld [vmem:[#allocation7 + $0x2a8] sm:$0xff]
    %v249 = vld [vmem:[#allocation7 + $0x2b0] sm:$0xff]
    %v250 = vld [vmem:[#allocation7 + $0x2b8] sm:$0xff]
    %v251 = vld [vmem:[#allocation7 + $0x2c0] sm:$0xff]
    %v252 = vld [vmem:[#allocation7 + $0x2c8] sm:$0xff]
    %v253 = vld [vmem:[#allocation7 + $0x2d0] sm:$0xff]
    %v254 = vld [vmem:[#allocation7 + $0x2d8] sm:$0xff]
    %v255 = vld [vmem:[#allocation7 + $0x2e0] sm:$0xff]
    %v256 = vld [vmem:[#allocation7 + $0x2e8] sm:$0xff]
    %v257 = vld [vmem:[#allocation7 + $0x2f0] sm:$0xff]
    %v258 = vld [vmem:[#allocation7 + $0x2f8] sm:$0xff]
    %v259 = vld [vmem:[#allocation7 + $0x300] sm:$0xff]
    %v260 = vld [vmem:[#allocation7 + $0x308] sm:$0xff]
    %v261 = vld [vmem:[#allocation7 + $0x310] sm:$0xff]
    %v262 = vld [vmem:[#allocation7 + $0x318] sm:$0xff]
    %v263 = vld [vmem:[#allocation7 + $0x320] sm:$0xff]
    %v264 = vld [vmem:[#allocation7 + $0x328] sm:$0xff]
    %v265 = vld [vmem:[#allocation7 + $0x330] sm:$0xff]
    %v266 = vld [vmem:[#allocation7 + $0x338] sm:$0xff]
    %v267 = vld [vmem:[#allocation7 + $0x340] sm:$0xff]
    %v268 = vld [vmem:[#allocation7 + $0x348] sm:$0xff]
    %v269 = vld [vmem:[#allocation7 + $0x350] sm:$0xff]
    %v270 = vld [vmem:[#allocation7 + $0x358] sm:$0xff]
    %v271 = vld [vmem:[#allocation7 + $0x360] sm:$0xff]
    %v272 = vld [vmem:[#allocation7 + $0x368] sm:$0xff]
    %v273 = vld [vmem:[#allocation7 + $0x370] sm:$0xff]
    %v274 = vld [vmem:[#allocation7 + $0x378] sm:$0xff]
    %v275 = vld [vmem:[#allocation7 + $0x380] sm:$0xff]
    %v276 = vld [vmem:[#allocation7 + $0x388] sm:$0xff]
    %v277 = vld [vmem:[#allocation7 + $0x390] sm:$0xff]
    %v278 = vld [vmem:[#allocation7 + $0x398] sm:$0xff]
    %v279 = vld [vmem:[#allocation7 + $0x3a0] sm:$0xff]
    %v280 = vld [vmem:[#allocation7 + $0x3a8] sm:$0xff]
    %v281 = vld [vmem:[#allocation7 + $0x3b0] sm:$0xff]
    %v282 = vld [vmem:[#allocation7 + $0x3b8] sm:$0xff]
    %v283 = vld [vmem:[#allocation7 + $0x3c0] sm:$0xff]
    %v284 = vld [vmem:[#allocation7 + $0x3c8] sm:$0xff]
    %v285 = vld [vmem:[#allocation7 + $0x3d0] sm:$0xff]
    %v286 = vld [vmem:[#allocation7 + $0x3d8] sm:$0xff]
    %v287 = vld [vmem:[#allocation7 + $0x3e0] sm:$0xff]
    %v288 = vld [vmem:[#allocation7 + $0x3e8] sm:$0xff]
    %v289 = vld [vmem:[#allocation7 + $0x3f0] sm:$0xff]
    %v290 = vld [vmem:[#allocation7 + $0x3f8] sm:$0xff]
    %v291 = vld [vmem:[#allocation7 + $0x400] sm:$0xff]
    %v292 = vld [vmem:[#allocation7 + $0x408] sm:$0xff]
    %v293 = vld [vmem:[#allocation7 + $0x410] sm:$0xff]
    %v294 = vld [vmem:[#allocation7 + $0x418] sm:$0xff]
    %v295 = vld [vmem:[#allocation7 + $0x420] sm:$0xff]
    %v296 = vld [vmem:[#allocation7 + $0x428] sm:$0xff]
    %v297 = vld [vmem:[#allocation7 + $0x430] sm:$0xff]
    %v298 = vld [vmem:[#allocation7 + $0x438] sm:$0xff]
    %v299 = vld [vmem:[#allocation7 + $0x440] sm:$0xff]
    %v300 = vld [vmem:[#allocation7 + $0x448] sm:$0xff]
    %v301 = vld [vmem:[#allocation7 + $0x450] sm:$0xff]
    %v302 = vld [vmem:[#allocation7 + $0x458] sm:$0xff]
    %v303 = vld [vmem:[#allocation7 + $0x460] sm:$0xff]
    %v304 = vld [vmem:[#allocation7 + $0x468] sm:$0xff]
    %v305 = vld [vmem:[#allocation7 + $0x470] sm:$0xff]
    %v306 = vld [vmem:[#allocation7 + $0x478] sm:$0xff]
    %v307 = vld [vmem:[#allocation7 + $0x480] sm:$0xff]
    %v308 = vld [vmem:[#allocation7 + $0x488] sm:$0xff]
    %v309 = vld [vmem:[#allocation7 + $0x490] sm:$0xff]
    %v310 = vld [vmem:[#allocation7 + $0x498] sm:$0xff]
    %v311 = vld [vmem:[#allocation7 + $0x4a0] sm:$0xff]
    %v312 = vld [vmem:[#allocation7 + $0x4a8] sm:$0xff]
    %v313 = vld [vmem:[#allocation7 + $0x4b0] sm:$0xff]
    %v314 = vld [vmem:[#allocation7 + $0x4b8] sm:$0xff]
    %v315 = vld [vmem:[#allocation7 + $0x4c0] sm:$0xff]
    %v316 = vld [vmem:[#allocation7 + $0x4c8] sm:$0xff]
    %v317 = vld [vmem:[#allocation7 + $0x4d0] sm:$0xff]
    %v318 = vld [vmem:[#allocation7 + $0x4d8] sm:$0xff]
    %v319 = vld [vmem:[#allocation7 + $0x4e0] sm:$0xff]
    %v320 = vld [vmem:[#allocation7 + $0x4e8] sm:$0xff]
    %v321 = vld [vmem:[#allocation7 + $0x4f0] sm:$0xff]
    %v322 = vld [vmem:[#allocation7 + $0x4f8] sm:$0xff]
    %v323 = vld [vmem:[#allocation7 + $0x500] sm:$0xff]
    %v324 = vld [vmem:[#allocation7 + $0x508] sm:$0xff]
    %v325 = vld [vmem:[#allocation7 + $0x510] sm:$0xff]
    %v326 = vld [vmem:[#allocation7 + $0x518] sm:$0xff]
    %v327 = vld [vmem:[#allocation7 + $0x520] sm:$0xff]
    %v328 = vld [vmem:[#allocation7 + $0x528] sm:$0xff]
    %v329 = vld [vmem:[#allocation7 + $0x530] sm:$0xff]
    %v330 = vld [vmem:[#allocation7 + $0x538] sm:$0xff]
    %v331 = vld [vmem:[#allocation7 + $0x540] sm:$0xff]
    %v332 = vld [vmem:[#allocation7 + $0x548] sm:$0xff]
    %v333 = vld [vmem:[#allocation7 + $0x550] sm:$0xff]
    %v334 = vld [vmem:[#allocation7 + $0x558] sm:$0xff]
    %v335 = vld [vmem:[#allocation7 + $0x560] sm:$0xff]
    %v336 = vld [vmem:[#allocation7 + $0x568] sm:$0xff]
    %v337 = vld [vmem:[#allocation7 + $0x570] sm:$0xff]
    %v338 = vld [vmem:[#allocation7 + $0x578] sm:$0xff]
    %v339 = vld [vmem:[#allocation7 + $0x580] sm:$0xff]
    %v340 = vld [vmem:[#allocation7 + $0x588] sm:$0xff]
    %v341 = vld [vmem:[#allocation7 + $0x590] sm:$0xff]
    %v342 = vld [vmem:[#allocation7 + $0x598] sm:$0xff]
    %v343 = vld [vmem:[#allocation7 + $0x5a0] sm:$0xff]
    %v344 = vld [vmem:[#allocation7 + $0x5a8] sm:$0xff]
    %v345 = vld [vmem:[#allocation7 + $0x5b0] sm:$0xff]
    %v346 = vld [vmem:[#allocation7 + $0x5b8] sm:$0xff]
    %v347 = vld [vmem:[#allocation7 + $0x5c0] sm:$0xff]
    %v348 = vld [vmem:[#allocation7 + $0x5c8] sm:$0xff]
    %v349 = vld [vmem:[#allocation7 + $0x5d0] sm:$0xff]
    %v350 = vld [vmem:[#allocation7 + $0x5d8] sm:$0xff]
    %v351 = vld [vmem:[#allocation7 + $0x5e0] sm:$0xff]
    %v352 = vld [vmem:[#allocation7 + $0x5e8] sm:$0xff]
    %v353 = vld [vmem:[#allocation7 + $0x5f0] sm:$0xff]
    %v354 = vld [vmem:[#allocation7 + $0x5f8] sm:$0xff]
    %v355 = vld [vmem:[#allocation7 + $0x600] sm:$0xff]
    %v356 = vld [vmem:[#allocation7 + $0x608] sm:$0xff]
    %v357 = vld [vmem:[#allocation7 + $0x610] sm:$0xff]
    %v358 = vld [vmem:[#allocation7 + $0x618] sm:$0xff]
    %v359 = vld [vmem:[#allocation7 + $0x620] sm:$0xff]
    %v360 = vld [vmem:[#allocation7 + $0x628] sm:$0xff]
    %v361 = vld [vmem:[#allocation7 + $0x630] sm:$0xff]
    %v362 = vld [vmem:[#allocation7 + $0x638] sm:$0xff]
    %v363 = vld [vmem:[#allocation7 + $0x640] sm:$0xff]
    %v364 = vld [vmem:[#allocation7 + $0x648] sm:$0xff]
    %v365 = vld [vmem:[#allocation7 + $0x650] sm:$0xff]
    %v366 = vld [vmem:[#allocation7 + $0x658] sm:$0xff]
    %v367 = vld [vmem:[#allocation7 + $0x660] sm:$0xff]
    %v368 = vld [vmem:[#allocation7 + $0x668] sm:$0xff]
    %v369 = vld [vmem:[#allocation7 + $0x670] sm:$0xff]
    %v370 = vld [vmem:[#allocation7 + $0x678] sm:$0xff]
    %v371 = vld [vmem:[#allocation7 + $0x680] sm:$0xff]
    %v372 = vld [vmem:[#allocation7 + $0x688] sm:$0xff]
    %v373 = vld [vmem:[#allocation7 + $0x690] sm:$0xff]
    %v374 = vld [vmem:[#allocation7 + $0x698] sm:$0xff]
    %v375 = vld [vmem:[#allocation7 + $0x6a0] sm:$0xff]
    %v376 = vld [vmem:[#allocation7 + $0x6a8] sm:$0xff]
    %v377 = vld [vmem:[#allocation7 + $0x6b0] sm:$0xff]
    %v378 = vld [vmem:[#allocation7 + $0x6b8] sm:$0xff]
    %v379 = vld [vmem:[#allocation7 + $0x6c0] sm:$0xff]
    %v380 = vld [vmem:[#allocation7 + $0x6c8] sm:$0xff]
    %v381 = vld [vmem:[#allocation7 + $0x6d0] sm:$0xff]
    %v382 = vld [vmem:[#allocation7 + $0x6d8] sm:$0xff]
    %v383 = vld [vmem:[#allocation7 + $0x6e0] sm:$0xff]
    %v384 = vld [vmem:[#allocation7 + $0x6e8] sm:$0xff]
    %v385 = vld [vmem:[#allocation7 + $0x6f0] sm:$0xff]
    %v386 = vld [vmem:[#allocation7 + $0x6f8] sm:$0xff]
    %v387 = vld [vmem:[#allocation7 + $0x700] sm:$0xff]
    %v388 = vld [vmem:[#allocation7 + $0x708] sm:$0xff]
    %v389 = vld [vmem:[#allocation7 + $0x710] sm:$0xff]
    %v390 = vld [vmem:[#allocation7 + $0x718] sm:$0xff]
    %v391 = vld [vmem:[#allocation7 + $0x720] sm:$0xff]
    %v392 = vld [vmem:[#allocation7 + $0x728] sm:$0xff]
    %v393 = vld [vmem:[#allocation7 + $0x730] sm:$0xff]
    %v394 = vld [vmem:[#allocation7 + $0x738] sm:$0xff]
    %v395 = vld [vmem:[#allocation7 + $0x740] sm:$0xff]
    %v396 = vld [vmem:[#allocation7 + $0x748] sm:$0xff]
    %v397 = vld [vmem:[#allocation7 + $0x750] sm:$0xff]
    %v398 = vld [vmem:[#allocation7 + $0x758] sm:$0xff]
    %v399 = vld [vmem:[#allocation7 + $0x760] sm:$0xff]
    %v400 = vld [vmem:[#allocation7 + $0x768] sm:$0xff]
    %v401 = vld [vmem:[#allocation7 + $0x770] sm:$0xff]
    %v402 = vld [vmem:[#allocation7 + $0x778] sm:$0xff]
    %v403 = vld [vmem:[#allocation7 + $0x780] sm:$0xff]
    %v404 = vld [vmem:[#allocation7 + $0x788] sm:$0xff]
    %v405 = vld [vmem:[#allocation7 + $0x790] sm:$0xff]
    %v406 = vld [vmem:[#allocation7 + $0x798] sm:$0xff]
    %v407 = vld [vmem:[#allocation7 + $0x7a0] sm:$0xff]
    %v408 = vld [vmem:[#allocation7 + $0x7a8] sm:$0xff]
    %v409 = vld [vmem:[#allocation7 + $0x7b0] sm:$0xff]
    %v410 = vld [vmem:[#allocation7 + $0x7b8] sm:$0xff]
    %v411 = vld [vmem:[#allocation7 + $0x7c0] sm:$0xff]
    %v412 = vld [vmem:[#allocation7 + $0x7c8] sm:$0xff]
    %v413 = vld [vmem:[#allocation7 + $0x7d0] sm:$0xff]
    %v414 = vld [vmem:[#allocation7 + $0x7d8] sm:$0xff]
    %v415 = vld [vmem:[#allocation7 + $0x7e0] sm:$0xff]
    %v416 = vld [vmem:[#allocation7 + $0x7e8] sm:$0xff]
    %v417 = vld [vmem:[#allocation7 + $0x7f0] sm:$0xff]
    %v418 = vld [vmem:[#allocation7 + $0x7f8] sm:$0xff]
    %v419 = vld [vmem:[#allocation7 + $0x800] sm:$0xff]
    %v420 = vld [vmem:[#allocation7 + $0x808] sm:$0xff]
    %v421 = vld [vmem:[#allocation7 + $0x810] sm:$0xff]
    %v422 = vld [vmem:[#allocation7 + $0x818] sm:$0xff]
    %v423 = vld [vmem:[#allocation7 + $0x820] sm:$0xff]
    %v424 = vld [vmem:[#allocation7 + $0x828] sm:$0xff]
    %v425 = vld [vmem:[#allocation7 + $0x830] sm:$0xff]
    %v426 = vld [vmem:[#allocation7 + $0x838] sm:$0xff]
    %v427 = vld [vmem:[#allocation7 + $0x840] sm:$0xff]
    %v428 = vld [vmem:[#allocation7 + $0x848] sm:$0xff]
    %v429 = vld [vmem:[#allocation7 + $0x850] sm:$0xff]
    %v430 = vld [vmem:[#allocation7 + $0x858] sm:$0xff]
    %v431 = vld [vmem:[#allocation7 + $0x860] sm:$0xff]
    %v432 = vld [vmem:[#allocation7 + $0x868] sm:$0xff]
    %v433 = vld [vmem:[#allocation7 + $0x870] sm:$0xff]
    %v434 = vld [vmem:[#allocation7 + $0x878] sm:$0xff]
    %v435 = vld [vmem:[#allocation7 + $0x880] sm:$0xff]
    %v436 = vld [vmem:[#allocation7 + $0x888] sm:$0xff]
    %v437 = vld [vmem:[#allocation7 + $0x890] sm:$0xff]
    %v438 = vld [vmem:[#allocation7 + $0x898] sm:$0xff]
    %v439 = vld [vmem:[#allocation7 + $0x8a0] sm:$0xff]
    %v440 = vld [vmem:[#allocation7 + $0x8a8] sm:$0xff]
    %v441 = vld [vmem:[#allocation7 + $0x8b0] sm:$0xff]
    %v442 = vld [vmem:[#allocation7 + $0x8b8] sm:$0xff]
    %v443 = vld [vmem:[#allocation7 + $0x8c0] sm:$0xff]
    %v444 = vld [vmem:[#allocation7 + $0x8c8] sm:$0xff]
    %v445 = vld [vmem:[#allocation7 + $0x8d0] sm:$0xff]
    %v446 = vld [vmem:[#allocation7 + $0x8d8] sm:$0xff]
    %v447 = vld [vmem:[#allocation7 + $0x8e0] sm:$0xff]
    %v448 = vld [vmem:[#allocation7 + $0x8e8] sm:$0xff]
    %v449 = vld [vmem:[#allocation7 + $0x8f0] sm:$0xff]
    %v450 = vld [vmem:[#allocation7 + $0x8f8] sm:$0xff]
    %v451 = vld [vmem:[#allocation7 + $0x900] sm:$0xff]
    %v452 = vld [vmem:[#allocation7 + $0x908] sm:$0xff]
    %v453 = vld [vmem:[#allocation7 + $0x910] sm:$0xff]
    %v454 = vld [vmem:[#allocation7 + $0x918] sm:$0xff]
    %v455 = vld [vmem:[#allocation7 + $0x920] sm:$0xff]
    %v456 = vld [vmem:[#allocation7 + $0x928] sm:$0xff]
    %v457 = vld [vmem:[#allocation7 + $0x930] sm:$0xff]
    %v458 = vld [vmem:[#allocation7 + $0x938] sm:$0xff]
    %v459 = vld [vmem:[#allocation7 + $0x940] sm:$0xff]
    %v460 = vld [vmem:[#allocation7 + $0x948] sm:$0xff]
    %v461 = vld [vmem:[#allocation7 + $0x950] sm:$0xff]
    %v462 = vld [vmem:[#allocation7 + $0x958] sm:$0xff]
    %v463 = vld [vmem:[#allocation7 + $0x960] sm:$0xff]
    %v464 = vld [vmem:[#allocation7 + $0x968] sm:$0xff]
    %v465 = vld [vmem:[#allocation7 + $0x970] sm:$0xff]
    %v466 = vld [vmem:[#allocation7 + $0x978] sm:$0xff]
    %v467 = vld [vmem:[#allocation7 + $0x980] sm:$0xff]
    %v468 = vld [vmem:[#allocation7 + $0x988] sm:$0xff]
    %v469 = vld [vmem:[#allocation7 + $0x990] sm:$0xff]
    %v470 = vld [vmem:[#allocation7 + $0x998] sm:$0xff]
    %v471 = vld [vmem:[#allocation7 + $0x9a0] sm:$0xff]
    %v472 = vld [vmem:[#allocation7 + $0x9a8] sm:$0xff]
    %v473 = vld [vmem:[#allocation7 + $0x9b0] sm:$0xff]
    %v474 = vld [vmem:[#allocation7 + $0x9b8] sm:$0xff]
    %v475 = vld [vmem:[#allocation7 + $0x9c0] sm:$0xff]
    %v476 = vld [vmem:[#allocation7 + $0x9c8] sm:$0xff]
    %v477 = vld [vmem:[#allocation7 + $0x9d0] sm:$0xff]
    %v478 = vld [vmem:[#allocation7 + $0x9d8] sm:$0xff]
    %v479 = vld [vmem:[#allocation7 + $0x9e0] sm:$0xff]
    %v480 = vld [vmem:[#allocation7 + $0x9e8] sm:$0xff]
    %v481 = vld [vmem:[#allocation7 + $0x9f0] sm:$0xff]
    %v482 = vld [vmem:[#allocation7 + $0x9f8] sm:$0xff]
    %v483 = vld [vmem:[#allocation7 + $0xa00] sm:$0xff]
    %v484 = vld [vmem:[#allocation7 + $0xa08] sm:$0xff]
    %v485 = vld [vmem:[#allocation7 + $0xa10] sm:$0xff]
    %v486 = vld [vmem:[#allocation7 + $0xa18] sm:$0xff]
    %v487 = vld [vmem:[#allocation7 + $0xa20] sm:$0xff]
    %v488 = vld [vmem:[#allocation7 + $0xa28] sm:$0xff]
    %v489 = vld [vmem:[#allocation7 + $0xa30] sm:$0xff]
    %v490 = vld [vmem:[#allocation7 + $0xa38] sm:$0xff]
    %v491 = vld [vmem:[#allocation7 + $0xa40] sm:$0xff]
    %v492 = vld [vmem:[#allocation7 + $0xa48] sm:$0xff]
    %v493 = vld [vmem:[#allocation7 + $0xa50] sm:$0xff]
    %v494 = vld [vmem:[#allocation7 + $0xa58] sm:$0xff]
    %v495 = vld [vmem:[#allocation7 + $0xa60] sm:$0xff]
    %v496 = vld [vmem:[#allocation7 + $0xa68] sm:$0xff]
    %v497 = vld [vmem:[#allocation7 + $0xa70] sm:$0xff]
    %v498 = vld [vmem:[#allocation7 + $0xa78] sm:$0xff]
    %v499 = vld [vmem:[#allocation7 + $0xa80] sm:$0xff]
    %v500 = vld [vmem:[#allocation7 + $0xa88] sm:$0xff]
    %v501 = vld [vmem:[#allocation7 + $0xa90] sm:$0xff]
    %v502 = vld [vmem:[#allocation7 + $0xa98] sm:$0xff]
    %v503 = vld [vmem:[#allocation7 + $0xaa0] sm:$0xff]
    %v504 = vld [vmem:[#allocation7 + $0xaa8] sm:$0xff]
    %v505 = vld [vmem:[#allocation7 + $0xab0] sm:$0xff]
    %v506 = vld [vmem:[#allocation7 + $0xab8] sm:$0xff]
    %v507 = vld [vmem:[#allocation7 + $0xac0] sm:$0xff]
    %v508 = vld [vmem:[#allocation7 + $0xac8] sm:$0xff]
    %v509 = vld [vmem:[#allocation7 + $0xad0] sm:$0xff]
    %v510 = vld [vmem:[#allocation7 + $0xad8] sm:$0xff]
    %v511 = vld [vmem:[#allocation7 + $0xae0] sm:$0xff]
    %v512 = vld [vmem:[#allocation7 + $0xae8] sm:$0xff]
    %v513 = vld [vmem:[#allocation7 + $0xaf0] sm:$0xff]
    %v514 = vld [vmem:[#allocation7 + $0xaf8] sm:$0xff]
    %v515 = vld [vmem:[#allocation7 + $0xb00] sm:$0xff]
    %v516 = vld [vmem:[#allocation7 + $0xb08] sm:$0xff]
    %v517 = vld [vmem:[#allocation7 + $0xb10] sm:$0xff]
    %v518 = vld [vmem:[#allocation7 + $0xb18] sm:$0xff]
    %v519 = vld [vmem:[#allocation7 + $0xb20] sm:$0xff]
    %v520 = vld [vmem:[#allocation7 + $0xb28] sm:$0xff]
    %v521 = vld [vmem:[#allocation7 + $0xb30] sm:$0xff]
    %v522 = vld [vmem:[#allocation7 + $0xb38] sm:$0xff]
    %v523 = vld [vmem:[#allocation7 + $0xb40] sm:$0xff]
    %v524 = vld [vmem:[#allocation7 + $0xb48] sm:$0xff]
    %v525 = vld [vmem:[#allocation7 + $0xb50] sm:$0xff]
    %v526 = vld [vmem:[#allocation7 + $0xb58] sm:$0xff]
    %v527 = vld [vmem:[#allocation7 + $0xb60] sm:$0xff]
    %v528 = vld [vmem:[#allocation7 + $0xb68] sm:$0xff]
    %v529 = vld [vmem:[#allocation7 + $0xb70] sm:$0xff]
    %v530 = vld [vmem:[#allocation7 + $0xb78] sm:$0xff]
    %v531 = vld [vmem:[#allocation7 + $0xb80] sm:$0xff]
    %v532 = vld [vmem:[#allocation7 + $0xb88] sm:$0xff]
    %v533 = vld [vmem:[#allocation7 + $0xb90] sm:$0xff]
    %v534 = vld [vmem:[#allocation7 + $0xb98] sm:$0xff]
    %v535 = vld [vmem:[#allocation7 + $0xba0] sm:$0xff]
    %v536 = vld [vmem:[#allocation7 + $0xba8] sm:$0xff]
    %v537 = vld [vmem:[#allocation7 + $0xbb0] sm:$0xff]
    %v538 = vld [vmem:[#allocation7 + $0xbb8] sm:$0xff]
    %v539 = vld [vmem:[#allocation7 + $0xbc0] sm:$0xff]
    %v540 = vld [vmem:[#allocation7 + $0xbc8] sm:$0xff]
    %v541 = vld [vmem:[#allocation7 + $0xbd0] sm:$0xff]
    %v542 = vld [vmem:[#allocation7 + $0xbd8] sm:$0xff]
    %v543 = vld [vmem:[#allocation7 + $0xbe0] sm:$0xff]
    %v544 = vld [vmem:[#allocation7 + $0xbe8] sm:$0xff]
    %v545 = vld [vmem:[#allocation7 + $0xbf0] sm:$0xff]
    %v546 = vld [vmem:[#allocation7 + $0xbf8] sm:$0xff]
    %v547 = vld [vmem:[#allocation7 + $0xc00] sm:$0xff]
    %v548 = vld [vmem:[#allocation7 + $0xc08] sm:$0xff]
    %v549 = vld [vmem:[#allocation7 + $0xc10] sm:$0xff]
    %v550 = vld [vmem:[#allocation7 + $0xc18] sm:$0xff]
    %v551 = vld [vmem:[#allocation7 + $0xc20] sm:$0xff]
    %v552 = vld [vmem:[#allocation7 + $0xc28] sm:$0xff]
    %v553 = vld [vmem:[#allocation7 + $0xc30] sm:$0xff]
    %v554 = vld [vmem:[#allocation7 + $0xc38] sm:$0xff]
    %v555 = vld [vmem:[#allocation7 + $0xc40] sm:$0xff]
    %v556 = vld [vmem:[#allocation7 + $0xc48] sm:$0xff]
    %v557 = vld [vmem:[#allocation7 + $0xc50] sm:$0xff]
    %v558 = vld [vmem:[#allocation7 + $0xc58] sm:$0xff]
    %v559 = vld [vmem:[#allocation7 + $0xc60] sm:$0xff]
    %v560 = vld [vmem:[#allocation7 + $0xc68] sm:$0xff]
    %v561 = vld [vmem:[#allocation7 + $0xc70] sm:$0xff]
    %v562 = vld [vmem:[#allocation7 + $0xc78] sm:$0xff]
    %v563 = vld [vmem:[#allocation7 + $0xc80] sm:$0xff]
    %v564 = vld [vmem:[#allocation7 + $0xc88] sm:$0xff]
    %v565 = vld [vmem:[#allocation7 + $0xc90] sm:$0xff]
    %v566 = vld [vmem:[#allocation7 + $0xc98] sm:$0xff]
    %v567 = vld [vmem:[#allocation7 + $0xca0] sm:$0xff]
    %v568 = vld [vmem:[#allocation7 + $0xca8] sm:$0xff]
    %v569 = vld [vmem:[#allocation7 + $0xcb0] sm:$0xff]
    %v570 = vld [vmem:[#allocation7 + $0xcb8] sm:$0xff]
    %v571 = vld [vmem:[#allocation7 + $0xcc0] sm:$0xff]
    %v572 = vld [vmem:[#allocation7 + $0xcc8] sm:$0xff]
    %v573 = vld [vmem:[#allocation7 + $0xcd0] sm:$0xff]
    %v574 = vld [vmem:[#allocation7 + $0xcd8] sm:$0xff]
    %v575 = vld [vmem:[#allocation7 + $0xce0] sm:$0xff]
    %v576 = vld [vmem:[#allocation7 + $0xce8] sm:$0xff]
    %v577 = vld [vmem:[#allocation7 + $0xcf0] sm:$0xff]
    %v578 = vld [vmem:[#allocation7 + $0xcf8] sm:$0xff]
    %v579 = vld [vmem:[#allocation7 + $0xd00] sm:$0xff]
    %v580 = vld [vmem:[#allocation7 + $0xd08] sm:$0xff]
    %v581 = vld [vmem:[#allocation7 + $0xd10] sm:$0xff]
    %v582 = vld [vmem:[#allocation7 + $0xd18] sm:$0xff]
    %v583 = vld [vmem:[#allocation7 + $0xd20] sm:$0xff]
    %v584 = vld [vmem:[#allocation7 + $0xd28] sm:$0xff]
    %v585 = vld [vmem:[#allocation7 + $0xd30] sm:$0xff]
    %v586 = vld [vmem:[#allocation7 + $0xd38] sm:$0xff]
    %v587 = vld [vmem:[#allocation7 + $0xd40] sm:$0xff]
    %v588 = vld [vmem:[#allocation7 + $0xd48] sm:$0xff]
    %v589 = vld [vmem:[#allocation7 + $0xd50] sm:$0xff]
    %v590 = vld [vmem:[#allocation7 + $0xd58] sm:$0xff]
    %v591 = vld [vmem:[#allocation7 + $0xd60] sm:$0xff]
    %v592 = vld [vmem:[#allocation7 + $0xd68] sm:$0xff]
    %v593 = vld [vmem:[#allocation7 + $0xd70] sm:$0xff]
    %v594 = vld [vmem:[#allocation7 + $0xd78] sm:$0xff]
    %v595 = vld [vmem:[#allocation7 + $0xd80] sm:$0xff]
    %v596 = vld [vmem:[#allocation7 + $0xd88] sm:$0xff]
    %v597 = vld [vmem:[#allocation7 + $0xd90] sm:$0xff]
    %v598 = vld [vmem:[#allocation7 + $0xd98] sm:$0xff]
    %v599 = vld [vmem:[#allocation7 + $0xda0] sm:$0xff]
    %v600 = vld [vmem:[#allocation7 + $0xda8] sm:$0xff]
    %v601 = vld [vmem:[#allocation7 + $0xdb0] sm:$0xff]
    %v602 = vld [vmem:[#allocation7 + $0xdb8] sm:$0xff]
    %v603 = vld [vmem:[#allocation7 + $0xdc0] sm:$0xff]
    %v604 = vld [vmem:[#allocation7 + $0xdc8] sm:$0xff]
    %v605 = vld [vmem:[#allocation7 + $0xdd0] sm:$0xff]
    %v606 = vld [vmem:[#allocation7 + $0xdd8] sm:$0xff]
    %v607 = vld [vmem:[#allocation7 + $0xde0] sm:$0xff]
    %v608 = vld [vmem:[#allocation7 + $0xde8] sm:$0xff]
    %v609 = vld [vmem:[#allocation7 + $0xdf0] sm:$0xff]
    %v610 = vld [vmem:[#allocation7 + $0xdf8] sm:$0xff]
    %v611 = vld [vmem:[#allocation7 + $0xe00] sm:$0xff]
    %v612 = vld [vmem:[#allocation7 + $0xe08] sm:$0xff]
    %v613 = vld [vmem:[#allocation7 + $0xe10] sm:$0xff]
    %v614 = vld [vmem:[#allocation7 + $0xe18] sm:$0xff]
    %v615 = vld [vmem:[#allocation7 + $0xe20] sm:$0xff]
    %v616 = vld [vmem:[#allocation7 + $0xe28] sm:$0xff]
    %v617 = vld [vmem:[#allocation7 + $0xe30] sm:$0xff]
    %v618 = vld [vmem:[#allocation7 + $0xe38] sm:$0xff]
    %v619 = vld [vmem:[#allocation7 + $0xe40] sm:$0xff]
    %v620 = vld [vmem:[#allocation7 + $0xe48] sm:$0xff]
    %v621 = vld [vmem:[#allocation7 + $0xe50] sm:$0xff]
    %v622 = vld [vmem:[#allocation7 + $0xe58] sm:$0xff]
    %v623 = vld [vmem:[#allocation7 + $0xe60] sm:$0xff]
    %v624 = vld [vmem:[#allocation7 + $0xe68] sm:$0xff]
    %v625 = vld [vmem:[#allocation7 + $0xe70] sm:$0xff]
    %v626 = vld [vmem:[#allocation7 + $0xe78] sm:$0xff]
    %v627 = vld [vmem:[#allocation7 + $0xe80] sm:$0xff]
    %v628 = vld [vmem:[#allocation7 + $0xe88] sm:$0xff]
    %v629 = vld [vmem:[#allocation7 + $0xe90] sm:$0xff]
    %v630 = vld [vmem:[#allocation7 + $0xe98] sm:$0xff]
    %v631 = vld [vmem:[#allocation7 + $0xea0] sm:$0xff]
    %v632 = vld [vmem:[#allocation7 + $0xea8] sm:$0xff]
    %v633 = vld [vmem:[#allocation7 + $0xeb0] sm:$0xff]
    %v634 = vld [vmem:[#allocation7 + $0xeb8] sm:$0xff]
    %v635 = vld [vmem:[#allocation7 + $0xec0] sm:$0xff]
    %v636 = vld [vmem:[#allocation7 + $0xec8] sm:$0xff]
    %v637 = vld [vmem:[#allocation7 + $0xed0] sm:$0xff]
    %v638 = vld [vmem:[#allocation7 + $0xed8] sm:$0xff]
    %v639 = vld [vmem:[#allocation7 + $0xee0] sm:$0xff]
    %v640 = vld [vmem:[#allocation7 + $0xee8] sm:$0xff]
    %v641 = vld [vmem:[#allocation7 + $0xef0] sm:$0xff]
    %v642 = vld [vmem:[#allocation7 + $0xef8] sm:$0xff]
    %v643 = vld [vmem:[#allocation7 + $0xf00] sm:$0xff]
    %v644 = vld [vmem:[#allocation7 + $0xf08] sm:$0xff]
    %v645 = vld [vmem:[#allocation7 + $0xf10] sm:$0xff]
    %v646 = vld [vmem:[#allocation7 + $0xf18] sm:$0xff]
    %v647 = vld [vmem:[#allocation7 + $0xf20] sm:$0xff]
    %v648 = vld [vmem:[#allocation7 + $0xf28] sm:$0xff]
    %v649 = vld [vmem:[#allocation7 + $0xf30] sm:$0xff]
    %v650 = vld [vmem:[#allocation7 + $0xf38] sm:$0xff]
    %v651 = vld [vmem:[#allocation7 + $0xf40] sm:$0xff]
    %v652 = vld [vmem:[#allocation7 + $0xf48] sm:$0xff]
    %v653 = vld [vmem:[#allocation7 + $0xf50] sm:$0xff]
    %v654 = vld [vmem:[#allocation7 + $0xf58] sm:$0xff]
    %v655 = vld [vmem:[#allocation7 + $0xf60] sm:$0xff]
    %v656 = vld [vmem:[#allocation7 + $0xf68] sm:$0xff]
    %v657 = vld [vmem:[#allocation7 + $0xf70] sm:$0xff]
    %v658 = vld [vmem:[#allocation7 + $0xf78] sm:$0xff]
    %v659 = vld [vmem:[#allocation7 + $0xf80] sm:$0xff]
    %v660 = vld [vmem:[#allocation7 + $0xf88] sm:$0xff]
    %v661 = vld [vmem:[#allocation7 + $0xf90] sm:$0xff]
    %v662 = vld [vmem:[#allocation7 + $0xf98] sm:$0xff]
    %v663 = vld [vmem:[#allocation7 + $0xfa0] sm:$0xff]
    %v664 = vld [vmem:[#allocation7 + $0xfa8] sm:$0xff]
    %v665 = vld [vmem:[#allocation7 + $0xfb0] sm:$0xff]
    %v666 = vld [vmem:[#allocation7 + $0xfb8] sm:$0xff]
    %v667 = vld [vmem:[#allocation7 + $0xfc0] sm:$0xff]
    %v668 = vld [vmem:[#allocation7 + $0xfc8] sm:$0xff]
    %v669 = vld [vmem:[#allocation7 + $0xfd0] sm:$0xff]
    %v670 = vld [vmem:[#allocation7 + $0xfd8] sm:$0xff]
    %v671 = vld [vmem:[#allocation7 + $0xfe0] sm:$0xff]
    %v672 = vld [vmem:[#allocation7 + $0xfe8] sm:$0xff]
    %v673 = vld [vmem:[#allocation7 + $0xff0] sm:$0xff]
    %v674 = vld [vmem:[#allocation7 + $0xff8] sm:$0xff]
    %v675 = vld [vmem:[#allocation7 + $0x1000] sm:$0xff]
    %v676 = vld [vmem:[#allocation7 + $0x1008] sm:$0xff]
    %v677 = vld [vmem:[#allocation7 + $0x1010] sm:$0xff]
    %v678 = vld [vmem:[#allocation7 + $0x1018] sm:$0xff]
    %v679 = vld [vmem:[#allocation7 + $0x1020] sm:$0xff]
    %v680 = vld [vmem:[#allocation7 + $0x1028] sm:$0xff]
    %v681 = vld [vmem:[#allocation7 + $0x1030] sm:$0xff]
    %v682 = vld [vmem:[#allocation7 + $0x1038] sm:$0xff]
    %v683 = vld [vmem:[#allocation7 + $0x1040] sm:$0xff]
    %v684 = vld [vmem:[#allocation7 + $0x1048] sm:$0xff]
    %v685 = vld [vmem:[#allocation7 + $0x1050] sm:$0xff]
    %v686 = vld [vmem:[#allocation7 + $0x1058] sm:$0xff]
    %v687 = vld [vmem:[#allocation7 + $0x1060] sm:$0xff]
    %v688 = vld [vmem:[#allocation7 + $0x1068] sm:$0xff]
    %v689 = vld [vmem:[#allocation7 + $0x1070] sm:$0xff]
    %v690 = vld [vmem:[#allocation7 + $0x1078] sm:$0xff]
    %v691 = vld [vmem:[#allocation7 + $0x1080] sm:$0xff]
    %v692 = vld [vmem:[#allocation7 + $0x1088] sm:$0xff]
    %v693 = vld [vmem:[#allocation7 + $0x1090] sm:$0xff]
    %v694 = vld [vmem:[#allocation7 + $0x1098] sm:$0xff]
    %v695 = vld [vmem:[#allocation7 + $0x10a0] sm:$0xff]
    %v696 = vld [vmem:[#allocation7 + $0x10a8] sm:$0xff]
    %v697 = vld [vmem:[#allocation7 + $0x10b0] sm:$0xff]
    %v698 = vld [vmem:[#allocation7 + $0x10b8] sm:$0xff]
    %v699 = vld [vmem:[#allocation7 + $0x10c0] sm:$0xff]
    %v700 = vld [vmem:[#allocation7 + $0x10c8] sm:$0xff]
    %v701 = vld [vmem:[#allocation7 + $0x10d0] sm:$0xff]
    %v702 = vld [vmem:[#allocation7 + $0x10d8] sm:$0xff]
    %v703 = vld [vmem:[#allocation7 + $0x10e0] sm:$0xff]
    %v704 = vld [vmem:[#allocation7 + $0x10e8] sm:$0xff]
    %v705 = vld [vmem:[#allocation7 + $0x10f0] sm:$0xff]
    %v706 = vld [vmem:[#allocation7 + $0x10f8] sm:$0xff]
    %v707 = vld [vmem:[#allocation7 + $0x1100] sm:$0xff]
    %v708 = vld [vmem:[#allocation7 + $0x1108] sm:$0xff]
    %v709 = vld [vmem:[#allocation7 + $0x1110] sm:$0xff]
    %v710 = vld [vmem:[#allocation7 + $0x1118] sm:$0xff]
    %v711 = vld [vmem:[#allocation7 + $0x1120] sm:$0xff]
    %v712 = vld [vmem:[#allocation7 + $0x1128] sm:$0xff]
    %v713 = vld [vmem:[#allocation7 + $0x1130] sm:$0xff]
    %v714 = vld [vmem:[#allocation7 + $0x1138] sm:$0xff]
    %v715 = vld [vmem:[#allocation7 + $0x1140] sm:$0xff]
    %v716 = vld [vmem:[#allocation7 + $0x1148] sm:$0xff]
    %v717 = vld [vmem:[#allocation7 + $0x1150] sm:$0xff]
    %v718 = vld [vmem:[#allocation7 + $0x1158] sm:$0xff]
    %v719 = vld [vmem:[#allocation7 + $0x1160] sm:$0xff]
    %v720 = vld [vmem:[#allocation7 + $0x1168] sm:$0xff]
    %v721 = vld [vmem:[#allocation7 + $0x1170] sm:$0xff]
    %v722 = vld [vmem:[#allocation7 + $0x1178] sm:$0xff]
    %v723 = vld [vmem:[#allocation7 + $0x1180] sm:$0xff]
    %v724 = vld [vmem:[#allocation7 + $0x1188] sm:$0xff]
    %v725 = vld [vmem:[#allocation7 + $0x1190] sm:$0xff]
    %v726 = vld [vmem:[#allocation7 + $0x1198] sm:$0xff]
    %v727 = vld [vmem:[#allocation7 + $0x11a0] sm:$0xff]
    %v728 = vld [vmem:[#allocation7 + $0x11a8] sm:$0xff]
    %v729 = vld [vmem:[#allocation7 + $0x11b0] sm:$0xff]
    %v730 = vld [vmem:[#allocation7 + $0x11b8] sm:$0xff]
    %v731 = vld [vmem:[#allocation7 + $0x11c0] sm:$0xff]
    %v732 = vld [vmem:[#allocation7 + $0x11c8] sm:$0xff]
    %v733 = vld [vmem:[#allocation7 + $0x11d0] sm:$0xff]
    %v734 = vld [vmem:[#allocation7 + $0x11d8] sm:$0xff]
    %v735 = vld [vmem:[#allocation7 + $0x11e0] sm:$0xff]
    %v736 = vld [vmem:[#allocation7 + $0x11e8] sm:$0xff]
    %v737 = vld [vmem:[#allocation7 + $0x11f0] sm:$0xff]
    %v738 = vld [vmem:[#allocation7 + $0x11f8] sm:$0xff]
    %v739 = vld [vmem:[#allocation7 + $0x1200] sm:$0xff]
    %v740 = vld [vmem:[#allocation7 + $0x1208] sm:$0xff]
    %v741 = vld [vmem:[#allocation7 + $0x1210] sm:$0xff]
    %v742 = vld [vmem:[#allocation7 + $0x1218] sm:$0xff]
    %v743 = vld [vmem:[#allocation7 + $0x1220] sm:$0xff]
    %v744 = vld [vmem:[#allocation7 + $0x1228] sm:$0xff]
    %v745 = vld [vmem:[#allocation7 + $0x1230] sm:$0xff]
    %v746 = vld [vmem:[#allocation7 + $0x1238] sm:$0xff]
    %v747 = vld [vmem:[#allocation7 + $0x1240] sm:$0xff]
    %v748 = vld [vmem:[#allocation7 + $0x1248] sm:$0xff]
    %v749 = vld [vmem:[#allocation7 + $0x1250] sm:$0xff]
    %v750 = vld [vmem:[#allocation7 + $0x1258] sm:$0xff]
    %v751 = vld [vmem:[#allocation7 + $0x1260] sm:$0xff]
    %v752 = vld [vmem:[#allocation7 + $0x1268] sm:$0xff]
    %v753 = vld [vmem:[#allocation7 + $0x1270] sm:$0xff]
    %v754 = vld [vmem:[#allocation7 + $0x1278] sm:$0xff]
    %v755 = vld [vmem:[#allocation7 + $0x1280] sm:$0xff]
    %v756 = vld [vmem:[#allocation7 + $0x1288] sm:$0xff]
    %v757 = vld [vmem:[#allocation7 + $0x1290] sm:$0xff]
    %v758 = vld [vmem:[#allocation7 + $0x1298] sm:$0xff]
    %v759 = vld [vmem:[#allocation7 + $0x12a0] sm:$0xff]
    %v760 = vld [vmem:[#allocation7 + $0x12a8] sm:$0xff]
    %v761 = vld [vmem:[#allocation7 + $0x12b0] sm:$0xff]
    %v762 = vld [vmem:[#allocation7 + $0x12b8] sm:$0xff]
    %v763 = vld [vmem:[#allocation7 + $0x12c0] sm:$0xff]
    %v764 = vld [vmem:[#allocation7 + $0x12c8] sm:$0xff]
    %v765 = vld [vmem:[#allocation7 + $0x12d0] sm:$0xff]
    %v766 = vld [vmem:[#allocation7 + $0x12d8] sm:$0xff]
    %v767 = vld [vmem:[#allocation7 + $0x12e0] sm:$0xff]
    %v768 = vld [vmem:[#allocation7 + $0x12e8] sm:$0xff]
    %v769 = vld [vmem:[#allocation7 + $0x12f0] sm:$0xff]
    %v770 = vld [vmem:[#allocation7 + $0x12f8] sm:$0xff]
    %v771 = vld [vmem:[#allocation7 + $0x1300] sm:$0xff]
    %v772 = vld [vmem:[#allocation7 + $0x1308] sm:$0xff]
    %v773 = vld [vmem:[#allocation7 + $0x1310] sm:$0xff]
    %v774 = vld [vmem:[#allocation7 + $0x1318] sm:$0xff]
    %v775 = vld [vmem:[#allocation7 + $0x1320] sm:$0xff]
    %v776 = vld [vmem:[#allocation7 + $0x1328] sm:$0xff]
    %v777 = vld [vmem:[#allocation7 + $0x1330] sm:$0xff]
    %v778 = vld [vmem:[#allocation7 + $0x1338] sm:$0xff]
    %v779 = vld [vmem:[#allocation7 + $0x1340] sm:$0xff]
    %v780 = vld [vmem:[#allocation7 + $0x1348] sm:$0xff]
    %v781 = vld [vmem:[#allocation7 + $0x1350] sm:$0xff]
    %v782 = vld [vmem:[#allocation7 + $0x1358] sm:$0xff]
    %v783 = vld [vmem:[#allocation7 + $0x1360] sm:$0xff]
    %v784 = vld [vmem:[#allocation7 + $0x1368] sm:$0xff]
    %v785 = vld [vmem:[#allocation7 + $0x1370] sm:$0xff]
    %v786 = vld [vmem:[#allocation7 + $0x1378] sm:$0xff]
    %v787 = vld [vmem:[#allocation7 + $0x1380] sm:$0xff]
    %v788 = vld [vmem:[#allocation7 + $0x1388] sm:$0xff]
    %v789 = vld [vmem:[#allocation7 + $0x1390] sm:$0xff]
    %v790 = vld [vmem:[#allocation7 + $0x1398] sm:$0xff]
    %v791 = vld [vmem:[#allocation7 + $0x13a0] sm:$0xff]
    %v792 = vld [vmem:[#allocation7 + $0x13a8] sm:$0xff]
    %v793 = vld [vmem:[#allocation7 + $0x13b0] sm:$0xff]
    %v794 = vld [vmem:[#allocation7 + $0x13b8] sm:$0xff]
    %v795 = vld [vmem:[#allocation7 + $0x13c0] sm:$0xff]
    %v796 = vld [vmem:[#allocation7 + $0x13c8] sm:$0xff]
    %v797 = vld [vmem:[#allocation7 + $0x13d0] sm:$0xff]
    %v798 = vld [vmem:[#allocation7 + $0x13d8] sm:$0xff]
    %v799 = vld [vmem:[#allocation7 + $0x13e0] sm:$0xff]
    %v800 = vld [vmem:[#allocation7 + $0x13e8] sm:$0xff]
    %v801 = vld [vmem:[#allocation7 + $0x13f0] sm:$0xff]
    %v802 = vld [vmem:[#allocation7 + $0x13f8] sm:$0xff]
    %v803 = vld [vmem:[#allocation7 + $0x1400] sm:$0xff]
    %v804 = vld [vmem:[#allocation7 + $0x1408] sm:$0xff]
    %v805 = vld [vmem:[#allocation7 + $0x1410] sm:$0xff]
    %v806 = vld [vmem:[#allocation7 + $0x1418] sm:$0xff]
    %v807 = vld [vmem:[#allocation7 + $0x1420] sm:$0xff]
    %v808 = vld [vmem:[#allocation7 + $0x1428] sm:$0xff]
    %v809 = vld [vmem:[#allocation7 + $0x1430] sm:$0xff]
    %v810 = vld [vmem:[#allocation7 + $0x1438] sm:$0xff]
    %v811 = vld [vmem:[#allocation7 + $0x1440] sm:$0xff]
    %v812 = vld [vmem:[#allocation7 + $0x1448] sm:$0xff]
    %v813 = vld [vmem:[#allocation7 + $0x1450] sm:$0xff]
    %v814 = vld [vmem:[#allocation7 + $0x1458] sm:$0xff]
    %v815 = vld [vmem:[#allocation7 + $0x1460] sm:$0xff]
    %v816 = vld [vmem:[#allocation7 + $0x1468] sm:$0xff]
    %v817 = vld [vmem:[#allocation7 + $0x1470] sm:$0xff]
    %v818 = vld [vmem:[#allocation7 + $0x1478] sm:$0xff]
    %v819 = vld [vmem:[#allocation7 + $0x1480] sm:$0xff]
    %v820 = vld [vmem:[#allocation7 + $0x1488] sm:$0xff]
    %v821 = vld [vmem:[#allocation7 + $0x1490] sm:$0xff]
    %v822 = vld [vmem:[#allocation7 + $0x1498] sm:$0xff]
    %v823 = vld [vmem:[#allocation7 + $0x14a0] sm:$0xff]
    %v824 = vld [vmem:[#allocation7 + $0x14a8] sm:$0xff]
    %v825 = vld [vmem:[#allocation7 + $0x14b0] sm:$0xff]
    %v826 = vld [vmem:[#allocation7 + $0x14b8] sm:$0xff]
    %v827 = vld [vmem:[#allocation7 + $0x14c0] sm:$0xff]
    %v828 = vld [vmem:[#allocation7 + $0x14c8] sm:$0xff]
    %v829 = vld [vmem:[#allocation7 + $0x14d0] sm:$0xff]
    %v830 = vld [vmem:[#allocation7 + $0x14d8] sm:$0xff]
    %v831 = vld [vmem:[#allocation7 + $0x14e0] sm:$0xff]
    %v832 = vld [vmem:[#allocation7 + $0x14e8] sm:$0xff]
    %v833 = vld [vmem:[#allocation7 + $0x14f0] sm:$0xff]
    %v834 = vld [vmem:[#allocation7 + $0x14f8] sm:$0xff]
    %v835 = vld [vmem:[#allocation7 + $0x1500] sm:$0xff]
    %v836 = vld [vmem:[#allocation7 + $0x1508] sm:$0xff]
    %v837 = vld [vmem:[#allocation7 + $0x1510] sm:$0xff]
    %v838 = vld [vmem:[#allocation7 + $0x1518] sm:$0xff]
    %v839 = vld [vmem:[#allocation7 + $0x1520] sm:$0xff]
    %v840 = vld [vmem:[#allocation7 + $0x1528] sm:$0xff]
    %v841 = vld [vmem:[#allocation7 + $0x1530] sm:$0xff]
    %v842 = vld [vmem:[#allocation7 + $0x1538] sm:$0xff]
    %v843 = vld [vmem:[#allocation7 + $0x1540] sm:$0xff]
    %v844 = vld [vmem:[#allocation7 + $0x1548] sm:$0xff]
    %v845 = vld [vmem:[#allocation7 + $0x1550] sm:$0xff]
    %v846 = vld [vmem:[#allocation7 + $0x1558] sm:$0xff]
    %v847 = vld [vmem:[#allocation7 + $0x1560] sm:$0xff]
    %v848 = vld [vmem:[#allocation7 + $0x1568] sm:$0xff]
    %v849 = vld [vmem:[#allocation7 + $0x1570] sm:$0xff]
    %v850 = vld [vmem:[#allocation7 + $0x1578] sm:$0xff]
    %v851 = vld [vmem:[#allocation7 + $0x1580] sm:$0xff]
    %v852 = vld [vmem:[#allocation7 + $0x1588] sm:$0xff]
    %v853 = vld [vmem:[#allocation7 + $0x1590] sm:$0xff]
    %v854 = vld [vmem:[#allocation7 + $0x1598] sm:$0xff]
    %v855 = vld [vmem:[#allocation7 + $0x15a0] sm:$0xff]
    %v856 = vld [vmem:[#allocation7 + $0x15a8] sm:$0xff]
    %v857 = vld [vmem:[#allocation7 + $0x15b0] sm:$0xff]
    %v858 = vld [vmem:[#allocation7 + $0x15b8] sm:$0xff]
    %v859 = vld [vmem:[#allocation7 + $0x15c0] sm:$0xff]
    %v860 = vld [vmem:[#allocation7 + $0x15c8] sm:$0xff]
    %v861 = vld [vmem:[#allocation7 + $0x15d0] sm:$0xff]
    %v862 = vld [vmem:[#allocation7 + $0x15d8] sm:$0xff]
    %v863 = vld [vmem:[#allocation7 + $0x15e0] sm:$0xff]
    %v864 = vld [vmem:[#allocation7 + $0x15e8] sm:$0xff]
    %v865 = vld [vmem:[#allocation7 + $0x15f0] sm:$0xff]
    %v866 = vld [vmem:[#allocation7 + $0x15f8] sm:$0xff]
    %v867 = vld [vmem:[#allocation7 + $0x1600] sm:$0xff]
    %v868 = vld [vmem:[#allocation7 + $0x1608] sm:$0xff]
    %v869 = vld [vmem:[#allocation7 + $0x1610] sm:$0xff]
    %v870 = vld [vmem:[#allocation7 + $0x1618] sm:$0xff]
    %v871 = vld [vmem:[#allocation7 + $0x1620] sm:$0xff]
    %v872 = vld [vmem:[#allocation7 + $0x1628] sm:$0xff]
    %v873 = vld [vmem:[#allocation7 + $0x1630] sm:$0xff]
    %v874 = vld [vmem:[#allocation7 + $0x1638] sm:$0xff]
    %v875 = vld [vmem:[#allocation7 + $0x1640] sm:$0xff]
    %v876 = vld [vmem:[#allocation7 + $0x1648] sm:$0xff]
    %v877 = vld [vmem:[#allocation7 + $0x1650] sm:$0xff]
    %v878 = vld [vmem:[#allocation7 + $0x1658] sm:$0xff]
    %v879 = vld [vmem:[#allocation7 + $0x1660] sm:$0xff]
    %v880 = vld [vmem:[#allocation7 + $0x1668] sm:$0xff]
    %v881 = vld [vmem:[#allocation7 + $0x1670] sm:$0xff]
    %v882 = vld [vmem:[#allocation7 + $0x1678] sm:$0xff]
    %v883 = vld [vmem:[#allocation7 + $0x1680] sm:$0xff]
    %v884 = vld [vmem:[#allocation7 + $0x1688] sm:$0xff]
    %v885 = vld [vmem:[#allocation7 + $0x1690] sm:$0xff]
    %v886 = vld [vmem:[#allocation7 + $0x1698] sm:$0xff]
    %v887 = vld [vmem:[#allocation7 + $0x16a0] sm:$0xff]
    %v888 = vld [vmem:[#allocation7 + $0x16a8] sm:$0xff]
    %v889 = vld [vmem:[#allocation7 + $0x16b0] sm:$0xff]
    %v890 = vld [vmem:[#allocation7 + $0x16b8] sm:$0xff]
    %v891 = vld [vmem:[#allocation7 + $0x16c0] sm:$0xff]
    %v892 = vld [vmem:[#allocation7 + $0x16c8] sm:$0xff]
    %v893 = vld [vmem:[#allocation7 + $0x16d0] sm:$0xff]
    %v894 = vld [vmem:[#allocation7 + $0x16d8] sm:$0xff]
    %v895 = vld [vmem:[#allocation7 + $0x16e0] sm:$0xff]
    %v896 = vld [vmem:[#allocation7 + $0x16e8] sm:$0xff]
    %v897 = vld [vmem:[#allocation7 + $0x16f0] sm:$0xff]
    %v898 = vld [vmem:[#allocation7 + $0x16f8] sm:$0xff]
    %v899 = vld [vmem:[#allocation7 + $0x1700] sm:$0xff]
    %v900 = vld [vmem:[#allocation7 + $0x1708] sm:$0xff]
    %v901 = vld [vmem:[#allocation7 + $0x1710] sm:$0xff]
    %v902 = vld [vmem:[#allocation7 + $0x1718] sm:$0xff]
    %v903 = vld [vmem:[#allocation7 + $0x1720] sm:$0xff]
    %v904 = vld [vmem:[#allocation7 + $0x1728] sm:$0xff]
    %v905 = vld [vmem:[#allocation7 + $0x1730] sm:$0xff]
    %v906 = vld [vmem:[#allocation7 + $0x1738] sm:$0xff]
    %v907 = vld [vmem:[#allocation7 + $0x1740] sm:$0xff]
    %v908 = vld [vmem:[#allocation7 + $0x1748] sm:$0xff]
    %v909 = vld [vmem:[#allocation7 + $0x1750] sm:$0xff]
    %v910 = vld [vmem:[#allocation7 + $0x1758] sm:$0xff]
    %v911 = vld [vmem:[#allocation7 + $0x1760] sm:$0xff]
    %v912 = vld [vmem:[#allocation7 + $0x1768] sm:$0xff]
    %v913 = vld [vmem:[#allocation7 + $0x1770] sm:$0xff]
    %v914 = vld [vmem:[#allocation7 + $0x1778] sm:$0xff]
    %v915 = vld [vmem:[#allocation7 + $0x1780] sm:$0xff]
    %v916 = vld [vmem:[#allocation7 + $0x1788] sm:$0xff]
    %v917 = vld [vmem:[#allocation7 + $0x1790] sm:$0xff]
    %v918 = vld [vmem:[#allocation7 + $0x1798] sm:$0xff]
    %v919 = vld [vmem:[#allocation7 + $0x17a0] sm:$0xff]
    %v920 = vld [vmem:[#allocation7 + $0x17a8] sm:$0xff]
    %v921 = vld [vmem:[#allocation7 + $0x17b0] sm:$0xff]
    %v922 = vld [vmem:[#allocation7 + $0x17b8] sm:$0xff]
    %v923 = vld [vmem:[#allocation7 + $0x17c0] sm:$0xff]
    %v924 = vld [vmem:[#allocation7 + $0x17c8] sm:$0xff]
    %v925 = vld [vmem:[#allocation7 + $0x17d0] sm:$0xff]
    %v926 = vld [vmem:[#allocation7 + $0x17d8] sm:$0xff]
    %v927 = vld [vmem:[#allocation7 + $0x17e0] sm:$0xff]
    %v928 = vld [vmem:[#allocation7 + $0x17e8] sm:$0xff]
    %v929 = vld [vmem:[#allocation7 + $0x17f0] sm:$0xff]
    %v930 = vld [vmem:[#allocation7 + $0x17f8] sm:$0xff]
    %v931 = vld [vmem:[#allocation7 + $0x1800] sm:$0xff]
    %v932 = vld [vmem:[#allocation7 + $0x1808] sm:$0xff]
    %v933 = vld [vmem:[#allocation7 + $0x1810] sm:$0xff]
    %v934 = vld [vmem:[#allocation7 + $0x1818] sm:$0xff]
    %v935 = vld [vmem:[#allocation7 + $0x1820] sm:$0xff]
    %v936 = vld [vmem:[#allocation7 + $0x1828] sm:$0xff]
    %v937 = vld [vmem:[#allocation7 + $0x1830] sm:$0xff]
    %v938 = vld [vmem:[#allocation7 + $0x1838] sm:$0xff]
    %v939 = vld [vmem:[#allocation7 + $0x1840] sm:$0xff]
    %v940 = vld [vmem:[#allocation7 + $0x1848] sm:$0xff]
    %v941 = vld [vmem:[#allocation7 + $0x1850] sm:$0xff]
    %v942 = vld [vmem:[#allocation7 + $0x1858] sm:$0xff]
    %v943 = vld [vmem:[#allocation7 + $0x1860] sm:$0xff]
    %v944 = vld [vmem:[#allocation7 + $0x1868] sm:$0xff]
    %v945 = vld [vmem:[#allocation7 + $0x1870] sm:$0xff]
    %v946 = vld [vmem:[#allocation7 + $0x1878] sm:$0xff]
    %v947 = vld [vmem:[#allocation7 + $0x1880] sm:$0xff]
    %v948 = vld [vmem:[#allocation7 + $0x1888] sm:$0xff]
    %v949 = vld [vmem:[#allocation7 + $0x1890] sm:$0xff]
    %v950 = vld [vmem:[#allocation7 + $0x1898] sm:$0xff]
    %v951 = vld [vmem:[#allocation7 + $0x18a0] sm:$0xff]
    %v952 = vld [vmem:[#allocation7 + $0x18a8] sm:$0xff]
    %v953 = vld [vmem:[#allocation7 + $0x18b0] sm:$0xff]
    %v954 = vld [vmem:[#allocation7 + $0x18b8] sm:$0xff]
    %v955 = vld [vmem:[#allocation7 + $0x18c0] sm:$0xff]
    %v956 = vld [vmem:[#allocation7 + $0x18c8] sm:$0xff]
    %v957 = vld [vmem:[#allocation7 + $0x18d0] sm:$0xff]
    %v958 = vld [vmem:[#allocation7 + $0x18d8] sm:$0xff]
    %v959 = vld [vmem:[#allocation7 + $0x18e0] sm:$0xff]
    %v960 = vld [vmem:[#allocation7 + $0x18e8] sm:$0xff]
    %v961 = vld [vmem:[#allocation7 + $0x18f0] sm:$0xff]
    %v962 = vld [vmem:[#allocation7 + $0x18f8] sm:$0xff]
    %v963 = vld [vmem:[#allocation7 + $0x1900] sm:$0xff]
    %v964 = vld [vmem:[#allocation7 + $0x1908] sm:$0xff]
    %v965 = vld [vmem:[#allocation7 + $0x1910] sm:$0xff]
    %v966 = vld [vmem:[#allocation7 + $0x1918] sm:$0xff]
    %v967 = vld [vmem:[#allocation7 + $0x1920] sm:$0xff]
    %v968 = vld [vmem:[#allocation7 + $0x1928] sm:$0xff]
    %v969 = vld [vmem:[#allocation7 + $0x1930] sm:$0xff]
    %v970 = vld [vmem:[#allocation7 + $0x1938] sm:$0xff]
    %v971 = vld [vmem:[#allocation7 + $0x1940] sm:$0xff]
    %v972 = vld [vmem:[#allocation7 + $0x1948] sm:$0xff]
    %v973 = vld [vmem:[#allocation7 + $0x1950] sm:$0xff]
    %v974 = vld [vmem:[#allocation7 + $0x1958] sm:$0xff]
    %v975 = vld [vmem:[#allocation7 + $0x1960] sm:$0xff]
    %v976 = vld [vmem:[#allocation7 + $0x1968] sm:$0xff]
    %v977 = vld [vmem:[#allocation7 + $0x1970] sm:$0xff]
    %v978 = vld [vmem:[#allocation7 + $0x1978] sm:$0xff]
    %v979 = vld [vmem:[#allocation7 + $0x1980] sm:$0xff]
    %v980 = vld [vmem:[#allocation7 + $0x1988] sm:$0xff]
    %v981 = vld [vmem:[#allocation7 + $0x1990] sm:$0xff]
    %v982 = vld [vmem:[#allocation7 + $0x1998] sm:$0xff]
    %v983 = vld [vmem:[#allocation7 + $0x19a0] sm:$0xff]
    %v984 = vld [vmem:[#allocation7 + $0x19a8] sm:$0xff]
    %v985 = vld [vmem:[#allocation7 + $0x19b0] sm:$0xff]
    %v986 = vld [vmem:[#allocation7 + $0x19b8] sm:$0xff]
    %v987 = vld [vmem:[#allocation7 + $0x19c0] sm:$0xff]
    %v988 = vld [vmem:[#allocation7 + $0x19c8] sm:$0xff]
    %v989 = vld [vmem:[#allocation7 + $0x19d0] sm:$0xff]
    %v990 = vld [vmem:[#allocation7 + $0x19d8] sm:$0xff]
    %v991 = vld [vmem:[#allocation7 + $0x19e0] sm:$0xff]
    %v992 = vld [vmem:[#allocation7 + $0x19e8] sm:$0xff]
    %v993 = vld [vmem:[#allocation7 + $0x19f0] sm:$0xff]
    %v994 = vld [vmem:[#allocation7 + $0x19f8] sm:$0xff]
    %v995 = vld [vmem:[#allocation7 + $0x1a00] sm:$0xff]
    %v996 = vld [vmem:[#allocation7 + $0x1a08] sm:$0xff]
    %v997 = vld [vmem:[#allocation7 + $0x1a10] sm:$0xff]
    %v998 = vld [vmem:[#allocation7 + $0x1a18] sm:$0xff]
    %v999 = vld [vmem:[#allocation7 + $0x1a20] sm:$0xff]
    %v1000 = vld [vmem:[#allocation7 + $0x1a28] sm:$0xff]
    %v1001 = vld [vmem:[#allocation7 + $0x1a30] sm:$0xff]
    %v1002 = vld [vmem:[#allocation7 + $0x1a38] sm:$0xff]
    %v1003 = vld [vmem:[#allocation7 + $0x1a40] sm:$0xff]
    %v1004 = vld [vmem:[#allocation7 + $0x1a48] sm:$0xff]
    %v1005 = vld [vmem:[#allocation7 + $0x1a50] sm:$0xff]
    %v1006 = vld [vmem:[#allocation7 + $0x1a58] sm:$0xff]
    %v1007 = vld [vmem:[#allocation7 + $0x1a60] sm:$0xff]
    %v1008 = vld [vmem:[#allocation7 + $0x1a68] sm:$0xff]
    %v1009 = vld [vmem:[#allocation7 + $0x1a70] sm:$0xff]
    %v1010 = vld [vmem:[#allocation7 + $0x1a78] sm:$0xff]
    %v1011 = vld [vmem:[#allocation7 + $0x1a80] sm:$0xff]
    %v1012 = vld [vmem:[#allocation7 + $0x1a88] sm:$0xff]
    %v1013 = vld [vmem:[#allocation7 + $0x1a90] sm:$0xff]
    %v1014 = vld [vmem:[#allocation7 + $0x1a98] sm:$0xff]
    %v1015 = vld [vmem:[#allocation7 + $0x1aa0] sm:$0xff]
    %v1016 = vld [vmem:[#allocation7 + $0x1aa8] sm:$0xff]
    %v1017 = vld [vmem:[#allocation7 + $0x1ab0] sm:$0xff]
    %v1018 = vld [vmem:[#allocation7 + $0x1ab8] sm:$0xff]
    %v1019 = vld [vmem:[#allocation7 + $0x1ac0] sm:$0xff]
    %v1020 = vld [vmem:[#allocation7 + $0x1ac8] sm:$0xff]
    %v1021 = vld [vmem:[#allocation7 + $0x1ad0] sm:$0xff]
    %v1022 = vld [vmem:[#allocation7 + $0x1ad8] sm:$0xff]
    %v1023 = vld [vmem:[#allocation7 + $0x1ae0] sm:$0xff]
    %v1024 = vld [vmem:[#allocation7 + $0x1ae8] sm:$0xff]
    %v1025 = vld [vmem:[#allocation7 + $0x1af0] sm:$0xff]
    %v1026 = vld [vmem:[#allocation7 + $0x1af8] sm:$0xff]
    %v1027 = vld [vmem:[#allocation7 + $0x1b00] sm:$0xff]
    %v1028 = vld [vmem:[#allocation7 + $0x1b08] sm:$0xff]
    %v1029 = vld [vmem:[#allocation7 + $0x1b10] sm:$0xff]
    %v1030 = vld [vmem:[#allocation7 + $0x1b18] sm:$0xff]
    %v1031 = vld [vmem:[#allocation7 + $0x1b20] sm:$0xff]
    %v1032 = vld [vmem:[#allocation7 + $0x1b28] sm:$0xff]
    %v1033 = vld [vmem:[#allocation7 + $0x1b30] sm:$0xff]
    %v1034 = vld [vmem:[#allocation7 + $0x1b38] sm:$0xff]
    %v1035 = vld [vmem:[#allocation7 + $0x1b40] sm:$0xff]
    %v1036 = vld [vmem:[#allocation7 + $0x1b48] sm:$0xff]
    %v1037 = vld [vmem:[#allocation7 + $0x1b50] sm:$0xff]
    %v1038 = vld [vmem:[#allocation7 + $0x1b58] sm:$0xff]
    %v1039 = vld [vmem:[#allocation7 + $0x1b60] sm:$0xff]
    %v1040 = vld [vmem:[#allocation7 + $0x1b68] sm:$0xff]
    %v1041 = vld [vmem:[#allocation7 + $0x1b70] sm:$0xff]
    %v1042 = vld [vmem:[#allocation7 + $0x1b78] sm:$0xff]
    %v1043 = vld [vmem:[#allocation7 + $0x1b80] sm:$0xff]
    %v1044 = vld [vmem:[#allocation7 + $0x1b88] sm:$0xff]
    %v1045 = vld [vmem:[#allocation7 + $0x1b90] sm:$0xff]
    %v1046 = vld [vmem:[#allocation7 + $0x1b98] sm:$0xff]
    %v1047 = vld [vmem:[#allocation7 + $0x1ba0] sm:$0xff]
    %v1048 = vld [vmem:[#allocation7 + $0x1ba8] sm:$0xff]
    %v1049 = vld [vmem:[#allocation7 + $0x1bb0] sm:$0xff]
    %v1050 = vld [vmem:[#allocation7 + $0x1bb8] sm:$0xff]
    %v1051 = vld [vmem:[#allocation7 + $0x1bc0] sm:$0xff]
    %v1052 = vld [vmem:[#allocation7 + $0x1bc8] sm:$0xff]
    %v1053 = vld [vmem:[#allocation7 + $0x1bd0] sm:$0xff]
    %v1054 = vld [vmem:[#allocation7 + $0x1bd8] sm:$0xff]
    %v1055 = vld [vmem:[#allocation7 + $0x1be0] sm:$0xff]
    %v1056 = vld [vmem:[#allocation7 + $0x1be8] sm:$0xff]
    %v1057 = vld [vmem:[#allocation7 + $0x1bf0] sm:$0xff]
    %v1058 = vld [vmem:[#allocation7 + $0x1bf8] sm:$0xff]
    %v1059 = vld [vmem:[#allocation7 + $0x1c00] sm:$0xff]
    %v1060 = vld [vmem:[#allocation7 + $0x1c08] sm:$0xff]
    %v1061 = vld [vmem:[#allocation7 + $0x1c10] sm:$0xff]
    %v1062 = vld [vmem:[#allocation7 + $0x1c18] sm:$0xff]
    %v1063 = vld [vmem:[#allocation7 + $0x1c20] sm:$0xff]
    %v1064 = vld [vmem:[#allocation7 + $0x1c28] sm:$0xff]
    %v1065 = vld [vmem:[#allocation7 + $0x1c30] sm:$0xff]
    %v1066 = vld [vmem:[#allocation7 + $0x1c38] sm:$0xff]
    %v1067 = vld [vmem:[#allocation7 + $0x1c40] sm:$0xff]
    %v1068 = vld [vmem:[#allocation7 + $0x1c48] sm:$0xff]
    %v1069 = vld [vmem:[#allocation7 + $0x1c50] sm:$0xff]
    %v1070 = vld [vmem:[#allocation7 + $0x1c58] sm:$0xff]
    %v1071 = vld [vmem:[#allocation7 + $0x1c60] sm:$0xff]
    %v1072 = vld [vmem:[#allocation7 + $0x1c68] sm:$0xff]
    %v1073 = vld [vmem:[#allocation7 + $0x1c70] sm:$0xff]
    %v1074 = vld [vmem:[#allocation7 + $0x1c78] sm:$0xff]
    %v1075 = vld [vmem:[#allocation7 + $0x1c80] sm:$0xff]
    %v1076 = vld [vmem:[#allocation7 + $0x1c88] sm:$0xff]
    %v1077 = vld [vmem:[#allocation7 + $0x1c90] sm:$0xff]
    %v1078 = vld [vmem:[#allocation7 + $0x1c98] sm:$0xff]
    %v1079 = vld [vmem:[#allocation7 + $0x1ca0] sm:$0xff]
    %v1080 = vld [vmem:[#allocation7 + $0x1ca8] sm:$0xff]
    %v1081 = vld [vmem:[#allocation7 + $0x1cb0] sm:$0xff]
    %v1082 = vld [vmem:[#allocation7 + $0x1cb8] sm:$0xff]
    %v1083 = vld [vmem:[#allocation7 + $0x1cc0] sm:$0xff]
    %v1084 = vld [vmem:[#allocation7 + $0x1cc8] sm:$0xff]
    %v1085 = vld [vmem:[#allocation7 + $0x1cd0] sm:$0xff]
    %v1086 = vld [vmem:[#allocation7 + $0x1cd8] sm:$0xff]
    %v1087 = vld [vmem:[#allocation7 + $0x1ce0] sm:$0xff]
    %v1088 = vld [vmem:[#allocation7 + $0x1ce8] sm:$0xff]
    %v1089 = vld [vmem:[#allocation7 + $0x1cf0] sm:$0xff]
    %v1090 = vld [vmem:[#allocation7 + $0x1cf8] sm:$0xff]
    %v1091 = vld [vmem:[#allocation7 + $0x1d00] sm:$0xff]
    %v1092 = vld [vmem:[#allocation7 + $0x1d08] sm:$0xff]
    %v1093 = vld [vmem:[#allocation7 + $0x1d10] sm:$0xff]
    %v1094 = vld [vmem:[#allocation7 + $0x1d18] sm:$0xff]
    %v1095 = vld [vmem:[#allocation7 + $0x1d20] sm:$0xff]
    %v1096 = vld [vmem:[#allocation7 + $0x1d28] sm:$0xff]
    %v1097 = vld [vmem:[#allocation7 + $0x1d30] sm:$0xff]
    %v1098 = vld [vmem:[#allocation7 + $0x1d38] sm:$0xff]
    %v1099 = vld [vmem:[#allocation7 + $0x1d40] sm:$0xff]
    %v1100 = vld [vmem:[#allocation7 + $0x1d48] sm:$0xff]
    %v1101 = vld [vmem:[#allocation7 + $0x1d50] sm:$0xff]
    %v1102 = vld [vmem:[#allocation7 + $0x1d58] sm:$0xff]
    %v1103 = vld [vmem:[#allocation7 + $0x1d60] sm:$0xff]
    %v1104 = vld [vmem:[#allocation7 + $0x1d68] sm:$0xff]
    %v1105 = vld [vmem:[#allocation7 + $0x1d70] sm:$0xff]
    %v1106 = vld [vmem:[#allocation7 + $0x1d78] sm:$0xff]
    %v1107 = vld [vmem:[#allocation7 + $0x1d80] sm:$0xff]
    %v1108 = vld [vmem:[#allocation7 + $0x1d88] sm:$0xff]
    %v1109 = vld [vmem:[#allocation7 + $0x1d90] sm:$0xff]
    %v1110 = vld [vmem:[#allocation7 + $0x1d98] sm:$0xff]
    %v1111 = vld [vmem:[#allocation7 + $0x1da0] sm:$0xff]
    %v1112 = vld [vmem:[#allocation7 + $0x1da8] sm:$0xff]
    %v1113 = vld [vmem:[#allocation7 + $0x1db0] sm:$0xff]
    %v1114 = vld [vmem:[#allocation7 + $0x1db8] sm:$0xff]
    %v1115 = vld [vmem:[#allocation7 + $0x1dc0] sm:$0xff]
    %v1116 = vld [vmem:[#allocation7 + $0x1dc8] sm:$0xff]
    %v1117 = vld [vmem:[#allocation7 + $0x1dd0] sm:$0xff]
    %v1118 = vld [vmem:[#allocation7 + $0x1dd8] sm:$0xff]
    %v1119 = vld [vmem:[#allocation7 + $0x1de0] sm:$0xff]
    %v1120 = vld [vmem:[#allocation7 + $0x1de8] sm:$0xff]
    %v1121 = vld [vmem:[#allocation7 + $0x1df0] sm:$0xff]
    %v1122 = vld [vmem:[#allocation7 + $0x1df8] sm:$0xff]
    %v1123 = vld [vmem:[#allocation7 + $0x1e00] sm:$0xff]
    %v1124 = vld [vmem:[#allocation7 + $0x1e08] sm:$0xff]
    %v1125 = vld [vmem:[#allocation7 + $0x1e10] sm:$0xff]
    %v1126 = vld [vmem:[#allocation7 + $0x1e18] sm:$0xff]
    %v1127 = vld [vmem:[#allocation7 + $0x1e20] sm:$0xff]
    %v1128 = vld [vmem:[#allocation7 + $0x1e28] sm:$0xff]
    %v1129 = vld [vmem:[#allocation7 + $0x1e30] sm:$0xff]
    %v1130 = vld [vmem:[#allocation7 + $0x1e38] sm:$0xff]
    %v1131 = vld [vmem:[#allocation7 + $0x1e40] sm:$0xff]
    %v1132 = vld [vmem:[#allocation7 + $0x1e48] sm:$0xff]
    %v1133 = vld [vmem:[#allocation7 + $0x1e50] sm:$0xff]
    %v1134 = vld [vmem:[#allocation7 + $0x1e58] sm:$0xff]
    %v1135 = vld [vmem:[#allocation7 + $0x1e60] sm:$0xff]
    %v1136 = vld [vmem:[#allocation7 + $0x1e68] sm:$0xff]
    %v1137 = vld [vmem:[#allocation7 + $0x1e70] sm:$0xff]
    %v1138 = vld [vmem:[#allocation7 + $0x1e78] sm:$0xff]
    %v1139 = vld [vmem:[#allocation7 + $0x1e80] sm:$0xff]
    %v1140 = vld [vmem:[#allocation7 + $0x1e88] sm:$0xff]
    %v1141 = vld [vmem:[#allocation7 + $0x1e90] sm:$0xff]
    %v1142 = vld [vmem:[#allocation7 + $0x1e98] sm:$0xff]
    %v1143 = vld [vmem:[#allocation7 + $0x1ea0] sm:$0xff]
    %v1144 = vld [vmem:[#allocation7 + $0x1ea8] sm:$0xff]
    %v1145 = vld [vmem:[#allocation7 + $0x1eb0] sm:$0xff]
    %v1146 = vld [vmem:[#allocation7 + $0x1eb8] sm:$0xff]
    %v1147 = vld [vmem:[#allocation7 + $0x1ec0] sm:$0xff]
    %v1148 = vld [vmem:[#allocation7 + $0x1ec8] sm:$0xff]
    %v1149 = vld [vmem:[#allocation7 + $0x1ed0] sm:$0xff]
    %v1150 = vld [vmem:[#allocation7 + $0x1ed8] sm:$0xff]
    %v1151 = vld [vmem:[#allocation7 + $0x1ee0] sm:$0xff]
    %v1152 = vld [vmem:[#allocation7 + $0x1ee8] sm:$0xff]
    %v1153 = vld [vmem:[#allocation7 + $0x1ef0] sm:$0xff]
    %v1154 = vld [vmem:[#allocation7 + $0x1ef8] sm:$0xff]
    %v1155 = vld [vmem:[#allocation7 + $0x1f00] sm:$0xff]
    %v1156 = vld [vmem:[#allocation7 + $0x1f08] sm:$0xff]
    %v1157 = vld [vmem:[#allocation7 + $0x1f10] sm:$0xff]
    %v1158 = vld [vmem:[#allocation7 + $0x1f18] sm:$0xff]
    %v1159 = vld [vmem:[#allocation7 + $0x1f20] sm:$0xff]
    %v1160 = vld [vmem:[#allocation7 + $0x1f28] sm:$0xff]
    %v1161 = vld [vmem:[#allocation7 + $0x1f30] sm:$0xff]
    %v1162 = vld [vmem:[#allocation7 + $0x1f38] sm:$0xff]
    %v1163 = vld [vmem:[#allocation7 + $0x1f40] sm:$0xff]
    %v1164 = vld [vmem:[#allocation7 + $0x1f48] sm:$0xff]
    %v1165 = vld [vmem:[#allocation7 + $0x1f50] sm:$0xff]
    %v1166 = vld [vmem:[#allocation7 + $0x1f58] sm:$0xff]
    %v1167 = vld [vmem:[#allocation7 + $0x1f60] sm:$0xff]
    %v1168 = vld [vmem:[#allocation7 + $0x1f68] sm:$0xff]
    %v1169 = vld [vmem:[#allocation7 + $0x1f70] sm:$0xff]
    %v1170 = vld [vmem:[#allocation7 + $0x1f78] sm:$0xff]
    %v1171 = vld [vmem:[#allocation7 + $0x1f80] sm:$0xff]
    %v1172 = vld [vmem:[#allocation7 + $0x1f88] sm:$0xff]
    %v1173 = vld [vmem:[#allocation7 + $0x1f90] sm:$0xff]
    %v1174 = vld [vmem:[#allocation7 + $0x1f98] sm:$0xff]
    %v1175 = vld [vmem:[#allocation7 + $0x1fa0] sm:$0xff]
    %v1176 = vld [vmem:[#allocation7 + $0x1fa8] sm:$0xff]
    %v1177 = vld [vmem:[#allocation7 + $0x1fb0] sm:$0xff]
    %v1178 = vld [vmem:[#allocation7 + $0x1fb8] sm:$0xff]
    %v1179 = vld [vmem:[#allocation7 + $0x1fc0] sm:$0xff]
    %v1180 = vld [vmem:[#allocation7 + $0x1fc8] sm:$0xff]
    %v1181 = vld [vmem:[#allocation7 + $0x1fd0] sm:$0xff]
    %v1182 = vld [vmem:[#allocation7 + $0x1fd8] sm:$0xff]
    %v1183 = vld [vmem:[#allocation7 + $0x1fe0] sm:$0xff]
    %v1184 = vld [vmem:[#allocation7 + $0x1fe8] sm:$0xff]
    %v1185 = vld [vmem:[#allocation7 + $0x1ff0] sm:$0xff]
    %v1186 = vld [vmem:[#allocation7 + $0x1ff8] sm:$0xff]
    %v1187 = vld [vmem:[#allocation7 + $0x2000] sm:$0xff]
    %v1188 = vld [vmem:[#allocation7 + $0x2008] sm:$0xff]
    %v1189 = vld [vmem:[#allocation7 + $0x2010] sm:$0xff]
    %v1190 = vld [vmem:[#allocation7 + $0x2018] sm:$0xff]
    %v1191 = vld [vmem:[#allocation7 + $0x2020] sm:$0xff]
    %v1192 = vld [vmem:[#allocation7 + $0x2028] sm:$0xff]
    %v1193 = vld [vmem:[#allocation7 + $0x2030] sm:$0xff]
    %v1194 = vld [vmem:[#allocation7 + $0x2038] sm:$0xff]
    %v1195 = vld [vmem:[#allocation7 + $0x2040] sm:$0xff]
    %v1196 = vld [vmem:[#allocation7 + $0x2048] sm:$0xff]
    %v1197 = vld [vmem:[#allocation7 + $0x2050] sm:$0xff]
    %v1198 = vld [vmem:[#allocation7 + $0x2058] sm:$0xff]
    %v1199 = vld [vmem:[#allocation7 + $0x2060] sm:$0xff]
    %v1200 = vld [vmem:[#allocation7 + $0x2068] sm:$0xff]
    %v1201 = vld [vmem:[#allocation7 + $0x2070] sm:$0xff]
    %v1202 = vld [vmem:[#allocation7 + $0x2078] sm:$0xff]
    %v1203 = vld [vmem:[#allocation7 + $0x2080] sm:$0xff]
    %v1204 = vld [vmem:[#allocation7 + $0x2088] sm:$0xff]
    %v1205 = vld [vmem:[#allocation7 + $0x2090] sm:$0xff]
    %v1206 = vld [vmem:[#allocation7 + $0x2098] sm:$0xff]
    %v1207 = vld [vmem:[#allocation7 + $0x20a0] sm:$0xff]
    %v1208 = vld [vmem:[#allocation7 + $0x20a8] sm:$0xff]
    %v1209 = vld [vmem:[#allocation7 + $0x20b0] sm:$0xff]
    %v1210 = vld [vmem:[#allocation7 + $0x20b8] sm:$0xff]
    %v1211 = vld [vmem:[#allocation7 + $0x20c0] sm:$0xff]
    %v1212 = vld [vmem:[#allocation7 + $0x20c8] sm:$0xff]
    %v1213 = vld [vmem:[#allocation7 + $0x20d0] sm:$0xff]
    %v1214 = vld [vmem:[#allocation7 + $0x20d8] sm:$0xff]
    %v1215 = vld [vmem:[#allocation7 + $0x20e0] sm:$0xff]
    %v1216 = vld [vmem:[#allocation7 + $0x20e8] sm:$0xff]
    %v1217 = vld [vmem:[#allocation7 + $0x20f0] sm:$0xff]
    %v1218 = vld [vmem:[#allocation7 + $0x20f8] sm:$0xff]
    %v1219 = vld [vmem:[#allocation7 + $0x2100] sm:$0xff]
    %v1220 = vld [vmem:[#allocation7 + $0x2108] sm:$0xff]
    %v1221 = vld [vmem:[#allocation7 + $0x2110] sm:$0xff]
    %v1222 = vld [vmem:[#allocation7 + $0x2118] sm:$0xff]
    %v1223 = vld [vmem:[#allocation7 + $0x2120] sm:$0xff]
    %v1224 = vld [vmem:[#allocation7 + $0x2128] sm:$0xff]
    %v1225 = vld [vmem:[#allocation7 + $0x2130] sm:$0xff]
    %v1226 = vld [vmem:[#allocation7 + $0x2138] sm:$0xff]
    %v1227 = vld [vmem:[#allocation7 + $0x2140] sm:$0xff]
    %v1228 = vld [vmem:[#allocation7 + $0x2148] sm:$0xff]
    %v1229 = vld [vmem:[#allocation7 + $0x2150] sm:$0xff]
    %v1230 = vld [vmem:[#allocation7 + $0x2158] sm:$0xff]
    %v1231 = vld [vmem:[#allocation7 + $0x2160] sm:$0xff]
    %v1232 = vld [vmem:[#allocation7 + $0x2168] sm:$0xff]
    %v1233 = vld [vmem:[#allocation7 + $0x2170] sm:$0xff]
    %v1234 = vld [vmem:[#allocation7 + $0x2178] sm:$0xff]
    %v1235 = vld [vmem:[#allocation7 + $0x2180] sm:$0xff]
    %v1236 = vld [vmem:[#allocation7 + $0x2188] sm:$0xff]
    %v1237 = vld [vmem:[#allocation7 + $0x2190] sm:$0xff]
    %v1238 = vld [vmem:[#allocation7 + $0x2198] sm:$0xff]
    %v1239 = vld [vmem:[#allocation7 + $0x21a0] sm:$0xff]
    %v1240 = vld [vmem:[#allocation7 + $0x21a8] sm:$0xff]
    %v1241 = vld [vmem:[#allocation7 + $0x21b0] sm:$0xff]
    %v1242 = vld [vmem:[#allocation7 + $0x21b8] sm:$0xff]
    %v1243 = vld [vmem:[#allocation7 + $0x21c0] sm:$0xff]
    %v1244 = vld [vmem:[#allocation7 + $0x21c8] sm:$0xff]
    %v1245 = vld [vmem:[#allocation7 + $0x21d0] sm:$0xff]
    %v1246 = vld [vmem:[#allocation7 + $0x21d8] sm:$0xff]
    %v1247 = vld [vmem:[#allocation7 + $0x21e0] sm:$0xff]
    %v1248 = vld [vmem:[#allocation7 + $0x21e8] sm:$0xff]
    %v1249 = vld [vmem:[#allocation7 + $0x21f0] sm:$0xff]
    %v1250 = vld [vmem:[#allocation7 + $0x21f8] sm:$0xff]
    %v1251 = vld [vmem:[#allocation7 + $0x2200] sm:$0xff]
    %v1252 = vld [vmem:[#allocation7 + $0x2208] sm:$0xff]
    %v1253 = vld [vmem:[#allocation7 + $0x2210] sm:$0xff]
    %v1254 = vld [vmem:[#allocation7 + $0x2218] sm:$0xff]
    %v1255 = vld [vmem:[#allocation7 + $0x2220] sm:$0xff]
    %v1256 = vld [vmem:[#allocation7 + $0x2228] sm:$0xff]
    %v1257 = vld [vmem:[#allocation7 + $0x2230] sm:$0xff]
    %v1258 = vld [vmem:[#allocation7 + $0x2238] sm:$0xff]
    %v1259 = vld [vmem:[#allocation7 + $0x2240] sm:$0xff]
    %v1260 = vld [vmem:[#allocation7 + $0x2248] sm:$0xff]
    %v1261 = vld [vmem:[#allocation7 + $0x2250] sm:$0xff]
    %v1262 = vld [vmem:[#allocation7 + $0x2258] sm:$0xff]
    %v1263 = vld [vmem:[#allocation7 + $0x2260] sm:$0xff]
    %v1264 = vld [vmem:[#allocation7 + $0x2268] sm:$0xff]
    %v1265 = vld [vmem:[#allocation7 + $0x2270] sm:$0xff]
    %v1266 = vld [vmem:[#allocation7 + $0x2278] sm:$0xff]
    %v1267 = vld [vmem:[#allocation7 + $0x2280] sm:$0xff]
    %v1268 = vld [vmem:[#allocation7 + $0x2288] sm:$0xff]
    %v1269 = vld [vmem:[#allocation7 + $0x2290] sm:$0xff]
    %v1270 = vld [vmem:[#allocation7 + $0x2298] sm:$0xff]
    %v1271 = vld [vmem:[#allocation7 + $0x22a0] sm:$0xff]
    %v1272 = vld [vmem:[#allocation7 + $0x22a8] sm:$0xff]
    %v1273 = vld [vmem:[#allocation7 + $0x22b0] sm:$0xff]
    %v1274 = vld [vmem:[#allocation7 + $0x22b8] sm:$0xff]
    %v1275 = vld [vmem:[#allocation7 + $0x22c0] sm:$0xff]
    %v1276 = vld [vmem:[#allocation7 + $0x22c8] sm:$0xff]
    %v1277 = vld [vmem:[#allocation7 + $0x22d0] sm:$0xff]
    %v1278 = vld [vmem:[#allocation7 + $0x22d8] sm:$0xff]
    %v1279 = vld [vmem:[#allocation7 + $0x22e0] sm:$0xff]
    %v1280 = vld [vmem:[#allocation7 + $0x22e8] sm:$0xff]
    %v1281 = vld [vmem:[#allocation7 + $0x22f0] sm:$0xff]
    %v1282 = vld [vmem:[#allocation7 + $0x22f8] sm:$0xff]
    %v1283 = vld [vmem:[#allocation7 + $0x2300] sm:$0xff]
    %v1284 = vld [vmem:[#allocation7 + $0x2308] sm:$0xff]
    %v1285 = vld [vmem:[#allocation7 + $0x2310] sm:$0xff]
    %v1286 = vld [vmem:[#allocation7 + $0x2318] sm:$0xff]
    %v1287 = vld [vmem:[#allocation7 + $0x2320] sm:$0xff]
    %v1288 = vld [vmem:[#allocation7 + $0x2328] sm:$0xff]
    %v1289 = vld [vmem:[#allocation7 + $0x2330] sm:$0xff]
    %v1290 = vld [vmem:[#allocation7 + $0x2338] sm:$0xff]
    %v1291 = vld [vmem:[#allocation7 + $0x2340] sm:$0xff]
    %v1292 = vld [vmem:[#allocation7 + $0x2348] sm:$0xff]
    %v1293 = vld [vmem:[#allocation7 + $0x2350] sm:$0xff]
    %v1294 = vld [vmem:[#allocation7 + $0x2358] sm:$0xff]
    %v1295 = vld [vmem:[#allocation7 + $0x2360] sm:$0xff]
    %v1296 = vld [vmem:[#allocation7 + $0x2368] sm:$0xff]
    %v1297 = vld [vmem:[#allocation7 + $0x2370] sm:$0xff]
    %v1298 = vld [vmem:[#allocation7 + $0x2378] sm:$0xff]
    %v1299 = vld [vmem:[#allocation7 + $0x2380] sm:$0xff]
    %v1300 = vld [vmem:[#allocation7 + $0x2388] sm:$0xff]
    %v1301 = vld [vmem:[#allocation7 + $0x2390] sm:$0xff]
    %v1302 = vld [vmem:[#allocation7 + $0x2398] sm:$0xff]
    %v1303 = vld [vmem:[#allocation7 + $0x23a0] sm:$0xff]
    %v1304 = vld [vmem:[#allocation7 + $0x23a8] sm:$0xff]
    %v1305 = vld [vmem:[#allocation7 + $0x23b0] sm:$0xff]
    %v1306 = vld [vmem:[#allocation7 + $0x23b8] sm:$0xff]
    %v1307 = vld [vmem:[#allocation7 + $0x23c0] sm:$0xff]
    %v1308 = vld [vmem:[#allocation7 + $0x23c8] sm:$0xff]
    %v1309 = vld [vmem:[#allocation7 + $0x23d0] sm:$0xff]
    %v1310 = vld [vmem:[#allocation7 + $0x23d8] sm:$0xff]
    %v1311 = vld [vmem:[#allocation7 + $0x23e0] sm:$0xff]
    %v1312 = vld [vmem:[#allocation7 + $0x23e8] sm:$0xff]
    %v1313 = vld [vmem:[#allocation7 + $0x23f0] sm:$0xff]
    %v1314 = vld [vmem:[#allocation7 + $0x23f8] sm:$0xff]
    %v1315 = vld [vmem:[#allocation8] sm:$0xff]
    %v1316 = vld [vmem:[#allocation8 + $0x8] sm:$0xf]
    %v1319 = vperm.slane %v1315, 0
    %v1320 = vperm.slane %v1315, 1
    %v1321 = vperm.slane %v1315, 2
    %v1322 = vperm.slane %v1315, 3
    %v1323 = vperm.slane %v1315, 4
    %v1324 = vperm.slane %v1315, 5
    %v1325 = vperm.slane %v1315, 6
    %v1326 = vperm.slane %v1315, 7
    %v1327 = vperm.slane %v1316, 0
    %v1328 = vperm.slane %v1316, 1
    %v1329 = vperm.slane %v1316, 2
    %v1330 = vperm.slane %v1316, 3
    %1343 = vmatpush.msra.mxu0 %v343
    %1344 = vmatpush.msra.mxu0 %v331
    %1345 = vmatpush.msra.mxu0 %v319
    %1346 = vmatpush.msra.mxu0 %v307
    %1347 = vmatpush.msra.mxu0 %v295
    %1348 = vmatpush.msra.mxu0 %v283
    %1349 = vmatpush.msra.mxu0 %v271
    %1350 = vmatpush.msra.mxu0 %v259
    %1351 = vmatpush.msra.mxu0 %v247
    %1352 = vmatpush.msra.mxu0 %v235
    %1353 = vmatpush.msra.mxu0 %v223
    %1354 = vmatpush.msra.mxu0 %v211
    %1355 = vmatpush.msra.mxu0 %v199
    %1356 = vmatpush.msra.mxu0 %v187
    %1357 = vmatpush.msra.mxu0 %v175
    %1358 = vmatpush.msra.mxu0 %v163
    %1359 = vmatmul.f32.gmra.mxu0 %v151
    %v1360 = vpop.f32.mrf.mxu0
    %v1361 = vadd.f32 %v1319, %v1360
    %1362 = vmatmul.f32.gmra.mxu0 %v157
    %v1363 = vpop.f32.mrf.mxu0
    %v1364 = vadd.f32 %v1319, %v1363
    %1365 = vdwg.mxu0
    %1366 = vmatpush.msra.mxu0 %v535
    %1367 = vmatpush.msra.mxu0 %v523
    %1368 = vmatpush.msra.mxu0 %v511
    %1369 = vmatpush.msra.mxu0 %v499
    %1370 = vmatpush.msra.mxu0 %v487
    %1371 = vmatpush.msra.mxu0 %v475
    %1372 = vmatpush.msra.mxu0 %v463
    %1373 = vmatpush.msra.mxu0 %v451
    %1374 = vmatpush.msra.mxu0 %v439
    %1375 = vmatpush.msra.mxu0 %v427
    %1376 = vmatpush.msra.mxu0 %v415
    %1377 = vmatpush.msra.mxu0 %v403
    %1378 = vmatpush.msra.mxu0 %v391
    %1379 = vmatpush.msra.mxu0 %v379
    %1380 = vmatpush.msra.mxu0 %v367
    %1381 = vmatpush.msra.mxu0 %v355
    %1382 = vmatmul.f32.gmra.mxu0 %v152
    %v1383 = vpop.f32.mrf.mxu0
    %v1384 = vadd.f32 %v1361, %v1383
    %1385 = vmatmul.f32.gmra.mxu0 %v158
    %v1386 = vpop.f32.mrf.mxu0
    %v1387 = vadd.f32 %v1364, %v1386
    %1388 = vdwg.mxu0
    %1389 = vmatpush.msra.mxu0 %v727
    %1390 = vmatpush.msra.mxu0 %v715
    %1391 = vmatpush.msra.mxu0 %v703
    %1392 = vmatpush.msra.mxu0 %v691
    %1393 = vmatpush.msra.mxu0 %v679
    %1394 = vmatpush.msra.mxu0 %v667
    %1395 = vmatpush.msra.mxu0 %v655
    %1396 = vmatpush.msra.mxu0 %v643
    %1397 = vmatpush.msra.mxu0 %v631
    %1398 = vmatpush.msra.mxu0 %v619
    %1399 = vmatpush.msra.mxu0 %v607
    %1400 = vmatpush.msra.mxu0 %v595
    %1401 = vmatpush.msra.mxu0 %v583
    %1402 = vmatpush.msra.mxu0 %v571
    %1403 = vmatpush.msra.mxu0 %v559
    %1404 = vmatpush.msra.mxu0 %v547
    %1405 = vmatmul.f32.gmra.mxu0 %v153
    %v1406 = vpop.f32.mrf.mxu0
    %v1407 = vadd.f32 %v1384, %v1406
    %1408 = vmatmul.f32.gmra.mxu0 %v159
    %v1409 = vpop.f32.mrf.mxu0
    %v1410 = vadd.f32 %v1387, %v1409
    %1411 = vdwg.mxu0
    %1412 = vmatpush.msra.mxu0 %v919
    %1413 = vmatpush.msra.mxu0 %v907
    %1414 = vmatpush.msra.mxu0 %v895
    %1415 = vmatpush.msra.mxu0 %v883
    %1416 = vmatpush.msra.mxu0 %v871
    %1417 = vmatpush.msra.mxu0 %v859
    %1418 = vmatpush.msra.mxu0 %v847
    %1419 = vmatpush.msra.mxu0 %v835
    %1420 = vmatpush.msra.mxu0 %v823
    %1421 = vmatpush.msra.mxu0 %v811
    %1422 = vmatpush.msra.mxu0 %v799
    %1423 = vmatpush.msra.mxu0 %v787
    %1424 = vmatpush.msra.mxu0 %v775
    %1425 = vmatpush.msra.mxu0 %v763
    %1426 = vmatpush.msra.mxu0 %v751
    %1427 = vmatpush.msra.mxu0 %v739
    %1428 = vmatmul.f32.gmra.mxu0 %v154
    %v1429 = vpop.f32.mrf.mxu0
    %v1430 = vadd.f32 %v1407, %v1429
    %1431 = vmatmul.f32.gmra.mxu0 %v160
    %v1432 = vpop.f32.mrf.mxu0
    %v1433 = vadd.f32 %v1410, %v1432
    %1434 = vdwg.mxu0
    %1435 = vmatpush.msra.mxu0 %v1111
    %1436 = vmatpush.msra.mxu0 %v1099
    %1437 = vmatpush.msra.mxu0 %v1087
    %1438 = vmatpush.msra.mxu0 %v1075
    %1439 = vmatpush.msra.mxu0 %v1063
    %1440 = vmatpush.msra.mxu0 %v1051
    %1441 = vmatpush.msra.mxu0 %v1039
    %1442 = vmatpush.msra.mxu0 %v1027
    %1443 = vmatpush.msra.mxu0 %v1015
    %1444 = vmatpush.msra.mxu0 %v1003
    %1445 = vmatpush.msra.mxu0 %v991
    %1446 = vmatpush.msra.mxu0 %v979
    %1447 = vmatpush.msra.mxu0 %v967
    %1448 = vmatpush.msra.mxu0 %v955
    %1449 = vmatpush.msra.mxu0 %v943
    %1450 = vmatpush.msra.mxu0 %v931
    %1451 = vmatmul.f32.gmra.mxu0 %v155
    %v1452 = vpop.f32.mrf.mxu0
    %v1453 = vadd.f32 %v1430, %v1452
    %1454 = vmatmul.f32.gmra.mxu0 %v161
    %v1455 = vpop.f32.mrf.mxu0
    %v1456 = vadd.f32 %v1433, %v1455
    %1457 = vdwg.mxu0
    %1458 = vmatpush.msra.mxu0 %v1303
    %1459 = vmatpush.msra.mxu0 %v1291
    %1460 = vmatpush.msra.mxu0 %v1279
    %1461 = vmatpush.msra.mxu0 %v1267
    %1462 = vmatpush.msra.mxu0 %v1255
    %1463 = vmatpush.msra.mxu0 %v1243
    %1464 = vmatpush.msra.mxu0 %v1231
    %1465 = vmatpush.msra.mxu0 %v1219
    %1466 = vmatpush.msra.mxu0 %v1207
    %1467 = vmatpush.msra.mxu0 %v1195
    %1468 = vmatpush.msra.mxu0 %v1183
    %1469 = vmatpush.msra.mxu0 %v1171
    %1470 = vmatpush.msra.mxu0 %v1159
    %1471 = vmatpush.msra.mxu0 %v1147
    %1472 = vmatpush.msra.mxu0 %v1135
    %1473 = vmatpush.msra.mxu0 %v1123
    %1474 = vmatmul.f32.gmra.mxu0 %v156
    %v1475 = vpop.f32.mrf.mxu0
    %v1476 = vadd.f32 %v1453, %v1475
    %1477 = vmatmul.f32.gmra.mxu0 %v162
    %v1478 = vpop.f32.mrf.mxu0
    %v1479 = vadd.f32 %v1456, %v1478
    %1480 = vdwg.mxu0
    %1481 = vmatpush.msra.mxu0 %v344
    %1482 = vmatpush.msra.mxu0 %v332
    %1483 = vmatpush.msra.mxu0 %v320
    %1484 = vmatpush.msra.mxu0 %v308
    %1485 = vmatpush.msra.mxu0 %v296
    %1486 = vmatpush.msra.mxu0 %v284
    %1487 = vmatpush.msra.mxu0 %v272
    %1488 = vmatpush.msra.mxu0 %v260
    %1489 = vmatpush.msra.mxu0 %v248
    %1490 = vmatpush.msra.mxu0 %v236
    %1491 = vmatpush.msra.mxu0 %v224
    %1492 = vmatpush.msra.mxu0 %v212
    %1493 = vmatpush.msra.mxu0 %v200
    %1494 = vmatpush.msra.mxu0 %v188
    %1495 = vmatpush.msra.mxu0 %v176
    %1496 = vmatpush.msra.mxu0 %v164
    %1497 = vmatmul.f32.gmra.mxu0 %v151
    %v1498 = vpop.f32.mrf.mxu0
    %v1499 = vadd.f32 %v1320, %v1498
    %1500 = vmatmul.f32.gmra.mxu0 %v157
    %v1501 = vpop.f32.mrf.mxu0
    %v1502 = vadd.f32 %v1320, %v1501
    %1503 = vdwg.mxu0
    %1504 = vmatpush.msra.mxu0 %v536
    %1505 = vmatpush.msra.mxu0 %v524
    %1506 = vmatpush.msra.mxu0 %v512
    %1507 = vmatpush.msra.mxu0 %v500
    %1508 = vmatpush.msra.mxu0 %v488
    %1509 = vmatpush.msra.mxu0 %v476
    %1510 = vmatpush.msra.mxu0 %v464
    %1511 = vmatpush.msra.mxu0 %v452
    %1512 = vmatpush.msra.mxu0 %v440
    %1513 = vmatpush.msra.mxu0 %v428
    %1514 = vmatpush.msra.mxu0 %v416
    %1515 = vmatpush.msra.mxu0 %v404
    %1516 = vmatpush.msra.mxu0 %v392
    %1517 = vmatpush.msra.mxu0 %v380
    %1518 = vmatpush.msra.mxu0 %v368
    %1519 = vmatpush.msra.mxu0 %v356
    %1520 = vmatmul.f32.gmra.mxu0 %v152
    %v1521 = vpop.f32.mrf.mxu0
    %v1522 = vadd.f32 %v1499, %v1521
    %1523 = vmatmul.f32.gmra.mxu0 %v158
    %v1524 = vpop.f32.mrf.mxu0
    %v1525 = vadd.f32 %v1502, %v1524
    %1526 = vdwg.mxu0
    %1527 = vmatpush.msra.mxu0 %v728
    %1528 = vmatpush.msra.mxu0 %v716
    %1529 = vmatpush.msra.mxu0 %v704
    %1530 = vmatpush.msra.mxu0 %v692
    %1531 = vmatpush.msra.mxu0 %v680
    %1532 = vmatpush.msra.mxu0 %v668
    %1533 = vmatpush.msra.mxu0 %v656
    %1534 = vmatpush.msra.mxu0 %v644
    %1535 = vmatpush.msra.mxu0 %v632
    %1536 = vmatpush.msra.mxu0 %v620
    %1537 = vmatpush.msra.mxu0 %v608
    %1538 = vmatpush.msra.mxu0 %v596
    %1539 = vmatpush.msra.mxu0 %v584
    %1540 = vmatpush.msra.mxu0 %v572
    %1541 = vmatpush.msra.mxu0 %v560
    %1542 = vmatpush.msra.mxu0 %v548
    %1543 = vmatmul.f32.gmra.mxu0 %v153
    %v1544 = vpop.f32.mrf.mxu0
    %v1545 = vadd.f32 %v1522, %v1544
    %1546 = vmatmul.f32.gmra.mxu0 %v159
    %v1547 = vpop.f32.mrf.mxu0
    %v1548 = vadd.f32 %v1525, %v1547
    %1549 = vdwg.mxu0
    %1550 = vmatpush.msra.mxu0 %v920
    %1551 = vmatpush.msra.mxu0 %v908
    %1552 = vmatpush.msra.mxu0 %v896
    %1553 = vmatpush.msra.mxu0 %v884
    %1554 = vmatpush.msra.mxu0 %v872
    %1555 = vmatpush.msra.mxu0 %v860
    %1556 = vmatpush.msra.mxu0 %v848
    %1557 = vmatpush.msra.mxu0 %v836
    %1558 = vmatpush.msra.mxu0 %v824
    %1559 = vmatpush.msra.mxu0 %v812
    %1560 = vmatpush.msra.mxu0 %v800
    %1561 = vmatpush.msra.mxu0 %v788
    %1562 = vmatpush.msra.mxu0 %v776
    %1563 = vmatpush.msra.mxu0 %v764
    %1564 = vmatpush.msra.mxu0 %v752
    %1565 = vmatpush.msra.mxu0 %v740
    %1566 = vmatmul.f32.gmra.mxu0 %v154
    %v1567 = vpop.f32.mrf.mxu0
    %v1568 = vadd.f32 %v1545, %v1567
    %1569 = vmatmul.f32.gmra.mxu0 %v160
    %v1570 = vpop.f32.mrf.mxu0
    %v1571 = vadd.f32 %v1548, %v1570
    %1572 = vdwg.mxu0
    %1573 = vmatpush.msra.mxu0 %v1112
    %1574 = vmatpush.msra.mxu0 %v1100
    %1575 = vmatpush.msra.mxu0 %v1088
    %1576 = vmatpush.msra.mxu0 %v1076
    %1577 = vmatpush.msra.mxu0 %v1064
    %1578 = vmatpush.msra.mxu0 %v1052
    %1579 = vmatpush.msra.mxu0 %v1040
    %1580 = vmatpush.msra.mxu0 %v1028
    %1581 = vmatpush.msra.mxu0 %v1016
    %1582 = vmatpush.msra.mxu0 %v1004
    %1583 = vmatpush.msra.mxu0 %v992
    %1584 = vmatpush.msra.mxu0 %v980
    %1585 = vmatpush.msra.mxu0 %v968
    %1586 = vmatpush.msra.mxu0 %v956
    %1587 = vmatpush.msra.mxu0 %v944
    %1588 = vmatpush.msra.mxu0 %v932
    %1589 = vmatmul.f32.gmra.mxu0 %v155
    %v1590 = vpop.f32.mrf.mxu0
    %v1591 = vadd.f32 %v1568, %v1590
    %1592 = vmatmul.f32.gmra.mxu0 %v161
    %v1593 = vpop.f32.mrf.mxu0
    %v1594 = vadd.f32 %v1571, %v1593
    %1595 = vdwg.mxu0
    %1596 = vmatpush.msra.mxu0 %v1304
    %1597 = vmatpush.msra.mxu0 %v1292
    %1598 = vmatpush.msra.mxu0 %v1280
    %1599 = vmatpush.msra.mxu0 %v1268
    %1600 = vmatpush.msra.mxu0 %v1256
    %1601 = vmatpush.msra.mxu0 %v1244
    %1602 = vmatpush.msra.mxu0 %v1232
    %1603 = vmatpush.msra.mxu0 %v1220
    %1604 = vmatpush.msra.mxu0 %v1208
    %1605 = vmatpush.msra.mxu0 %v1196
    %1606 = vmatpush.msra.mxu0 %v1184
    %1607 = vmatpush.msra.mxu0 %v1172
    %1608 = vmatpush.msra.mxu0 %v1160
    %1609 = vmatpush.msra.mxu0 %v1148
    %1610 = vmatpush.msra.mxu0 %v1136
    %1611 = vmatpush.msra.mxu0 %v1124
    %1612 = vmatmul.f32.gmra.mxu0 %v156
    %v1613 = vpop.f32.mrf.mxu0
    %v1614 = vadd.f32 %v1591, %v1613
    %1615 = vmatmul.f32.gmra.mxu0 %v162
    %v1616 = vpop.f32.mrf.mxu0
    %v1617 = vadd.f32 %v1594, %v1616
    %1618 = vdwg.mxu0
    %1619 = vmatpush.msra.mxu0 %v345
    %1620 = vmatpush.msra.mxu0 %v333
    %1621 = vmatpush.msra.mxu0 %v321
    %1622 = vmatpush.msra.mxu0 %v309
    %1623 = vmatpush.msra.mxu0 %v297
    %1624 = vmatpush.msra.mxu0 %v285
    %1625 = vmatpush.msra.mxu0 %v273
    %1626 = vmatpush.msra.mxu0 %v261
    %1627 = vmatpush.msra.mxu0 %v249
    %1628 = vmatpush.msra.mxu0 %v237
    %1629 = vmatpush.msra.mxu0 %v225
    %1630 = vmatpush.msra.mxu0 %v213
    %1631 = vmatpush.msra.mxu0 %v201
    %1632 = vmatpush.msra.mxu0 %v189
    %1633 = vmatpush.msra.mxu0 %v177
    %1634 = vmatpush.msra.mxu0 %v165
    %1635 = vmatmul.f32.gmra.mxu0 %v151
    %v1636 = vpop.f32.mrf.mxu0
    %v1637 = vadd.f32 %v1321, %v1636
    %1638 = vmatmul.f32.gmra.mxu0 %v157
    %v1639 = vpop.f32.mrf.mxu0
    %v1640 = vadd.f32 %v1321, %v1639
    %1641 = vdwg.mxu0
    %1642 = vmatpush.msra.mxu0 %v537
    %1643 = vmatpush.msra.mxu0 %v525
    %1644 = vmatpush.msra.mxu0 %v513
    %1645 = vmatpush.msra.mxu0 %v501
    %1646 = vmatpush.msra.mxu0 %v489
    %1647 = vmatpush.msra.mxu0 %v477
    %1648 = vmatpush.msra.mxu0 %v465
    %1649 = vmatpush.msra.mxu0 %v453
    %1650 = vmatpush.msra.mxu0 %v441
    %1651 = vmatpush.msra.mxu0 %v429
    %1652 = vmatpush.msra.mxu0 %v417
    %1653 = vmatpush.msra.mxu0 %v405
    %1654 = vmatpush.msra.mxu0 %v393
    %1655 = vmatpush.msra.mxu0 %v381
    %1656 = vmatpush.msra.mxu0 %v369
    %1657 = vmatpush.msra.mxu0 %v357
    %1658 = vmatmul.f32.gmra.mxu0 %v152
    %v1659 = vpop.f32.mrf.mxu0
    %v1660 = vadd.f32 %v1637, %v1659
    %1661 = vmatmul.f32.gmra.mxu0 %v158
    %v1662 = vpop.f32.mrf.mxu0
    %v1663 = vadd.f32 %v1640, %v1662
    %1664 = vdwg.mxu0
    %1665 = vmatpush.msra.mxu0 %v729
    %1666 = vmatpush.msra.mxu0 %v717
    %1667 = vmatpush.msra.mxu0 %v705
    %1668 = vmatpush.msra.mxu0 %v693
    %1669 = vmatpush.msra.mxu0 %v681
    %1670 = vmatpush.msra.mxu0 %v669
    %1671 = vmatpush.msra.mxu0 %v657
    %1672 = vmatpush.msra.mxu0 %v645
    %1673 = vmatpush.msra.mxu0 %v633
    %1674 = vmatpush.msra.mxu0 %v621
    %1675 = vmatpush.msra.mxu0 %v609
    %1676 = vmatpush.msra.mxu0 %v597
    %1677 = vmatpush.msra.mxu0 %v585
    %1678 = vmatpush.msra.mxu0 %v573
    %1679 = vmatpush.msra.mxu0 %v561
    %1680 = vmatpush.msra.mxu0 %v549
    %1681 = vmatmul.f32.gmra.mxu0 %v153
    %v1682 = vpop.f32.mrf.mxu0
    %v1683 = vadd.f32 %v1660, %v1682
    %1684 = vmatmul.f32.gmra.mxu0 %v159
    %v1685 = vpop.f32.mrf.mxu0
    %v1686 = vadd.f32 %v1663, %v1685
    %1687 = vdwg.mxu0
    %1688 = vmatpush.msra.mxu0 %v921
    %1689 = vmatpush.msra.mxu0 %v909
    %1690 = vmatpush.msra.mxu0 %v897
    %1691 = vmatpush.msra.mxu0 %v885
    %1692 = vmatpush.msra.mxu0 %v873
    %1693 = vmatpush.msra.mxu0 %v861
    %1694 = vmatpush.msra.mxu0 %v849
    %1695 = vmatpush.msra.mxu0 %v837
    %1696 = vmatpush.msra.mxu0 %v825
    %1697 = vmatpush.msra.mxu0 %v813
    %1698 = vmatpush.msra.mxu0 %v801
    %1699 = vmatpush.msra.mxu0 %v789
    %1700 = vmatpush.msra.mxu0 %v777
    %1701 = vmatpush.msra.mxu0 %v765
    %1702 = vmatpush.msra.mxu0 %v753
    %1703 = vmatpush.msra.mxu0 %v741
    %1704 = vmatmul.f32.gmra.mxu0 %v154
    %v1705 = vpop.f32.mrf.mxu0
    %v1706 = vadd.f32 %v1683, %v1705
    %1707 = vmatmul.f32.gmra.mxu0 %v160
    %v1708 = vpop.f32.mrf.mxu0
    %v1709 = vadd.f32 %v1686, %v1708
    %1710 = vdwg.mxu0
    %1711 = vmatpush.msra.mxu0 %v1113
    %1712 = vmatpush.msra.mxu0 %v1101
    %1713 = vmatpush.msra.mxu0 %v1089
    %1714 = vmatpush.msra.mxu0 %v1077
    %1715 = vmatpush.msra.mxu0 %v1065
    %1716 = vmatpush.msra.mxu0 %v1053
    %1717 = vmatpush.msra.mxu0 %v1041
    %1718 = vmatpush.msra.mxu0 %v1029
    %1719 = vmatpush.msra.mxu0 %v1017
    %1720 = vmatpush.msra.mxu0 %v1005
    %1721 = vmatpush.msra.mxu0 %v993
    %1722 = vmatpush.msra.mxu0 %v981
    %1723 = vmatpush.msra.mxu0 %v969
    %1724 = vmatpush.msra.mxu0 %v957
    %1725 = vmatpush.msra.mxu0 %v945
    %1726 = vmatpush.msra.mxu0 %v933
    %1727 = vmatmul.f32.gmra.mxu0 %v155
    %v1728 = vpop.f32.mrf.mxu0
    %v1729 = vadd.f32 %v1706, %v1728
    %1730 = vmatmul.f32.gmra.mxu0 %v161
    %v1731 = vpop.f32.mrf.mxu0
    %v1732 = vadd.f32 %v1709, %v1731
    %1733 = vdwg.mxu0
    %1734 = vmatpush.msra.mxu0 %v1305
    %1735 = vmatpush.msra.mxu0 %v1293
    %1736 = vmatpush.msra.mxu0 %v1281
    %1737 = vmatpush.msra.mxu0 %v1269
    %1738 = vmatpush.msra.mxu0 %v1257
    %1739 = vmatpush.msra.mxu0 %v1245
    %1740 = vmatpush.msra.mxu0 %v1233
    %1741 = vmatpush.msra.mxu0 %v1221
    %1742 = vmatpush.msra.mxu0 %v1209
    %1743 = vmatpush.msra.mxu0 %v1197
    %1744 = vmatpush.msra.mxu0 %v1185
    %1745 = vmatpush.msra.mxu0 %v1173
    %1746 = vmatpush.msra.mxu0 %v1161
    %1747 = vmatpush.msra.mxu0 %v1149
    %1748 = vmatpush.msra.mxu0 %v1137
    %1749 = vmatpush.msra.mxu0 %v1125
    %1750 = vmatmul.f32.gmra.mxu0 %v156
    %v1751 = vpop.f32.mrf.mxu0
    %v1752 = vadd.f32 %v1729, %v1751
    %1753 = vmatmul.f32.gmra.mxu0 %v162
    %v1754 = vpop.f32.mrf.mxu0
    %v1755 = vadd.f32 %v1732, %v1754
    %1756 = vdwg.mxu0
    %1757 = vmatpush.msra.mxu0 %v346
    %1758 = vmatpush.msra.mxu0 %v334
    %1759 = vmatpush.msra.mxu0 %v322
    %1760 = vmatpush.msra.mxu0 %v310
    %1761 = vmatpush.msra.mxu0 %v298
    %1762 = vmatpush.msra.mxu0 %v286
    %1763 = vmatpush.msra.mxu0 %v274
    %1764 = vmatpush.msra.mxu0 %v262
    %1765 = vmatpush.msra.mxu0 %v250
    %1766 = vmatpush.msra.mxu0 %v238
    %1767 = vmatpush.msra.mxu0 %v226
    %1768 = vmatpush.msra.mxu0 %v214
    %1769 = vmatpush.msra.mxu0 %v202
    %1770 = vmatpush.msra.mxu0 %v190
    %1771 = vmatpush.msra.mxu0 %v178
    %1772 = vmatpush.msra.mxu0 %v166
    %1773 = vmatmul.f32.gmra.mxu0 %v151
    %v1774 = vpop.f32.mrf.mxu0
    %v1775 = vadd.f32 %v1322, %v1774
    %1776 = vmatmul.f32.gmra.mxu0 %v157
    %v1777 = vpop.f32.mrf.mxu0
    %v1778 = vadd.f32 %v1322, %v1777
    %1779 = vdwg.mxu0
    %1780 = vmatpush.msra.mxu0 %v538
    %1781 = vmatpush.msra.mxu0 %v526
    %1782 = vmatpush.msra.mxu0 %v514
    %1783 = vmatpush.msra.mxu0 %v502
    %1784 = vmatpush.msra.mxu0 %v490
    %1785 = vmatpush.msra.mxu0 %v478
    %1786 = vmatpush.msra.mxu0 %v466
    %1787 = vmatpush.msra.mxu0 %v454
    %1788 = vmatpush.msra.mxu0 %v442
    %1789 = vmatpush.msra.mxu0 %v430
    %1790 = vmatpush.msra.mxu0 %v418
    %1791 = vmatpush.msra.mxu0 %v406
    %1792 = vmatpush.msra.mxu0 %v394
    %1793 = vmatpush.msra.mxu0 %v382
    %1794 = vmatpush.msra.mxu0 %v370
    %1795 = vmatpush.msra.mxu0 %v358
    %1796 = vmatmul.f32.gmra.mxu0 %v152
    %v1797 = vpop.f32.mrf.mxu0
    %v1798 = vadd.f32 %v1775, %v1797
    %1799 = vmatmul.f32.gmra.mxu0 %v158
    %v1800 = vpop.f32.mrf.mxu0
    %v1801 = vadd.f32 %v1778, %v1800
    %1802 = vdwg.mxu0
    %1803 = vmatpush.msra.mxu0 %v730
    %1804 = vmatpush.msra.mxu0 %v718
    %1805 = vmatpush.msra.mxu0 %v706
    %1806 = vmatpush.msra.mxu0 %v694
    %1807 = vmatpush.msra.mxu0 %v682
    %1808 = vmatpush.msra.mxu0 %v670
    %1809 = vmatpush.msra.mxu0 %v658
    %1810 = vmatpush.msra.mxu0 %v646
    %1811 = vmatpush.msra.mxu0 %v634
    %1812 = vmatpush.msra.mxu0 %v622
    %1813 = vmatpush.msra.mxu0 %v610
    %1814 = vmatpush.msra.mxu0 %v598
    %1815 = vmatpush.msra.mxu0 %v586
    %1816 = vmatpush.msra.mxu0 %v574
    %1817 = vmatpush.msra.mxu0 %v562
    %1818 = vmatpush.msra.mxu0 %v550
    %1819 = vmatmul.f32.gmra.mxu0 %v153
    %v1820 = vpop.f32.mrf.mxu0
    %v1821 = vadd.f32 %v1798, %v1820
    %1822 = vmatmul.f32.gmra.mxu0 %v159
    %v1823 = vpop.f32.mrf.mxu0
    %v1824 = vadd.f32 %v1801, %v1823
    %1825 = vdwg.mxu0
    %1826 = vmatpush.msra.mxu0 %v922
    %1827 = vmatpush.msra.mxu0 %v910
    %1828 = vmatpush.msra.mxu0 %v898
    %1829 = vmatpush.msra.mxu0 %v886
    %1830 = vmatpush.msra.mxu0 %v874
    %1831 = vmatpush.msra.mxu0 %v862
    %1832 = vmatpush.msra.mxu0 %v850
    %1833 = vmatpush.msra.mxu0 %v838
    %1834 = vmatpush.msra.mxu0 %v826
    %1835 = vmatpush.msra.mxu0 %v814
    %1836 = vmatpush.msra.mxu0 %v802
    %1837 = vmatpush.msra.mxu0 %v790
    %1838 = vmatpush.msra.mxu0 %v778
    %1839 = vmatpush.msra.mxu0 %v766
    %1840 = vmatpush.msra.mxu0 %v754
    %1841 = vmatpush.msra.mxu0 %v742
    %1842 = vmatmul.f32.gmra.mxu0 %v154
    %v1843 = vpop.f32.mrf.mxu0
    %v1844 = vadd.f32 %v1821, %v1843
    %1845 = vmatmul.f32.gmra.mxu0 %v160
    %v1846 = vpop.f32.mrf.mxu0
    %v1847 = vadd.f32 %v1824, %v1846
    %1848 = vdwg.mxu0
    %1849 = vmatpush.msra.mxu0 %v1114
    %1850 = vmatpush.msra.mxu0 %v1102
    %1851 = vmatpush.msra.mxu0 %v1090
    %1852 = vmatpush.msra.mxu0 %v1078
    %1853 = vmatpush.msra.mxu0 %v1066
    %1854 = vmatpush.msra.mxu0 %v1054
    %1855 = vmatpush.msra.mxu0 %v1042
    %1856 = vmatpush.msra.mxu0 %v1030
    %1857 = vmatpush.msra.mxu0 %v1018
    %1858 = vmatpush.msra.mxu0 %v1006
    %1859 = vmatpush.msra.mxu0 %v994
    %1860 = vmatpush.msra.mxu0 %v982
    %1861 = vmatpush.msra.mxu0 %v970
    %1862 = vmatpush.msra.mxu0 %v958
    %1863 = vmatpush.msra.mxu0 %v946
    %1864 = vmatpush.msra.mxu0 %v934
    %1865 = vmatmul.f32.gmra.mxu0 %v155
    %v1866 = vpop.f32.mrf.mxu0
    %v1867 = vadd.f32 %v1844, %v1866
    %1868 = vmatmul.f32.gmra.mxu0 %v161
    %v1869 = vpop.f32.mrf.mxu0
    %v1870 = vadd.f32 %v1847, %v1869
    %1871 = vdwg.mxu0
    %1872 = vmatpush.msra.mxu0 %v1306
    %1873 = vmatpush.msra.mxu0 %v1294
    %1874 = vmatpush.msra.mxu0 %v1282
    %1875 = vmatpush.msra.mxu0 %v1270
    %1876 = vmatpush.msra.mxu0 %v1258
    %1877 = vmatpush.msra.mxu0 %v1246
    %1878 = vmatpush.msra.mxu0 %v1234
    %1879 = vmatpush.msra.mxu0 %v1222
    %1880 = vmatpush.msra.mxu0 %v1210
    %1881 = vmatpush.msra.mxu0 %v1198
    %1882 = vmatpush.msra.mxu0 %v1186
    %1883 = vmatpush.msra.mxu0 %v1174
    %1884 = vmatpush.msra.mxu0 %v1162
    %1885 = vmatpush.msra.mxu0 %v1150
    %1886 = vmatpush.msra.mxu0 %v1138
    %1887 = vmatpush.msra.mxu0 %v1126
    %1888 = vmatmul.f32.gmra.mxu0 %v156
    %v1889 = vpop.f32.mrf.mxu0
    %v1890 = vadd.f32 %v1867, %v1889
    %1891 = vmatmul.f32.gmra.mxu0 %v162
    %v1892 = vpop.f32.mrf.mxu0
    %v1893 = vadd.f32 %v1870, %v1892
    %1894 = vdwg.mxu0
    %1895 = vmatpush.msra.mxu0 %v347
    %1896 = vmatpush.msra.mxu0 %v335
    %1897 = vmatpush.msra.mxu0 %v323
    %1898 = vmatpush.msra.mxu0 %v311
    %1899 = vmatpush.msra.mxu0 %v299
    %1900 = vmatpush.msra.mxu0 %v287
    %1901 = vmatpush.msra.mxu0 %v275
    %1902 = vmatpush.msra.mxu0 %v263
    %1903 = vmatpush.msra.mxu0 %v251
    %1904 = vmatpush.msra.mxu0 %v239
    %1905 = vmatpush.msra.mxu0 %v227
    %1906 = vmatpush.msra.mxu0 %v215
    %1907 = vmatpush.msra.mxu0 %v203
    %1908 = vmatpush.msra.mxu0 %v191
    %1909 = vmatpush.msra.mxu0 %v179
    %1910 = vmatpush.msra.mxu0 %v167
    %1911 = vmatmul.f32.gmra.mxu0 %v151
    %v1912 = vpop.f32.mrf.mxu0
    %v1913 = vadd.f32 %v1323, %v1912
    %1914 = vmatmul.f32.gmra.mxu0 %v157
    %v1915 = vpop.f32.mrf.mxu0
    %v1916 = vadd.f32 %v1323, %v1915
    %1917 = vdwg.mxu0
    %1918 = vmatpush.msra.mxu0 %v539
    %1919 = vmatpush.msra.mxu0 %v527
    %1920 = vmatpush.msra.mxu0 %v515
    %1921 = vmatpush.msra.mxu0 %v503
    %1922 = vmatpush.msra.mxu0 %v491
    %1923 = vmatpush.msra.mxu0 %v479
    %1924 = vmatpush.msra.mxu0 %v467
    %1925 = vmatpush.msra.mxu0 %v455
    %1926 = vmatpush.msra.mxu0 %v443
    %1927 = vmatpush.msra.mxu0 %v431
    %1928 = vmatpush.msra.mxu0 %v419
    %1929 = vmatpush.msra.mxu0 %v407
    %1930 = vmatpush.msra.mxu0 %v395
    %1931 = vmatpush.msra.mxu0 %v383
    %1932 = vmatpush.msra.mxu0 %v371
    %1933 = vmatpush.msra.mxu0 %v359
    %1934 = vmatmul.f32.gmra.mxu0 %v152
    %v1935 = vpop.f32.mrf.mxu0
    %v1936 = vadd.f32 %v1913, %v1935
    %1937 = vmatmul.f32.gmra.mxu0 %v158
    %v1938 = vpop.f32.mrf.mxu0
    %v1939 = vadd.f32 %v1916, %v1938
    %1940 = vdwg.mxu0
    %1941 = vmatpush.msra.mxu0 %v731
    %1942 = vmatpush.msra.mxu0 %v719
    %1943 = vmatpush.msra.mxu0 %v707
    %1944 = vmatpush.msra.mxu0 %v695
    %1945 = vmatpush.msra.mxu0 %v683
    %1946 = vmatpush.msra.mxu0 %v671
    %1947 = vmatpush.msra.mxu0 %v659
    %1948 = vmatpush.msra.mxu0 %v647
    %1949 = vmatpush.msra.mxu0 %v635
    %1950 = vmatpush.msra.mxu0 %v623
    %1951 = vmatpush.msra.mxu0 %v611
    %1952 = vmatpush.msra.mxu0 %v599
    %1953 = vmatpush.msra.mxu0 %v587
    %1954 = vmatpush.msra.mxu0 %v575
    %1955 = vmatpush.msra.mxu0 %v563
    %1956 = vmatpush.msra.mxu0 %v551
    %1957 = vmatmul.f32.gmra.mxu0 %v153
    %v1958 = vpop.f32.mrf.mxu0
    %v1959 = vadd.f32 %v1936, %v1958
    %1960 = vmatmul.f32.gmra.mxu0 %v159
    %v1961 = vpop.f32.mrf.mxu0
    %v1962 = vadd.f32 %v1939, %v1961
    %1963 = vdwg.mxu0
    %1964 = vmatpush.msra.mxu0 %v923
    %1965 = vmatpush.msra.mxu0 %v911
    %1966 = vmatpush.msra.mxu0 %v899
    %1967 = vmatpush.msra.mxu0 %v887
    %1968 = vmatpush.msra.mxu0 %v875
    %1969 = vmatpush.msra.mxu0 %v863
    %1970 = vmatpush.msra.mxu0 %v851
    %1971 = vmatpush.msra.mxu0 %v839
    %1972 = vmatpush.msra.mxu0 %v827
    %1973 = vmatpush.msra.mxu0 %v815
    %1974 = vmatpush.msra.mxu0 %v803
    %1975 = vmatpush.msra.mxu0 %v791
    %1976 = vmatpush.msra.mxu0 %v779
    %1977 = vmatpush.msra.mxu0 %v767
    %1978 = vmatpush.msra.mxu0 %v755
    %1979 = vmatpush.msra.mxu0 %v743
    %1980 = vmatmul.f32.gmra.mxu0 %v154
    %v1981 = vpop.f32.mrf.mxu0
    %v1982 = vadd.f32 %v1959, %v1981
    %1983 = vmatmul.f32.gmra.mxu0 %v160
    %v1984 = vpop.f32.mrf.mxu0
    %v1985 = vadd.f32 %v1962, %v1984
    %1986 = vdwg.mxu0
    %1987 = vmatpush.msra.mxu0 %v1115
    %1988 = vmatpush.msra.mxu0 %v1103
    %1989 = vmatpush.msra.mxu0 %v1091
    %1990 = vmatpush.msra.mxu0 %v1079
    %1991 = vmatpush.msra.mxu0 %v1067
    %1992 = vmatpush.msra.mxu0 %v1055
    %1993 = vmatpush.msra.mxu0 %v1043
    %1994 = vmatpush.msra.mxu0 %v1031
    %1995 = vmatpush.msra.mxu0 %v1019
    %1996 = vmatpush.msra.mxu0 %v1007
    %1997 = vmatpush.msra.mxu0 %v995
    %1998 = vmatpush.msra.mxu0 %v983
    %1999 = vmatpush.msra.mxu0 %v971
    %2000 = vmatpush.msra.mxu0 %v959
    %2001 = vmatpush.msra.mxu0 %v947
    %2002 = vmatpush.msra.mxu0 %v935
    %2003 = vmatmul.f32.gmra.mxu0 %v155
    %v2004 = vpop.f32.mrf.mxu0
    %v2005 = vadd.f32 %v1982, %v2004
    %2006 = vmatmul.f32.gmra.mxu0 %v161
    %v2007 = vpop.f32.mrf.mxu0
    %v2008 = vadd.f32 %v1985, %v2007
    %2009 = vdwg.mxu0
    %2010 = vmatpush.msra.mxu0 %v1307
    %2011 = vmatpush.msra.mxu0 %v1295
    %2012 = vmatpush.msra.mxu0 %v1283
    %2013 = vmatpush.msra.mxu0 %v1271
    %2014 = vmatpush.msra.mxu0 %v1259
    %2015 = vmatpush.msra.mxu0 %v1247
    %2016 = vmatpush.msra.mxu0 %v1235
    %2017 = vmatpush.msra.mxu0 %v1223
    %2018 = vmatpush.msra.mxu0 %v1211
    %2019 = vmatpush.msra.mxu0 %v1199
    %2020 = vmatpush.msra.mxu0 %v1187
    %2021 = vmatpush.msra.mxu0 %v1175
    %2022 = vmatpush.msra.mxu0 %v1163
    %2023 = vmatpush.msra.mxu0 %v1151
    %2024 = vmatpush.msra.mxu0 %v1139
    %2025 = vmatpush.msra.mxu0 %v1127
    %2026 = vmatmul.f32.gmra.mxu0 %v156
    %v2027 = vpop.f32.mrf.mxu0
    %v2028 = vadd.f32 %v2005, %v2027
    %2029 = vmatmul.f32.gmra.mxu0 %v162
    %v2030 = vpop.f32.mrf.mxu0
    %v2031 = vadd.f32 %v2008, %v2030
    %2032 = vdwg.mxu0
    %2033 = vmatpush.msra.mxu0 %v348
    %2034 = vmatpush.msra.mxu0 %v336
    %2035 = vmatpush.msra.mxu0 %v324
    %2036 = vmatpush.msra.mxu0 %v312
    %2037 = vmatpush.msra.mxu0 %v300
    %2038 = vmatpush.msra.mxu0 %v288
    %2039 = vmatpush.msra.mxu0 %v276
    %2040 = vmatpush.msra.mxu0 %v264
    %2041 = vmatpush.msra.mxu0 %v252
    %2042 = vmatpush.msra.mxu0 %v240
    %2043 = vmatpush.msra.mxu0 %v228
    %2044 = vmatpush.msra.mxu0 %v216
    %2045 = vmatpush.msra.mxu0 %v204
    %2046 = vmatpush.msra.mxu0 %v192
    %2047 = vmatpush.msra.mxu0 %v180
    %2048 = vmatpush.msra.mxu0 %v168
    %2049 = vmatmul.f32.gmra.mxu0 %v151
    %v2050 = vpop.f32.mrf.mxu0
    %v2051 = vadd.f32 %v1324, %v2050
    %2052 = vmatmul.f32.gmra.mxu0 %v157
    %v2053 = vpop.f32.mrf.mxu0
    %v2054 = vadd.f32 %v1324, %v2053
    %2055 = vdwg.mxu0
    %2056 = vmatpush.msra.mxu0 %v540
    %2057 = vmatpush.msra.mxu0 %v528
    %2058 = vmatpush.msra.mxu0 %v516
    %2059 = vmatpush.msra.mxu0 %v504
    %2060 = vmatpush.msra.mxu0 %v492
    %2061 = vmatpush.msra.mxu0 %v480
    %2062 = vmatpush.msra.mxu0 %v468
    %2063 = vmatpush.msra.mxu0 %v456
    %2064 = vmatpush.msra.mxu0 %v444
    %2065 = vmatpush.msra.mxu0 %v432
    %2066 = vmatpush.msra.mxu0 %v420
    %2067 = vmatpush.msra.mxu0 %v408
    %2068 = vmatpush.msra.mxu0 %v396
    %2069 = vmatpush.msra.mxu0 %v384
    %2070 = vmatpush.msra.mxu0 %v372
    %2071 = vmatpush.msra.mxu0 %v360
    %2072 = vmatmul.f32.gmra.mxu0 %v152
    %v2073 = vpop.f32.mrf.mxu0
    %v2074 = vadd.f32 %v2051, %v2073
    %2075 = vmatmul.f32.gmra.mxu0 %v158
    %v2076 = vpop.f32.mrf.mxu0
    %v2077 = vadd.f32 %v2054, %v2076
    %2078 = vdwg.mxu0
    %2079 = vmatpush.msra.mxu0 %v732
    %2080 = vmatpush.msra.mxu0 %v720
    %2081 = vmatpush.msra.mxu0 %v708
    %2082 = vmatpush.msra.mxu0 %v696
    %2083 = vmatpush.msra.mxu0 %v684
    %2084 = vmatpush.msra.mxu0 %v672
    %2085 = vmatpush.msra.mxu0 %v660
    %2086 = vmatpush.msra.mxu0 %v648
    %2087 = vmatpush.msra.mxu0 %v636
    %2088 = vmatpush.msra.mxu0 %v624
    %2089 = vmatpush.msra.mxu0 %v612
    %2090 = vmatpush.msra.mxu0 %v600
    %2091 = vmatpush.msra.mxu0 %v588
    %2092 = vmatpush.msra.mxu0 %v576
    %2093 = vmatpush.msra.mxu0 %v564
    %2094 = vmatpush.msra.mxu0 %v552
    %2095 = vmatmul.f32.gmra.mxu0 %v153
    %v2096 = vpop.f32.mrf.mxu0
    %v2097 = vadd.f32 %v2074, %v2096
    %2098 = vmatmul.f32.gmra.mxu0 %v159
    %v2099 = vpop.f32.mrf.mxu0
    %v2100 = vadd.f32 %v2077, %v2099
    %2101 = vdwg.mxu0
    %2102 = vmatpush.msra.mxu0 %v924
    %2103 = vmatpush.msra.mxu0 %v912
    %2104 = vmatpush.msra.mxu0 %v900
    %2105 = vmatpush.msra.mxu0 %v888
    %2106 = vmatpush.msra.mxu0 %v876
    %2107 = vmatpush.msra.mxu0 %v864
    %2108 = vmatpush.msra.mxu0 %v852
    %2109 = vmatpush.msra.mxu0 %v840
    %2110 = vmatpush.msra.mxu0 %v828
    %2111 = vmatpush.msra.mxu0 %v816
    %2112 = vmatpush.msra.mxu0 %v804
    %2113 = vmatpush.msra.mxu0 %v792
    %2114 = vmatpush.msra.mxu0 %v780
    %2115 = vmatpush.msra.mxu0 %v768
    %2116 = vmatpush.msra.mxu0 %v756
    %2117 = vmatpush.msra.mxu0 %v744
    %2118 = vmatmul.f32.gmra.mxu0 %v154
    %v2119 = vpop.f32.mrf.mxu0
    %v2120 = vadd.f32 %v2097, %v2119
    %2121 = vmatmul.f32.gmra.mxu0 %v160
    %v2122 = vpop.f32.mrf.mxu0
    %v2123 = vadd.f32 %v2100, %v2122
    %2124 = vdwg.mxu0
    %2125 = vmatpush.msra.mxu0 %v1116
    %2126 = vmatpush.msra.mxu0 %v1104
    %2127 = vmatpush.msra.mxu0 %v1092
    %2128 = vmatpush.msra.mxu0 %v1080
    %2129 = vmatpush.msra.mxu0 %v1068
    %2130 = vmatpush.msra.mxu0 %v1056
    %2131 = vmatpush.msra.mxu0 %v1044
    %2132 = vmatpush.msra.mxu0 %v1032
    %2133 = vmatpush.msra.mxu0 %v1020
    %2134 = vmatpush.msra.mxu0 %v1008
    %2135 = vmatpush.msra.mxu0 %v996
    %2136 = vmatpush.msra.mxu0 %v984
    %2137 = vmatpush.msra.mxu0 %v972
    %2138 = vmatpush.msra.mxu0 %v960
    %2139 = vmatpush.msra.mxu0 %v948
    %2140 = vmatpush.msra.mxu0 %v936
    %2141 = vmatmul.f32.gmra.mxu0 %v155
    %v2142 = vpop.f32.mrf.mxu0
    %v2143 = vadd.f32 %v2120, %v2142
    %2144 = vmatmul.f32.gmra.mxu0 %v161
    %v2145 = vpop.f32.mrf.mxu0
    %v2146 = vadd.f32 %v2123, %v2145
    %2147 = vdwg.mxu0
    %2148 = vmatpush.msra.mxu0 %v1308
    %2149 = vmatpush.msra.mxu0 %v1296
    %2150 = vmatpush.msra.mxu0 %v1284
    %2151 = vmatpush.msra.mxu0 %v1272
    %2152 = vmatpush.msra.mxu0 %v1260
    %2153 = vmatpush.msra.mxu0 %v1248
    %2154 = vmatpush.msra.mxu0 %v1236
    %2155 = vmatpush.msra.mxu0 %v1224
    %2156 = vmatpush.msra.mxu0 %v1212
    %2157 = vmatpush.msra.mxu0 %v1200
    %2158 = vmatpush.msra.mxu0 %v1188
    %2159 = vmatpush.msra.mxu0 %v1176
    %2160 = vmatpush.msra.mxu0 %v1164
    %2161 = vmatpush.msra.mxu0 %v1152
    %2162 = vmatpush.msra.mxu0 %v1140
    %2163 = vmatpush.msra.mxu0 %v1128
    %2164 = vmatmul.f32.gmra.mxu0 %v156
    %v2165 = vpop.f32.mrf.mxu0
    %v2166 = vadd.f32 %v2143, %v2165
    %2167 = vmatmul.f32.gmra.mxu0 %v162
    %v2168 = vpop.f32.mrf.mxu0
    %v2169 = vadd.f32 %v2146, %v2168
    %2170 = vdwg.mxu0
    %2171 = vmatpush.msra.mxu0 %v349
    %2172 = vmatpush.msra.mxu0 %v337
    %2173 = vmatpush.msra.mxu0 %v325
    %2174 = vmatpush.msra.mxu0 %v313
    %2175 = vmatpush.msra.mxu0 %v301
    %2176 = vmatpush.msra.mxu0 %v289
    %2177 = vmatpush.msra.mxu0 %v277
    %2178 = vmatpush.msra.mxu0 %v265
    %2179 = vmatpush.msra.mxu0 %v253
    %2180 = vmatpush.msra.mxu0 %v241
    %2181 = vmatpush.msra.mxu0 %v229
    %2182 = vmatpush.msra.mxu0 %v217
    %2183 = vmatpush.msra.mxu0 %v205
    %2184 = vmatpush.msra.mxu0 %v193
    %2185 = vmatpush.msra.mxu0 %v181
    %2186 = vmatpush.msra.mxu0 %v169
    %2187 = vmatmul.f32.gmra.mxu0 %v151
    %v2188 = vpop.f32.mrf.mxu0
    %v2189 = vadd.f32 %v1325, %v2188
    %2190 = vmatmul.f32.gmra.mxu0 %v157
    %v2191 = vpop.f32.mrf.mxu0
    %v2192 = vadd.f32 %v1325, %v2191
    %2193 = vdwg.mxu0
    %2194 = vmatpush.msra.mxu0 %v541
    %2195 = vmatpush.msra.mxu0 %v529
    %2196 = vmatpush.msra.mxu0 %v517
    %2197 = vmatpush.msra.mxu0 %v505
    %2198 = vmatpush.msra.mxu0 %v493
    %2199 = vmatpush.msra.mxu0 %v481
    %2200 = vmatpush.msra.mxu0 %v469
    %2201 = vmatpush.msra.mxu0 %v457
    %2202 = vmatpush.msra.mxu0 %v445
    %2203 = vmatpush.msra.mxu0 %v433
    %2204 = vmatpush.msra.mxu0 %v421
    %2205 = vmatpush.msra.mxu0 %v409
    %2206 = vmatpush.msra.mxu0 %v397
    %2207 = vmatpush.msra.mxu0 %v385
    %2208 = vmatpush.msra.mxu0 %v373
    %2209 = vmatpush.msra.mxu0 %v361
    %2210 = vmatmul.f32.gmra.mxu0 %v152
    %v2211 = vpop.f32.mrf.mxu0
    %v2212 = vadd.f32 %v2189, %v2211
    %2213 = vmatmul.f32.gmra.mxu0 %v158
    %v2214 = vpop.f32.mrf.mxu0
    %v2215 = vadd.f32 %v2192, %v2214
    %2216 = vdwg.mxu0
    %2217 = vmatpush.msra.mxu0 %v733
    %2218 = vmatpush.msra.mxu0 %v721
    %2219 = vmatpush.msra.mxu0 %v709
    %2220 = vmatpush.msra.mxu0 %v697
    %2221 = vmatpush.msra.mxu0 %v685
    %2222 = vmatpush.msra.mxu0 %v673
    %2223 = vmatpush.msra.mxu0 %v661
    %2224 = vmatpush.msra.mxu0 %v649
    %2225 = vmatpush.msra.mxu0 %v637
    %2226 = vmatpush.msra.mxu0 %v625
    %2227 = vmatpush.msra.mxu0 %v613
    %2228 = vmatpush.msra.mxu0 %v601
    %2229 = vmatpush.msra.mxu0 %v589
    %2230 = vmatpush.msra.mxu0 %v577
    %2231 = vmatpush.msra.mxu0 %v565
    %2232 = vmatpush.msra.mxu0 %v553
    %2233 = vmatmul.f32.gmra.mxu0 %v153
    %v2234 = vpop.f32.mrf.mxu0
    %v2235 = vadd.f32 %v2212, %v2234
    %2236 = vmatmul.f32.gmra.mxu0 %v159
    %v2237 = vpop.f32.mrf.mxu0
    %v2238 = vadd.f32 %v2215, %v2237
    %2239 = vdwg.mxu0
    %2240 = vmatpush.msra.mxu0 %v925
    %2241 = vmatpush.msra.mxu0 %v913
    %2242 = vmatpush.msra.mxu0 %v901
    %2243 = vmatpush.msra.mxu0 %v889
    %2244 = vmatpush.msra.mxu0 %v877
    %2245 = vmatpush.msra.mxu0 %v865
    %2246 = vmatpush.msra.mxu0 %v853
    %2247 = vmatpush.msra.mxu0 %v841
    %2248 = vmatpush.msra.mxu0 %v829
    %2249 = vmatpush.msra.mxu0 %v817
    %2250 = vmatpush.msra.mxu0 %v805
    %2251 = vmatpush.msra.mxu0 %v793
    %2252 = vmatpush.msra.mxu0 %v781
    %2253 = vmatpush.msra.mxu0 %v769
    %2254 = vmatpush.msra.mxu0 %v757
    %2255 = vmatpush.msra.mxu0 %v745
    %2256 = vmatmul.f32.gmra.mxu0 %v154
    %v2257 = vpop.f32.mrf.mxu0
    %v2258 = vadd.f32 %v2235, %v2257
    %2259 = vmatmul.f32.gmra.mxu0 %v160
    %v2260 = vpop.f32.mrf.mxu0
    %v2261 = vadd.f32 %v2238, %v2260
    %2262 = vdwg.mxu0
    %2263 = vmatpush.msra.mxu0 %v1117
    %2264 = vmatpush.msra.mxu0 %v1105
    %2265 = vmatpush.msra.mxu0 %v1093
    %2266 = vmatpush.msra.mxu0 %v1081
    %2267 = vmatpush.msra.mxu0 %v1069
    %2268 = vmatpush.msra.mxu0 %v1057
    %2269 = vmatpush.msra.mxu0 %v1045
    %2270 = vmatpush.msra.mxu0 %v1033
    %2271 = vmatpush.msra.mxu0 %v1021
    %2272 = vmatpush.msra.mxu0 %v1009
    %2273 = vmatpush.msra.mxu0 %v997
    %2274 = vmatpush.msra.mxu0 %v985
    %2275 = vmatpush.msra.mxu0 %v973
    %2276 = vmatpush.msra.mxu0 %v961
    %2277 = vmatpush.msra.mxu0 %v949
    %2278 = vmatpush.msra.mxu0 %v937
    %2279 = vmatmul.f32.gmra.mxu0 %v155
    %v2280 = vpop.f32.mrf.mxu0
    %v2281 = vadd.f32 %v2258, %v2280
    %2282 = vmatmul.f32.gmra.mxu0 %v161
    %v2283 = vpop.f32.mrf.mxu0
    %v2284 = vadd.f32 %v2261, %v2283
    %2285 = vdwg.mxu0
    %2286 = vmatpush.msra.mxu0 %v1309
    %2287 = vmatpush.msra.mxu0 %v1297
    %2288 = vmatpush.msra.mxu0 %v1285
    %2289 = vmatpush.msra.mxu0 %v1273
    %2290 = vmatpush.msra.mxu0 %v1261
    %2291 = vmatpush.msra.mxu0 %v1249
    %2292 = vmatpush.msra.mxu0 %v1237
    %2293 = vmatpush.msra.mxu0 %v1225
    %2294 = vmatpush.msra.mxu0 %v1213
    %2295 = vmatpush.msra.mxu0 %v1201
    %2296 = vmatpush.msra.mxu0 %v1189
    %2297 = vmatpush.msra.mxu0 %v1177
    %2298 = vmatpush.msra.mxu0 %v1165
    %2299 = vmatpush.msra.mxu0 %v1153
    %2300 = vmatpush.msra.mxu0 %v1141
    %2301 = vmatpush.msra.mxu0 %v1129
    %2302 = vmatmul.f32.gmra.mxu0 %v156
    %v2303 = vpop.f32.mrf.mxu0
    %v2304 = vadd.f32 %v2281, %v2303
    %2305 = vmatmul.f32.gmra.mxu0 %v162
    %v2306 = vpop.f32.mrf.mxu0
    %v2307 = vadd.f32 %v2284, %v2306
    %2308 = vdwg.mxu0
    %2309 = vmatpush.msra.mxu0 %v350
    %2310 = vmatpush.msra.mxu0 %v338
    %2311 = vmatpush.msra.mxu0 %v326
    %2312 = vmatpush.msra.mxu0 %v314
    %2313 = vmatpush.msra.mxu0 %v302
    %2314 = vmatpush.msra.mxu0 %v290
    %2315 = vmatpush.msra.mxu0 %v278
    %2316 = vmatpush.msra.mxu0 %v266
    %2317 = vmatpush.msra.mxu0 %v254
    %2318 = vmatpush.msra.mxu0 %v242
    %2319 = vmatpush.msra.mxu0 %v230
    %2320 = vmatpush.msra.mxu0 %v218
    %2321 = vmatpush.msra.mxu0 %v206
    %2322 = vmatpush.msra.mxu0 %v194
    %2323 = vmatpush.msra.mxu0 %v182
    %2324 = vmatpush.msra.mxu0 %v170
    %2325 = vmatmul.f32.gmra.mxu0 %v151
    %v2326 = vpop.f32.mrf.mxu0
    %v2327 = vadd.f32 %v1326, %v2326
    %2328 = vmatmul.f32.gmra.mxu0 %v157
    %v2329 = vpop.f32.mrf.mxu0
    %v2330 = vadd.f32 %v1326, %v2329
    %2331 = vdwg.mxu0
    %2332 = vmatpush.msra.mxu0 %v542
    %2333 = vmatpush.msra.mxu0 %v530
    %2334 = vmatpush.msra.mxu0 %v518
    %2335 = vmatpush.msra.mxu0 %v506
    %2336 = vmatpush.msra.mxu0 %v494
    %2337 = vmatpush.msra.mxu0 %v482
    %2338 = vmatpush.msra.mxu0 %v470
    %2339 = vmatpush.msra.mxu0 %v458
    %2340 = vmatpush.msra.mxu0 %v446
    %2341 = vmatpush.msra.mxu0 %v434
    %2342 = vmatpush.msra.mxu0 %v422
    %2343 = vmatpush.msra.mxu0 %v410
    %2344 = vmatpush.msra.mxu0 %v398
    %2345 = vmatpush.msra.mxu0 %v386
    %2346 = vmatpush.msra.mxu0 %v374
    %2347 = vmatpush.msra.mxu0 %v362
    %2348 = vmatmul.f32.gmra.mxu0 %v152
    %v2349 = vpop.f32.mrf.mxu0
    %v2350 = vadd.f32 %v2327, %v2349
    %2351 = vmatmul.f32.gmra.mxu0 %v158
    %v2352 = vpop.f32.mrf.mxu0
    %v2353 = vadd.f32 %v2330, %v2352
    %2354 = vdwg.mxu0
    %2355 = vmatpush.msra.mxu0 %v734
    %2356 = vmatpush.msra.mxu0 %v722
    %2357 = vmatpush.msra.mxu0 %v710
    %2358 = vmatpush.msra.mxu0 %v698
    %2359 = vmatpush.msra.mxu0 %v686
    %2360 = vmatpush.msra.mxu0 %v674
    %2361 = vmatpush.msra.mxu0 %v662
    %2362 = vmatpush.msra.mxu0 %v650
    %2363 = vmatpush.msra.mxu0 %v638
    %2364 = vmatpush.msra.mxu0 %v626
    %2365 = vmatpush.msra.mxu0 %v614
    %2366 = vmatpush.msra.mxu0 %v602
    %2367 = vmatpush.msra.mxu0 %v590
    %2368 = vmatpush.msra.mxu0 %v578
    %2369 = vmatpush.msra.mxu0 %v566
    %2370 = vmatpush.msra.mxu0 %v554
    %2371 = vmatmul.f32.gmra.mxu0 %v153
    %v2372 = vpop.f32.mrf.mxu0
    %v2373 = vadd.f32 %v2350, %v2372
    %2374 = vmatmul.f32.gmra.mxu0 %v159
    %v2375 = vpop.f32.mrf.mxu0
    %v2376 = vadd.f32 %v2353, %v2375
    %2377 = vdwg.mxu0
    %2378 = vmatpush.msra.mxu0 %v926
    %2379 = vmatpush.msra.mxu0 %v914
    %2380 = vmatpush.msra.mxu0 %v902
    %2381 = vmatpush.msra.mxu0 %v890
    %2382 = vmatpush.msra.mxu0 %v878
    %2383 = vmatpush.msra.mxu0 %v866
    %2384 = vmatpush.msra.mxu0 %v854
    %2385 = vmatpush.msra.mxu0 %v842
    %2386 = vmatpush.msra.mxu0 %v830
    %2387 = vmatpush.msra.mxu0 %v818
    %2388 = vmatpush.msra.mxu0 %v806
    %2389 = vmatpush.msra.mxu0 %v794
    %2390 = vmatpush.msra.mxu0 %v782
    %2391 = vmatpush.msra.mxu0 %v770
    %2392 = vmatpush.msra.mxu0 %v758
    %2393 = vmatpush.msra.mxu0 %v746
    %2394 = vmatmul.f32.gmra.mxu0 %v154
    %v2395 = vpop.f32.mrf.mxu0
    %v2396 = vadd.f32 %v2373, %v2395
    %2397 = vmatmul.f32.gmra.mxu0 %v160
    %v2398 = vpop.f32.mrf.mxu0
    %v2399 = vadd.f32 %v2376, %v2398
    %2400 = vdwg.mxu0
    %2401 = vmatpush.msra.mxu0 %v1118
    %2402 = vmatpush.msra.mxu0 %v1106
    %2403 = vmatpush.msra.mxu0 %v1094
    %2404 = vmatpush.msra.mxu0 %v1082
    %2405 = vmatpush.msra.mxu0 %v1070
    %2406 = vmatpush.msra.mxu0 %v1058
    %2407 = vmatpush.msra.mxu0 %v1046
    %2408 = vmatpush.msra.mxu0 %v1034
    %2409 = vmatpush.msra.mxu0 %v1022
    %2410 = vmatpush.msra.mxu0 %v1010
    %2411 = vmatpush.msra.mxu0 %v998
    %2412 = vmatpush.msra.mxu0 %v986
    %2413 = vmatpush.msra.mxu0 %v974
    %2414 = vmatpush.msra.mxu0 %v962
    %2415 = vmatpush.msra.mxu0 %v950
    %2416 = vmatpush.msra.mxu0 %v938
    %2417 = vmatmul.f32.gmra.mxu0 %v155
    %v2418 = vpop.f32.mrf.mxu0
    %v2419 = vadd.f32 %v2396, %v2418
    %2420 = vmatmul.f32.gmra.mxu0 %v161
    %v2421 = vpop.f32.mrf.mxu0
    %v2422 = vadd.f32 %v2399, %v2421
    %2423 = vdwg.mxu0
    %2424 = vmatpush.msra.mxu0 %v1310
    %2425 = vmatpush.msra.mxu0 %v1298
    %2426 = vmatpush.msra.mxu0 %v1286
    %2427 = vmatpush.msra.mxu0 %v1274
    %2428 = vmatpush.msra.mxu0 %v1262
    %2429 = vmatpush.msra.mxu0 %v1250
    %2430 = vmatpush.msra.mxu0 %v1238
    %2431 = vmatpush.msra.mxu0 %v1226
    %2432 = vmatpush.msra.mxu0 %v1214
    %2433 = vmatpush.msra.mxu0 %v1202
    %2434 = vmatpush.msra.mxu0 %v1190
    %2435 = vmatpush.msra.mxu0 %v1178
    %2436 = vmatpush.msra.mxu0 %v1166
    %2437 = vmatpush.msra.mxu0 %v1154
    %2438 = vmatpush.msra.mxu0 %v1142
    %2439 = vmatpush.msra.mxu0 %v1130
    %2440 = vmatmul.f32.gmra.mxu0 %v156
    %v2441 = vpop.f32.mrf.mxu0
    %v2442 = vadd.f32 %v2419, %v2441
    %2443 = vmatmul.f32.gmra.mxu0 %v162
    %v2444 = vpop.f32.mrf.mxu0
    %v2445 = vadd.f32 %v2422, %v2444
    %2446 = vdwg.mxu0
    %2447 = vmatpush.msra.mxu0 %v351
    %2448 = vmatpush.msra.mxu0 %v339
    %2449 = vmatpush.msra.mxu0 %v327
    %2450 = vmatpush.msra.mxu0 %v315
    %2451 = vmatpush.msra.mxu0 %v303
    %2452 = vmatpush.msra.mxu0 %v291
    %2453 = vmatpush.msra.mxu0 %v279
    %2454 = vmatpush.msra.mxu0 %v267
    %2455 = vmatpush.msra.mxu0 %v255
    %2456 = vmatpush.msra.mxu0 %v243
    %2457 = vmatpush.msra.mxu0 %v231
    %2458 = vmatpush.msra.mxu0 %v219
    %2459 = vmatpush.msra.mxu0 %v207
    %2460 = vmatpush.msra.mxu0 %v195
    %2461 = vmatpush.msra.mxu0 %v183
    %2462 = vmatpush.msra.mxu0 %v171
    %2463 = vmatmul.f32.gmra.mxu0 %v151
    %v2464 = vpop.f32.mrf.mxu0
    %v2465 = vadd.f32 %v1327, %v2464
    %2466 = vmatmul.f32.gmra.mxu0 %v157
    %v2467 = vpop.f32.mrf.mxu0
    %v2468 = vadd.f32 %v1327, %v2467
    %2469 = vdwg.mxu0
    %2470 = vmatpush.msra.mxu0 %v543
    %2471 = vmatpush.msra.mxu0 %v531
    %2472 = vmatpush.msra.mxu0 %v519
    %2473 = vmatpush.msra.mxu0 %v507
    %2474 = vmatpush.msra.mxu0 %v495
    %2475 = vmatpush.msra.mxu0 %v483
    %2476 = vmatpush.msra.mxu0 %v471
    %2477 = vmatpush.msra.mxu0 %v459
    %2478 = vmatpush.msra.mxu0 %v447
    %2479 = vmatpush.msra.mxu0 %v435
    %2480 = vmatpush.msra.mxu0 %v423
    %2481 = vmatpush.msra.mxu0 %v411
    %2482 = vmatpush.msra.mxu0 %v399
    %2483 = vmatpush.msra.mxu0 %v387
    %2484 = vmatpush.msra.mxu0 %v375
    %2485 = vmatpush.msra.mxu0 %v363
    %2486 = vmatmul.f32.gmra.mxu0 %v152
    %v2487 = vpop.f32.mrf.mxu0
    %v2488 = vadd.f32 %v2465, %v2487
    %2489 = vmatmul.f32.gmra.mxu0 %v158
    %v2490 = vpop.f32.mrf.mxu0
    %v2491 = vadd.f32 %v2468, %v2490
    %2492 = vdwg.mxu0
    %2493 = vmatpush.msra.mxu0 %v735
    %2494 = vmatpush.msra.mxu0 %v723
    %2495 = vmatpush.msra.mxu0 %v711
    %2496 = vmatpush.msra.mxu0 %v699
    %2497 = vmatpush.msra.mxu0 %v687
    %2498 = vmatpush.msra.mxu0 %v675
    %2499 = vmatpush.msra.mxu0 %v663
    %2500 = vmatpush.msra.mxu0 %v651
    %2501 = vmatpush.msra.mxu0 %v639
    %2502 = vmatpush.msra.mxu0 %v627
    %2503 = vmatpush.msra.mxu0 %v615
    %2504 = vmatpush.msra.mxu0 %v603
    %2505 = vmatpush.msra.mxu0 %v591
    %2506 = vmatpush.msra.mxu0 %v579
    %2507 = vmatpush.msra.mxu0 %v567
    %2508 = vmatpush.msra.mxu0 %v555
    %2509 = vmatmul.f32.gmra.mxu0 %v153
    %v2510 = vpop.f32.mrf.mxu0
    %v2511 = vadd.f32 %v2488, %v2510
    %2512 = vmatmul.f32.gmra.mxu0 %v159
    %v2513 = vpop.f32.mrf.mxu0
    %v2514 = vadd.f32 %v2491, %v2513
    %2515 = vdwg.mxu0
    %2516 = vmatpush.msra.mxu0 %v927
    %2517 = vmatpush.msra.mxu0 %v915
    %2518 = vmatpush.msra.mxu0 %v903
    %2519 = vmatpush.msra.mxu0 %v891
    %2520 = vmatpush.msra.mxu0 %v879
    %2521 = vmatpush.msra.mxu0 %v867
    %2522 = vmatpush.msra.mxu0 %v855
    %2523 = vmatpush.msra.mxu0 %v843
    %2524 = vmatpush.msra.mxu0 %v831
    %2525 = vmatpush.msra.mxu0 %v819
    %2526 = vmatpush.msra.mxu0 %v807
    %2527 = vmatpush.msra.mxu0 %v795
    %2528 = vmatpush.msra.mxu0 %v783
    %2529 = vmatpush.msra.mxu0 %v771
    %2530 = vmatpush.msra.mxu0 %v759
    %2531 = vmatpush.msra.mxu0 %v747
    %2532 = vmatmul.f32.gmra.mxu0 %v154
    %v2533 = vpop.f32.mrf.mxu0
    %v2534 = vadd.f32 %v2511, %v2533
    %2535 = vmatmul.f32.gmra.mxu0 %v160
    %v2536 = vpop.f32.mrf.mxu0
    %v2537 = vadd.f32 %v2514, %v2536
    %2538 = vdwg.mxu0
    %2539 = vmatpush.msra.mxu0 %v1119
    %2540 = vmatpush.msra.mxu0 %v1107
    %2541 = vmatpush.msra.mxu0 %v1095
    %2542 = vmatpush.msra.mxu0 %v1083
    %2543 = vmatpush.msra.mxu0 %v1071
    %2544 = vmatpush.msra.mxu0 %v1059
    %2545 = vmatpush.msra.mxu0 %v1047
    %2546 = vmatpush.msra.mxu0 %v1035
    %2547 = vmatpush.msra.mxu0 %v1023
    %2548 = vmatpush.msra.mxu0 %v1011
    %2549 = vmatpush.msra.mxu0 %v999
    %2550 = vmatpush.msra.mxu0 %v987
    %2551 = vmatpush.msra.mxu0 %v975
    %2552 = vmatpush.msra.mxu0 %v963
    %2553 = vmatpush.msra.mxu0 %v951
    %2554 = vmatpush.msra.mxu0 %v939
    %2555 = vmatmul.f32.gmra.mxu0 %v155
    %v2556 = vpop.f32.mrf.mxu0
    %v2557 = vadd.f32 %v2534, %v2556
    %2558 = vmatmul.f32.gmra.mxu0 %v161
    %v2559 = vpop.f32.mrf.mxu0
    %v2560 = vadd.f32 %v2537, %v2559
    %2561 = vdwg.mxu0
    %2562 = vmatpush.msra.mxu0 %v1311
    %2563 = vmatpush.msra.mxu0 %v1299
    %2564 = vmatpush.msra.mxu0 %v1287
    %2565 = vmatpush.msra.mxu0 %v1275
    %2566 = vmatpush.msra.mxu0 %v1263
    %2567 = vmatpush.msra.mxu0 %v1251
    %2568 = vmatpush.msra.mxu0 %v1239
    %2569 = vmatpush.msra.mxu0 %v1227
    %2570 = vmatpush.msra.mxu0 %v1215
    %2571 = vmatpush.msra.mxu0 %v1203
    %2572 = vmatpush.msra.mxu0 %v1191
    %2573 = vmatpush.msra.mxu0 %v1179
    %2574 = vmatpush.msra.mxu0 %v1167
    %2575 = vmatpush.msra.mxu0 %v1155
    %2576 = vmatpush.msra.mxu0 %v1143
    %2577 = vmatpush.msra.mxu0 %v1131
    %2578 = vmatmul.f32.gmra.mxu0 %v156
    %v2579 = vpop.f32.mrf.mxu0
    %v2580 = vadd.f32 %v2557, %v2579
    %2581 = vmatmul.f32.gmra.mxu0 %v162
    %v2582 = vpop.f32.mrf.mxu0
    %v2583 = vadd.f32 %v2560, %v2582
    %2584 = vdwg.mxu0
    %2585 = vmatpush.msra.mxu0 %v352
    %2586 = vmatpush.msra.mxu0 %v340
    %2587 = vmatpush.msra.mxu0 %v328
    %2588 = vmatpush.msra.mxu0 %v316
    %2589 = vmatpush.msra.mxu0 %v304
    %2590 = vmatpush.msra.mxu0 %v292
    %2591 = vmatpush.msra.mxu0 %v280
    %2592 = vmatpush.msra.mxu0 %v268
    %2593 = vmatpush.msra.mxu0 %v256
    %2594 = vmatpush.msra.mxu0 %v244
    %2595 = vmatpush.msra.mxu0 %v232
    %2596 = vmatpush.msra.mxu0 %v220
    %2597 = vmatpush.msra.mxu0 %v208
    %2598 = vmatpush.msra.mxu0 %v196
    %2599 = vmatpush.msra.mxu0 %v184
    %2600 = vmatpush.msra.mxu0 %v172
    %2601 = vmatmul.f32.gmra.mxu0 %v151
    %v2602 = vpop.f32.mrf.mxu0
    %v2603 = vadd.f32 %v1328, %v2602
    %2604 = vmatmul.f32.gmra.mxu0 %v157
    %v2605 = vpop.f32.mrf.mxu0
    %v2606 = vadd.f32 %v1328, %v2605
    %2607 = vdwg.mxu0
    %2608 = vmatpush.msra.mxu0 %v544
    %2609 = vmatpush.msra.mxu0 %v532
    %2610 = vmatpush.msra.mxu0 %v520
    %2611 = vmatpush.msra.mxu0 %v508
    %2612 = vmatpush.msra.mxu0 %v496
    %2613 = vmatpush.msra.mxu0 %v484
    %2614 = vmatpush.msra.mxu0 %v472
    %2615 = vmatpush.msra.mxu0 %v460
    %2616 = vmatpush.msra.mxu0 %v448
    %2617 = vmatpush.msra.mxu0 %v436
    %2618 = vmatpush.msra.mxu0 %v424
    %2619 = vmatpush.msra.mxu0 %v412
    %2620 = vmatpush.msra.mxu0 %v400
    %2621 = vmatpush.msra.mxu0 %v388
    %2622 = vmatpush.msra.mxu0 %v376
    %2623 = vmatpush.msra.mxu0 %v364
    %2624 = vmatmul.f32.gmra.mxu0 %v152
    %v2625 = vpop.f32.mrf.mxu0
    %v2626 = vadd.f32 %v2603, %v2625
    %2627 = vmatmul.f32.gmra.mxu0 %v158
    %v2628 = vpop.f32.mrf.mxu0
    %v2629 = vadd.f32 %v2606, %v2628
    %2630 = vdwg.mxu0
    %2631 = vmatpush.msra.mxu0 %v736
    %2632 = vmatpush.msra.mxu0 %v724
    %2633 = vmatpush.msra.mxu0 %v712
    %2634 = vmatpush.msra.mxu0 %v700
    %2635 = vmatpush.msra.mxu0 %v688
    %2636 = vmatpush.msra.mxu0 %v676
    %2637 = vmatpush.msra.mxu0 %v664
    %2638 = vmatpush.msra.mxu0 %v652
    %2639 = vmatpush.msra.mxu0 %v640
    %2640 = vmatpush.msra.mxu0 %v628
    %2641 = vmatpush.msra.mxu0 %v616
    %2642 = vmatpush.msra.mxu0 %v604
    %2643 = vmatpush.msra.mxu0 %v592
    %2644 = vmatpush.msra.mxu0 %v580
    %2645 = vmatpush.msra.mxu0 %v568
    %2646 = vmatpush.msra.mxu0 %v556
    %2647 = vmatmul.f32.gmra.mxu0 %v153
    %v2648 = vpop.f32.mrf.mxu0
    %v2649 = vadd.f32 %v2626, %v2648
    %2650 = vmatmul.f32.gmra.mxu0 %v159
    %v2651 = vpop.f32.mrf.mxu0
    %v2652 = vadd.f32 %v2629, %v2651
    %2653 = vdwg.mxu0
    %2654 = vmatpush.msra.mxu0 %v928
    %2655 = vmatpush.msra.mxu0 %v916
    %2656 = vmatpush.msra.mxu0 %v904
    %2657 = vmatpush.msra.mxu0 %v892
    %2658 = vmatpush.msra.mxu0 %v880
    %2659 = vmatpush.msra.mxu0 %v868
    %2660 = vmatpush.msra.mxu0 %v856
    %2661 = vmatpush.msra.mxu0 %v844
    %2662 = vmatpush.msra.mxu0 %v832
    %2663 = vmatpush.msra.mxu0 %v820
    %2664 = vmatpush.msra.mxu0 %v808
    %2665 = vmatpush.msra.mxu0 %v796
    %2666 = vmatpush.msra.mxu0 %v784
    %2667 = vmatpush.msra.mxu0 %v772
    %2668 = vmatpush.msra.mxu0 %v760
    %2669 = vmatpush.msra.mxu0 %v748
    %2670 = vmatmul.f32.gmra.mxu0 %v154
    %v2671 = vpop.f32.mrf.mxu0
    %v2672 = vadd.f32 %v2649, %v2671
    %2673 = vmatmul.f32.gmra.mxu0 %v160
    %v2674 = vpop.f32.mrf.mxu0
    %v2675 = vadd.f32 %v2652, %v2674
    %2676 = vdwg.mxu0
    %2677 = vmatpush.msra.mxu0 %v1120
    %2678 = vmatpush.msra.mxu0 %v1108
    %2679 = vmatpush.msra.mxu0 %v1096
    %2680 = vmatpush.msra.mxu0 %v1084
    %2681 = vmatpush.msra.mxu0 %v1072
    %2682 = vmatpush.msra.mxu0 %v1060
    %2683 = vmatpush.msra.mxu0 %v1048
    %2684 = vmatpush.msra.mxu0 %v1036
    %2685 = vmatpush.msra.mxu0 %v1024
    %2686 = vmatpush.msra.mxu0 %v1012
    %2687 = vmatpush.msra.mxu0 %v1000
    %2688 = vmatpush.msra.mxu0 %v988
    %2689 = vmatpush.msra.mxu0 %v976
    %2690 = vmatpush.msra.mxu0 %v964
    %2691 = vmatpush.msra.mxu0 %v952
    %2692 = vmatpush.msra.mxu0 %v940
    %2693 = vmatmul.f32.gmra.mxu0 %v155
    %v2694 = vpop.f32.mrf.mxu0
    %v2695 = vadd.f32 %v2672, %v2694
    %2696 = vmatmul.f32.gmra.mxu0 %v161
    %v2697 = vpop.f32.mrf.mxu0
    %v2698 = vadd.f32 %v2675, %v2697
    %2699 = vdwg.mxu0
    %2700 = vmatpush.msra.mxu0 %v1312
    %2701 = vmatpush.msra.mxu0 %v1300
    %2702 = vmatpush.msra.mxu0 %v1288
    %2703 = vmatpush.msra.mxu0 %v1276
    %2704 = vmatpush.msra.mxu0 %v1264
    %2705 = vmatpush.msra.mxu0 %v1252
    %2706 = vmatpush.msra.mxu0 %v1240
    %2707 = vmatpush.msra.mxu0 %v1228
    %2708 = vmatpush.msra.mxu0 %v1216
    %2709 = vmatpush.msra.mxu0 %v1204
    %2710 = vmatpush.msra.mxu0 %v1192
    %2711 = vmatpush.msra.mxu0 %v1180
    %2712 = vmatpush.msra.mxu0 %v1168
    %2713 = vmatpush.msra.mxu0 %v1156
    %2714 = vmatpush.msra.mxu0 %v1144
    %2715 = vmatpush.msra.mxu0 %v1132
    %2716 = vmatmul.f32.gmra.mxu0 %v156
    %v2717 = vpop.f32.mrf.mxu0
    %v2718 = vadd.f32 %v2695, %v2717
    %2719 = vmatmul.f32.gmra.mxu0 %v162
    %v2720 = vpop.f32.mrf.mxu0
    %v2721 = vadd.f32 %v2698, %v2720
    %2722 = vdwg.mxu0
    %2723 = vmatpush.msra.mxu0 %v353
    %2724 = vmatpush.msra.mxu0 %v341
    %2725 = vmatpush.msra.mxu0 %v329
    %2726 = vmatpush.msra.mxu0 %v317
    %2727 = vmatpush.msra.mxu0 %v305
    %2728 = vmatpush.msra.mxu0 %v293
    %2729 = vmatpush.msra.mxu0 %v281
    %2730 = vmatpush.msra.mxu0 %v269
    %2731 = vmatpush.msra.mxu0 %v257
    %2732 = vmatpush.msra.mxu0 %v245
    %2733 = vmatpush.msra.mxu0 %v233
    %2734 = vmatpush.msra.mxu0 %v221
    %2735 = vmatpush.msra.mxu0 %v209
    %2736 = vmatpush.msra.mxu0 %v197
    %2737 = vmatpush.msra.mxu0 %v185
    %2738 = vmatpush.msra.mxu0 %v173
    %2739 = vmatmul.f32.gmra.mxu0 %v151
    %v2740 = vpop.f32.mrf.mxu0
    %v2741 = vadd.f32 %v1329, %v2740
    %2742 = vmatmul.f32.gmra.mxu0 %v157
    %v2743 = vpop.f32.mrf.mxu0
    %v2744 = vadd.f32 %v1329, %v2743
    %2745 = vdwg.mxu0
    %2746 = vmatpush.msra.mxu0 %v545
    %2747 = vmatpush.msra.mxu0 %v533
    %2748 = vmatpush.msra.mxu0 %v521
    %2749 = vmatpush.msra.mxu0 %v509
    %2750 = vmatpush.msra.mxu0 %v497
    %2751 = vmatpush.msra.mxu0 %v485
    %2752 = vmatpush.msra.mxu0 %v473
    %2753 = vmatpush.msra.mxu0 %v461
    %2754 = vmatpush.msra.mxu0 %v449
    %2755 = vmatpush.msra.mxu0 %v437
    %2756 = vmatpush.msra.mxu0 %v425
    %2757 = vmatpush.msra.mxu0 %v413
    %2758 = vmatpush.msra.mxu0 %v401
    %2759 = vmatpush.msra.mxu0 %v389
    %2760 = vmatpush.msra.mxu0 %v377
    %2761 = vmatpush.msra.mxu0 %v365
    %2762 = vmatmul.f32.gmra.mxu0 %v152
    %v2763 = vpop.f32.mrf.mxu0
    %v2764 = vadd.f32 %v2741, %v2763
    %2765 = vmatmul.f32.gmra.mxu0 %v158
    %v2766 = vpop.f32.mrf.mxu0
    %v2767 = vadd.f32 %v2744, %v2766
    %2768 = vdwg.mxu0
    %2769 = vmatpush.msra.mxu0 %v737
    %2770 = vmatpush.msra.mxu0 %v725
    %2771 = vmatpush.msra.mxu0 %v713
    %2772 = vmatpush.msra.mxu0 %v701
    %2773 = vmatpush.msra.mxu0 %v689
    %2774 = vmatpush.msra.mxu0 %v677
    %2775 = vmatpush.msra.mxu0 %v665
    %2776 = vmatpush.msra.mxu0 %v653
    %2777 = vmatpush.msra.mxu0 %v641
    %2778 = vmatpush.msra.mxu0 %v629
    %2779 = vmatpush.msra.mxu0 %v617
    %2780 = vmatpush.msra.mxu0 %v605
    %2781 = vmatpush.msra.mxu0 %v593
    %2782 = vmatpush.msra.mxu0 %v581
    %2783 = vmatpush.msra.mxu0 %v569
    %2784 = vmatpush.msra.mxu0 %v557
    %2785 = vmatmul.f32.gmra.mxu0 %v153
    %v2786 = vpop.f32.mrf.mxu0
    %v2787 = vadd.f32 %v2764, %v2786
    %2788 = vmatmul.f32.gmra.mxu0 %v159
    %v2789 = vpop.f32.mrf.mxu0
    %v2790 = vadd.f32 %v2767, %v2789
    %2791 = vdwg.mxu0
    %2792 = vmatpush.msra.mxu0 %v929
    %2793 = vmatpush.msra.mxu0 %v917
    %2794 = vmatpush.msra.mxu0 %v905
    %2795 = vmatpush.msra.mxu0 %v893
    %2796 = vmatpush.msra.mxu0 %v881
    %2797 = vmatpush.msra.mxu0 %v869
    %2798 = vmatpush.msra.mxu0 %v857
    %2799 = vmatpush.msra.mxu0 %v845
    %2800 = vmatpush.msra.mxu0 %v833
    %2801 = vmatpush.msra.mxu0 %v821
    %2802 = vmatpush.msra.mxu0 %v809
    %2803 = vmatpush.msra.mxu0 %v797
    %2804 = vmatpush.msra.mxu0 %v785
    %2805 = vmatpush.msra.mxu0 %v773
    %2806 = vmatpush.msra.mxu0 %v761
    %2807 = vmatpush.msra.mxu0 %v749
    %2808 = vmatmul.f32.gmra.mxu0 %v154
    %v2809 = vpop.f32.mrf.mxu0
    %v2810 = vadd.f32 %v2787, %v2809
    %2811 = vmatmul.f32.gmra.mxu0 %v160
    %v2812 = vpop.f32.mrf.mxu0
    %v2813 = vadd.f32 %v2790, %v2812
    %2814 = vdwg.mxu0
    %2815 = vmatpush.msra.mxu0 %v1121
    %2816 = vmatpush.msra.mxu0 %v1109
    %2817 = vmatpush.msra.mxu0 %v1097
    %2818 = vmatpush.msra.mxu0 %v1085
    %2819 = vmatpush.msra.mxu0 %v1073
    %2820 = vmatpush.msra.mxu0 %v1061
    %2821 = vmatpush.msra.mxu0 %v1049
    %2822 = vmatpush.msra.mxu0 %v1037
    %2823 = vmatpush.msra.mxu0 %v1025
    %2824 = vmatpush.msra.mxu0 %v1013
    %2825 = vmatpush.msra.mxu0 %v1001
    %2826 = vmatpush.msra.mxu0 %v989
    %2827 = vmatpush.msra.mxu0 %v977
    %2828 = vmatpush.msra.mxu0 %v965
    %2829 = vmatpush.msra.mxu0 %v953
    %2830 = vmatpush.msra.mxu0 %v941
    %2831 = vmatmul.f32.gmra.mxu0 %v155
    %v2832 = vpop.f32.mrf.mxu0
    %v2833 = vadd.f32 %v2810, %v2832
    %2834 = vmatmul.f32.gmra.mxu0 %v161
    %v2835 = vpop.f32.mrf.mxu0
    %v2836 = vadd.f32 %v2813, %v2835
    %2837 = vdwg.mxu0
    %2838 = vmatpush.msra.mxu0 %v1313
    %2839 = vmatpush.msra.mxu0 %v1301
    %2840 = vmatpush.msra.mxu0 %v1289
    %2841 = vmatpush.msra.mxu0 %v1277
    %2842 = vmatpush.msra.mxu0 %v1265
    %2843 = vmatpush.msra.mxu0 %v1253
    %2844 = vmatpush.msra.mxu0 %v1241
    %2845 = vmatpush.msra.mxu0 %v1229
    %2846 = vmatpush.msra.mxu0 %v1217
    %2847 = vmatpush.msra.mxu0 %v1205
    %2848 = vmatpush.msra.mxu0 %v1193
    %2849 = vmatpush.msra.mxu0 %v1181
    %2850 = vmatpush.msra.mxu0 %v1169
    %2851 = vmatpush.msra.mxu0 %v1157
    %2852 = vmatpush.msra.mxu0 %v1145
    %2853 = vmatpush.msra.mxu0 %v1133
    %2854 = vmatmul.f32.gmra.mxu0 %v156
    %v2855 = vpop.f32.mrf.mxu0
    %v2856 = vadd.f32 %v2833, %v2855
    %2857 = vmatmul.f32.gmra.mxu0 %v162
    %v2858 = vpop.f32.mrf.mxu0
    %v2859 = vadd.f32 %v2836, %v2858
    %2860 = vdwg.mxu0
    %2861 = vmatpush.msra.mxu0 %v354
    %2862 = vmatpush.msra.mxu0 %v342
    %2863 = vmatpush.msra.mxu0 %v330
    %2864 = vmatpush.msra.mxu0 %v318
    %2865 = vmatpush.msra.mxu0 %v306
    %2866 = vmatpush.msra.mxu0 %v294
    %2867 = vmatpush.msra.mxu0 %v282
    %2868 = vmatpush.msra.mxu0 %v270
    %2869 = vmatpush.msra.mxu0 %v258
    %2870 = vmatpush.msra.mxu0 %v246
    %2871 = vmatpush.msra.mxu0 %v234
    %2872 = vmatpush.msra.mxu0 %v222
    %2873 = vmatpush.msra.mxu0 %v210
    %2874 = vmatpush.msra.mxu0 %v198
    %2875 = vmatpush.msra.mxu0 %v186
    %2876 = vmatpush.msra.mxu0 %v174
    %2877 = vmatmul.f32.gmra.mxu0 %v151
    %v2878 = vpop.f32.mrf.mxu0
    %v2879 = vadd.f32 %v1330, %v2878
    %2880 = vmatmul.f32.gmra.mxu0 %v157
    %v2881 = vpop.f32.mrf.mxu0
    %v2882 = vadd.f32 %v1330, %v2881
    %2883 = vdwg.mxu0
    %2884 = vmatpush.msra.mxu0 %v546
    %2885 = vmatpush.msra.mxu0 %v534
    %2886 = vmatpush.msra.mxu0 %v522
    %2887 = vmatpush.msra.mxu0 %v510
    %2888 = vmatpush.msra.mxu0 %v498
    %2889 = vmatpush.msra.mxu0 %v486
    %2890 = vmatpush.msra.mxu0 %v474
    %2891 = vmatpush.msra.mxu0 %v462
    %2892 = vmatpush.msra.mxu0 %v450
    %2893 = vmatpush.msra.mxu0 %v438
    %2894 = vmatpush.msra.mxu0 %v426
    %2895 = vmatpush.msra.mxu0 %v414
    %2896 = vmatpush.msra.mxu0 %v402
    %2897 = vmatpush.msra.mxu0 %v390
    %2898 = vmatpush.msra.mxu0 %v378
    %2899 = vmatpush.msra.mxu0 %v366
    %2900 = vmatmul.f32.gmra.mxu0 %v152
    %v2901 = vpop.f32.mrf.mxu0
    %v2902 = vadd.f32 %v2879, %v2901
    %2903 = vmatmul.f32.gmra.mxu0 %v158
    %v2904 = vpop.f32.mrf.mxu0
    %v2905 = vadd.f32 %v2882, %v2904
    %2906 = vdwg.mxu0
    %2907 = vmatpush.msra.mxu0 %v738
    %2908 = vmatpush.msra.mxu0 %v726
    %2909 = vmatpush.msra.mxu0 %v714
    %2910 = vmatpush.msra.mxu0 %v702
    %2911 = vmatpush.msra.mxu0 %v690
    %2912 = vmatpush.msra.mxu0 %v678
    %2913 = vmatpush.msra.mxu0 %v666
    %2914 = vmatpush.msra.mxu0 %v654
    %2915 = vmatpush.msra.mxu0 %v642
    %2916 = vmatpush.msra.mxu0 %v630
    %2917 = vmatpush.msra.mxu0 %v618
    %2918 = vmatpush.msra.mxu0 %v606
    %2919 = vmatpush.msra.mxu0 %v594
    %2920 = vmatpush.msra.mxu0 %v582
    %2921 = vmatpush.msra.mxu0 %v570
    %2922 = vmatpush.msra.mxu0 %v558
    %2923 = vmatmul.f32.gmra.mxu0 %v153
    %v2924 = vpop.f32.mrf.mxu0
    %v2925 = vadd.f32 %v2902, %v2924
    %2926 = vmatmul.f32.gmra.mxu0 %v159
    %v2927 = vpop.f32.mrf.mxu0
    %v2928 = vadd.f32 %v2905, %v2927
    %2929 = vdwg.mxu0
    %2930 = vmatpush.msra.mxu0 %v930
    %2931 = vmatpush.msra.mxu0 %v918
    %2932 = vmatpush.msra.mxu0 %v906
    %2933 = vmatpush.msra.mxu0 %v894
    %2934 = vmatpush.msra.mxu0 %v882
    %2935 = vmatpush.msra.mxu0 %v870
    %2936 = vmatpush.msra.mxu0 %v858
    %2937 = vmatpush.msra.mxu0 %v846
    %2938 = vmatpush.msra.mxu0 %v834
    %2939 = vmatpush.msra.mxu0 %v822
    %2940 = vmatpush.msra.mxu0 %v810
    %2941 = vmatpush.msra.mxu0 %v798
    %2942 = vmatpush.msra.mxu0 %v786
    %2943 = vmatpush.msra.mxu0 %v774
    %2944 = vmatpush.msra.mxu0 %v762
    %2945 = vmatpush.msra.mxu0 %v750
    %2946 = vmatmul.f32.gmra.mxu0 %v154
    %v2947 = vpop.f32.mrf.mxu0
    %v2948 = vadd.f32 %v2925, %v2947
    %2949 = vmatmul.f32.gmra.mxu0 %v160
    %v2950 = vpop.f32.mrf.mxu0
    %v2951 = vadd.f32 %v2928, %v2950
    %2952 = vdwg.mxu0
    %2953 = vmatpush.msra.mxu0 %v1122
    %2954 = vmatpush.msra.mxu0 %v1110
    %2955 = vmatpush.msra.mxu0 %v1098
    %2956 = vmatpush.msra.mxu0 %v1086
    %2957 = vmatpush.msra.mxu0 %v1074
    %2958 = vmatpush.msra.mxu0 %v1062
    %2959 = vmatpush.msra.mxu0 %v1050
    %2960 = vmatpush.msra.mxu0 %v1038
    %2961 = vmatpush.msra.mxu0 %v1026
    %2962 = vmatpush.msra.mxu0 %v1014
    %2963 = vmatpush.msra.mxu0 %v1002
    %2964 = vmatpush.msra.mxu0 %v990
    %2965 = vmatpush.msra.mxu0 %v978
    %2966 = vmatpush.msra.mxu0 %v966
    %2967 = vmatpush.msra.mxu0 %v954
    %2968 = vmatpush.msra.mxu0 %v942
    %2969 = vmatmul.f32.gmra.mxu0 %v155
    %v2970 = vpop.f32.mrf.mxu0
    %v2971 = vadd.f32 %v2948, %v2970
    %2972 = vmatmul.f32.gmra.mxu0 %v161
    %v2973 = vpop.f32.mrf.mxu0
    %v2974 = vadd.f32 %v2951, %v2973
    %2975 = vdwg.mxu0
    %2976 = vmatpush.msra.mxu0 %v1314
    %2977 = vmatpush.msra.mxu0 %v1302
    %2978 = vmatpush.msra.mxu0 %v1290
    %2979 = vmatpush.msra.mxu0 %v1278
    %2980 = vmatpush.msra.mxu0 %v1266
    %2981 = vmatpush.msra.mxu0 %v1254
    %2982 = vmatpush.msra.mxu0 %v1242
    %2983 = vmatpush.msra.mxu0 %v1230
    %2984 = vmatpush.msra.mxu0 %v1218
    %2985 = vmatpush.msra.mxu0 %v1206
    %2986 = vmatpush.msra.mxu0 %v1194
    %2987 = vmatpush.msra.mxu0 %v1182
    %2988 = vmatpush.msra.mxu0 %v1170
    %2989 = vmatpush.msra.mxu0 %v1158
    %2990 = vmatpush.msra.mxu0 %v1146
    %2991 = vmatpush.msra.mxu0 %v1134
    %2992 = vmatmul.f32.gmra.mxu0 %v156
    %v2993 = vpop.f32.mrf.mxu0
    %v2994 = vadd.f32 %v2971, %v2993
    %2995 = vmatmul.f32.gmra.mxu0 %v162
    %v2996 = vpop.f32.mrf.mxu0
    %v2997 = vadd.f32 %v2974, %v2996
    %2998 = vdwg.mxu0
    %2999 = vmatpush.xpose.msra.mxu0 0.0
    %3000 = vmatpush.xpose.msra.mxu0 0.0
    %3001 = vmatpush.xpose.msra.mxu0 0.0
    %3002 = vmatpush.xpose.msra.mxu0 0.0
    %3003 = vmatpush.xpose.msra.mxu0 0.0
    %3004 = vmatpush.xpose.msra.mxu0 0.0
    %3005 = vmatpush.xpose.msra.mxu0 0.0
    %3006 = vmatpush.xpose.msra.mxu0 0.0
    %3007 = vmatpush.xpose.msra.mxu0 0.0
    %3008 = vmatpush.xpose.msra.mxu0 0.0
    %3009 = vmatpush.xpose.msra.mxu0 0.0
    %3010 = vmatpush.xpose.msra.mxu0 0.0
    %3011 = vmatpush.xpose.msra.mxu0 0.0
    %3012 = vmatpush.xpose.msra.mxu0 0.0
    %3013 = vmatpush.xpose.msra.mxu0 0.0
    %3014 = vmatpush.xpose.msra.mxu0 %v2304
    %3015 = vmatmul.f32.gmra.mxu0 %v1476
    %v3016 = vpop.f32.mrf.mxu0
    %v3017 = vadd.f32 0.0, %v3016
    %3018 = vdwg.mxu0
    %3019 = vmatpush.xpose.msra.mxu0 0.0
    %3020 = vmatpush.xpose.msra.mxu0 0.0
    %3021 = vmatpush.xpose.msra.mxu0 0.0
    %3022 = vmatpush.xpose.msra.mxu0 0.0
    %3023 = vmatpush.xpose.msra.mxu0 0.0
    %3024 = vmatpush.xpose.msra.mxu0 0.0
    %3025 = vmatpush.xpose.msra.mxu0 0.0
    %3026 = vmatpush.xpose.msra.mxu0 0.0
    %3027 = vmatpush.xpose.msra.mxu0 0.0
    %3028 = vmatpush.xpose.msra.mxu0 0.0
    %3029 = vmatpush.xpose.msra.mxu0 0.0
    %3030 = vmatpush.xpose.msra.mxu0 0.0
    %3031 = vmatpush.xpose.msra.mxu0 0.0
    %3032 = vmatpush.xpose.msra.mxu0 0.0
    %3033 = vmatpush.xpose.msra.mxu0 0.0
    %3034 = vmatpush.xpose.msra.mxu0 %v2442
    %3035 = vmatmul.f32.gmra.mxu0 %v1614
    %v3036 = vpop.f32.mrf.mxu0
    %v3037 = vadd.f32 %v3017, %v3036
    %3038 = vdwg.mxu0
    %3039 = vmatpush.xpose.msra.mxu0 0.0
    %3040 = vmatpush.xpose.msra.mxu0 0.0
    %3041 = vmatpush.xpose.msra.mxu0 0.0
    %3042 = vmatpush.xpose.msra.mxu0 0.0
    %3043 = vmatpush.xpose.msra.mxu0 0.0
    %3044 = vmatpush.xpose.msra.mxu0 0.0
    %3045 = vmatpush.xpose.msra.mxu0 0.0
    %3046 = vmatpush.xpose.msra.mxu0 0.0
    %3047 = vmatpush.xpose.msra.mxu0 0.0
    %3048 = vmatpush.xpose.msra.mxu0 0.0
    %3049 = vmatpush.xpose.msra.mxu0 0.0
    %3050 = vmatpush.xpose.msra.mxu0 0.0
    %3051 = vmatpush.xpose.msra.mxu0 0.0
    %3052 = vmatpush.xpose.msra.mxu0 0.0
    %3053 = vmatpush.xpose.msra.mxu0 0.0
    %3054 = vmatpush.xpose.msra.mxu0 %v2580
    %3055 = vmatmul.f32.gmra.mxu0 %v1752
    %v3056 = vpop.f32.mrf.mxu0
    %v3057 = vadd.f32 %v3037, %v3056
    %3058 = vdwg.mxu0
    %3059 = vmatpush.xpose.msra.mxu0 0.0
    %3060 = vmatpush.xpose.msra.mxu0 0.0
    %3061 = vmatpush.xpose.msra.mxu0 0.0
    %3062 = vmatpush.xpose.msra.mxu0 0.0
    %3063 = vmatpush.xpose.msra.mxu0 0.0
    %3064 = vmatpush.xpose.msra.mxu0 0.0
    %3065 = vmatpush.xpose.msra.mxu0 0.0
    %3066 = vmatpush.xpose.msra.mxu0 0.0
    %3067 = vmatpush.xpose.msra.mxu0 0.0
    %3068 = vmatpush.xpose.msra.mxu0 0.0
    %3069 = vmatpush.xpose.msra.mxu0 0.0
    %3070 = vmatpush.xpose.msra.mxu0 0.0
    %3071 = vmatpush.xpose.msra.mxu0 0.0
    %3072 = vmatpush.xpose.msra.mxu0 0.0
    %3073 = vmatpush.xpose.msra.mxu0 0.0
    %3074 = vmatpush.xpose.msra.mxu0 %v2718
    %3075 = vmatmul.f32.gmra.mxu0 %v1890
    %v3076 = vpop.f32.mrf.mxu0
    %v3077 = vadd.f32 %v3057, %v3076
    %3078 = vdwg.mxu0
    %3079 = vmatpush.xpose.msra.mxu0 0.0
    %3080 = vmatpush.xpose.msra.mxu0 0.0
    %3081 = vmatpush.xpose.msra.mxu0 0.0
    %3082 = vmatpush.xpose.msra.mxu0 0.0
    %3083 = vmatpush.xpose.msra.mxu0 0.0
    %3084 = vmatpush.xpose.msra.mxu0 0.0
    %3085 = vmatpush.xpose.msra.mxu0 0.0
    %3086 = vmatpush.xpose.msra.mxu0 0.0
    %3087 = vmatpush.xpose.msra.mxu0 0.0
    %3088 = vmatpush.xpose.msra.mxu0 0.0
    %3089 = vmatpush.xpose.msra.mxu0 0.0
    %3090 = vmatpush.xpose.msra.mxu0 0.0
    %3091 = vmatpush.xpose.msra.mxu0 0.0
    %3092 = vmatpush.xpose.msra.mxu0 0.0
    %3093 = vmatpush.xpose.msra.mxu0 0.0
    %3094 = vmatpush.xpose.msra.mxu0 %v2856
    %3095 = vmatmul.f32.gmra.mxu0 %v2028
    %v3096 = vpop.f32.mrf.mxu0
    %v3097 = vadd.f32 %v3077, %v3096
    %3098 = vdwg.mxu0
    %3099 = vmatpush.xpose.msra.mxu0 0.0
    %3100 = vmatpush.xpose.msra.mxu0 0.0
    %3101 = vmatpush.xpose.msra.mxu0 0.0
    %3102 = vmatpush.xpose.msra.mxu0 0.0
    %3103 = vmatpush.xpose.msra.mxu0 0.0
    %3104 = vmatpush.xpose.msra.mxu0 0.0
    %3105 = vmatpush.xpose.msra.mxu0 0.0
    %3106 = vmatpush.xpose.msra.mxu0 0.0
    %3107 = vmatpush.xpose.msra.mxu0 0.0
    %3108 = vmatpush.xpose.msra.mxu0 0.0
    %3109 = vmatpush.xpose.msra.mxu0 0.0
    %3110 = vmatpush.xpose.msra.mxu0 0.0
    %3111 = vmatpush.xpose.msra.mxu0 0.0
    %3112 = vmatpush.xpose.msra.mxu0 0.0
    %3113 = vmatpush.xpose.msra.mxu0 0.0
    %3114 = vmatpush.xpose.msra.mxu0 %v2994
    %3115 = vmatmul.f32.gmra.mxu0 %v2166
    %v3116 = vpop.f32.mrf.mxu0
    %v3117 = vadd.f32 %v3097, %v3116
    %3118 = vdwg.mxu0
    %3119 = vmatpush.xpose.msra.mxu0 0.0
    %3120 = vmatpush.xpose.msra.mxu0 0.0
    %3121 = vmatpush.xpose.msra.mxu0 0.0
    %3122 = vmatpush.xpose.msra.mxu0 0.0
    %3123 = vmatpush.xpose.msra.mxu0 0.0
    %3124 = vmatpush.xpose.msra.mxu0 0.0
    %3125 = vmatpush.xpose.msra.mxu0 0.0
    %3126 = vmatpush.xpose.msra.mxu0 0.0
    %3127 = vmatpush.xpose.msra.mxu0 0.0
    %3128 = vmatpush.xpose.msra.mxu0 0.0
    %3129 = vmatpush.xpose.msra.mxu0 0.0
    %3130 = vmatpush.xpose.msra.mxu0 0.0
    %3131 = vmatpush.xpose.msra.mxu0 0.0
    %3132 = vmatpush.xpose.msra.mxu0 0.0
    %3133 = vmatpush.xpose.msra.mxu0 0.0
    %3134 = vmatpush.xpose.msra.mxu0 %v2307
    %3135 = vmatmul.f32.gmra.mxu0 %v1479
    %v3136 = vpop.f32.mrf.mxu0
    %v3137 = vadd.f32 0.0, %v3136
    %3138 = vdwg.mxu0
    %3139 = vmatpush.xpose.msra.mxu0 0.0
    %3140 = vmatpush.xpose.msra.mxu0 0.0
    %3141 = vmatpush.xpose.msra.mxu0 0.0
    %3142 = vmatpush.xpose.msra.mxu0 0.0
    %3143 = vmatpush.xpose.msra.mxu0 0.0
    %3144 = vmatpush.xpose.msra.mxu0 0.0
    %3145 = vmatpush.xpose.msra.mxu0 0.0
    %3146 = vmatpush.xpose.msra.mxu0 0.0
    %3147 = vmatpush.xpose.msra.mxu0 0.0
    %3148 = vmatpush.xpose.msra.mxu0 0.0
    %3149 = vmatpush.xpose.msra.mxu0 0.0
    %3150 = vmatpush.xpose.msra.mxu0 0.0
    %3151 = vmatpush.xpose.msra.mxu0 0.0
    %3152 = vmatpush.xpose.msra.mxu0 0.0
    %3153 = vmatpush.xpose.msra.mxu0 0.0
    %3154 = vmatpush.xpose.msra.mxu0 %v2445
    %3155 = vmatmul.f32.gmra.mxu0 %v1617
    %v3156 = vpop.f32.mrf.mxu0
    %v3157 = vadd.f32 %v3137, %v3156
    %3158 = vdwg.mxu0
    %3159 = vmatpush.xpose.msra.mxu0 0.0
    %3160 = vmatpush.xpose.msra.mxu0 0.0
    %3161 = vmatpush.xpose.msra.mxu0 0.0
    %3162 = vmatpush.xpose.msra.mxu0 0.0
    %3163 = vmatpush.xpose.msra.mxu0 0.0
    %3164 = vmatpush.xpose.msra.mxu0 0.0
    %3165 = vmatpush.xpose.msra.mxu0 0.0
    %3166 = vmatpush.xpose.msra.mxu0 0.0
    %3167 = vmatpush.xpose.msra.mxu0 0.0
    %3168 = vmatpush.xpose.msra.mxu0 0.0
    %3169 = vmatpush.xpose.msra.mxu0 0.0
    %3170 = vmatpush.xpose.msra.mxu0 0.0
    %3171 = vmatpush.xpose.msra.mxu0 0.0
    %3172 = vmatpush.xpose.msra.mxu0 0.0
    %3173 = vmatpush.xpose.msra.mxu0 0.0
    %3174 = vmatpush.xpose.msra.mxu0 %v2583
    %3175 = vmatmul.f32.gmra.mxu0 %v1755
    %v3176 = vpop.f32.mrf.mxu0
    %v3177 = vadd.f32 %v3157, %v3176
    %3178 = vdwg.mxu0
    %3179 = vmatpush.xpose.msra.mxu0 0.0
    %3180 = vmatpush.xpose.msra.mxu0 0.0
    %3181 = vmatpush.xpose.msra.mxu0 0.0
    %3182 = vmatpush.xpose.msra.mxu0 0.0
    %3183 = vmatpush.xpose.msra.mxu0 0.0
    %3184 = vmatpush.xpose.msra.mxu0 0.0
    %3185 = vmatpush.xpose.msra.mxu0 0.0
    %3186 = vmatpush.xpose.msra.mxu0 0.0
    %3187 = vmatpush.xpose.msra.mxu0 0.0
    %3188 = vmatpush.xpose.msra.mxu0 0.0
    %3189 = vmatpush.xpose.msra.mxu0 0.0
    %3190 = vmatpush.xpose.msra.mxu0 0.0
    %3191 = vmatpush.xpose.msra.mxu0 0.0
    %3192 = vmatpush.xpose.msra.mxu0 0.0
    %3193 = vmatpush.xpose.msra.mxu0 0.0
    %3194 = vmatpush.xpose.msra.mxu0 %v2721
    %3195 = vmatmul.f32.gmra.mxu0 %v1893
    %v3196 = vpop.f32.mrf.mxu0
    %v3197 = vadd.f32 %v3177, %v3196
    %3198 = vdwg.mxu0
    %3199 = vmatpush.xpose.msra.mxu0 0.0
    %3200 = vmatpush.xpose.msra.mxu0 0.0
    %3201 = vmatpush.xpose.msra.mxu0 0.0
    %3202 = vmatpush.xpose.msra.mxu0 0.0
    %3203 = vmatpush.xpose.msra.mxu0 0.0
    %3204 = vmatpush.xpose.msra.mxu0 0.0
    %3205 = vmatpush.xpose.msra.mxu0 0.0
    %3206 = vmatpush.xpose.msra.mxu0 0.0
    %3207 = vmatpush.xpose.msra.mxu0 0.0
    %3208 = vmatpush.xpose.msra.mxu0 0.0
    %3209 = vmatpush.xpose.msra.mxu0 0.0
    %3210 = vmatpush.xpose.msra.mxu0 0.0
    %3211 = vmatpush.xpose.msra.mxu0 0.0
    %3212 = vmatpush.xpose.msra.mxu0 0.0
    %3213 = vmatpush.xpose.msra.mxu0 0.0
    %3214 = vmatpush.xpose.msra.mxu0 %v2859
    %3215 = vmatmul.f32.gmra.mxu0 %v2031
    %v3216 = vpop.f32.mrf.mxu0
    %v3217 = vadd.f32 %v3197, %v3216
    %3218 = vdwg.mxu0
    %3219 = vmatpush.xpose.msra.mxu0 0.0
    %3220 = vmatpush.xpose.msra.mxu0 0.0
    %3221 = vmatpush.xpose.msra.mxu0 0.0
    %3222 = vmatpush.xpose.msra.mxu0 0.0
    %3223 = vmatpush.xpose.msra.mxu0 0.0
    %3224 = vmatpush.xpose.msra.mxu0 0.0
    %3225 = vmatpush.xpose.msra.mxu0 0.0
    %3226 = vmatpush.xpose.msra.mxu0 0.0
    %3227 = vmatpush.xpose.msra.mxu0 0.0
    %3228 = vmatpush.xpose.msra.mxu0 0.0
    %3229 = vmatpush.xpose.msra.mxu0 0.0
    %3230 = vmatpush.xpose.msra.mxu0 0.0
    %3231 = vmatpush.xpose.msra.mxu0 0.0
    %3232 = vmatpush.xpose.msra.mxu0 0.0
    %3233 = vmatpush.xpose.msra.mxu0 0.0
    %3234 = vmatpush.xpose.msra.mxu0 %v2997
    %3235 = vmatmul.f32.gmra.mxu0 %v2169
    %v3236 = vpop.f32.mrf.mxu0
    %v3237 = vadd.f32 %v3217, %v3236
    %3238 = vdwg.mxu0
    %vm3239 = vcmask 64512
    %v3241 = vsel %vm3239, %v3117, 0
    %3243 = vmatpush.msra.mxu0 0.0
    %3244 = vmatpush.msra.mxu0 0.0
    %3245 = vmatpush.msra.mxu0 0.0
    %3246 = vmatpush.msra.mxu0 0.0
    %3247 = vmatpush.msra.mxu0 0.0
    %3248 = vmatpush.msra.mxu0 0.0
    %3249 = vmatpush.msra.mxu0 0.0
    %3250 = vmatpush.msra.mxu0 0.0
    %3251 = vmatpush.msra.mxu0 0.0
    %3252 = vmatpush.msra.mxu0 0.0
    %3253 = vmatpush.msra.mxu0 0.0
    %3254 = vmatpush.msra.mxu0 0.0
    %3255 = vmatpush.msra.mxu0 0.0
    %3256 = vmatpush.msra.mxu0 0.0
    %3257 = vmatpush.msra.mxu0 0.0
    %3258 = vmatpush.msra.mxu0 %v151
    %3259 = vmatmul.f32.gmra.mxu0 %v3241
    %v3260 = vpop.f32.mrf.mxu0
    %v3261 = vadd.f32 0.0, %v3260
    %3262 = vdwg.mxu0
    %3263 = vmatpush.msra.mxu0 0.0
    %3264 = vmatpush.msra.mxu0 0.0
    %3265 = vmatpush.msra.mxu0 0.0
    %3266 = vmatpush.msra.mxu0 0.0
    %3267 = vmatpush.msra.mxu0 0.0
    %3268 = vmatpush.msra.mxu0 0.0
    %3269 = vmatpush.msra.mxu0 0.0
    %3270 = vmatpush.msra.mxu0 0.0
    %3271 = vmatpush.msra.mxu0 0.0
    %3272 = vmatpush.msra.mxu0 0.0
    %3273 = vmatpush.msra.mxu0 0.0
    %3274 = vmatpush.msra.mxu0 0.0
    %3275 = vmatpush.msra.mxu0 0.0
    %3276 = vmatpush.msra.mxu0 0.0
    %3277 = vmatpush.msra.mxu0 0.0
    %3278 = vmatpush.msra.mxu0 %v152
    %3279 = vmatmul.f32.gmra.mxu0 %v3241
    %v3280 = vpop.f32.mrf.mxu0
    %v3281 = vadd.f32 0.0, %v3280
    %3282 = vdwg.mxu0
    %3283 = vmatpush.msra.mxu0 0.0
    %3284 = vmatpush.msra.mxu0 0.0
    %3285 = vmatpush.msra.mxu0 0.0
    %3286 = vmatpush.msra.mxu0 0.0
    %3287 = vmatpush.msra.mxu0 0.0
    %3288 = vmatpush.msra.mxu0 0.0
    %3289 = vmatpush.msra.mxu0 0.0
    %3290 = vmatpush.msra.mxu0 0.0
    %3291 = vmatpush.msra.mxu0 0.0
    %3292 = vmatpush.msra.mxu0 0.0
    %3293 = vmatpush.msra.mxu0 0.0
    %3294 = vmatpush.msra.mxu0 0.0
    %3295 = vmatpush.msra.mxu0 0.0
    %3296 = vmatpush.msra.mxu0 0.0
    %3297 = vmatpush.msra.mxu0 0.0
    %3298 = vmatpush.msra.mxu0 %v153
    %3299 = vmatmul.f32.gmra.mxu0 %v3241
    %v3300 = vpop.f32.mrf.mxu0
    %v3301 = vadd.f32 0.0, %v3300
    %3302 = vdwg.mxu0
    %3303 = vmatpush.msra.mxu0 0.0
    %3304 = vmatpush.msra.mxu0 0.0
    %3305 = vmatpush.msra.mxu0 0.0
    %3306 = vmatpush.msra.mxu0 0.0
    %3307 = vmatpush.msra.mxu0 0.0
    %3308 = vmatpush.msra.mxu0 0.0
    %3309 = vmatpush.msra.mxu0 0.0
    %3310 = vmatpush.msra.mxu0 0.0
    %3311 = vmatpush.msra.mxu0 0.0
    %3312 = vmatpush.msra.mxu0 0.0
    %3313 = vmatpush.msra.mxu0 0.0
    %3314 = vmatpush.msra.mxu0 0.0
    %3315 = vmatpush.msra.mxu0 0.0
    %3316 = vmatpush.msra.mxu0 0.0
    %3317 = vmatpush.msra.mxu0 0.0
    %3318 = vmatpush.msra.mxu0 %v154
    %3319 = vmatmul.f32.gmra.mxu0 %v3241
    %v3320 = vpop.f32.mrf.mxu0
    %v3321 = vadd.f32 0.0, %v3320
    %3322 = vdwg.mxu0
    %3323 = vmatpush.msra.mxu0 0.0
    %3324 = vmatpush.msra.mxu0 0.0
    %3325 = vmatpush.msra.mxu0 0.0
    %3326 = vmatpush.msra.mxu0 0.0
    %3327 = vmatpush.msra.mxu0 0.0
    %3328 = vmatpush.msra.mxu0 0.0
    %3329 = vmatpush.msra.mxu0 0.0
    %3330 = vmatpush.msra.mxu0 0.0
    %3331 = vmatpush.msra.mxu0 0.0
    %3332 = vmatpush.msra.mxu0 0.0
    %3333 = vmatpush.msra.mxu0 0.0
    %3334 = vmatpush.msra.mxu0 0.0
    %3335 = vmatpush.msra.mxu0 0.0
    %3336 = vmatpush.msra.mxu0 0.0
    %3337 = vmatpush.msra.mxu0 0.0
    %3338 = vmatpush.msra.mxu0 %v155
    %3339 = vmatmul.f32.gmra.mxu0 %v3241
    %v3340 = vpop.f32.mrf.mxu0
    %v3341 = vadd.f32 0.0, %v3340
    %3342 = vdwg.mxu0
    %3343 = vmatpush.msra.mxu0 0.0
    %3344 = vmatpush.msra.mxu0 0.0
    %3345 = vmatpush.msra.mxu0 0.0
    %3346 = vmatpush.msra.mxu0 0.0
    %3347 = vmatpush.msra.mxu0 0.0
    %3348 = vmatpush.msra.mxu0 0.0
    %3349 = vmatpush.msra.mxu0 0.0
    %3350 = vmatpush.msra.mxu0 0.0
    %3351 = vmatpush.msra.mxu0 0.0
    %3352 = vmatpush.msra.mxu0 0.0
    %3353 = vmatpush.msra.mxu0 0.0
    %3354 = vmatpush.msra.mxu0 0.0
    %3355 = vmatpush.msra.mxu0 0.0
    %3356 = vmatpush.msra.mxu0 0.0
    %3357 = vmatpush.msra.mxu0 0.0
    %3358 = vmatpush.msra.mxu0 %v156
    %3359 = vmatmul.f32.gmra.mxu0 %v3241
    %v3360 = vpop.f32.mrf.mxu0
    %v3361 = vadd.f32 0.0, %v3360
    %3362 = vdwg.mxu0
    %v3364 = vsel %vm3239, %v3237, 0
    %3366 = vmatpush.msra.mxu0 0.0
    %3367 = vmatpush.msra.mxu0 0.0
    %3368 = vmatpush.msra.mxu0 0.0
    %3369 = vmatpush.msra.mxu0 0.0
    %3370 = vmatpush.msra.mxu0 0.0
    %3371 = vmatpush.msra.mxu0 0.0
    %3372 = vmatpush.msra.mxu0 0.0
    %3373 = vmatpush.msra.mxu0 0.0
    %3374 = vmatpush.msra.mxu0 0.0
    %3375 = vmatpush.msra.mxu0 0.0
    %3376 = vmatpush.msra.mxu0 0.0
    %3377 = vmatpush.msra.mxu0 0.0
    %3378 = vmatpush.msra.mxu0 0.0
    %3379 = vmatpush.msra.mxu0 0.0
    %3380 = vmatpush.msra.mxu0 0.0
    %3381 = vmatpush.msra.mxu0 %v157
    %3382 = vmatmul.f32.gmra.mxu0 %v3364
    %v3383 = vpop.f32.mrf.mxu0
    %v3384 = vadd.f32 0.0, %v3383
    %3385 = vdwg.mxu0
    %3386 = vmatpush.msra.mxu0 0.0
    %3387 = vmatpush.msra.mxu0 0.0
    %3388 = vmatpush.msra.mxu0 0.0
    %3389 = vmatpush.msra.mxu0 0.0
    %3390 = vmatpush.msra.mxu0 0.0
    %3391 = vmatpush.msra.mxu0 0.0
    %3392 = vmatpush.msra.mxu0 0.0
    %3393 = vmatpush.msra.mxu0 0.0
    %3394 = vmatpush.msra.mxu0 0.0
    %3395 = vmatpush.msra.mxu0 0.0
    %3396 = vmatpush.msra.mxu0 0.0
    %3397 = vmatpush.msra.mxu0 0.0
    %3398 = vmatpush.msra.mxu0 0.0
    %3399 = vmatpush.msra.mxu0 0.0
    %3400 = vmatpush.msra.mxu0 0.0
    %3401 = vmatpush.msra.mxu0 %v158
    %3402 = vmatmul.f32.gmra.mxu0 %v3364
    %v3403 = vpop.f32.mrf.mxu0
    %v3404 = vadd.f32 0.0, %v3403
    %3405 = vdwg.mxu0
    %3406 = vmatpush.msra.mxu0 0.0
    %3407 = vmatpush.msra.mxu0 0.0
    %3408 = vmatpush.msra.mxu0 0.0
    %3409 = vmatpush.msra.mxu0 0.0
    %3410 = vmatpush.msra.mxu0 0.0
    %3411 = vmatpush.msra.mxu0 0.0
    %3412 = vmatpush.msra.mxu0 0.0
    %3413 = vmatpush.msra.mxu0 0.0
    %3414 = vmatpush.msra.mxu0 0.0
    %3415 = vmatpush.msra.mxu0 0.0
    %3416 = vmatpush.msra.mxu0 0.0
    %3417 = vmatpush.msra.mxu0 0.0
    %3418 = vmatpush.msra.mxu0 0.0
    %3419 = vmatpush.msra.mxu0 0.0
    %3420 = vmatpush.msra.mxu0 0.0
    %3421 = vmatpush.msra.mxu0 %v159
    %3422 = vmatmul.f32.gmra.mxu0 %v3364
    %v3423 = vpop.f32.mrf.mxu0
    %v3424 = vadd.f32 0.0, %v3423
    %3425 = vdwg.mxu0
    %3426 = vmatpush.msra.mxu0 0.0
    %3427 = vmatpush.msra.mxu0 0.0
    %3428 = vmatpush.msra.mxu0 0.0
    %3429 = vmatpush.msra.mxu0 0.0
    %3430 = vmatpush.msra.mxu0 0.0
    %3431 = vmatpush.msra.mxu0 0.0
    %3432 = vmatpush.msra.mxu0 0.0
    %3433 = vmatpush.msra.mxu0 0.0
    %3434 = vmatpush.msra.mxu0 0.0
    %3435 = vmatpush.msra.mxu0 0.0
    %3436 = vmatpush.msra.mxu0 0.0
    %3437 = vmatpush.msra.mxu0 0.0
    %3438 = vmatpush.msra.mxu0 0.0
    %3439 = vmatpush.msra.mxu0 0.0
    %3440 = vmatpush.msra.mxu0 0.0
    %3441 = vmatpush.msra.mxu0 %v160
    %3442 = vmatmul.f32.gmra.mxu0 %v3364
    %v3443 = vpop.f32.mrf.mxu0
    %v3444 = vadd.f32 0.0, %v3443
    %3445 = vdwg.mxu0
    %3446 = vmatpush.msra.mxu0 0.0
    %3447 = vmatpush.msra.mxu0 0.0
    %3448 = vmatpush.msra.mxu0 0.0
    %3449 = vmatpush.msra.mxu0 0.0
    %3450 = vmatpush.msra.mxu0 0.0
    %3451 = vmatpush.msra.mxu0 0.0
    %3452 = vmatpush.msra.mxu0 0.0
    %3453 = vmatpush.msra.mxu0 0.0
    %3454 = vmatpush.msra.mxu0 0.0
    %3455 = vmatpush.msra.mxu0 0.0
    %3456 = vmatpush.msra.mxu0 0.0
    %3457 = vmatpush.msra.mxu0 0.0
    %3458 = vmatpush.msra.mxu0 0.0
    %3459 = vmatpush.msra.mxu0 0.0
    %3460 = vmatpush.msra.mxu0 0.0
    %3461 = vmatpush.msra.mxu0 %v161
    %3462 = vmatmul.f32.gmra.mxu0 %v3364
    %v3463 = vpop.f32.mrf.mxu0
    %v3464 = vadd.f32 0.0, %v3463
    %3465 = vdwg.mxu0
    %3466 = vmatpush.msra.mxu0 0.0
    %3467 = vmatpush.msra.mxu0 0.0
    %3468 = vmatpush.msra.mxu0 0.0
    %3469 = vmatpush.msra.mxu0 0.0
    %3470 = vmatpush.msra.mxu0 0.0
    %3471 = vmatpush.msra.mxu0 0.0
    %3472 = vmatpush.msra.mxu0 0.0
    %3473 = vmatpush.msra.mxu0 0.0
    %3474 = vmatpush.msra.mxu0 0.0
    %3475 = vmatpush.msra.mxu0 0.0
    %3476 = vmatpush.msra.mxu0 0.0
    %3477 = vmatpush.msra.mxu0 0.0
    %3478 = vmatpush.msra.mxu0 0.0
    %3479 = vmatpush.msra.mxu0 0.0
    %3480 = vmatpush.msra.mxu0 0.0
    %3481 = vmatpush.msra.mxu0 %v162
    %3482 = vmatmul.f32.gmra.mxu0 %v3364
    %v3483 = vpop.f32.mrf.mxu0
    %v3484 = vadd.f32 0.0, %v3483
    %3485 = vdwg.mxu0
    %v3486 = vld [vmem:[#allocation10] sm:$0xff]
    %v3487 = vld [vmem:[#allocation10 + $0x8] sm:$0xff]
    %v3488 = vld [vmem:[#allocation10 + $0x10] sm:$0xff]
    %v3489 = vld [vmem:[#allocation10 + $0x18] sm:$0xff]
    %v3490 = vld [vmem:[#allocation10 + $0x20] sm:$0xff]
    %v3491 = vld [vmem:[#allocation10 + $0x28] sm:$0xff]
    %v3492 = vld [vmem:[#allocation10 + $0x30] sm:$0xff]
    %v3493 = vld [vmem:[#allocation10 + $0x38] sm:$0xff]
    %v3494 = vld [vmem:[#allocation10 + $0x40] sm:$0xff]
    %v3495 = vld [vmem:[#allocation10 + $0x48] sm:$0xff]
    %v3496 = vld [vmem:[#allocation10 + $0x50] sm:$0xff]
    %v3497 = vld [vmem:[#allocation10 + $0x58] sm:$0xff]
    %v3498 = vld [vmem:[#allocation10 + $0x60] sm:$0xff]
    %v3499 = vld [vmem:[#allocation10 + $0x68] sm:$0xff]
    %v3500 = vld [vmem:[#allocation10 + $0x70] sm:$0xff]
    %v3501 = vld [vmem:[#allocation10 + $0x78] sm:$0xff]
    %v3502 = vld [vmem:[#allocation10 + $0x80] sm:$0xff]
    %v3503 = vld [vmem:[#allocation10 + $0x88] sm:$0xff]
    %v3504 = vld [vmem:[#allocation10 + $0x90] sm:$0xff]
    %v3505 = vld [vmem:[#allocation10 + $0x98] sm:$0xff]
    %v3506 = vld [vmem:[#allocation10 + $0xa0] sm:$0xff]
    %v3507 = vld [vmem:[#allocation10 + $0xa8] sm:$0xff]
    %v3508 = vld [vmem:[#allocation10 + $0xb0] sm:$0xff]
    %v3509 = vld [vmem:[#allocation10 + $0xb8] sm:$0xff]
    %v3510 = vld [vmem:[#allocation10 + $0xc0] sm:$0xff]
    %v3511 = vld [vmem:[#allocation10 + $0xc8] sm:$0xff]
    %v3512 = vld [vmem:[#allocation10 + $0xd0] sm:$0xff]
    %v3513 = vld [vmem:[#allocation10 + $0xd8] sm:$0xff]
    %v3514 = vld [vmem:[#allocation10 + $0xe0] sm:$0xff]
    %v3515 = vld [vmem:[#allocation10 + $0xe8] sm:$0xff]
    %v3516 = vld [vmem:[#allocation10 + $0xf0] sm:$0xff]
    %v3517 = vld [vmem:[#allocation10 + $0xf8] sm:$0xff]
    %v3518 = vld [vmem:[#allocation10 + $0x100] sm:$0xff]
    %v3519 = vld [vmem:[#allocation10 + $0x108] sm:$0xff]
    %v3520 = vld [vmem:[#allocation10 + $0x110] sm:$0xff]
    %v3521 = vld [vmem:[#allocation10 + $0x118] sm:$0xff]
    %v3522 = vld [vmem:[#allocation10 + $0x120] sm:$0xff]
    %v3523 = vld [vmem:[#allocation10 + $0x128] sm:$0xff]
    %v3524 = vld [vmem:[#allocation10 + $0x130] sm:$0xff]
    %v3525 = vld [vmem:[#allocation10 + $0x138] sm:$0xff]
    %v3526 = vld [vmem:[#allocation10 + $0x140] sm:$0xff]
    %v3527 = vld [vmem:[#allocation10 + $0x148] sm:$0xff]
    %v3528 = vld [vmem:[#allocation10 + $0x150] sm:$0xff]
    %v3529 = vld [vmem:[#allocation10 + $0x158] sm:$0xff]
    %v3530 = vld [vmem:[#allocation10 + $0x160] sm:$0xff]
    %v3531 = vld [vmem:[#allocation10 + $0x168] sm:$0xff]
    %v3532 = vld [vmem:[#allocation10 + $0x170] sm:$0xff]
    %v3533 = vld [vmem:[#allocation10 + $0x178] sm:$0xff]
    %v3534 = vld [vmem:[#allocation10 + $0x180] sm:$0xff]
    %v3535 = vld [vmem:[#allocation10 + $0x188] sm:$0xff]
    %v3536 = vld [vmem:[#allocation10 + $0x190] sm:$0xff]
    %v3537 = vld [vmem:[#allocation10 + $0x198] sm:$0xff]
    %v3538 = vld [vmem:[#allocation10 + $0x1a0] sm:$0xff]
    %v3539 = vld [vmem:[#allocation10 + $0x1a8] sm:$0xff]
    %v3540 = vld [vmem:[#allocation10 + $0x1b0] sm:$0xff]
    %v3541 = vld [vmem:[#allocation10 + $0x1b8] sm:$0xff]
    %v3542 = vld [vmem:[#allocation10 + $0x1c0] sm:$0xff]
    %v3543 = vld [vmem:[#allocation10 + $0x1c8] sm:$0xff]
    %v3544 = vld [vmem:[#allocation10 + $0x1d0] sm:$0xff]
    %v3545 = vld [vmem:[#allocation10 + $0x1d8] sm:$0xff]
    %v3546 = vld [vmem:[#allocation10 + $0x1e0] sm:$0xff]
    %v3547 = vld [vmem:[#allocation10 + $0x1e8] sm:$0xff]
    %v3548 = vld [vmem:[#allocation10 + $0x1f0] sm:$0xff]
    %v3549 = vld [vmem:[#allocation10 + $0x1f8] sm:$0xff]
    %v3550 = vld [vmem:[#allocation10 + $0x200] sm:$0xff]
    %v3551 = vld [vmem:[#allocation10 + $0x208] sm:$0xff]
    %v3552 = vld [vmem:[#allocation10 + $0x210] sm:$0xff]
    %v3553 = vld [vmem:[#allocation10 + $0x218] sm:$0xff]
    %v3554 = vld [vmem:[#allocation10 + $0x220] sm:$0xff]
    %v3555 = vld [vmem:[#allocation10 + $0x228] sm:$0xff]
    %v3556 = vld [vmem:[#allocation10 + $0x230] sm:$0xff]
    %v3557 = vld [vmem:[#allocation10 + $0x238] sm:$0xff]
    %v3558 = vld [vmem:[#allocation10 + $0x240] sm:$0xff]
    %v3559 = vld [vmem:[#allocation10 + $0x248] sm:$0xff]
    %v3560 = vld [vmem:[#allocation10 + $0x250] sm:$0xff]
    %v3561 = vld [vmem:[#allocation10 + $0x258] sm:$0xff]
    %v3562 = vld [vmem:[#allocation10 + $0x260] sm:$0xff]
    %v3563 = vld [vmem:[#allocation10 + $0x268] sm:$0xff]
    %v3564 = vld [vmem:[#allocation10 + $0x270] sm:$0xff]
    %v3565 = vld [vmem:[#allocation10 + $0x278] sm:$0xff]
    %v3566 = vld [vmem:[#allocation10 + $0x280] sm:$0xff]
    %v3567 = vld [vmem:[#allocation10 + $0x288] sm:$0xff]
    %v3568 = vld [vmem:[#allocation10 + $0x290] sm:$0xff]
    %v3569 = vld [vmem:[#allocation10 + $0x298] sm:$0xff]
    %v3570 = vld [vmem:[#allocation10 + $0x2a0] sm:$0xff]
    %v3571 = vld [vmem:[#allocation10 + $0x2a8] sm:$0xff]
    %v3572 = vld [vmem:[#allocation10 + $0x2b0] sm:$0xff]
    %v3573 = vld [vmem:[#allocation10 + $0x2b8] sm:$0xff]
    %v3574 = vld [vmem:[#allocation10 + $0x2c0] sm:$0xff]
    %v3575 = vld [vmem:[#allocation10 + $0x2c8] sm:$0xff]
    %v3576 = vld [vmem:[#allocation10 + $0x2d0] sm:$0xff]
    %v3577 = vld [vmem:[#allocation10 + $0x2d8] sm:$0xff]
    %v3578 = vld [vmem:[#allocation10 + $0x2e0] sm:$0xff]
    %v3579 = vld [vmem:[#allocation10 + $0x2e8] sm:$0xff]
    %v3580 = vld [vmem:[#allocation10 + $0x2f0] sm:$0xff]
    %v3581 = vld [vmem:[#allocation10 + $0x2f8] sm:$0xff]
    %v3582 = vld [vmem:[#allocation10 + $0x300] sm:$0xff]
    %v3583 = vld [vmem:[#allocation10 + $0x308] sm:$0xff]
    %v3584 = vld [vmem:[#allocation10 + $0x310] sm:$0xff]
    %v3585 = vld [vmem:[#allocation10 + $0x318] sm:$0xff]
    %v3586 = vld [vmem:[#allocation10 + $0x320] sm:$0xff]
    %v3587 = vld [vmem:[#allocation10 + $0x328] sm:$0xff]
    %v3588 = vld [vmem:[#allocation10 + $0x330] sm:$0xff]
    %v3589 = vld [vmem:[#allocation10 + $0x338] sm:$0xff]
    %v3590 = vld [vmem:[#allocation10 + $0x340] sm:$0xff]
    %v3591 = vld [vmem:[#allocation10 + $0x348] sm:$0xff]
    %v3592 = vld [vmem:[#allocation10 + $0x350] sm:$0xff]
    %v3593 = vld [vmem:[#allocation10 + $0x358] sm:$0xff]
    %v3594 = vld [vmem:[#allocation10 + $0x360] sm:$0xff]
    %v3595 = vld [vmem:[#allocation10 + $0x368] sm:$0xff]
    %v3596 = vld [vmem:[#allocation10 + $0x370] sm:$0xff]
    %v3597 = vld [vmem:[#allocation10 + $0x378] sm:$0xff]
    %v3598 = vld [vmem:[#allocation10 + $0x380] sm:$0xff]
    %v3599 = vld [vmem:[#allocation10 + $0x388] sm:$0xff]
    %v3600 = vld [vmem:[#allocation10 + $0x390] sm:$0xff]
    %v3601 = vld [vmem:[#allocation10 + $0x398] sm:$0xff]
    %v3602 = vld [vmem:[#allocation10 + $0x3a0] sm:$0xff]
    %v3603 = vld [vmem:[#allocation10 + $0x3a8] sm:$0xff]
    %v3604 = vld [vmem:[#allocation10 + $0x3b0] sm:$0xff]
    %v3605 = vld [vmem:[#allocation10 + $0x3b8] sm:$0xff]
    %v3606 = vld [vmem:[#allocation10 + $0x3c0] sm:$0xff]
    %v3607 = vld [vmem:[#allocation10 + $0x3c8] sm:$0xff]
    %v3608 = vld [vmem:[#allocation10 + $0x3d0] sm:$0xff]
    %v3609 = vld [vmem:[#allocation10 + $0x3d8] sm:$0xff]
    %v3610 = vld [vmem:[#allocation10 + $0x3e0] sm:$0xff]
    %v3611 = vld [vmem:[#allocation10 + $0x3e8] sm:$0xff]
    %v3612 = vld [vmem:[#allocation10 + $0x3f0] sm:$0xff]
    %v3613 = vld [vmem:[#allocation10 + $0x3f8] sm:$0xff]
    %v3614 = vld [vmem:[#allocation10 + $0x400] sm:$0xff]
    %v3615 = vld [vmem:[#allocation10 + $0x408] sm:$0xff]
    %v3616 = vld [vmem:[#allocation10 + $0x410] sm:$0xff]
    %v3617 = vld [vmem:[#allocation10 + $0x418] sm:$0xff]
    %v3618 = vld [vmem:[#allocation10 + $0x420] sm:$0xff]
    %v3619 = vld [vmem:[#allocation10 + $0x428] sm:$0xff]
    %v3620 = vld [vmem:[#allocation10 + $0x430] sm:$0xff]
    %v3621 = vld [vmem:[#allocation10 + $0x438] sm:$0xff]
    %v3622 = vld [vmem:[#allocation10 + $0x440] sm:$0xff]
    %v3623 = vld [vmem:[#allocation10 + $0x448] sm:$0xff]
    %v3624 = vld [vmem:[#allocation10 + $0x450] sm:$0xff]
    %v3625 = vld [vmem:[#allocation10 + $0x458] sm:$0xff]
    %v3626 = vld [vmem:[#allocation10 + $0x460] sm:$0xff]
    %v3627 = vld [vmem:[#allocation10 + $0x468] sm:$0xff]
    %v3628 = vld [vmem:[#allocation10 + $0x470] sm:$0xff]
    %v3629 = vld [vmem:[#allocation10 + $0x478] sm:$0xff]
    %v3630 = vld [vmem:[#allocation10 + $0x480] sm:$0xff]
    %v3631 = vld [vmem:[#allocation10 + $0x488] sm:$0xff]
    %v3632 = vld [vmem:[#allocation10 + $0x490] sm:$0xff]
    %v3633 = vld [vmem:[#allocation10 + $0x498] sm:$0xff]
    %v3634 = vld [vmem:[#allocation10 + $0x4a0] sm:$0xff]
    %v3635 = vld [vmem:[#allocation10 + $0x4a8] sm:$0xff]
    %v3636 = vld [vmem:[#allocation10 + $0x4b0] sm:$0xff]
    %v3637 = vld [vmem:[#allocation10 + $0x4b8] sm:$0xff]
    %v3638 = vld [vmem:[#allocation10 + $0x4c0] sm:$0xff]
    %v3639 = vld [vmem:[#allocation10 + $0x4c8] sm:$0xff]
    %v3640 = vld [vmem:[#allocation10 + $0x4d0] sm:$0xff]
    %v3641 = vld [vmem:[#allocation10 + $0x4d8] sm:$0xff]
    %v3642 = vld [vmem:[#allocation10 + $0x4e0] sm:$0xff]
    %v3643 = vld [vmem:[#allocation10 + $0x4e8] sm:$0xff]
    %v3644 = vld [vmem:[#allocation10 + $0x4f0] sm:$0xff]
    %v3645 = vld [vmem:[#allocation10 + $0x4f8] sm:$0xff]
    %v3646 = vld [vmem:[#allocation10 + $0x500] sm:$0xff]
    %v3647 = vld [vmem:[#allocation10 + $0x508] sm:$0xff]
    %v3648 = vld [vmem:[#allocation10 + $0x510] sm:$0xff]
    %v3649 = vld [vmem:[#allocation10 + $0x518] sm:$0xff]
    %v3650 = vld [vmem:[#allocation10 + $0x520] sm:$0xff]
    %v3651 = vld [vmem:[#allocation10 + $0x528] sm:$0xff]
    %v3652 = vld [vmem:[#allocation10 + $0x530] sm:$0xff]
    %v3653 = vld [vmem:[#allocation10 + $0x538] sm:$0xff]
    %v3654 = vld [vmem:[#allocation10 + $0x540] sm:$0xff]
    %v3655 = vld [vmem:[#allocation10 + $0x548] sm:$0xff]
    %v3656 = vld [vmem:[#allocation10 + $0x550] sm:$0xff]
    %v3657 = vld [vmem:[#allocation10 + $0x558] sm:$0xff]
    %v3658 = vld [vmem:[#allocation10 + $0x560] sm:$0xff]
    %v3659 = vld [vmem:[#allocation10 + $0x568] sm:$0xff]
    %v3660 = vld [vmem:[#allocation10 + $0x570] sm:$0xff]
    %v3661 = vld [vmem:[#allocation10 + $0x578] sm:$0xff]
    %v3662 = vld [vmem:[#allocation10 + $0x580] sm:$0xff]
    %v3663 = vld [vmem:[#allocation10 + $0x588] sm:$0xff]
    %v3664 = vld [vmem:[#allocation10 + $0x590] sm:$0xff]
    %v3665 = vld [vmem:[#allocation10 + $0x598] sm:$0xff]
    %v3666 = vld [vmem:[#allocation10 + $0x5a0] sm:$0xff]
    %v3667 = vld [vmem:[#allocation10 + $0x5a8] sm:$0xff]
    %v3668 = vld [vmem:[#allocation10 + $0x5b0] sm:$0xff]
    %v3669 = vld [vmem:[#allocation10 + $0x5b8] sm:$0xff]
    %v3670 = vld [vmem:[#allocation10 + $0x5c0] sm:$0xff]
    %v3671 = vld [vmem:[#allocation10 + $0x5c8] sm:$0xff]
    %v3672 = vld [vmem:[#allocation10 + $0x5d0] sm:$0xff]
    %v3673 = vld [vmem:[#allocation10 + $0x5d8] sm:$0xff]
    %v3674 = vld [vmem:[#allocation10 + $0x5e0] sm:$0xff]
    %v3675 = vld [vmem:[#allocation10 + $0x5e8] sm:$0xff]
    %v3676 = vld [vmem:[#allocation10 + $0x5f0] sm:$0xff]
    %v3677 = vld [vmem:[#allocation10 + $0x5f8] sm:$0xff]
    %v3678 = vld [vmem:[#allocation10 + $0x600] sm:$0xff]
    %v3679 = vld [vmem:[#allocation10 + $0x608] sm:$0xff]
    %v3680 = vld [vmem:[#allocation10 + $0x610] sm:$0xff]
    %v3681 = vld [vmem:[#allocation10 + $0x618] sm:$0xff]
    %v3682 = vld [vmem:[#allocation10 + $0x620] sm:$0xff]
    %v3683 = vld [vmem:[#allocation10 + $0x628] sm:$0xff]
    %v3684 = vld [vmem:[#allocation10 + $0x630] sm:$0xff]
    %v3685 = vld [vmem:[#allocation10 + $0x638] sm:$0xff]
    %v3686 = vld [vmem:[#allocation10 + $0x640] sm:$0xff]
    %v3687 = vld [vmem:[#allocation10 + $0x648] sm:$0xff]
    %v3688 = vld [vmem:[#allocation10 + $0x650] sm:$0xff]
    %v3689 = vld [vmem:[#allocation10 + $0x658] sm:$0xff]
    %v3690 = vld [vmem:[#allocation10 + $0x660] sm:$0xff]
    %v3691 = vld [vmem:[#allocation10 + $0x668] sm:$0xff]
    %v3692 = vld [vmem:[#allocation10 + $0x670] sm:$0xff]
    %v3693 = vld [vmem:[#allocation10 + $0x678] sm:$0xff]
    %v3694 = vld [vmem:[#allocation10 + $0x680] sm:$0xff]
    %v3695 = vld [vmem:[#allocation10 + $0x688] sm:$0xff]
    %v3696 = vld [vmem:[#allocation10 + $0x690] sm:$0xff]
    %v3697 = vld [vmem:[#allocation10 + $0x698] sm:$0xff]
    %v3698 = vld [vmem:[#allocation10 + $0x6a0] sm:$0xff]
    %v3699 = vld [vmem:[#allocation10 + $0x6a8] sm:$0xff]
    %v3700 = vld [vmem:[#allocation10 + $0x6b0] sm:$0xff]
    %v3701 = vld [vmem:[#allocation10 + $0x6b8] sm:$0xff]
    %v3702 = vld [vmem:[#allocation10 + $0x6c0] sm:$0xff]
    %v3703 = vld [vmem:[#allocation10 + $0x6c8] sm:$0xff]
    %v3704 = vld [vmem:[#allocation10 + $0x6d0] sm:$0xff]
    %v3705 = vld [vmem:[#allocation10 + $0x6d8] sm:$0xff]
    %v3706 = vld [vmem:[#allocation10 + $0x6e0] sm:$0xff]
    %v3707 = vld [vmem:[#allocation10 + $0x6e8] sm:$0xff]
    %v3708 = vld [vmem:[#allocation10 + $0x6f0] sm:$0xff]
    %v3709 = vld [vmem:[#allocation10 + $0x6f8] sm:$0xff]
    %v3710 = vld [vmem:[#allocation10 + $0x700] sm:$0xff]
    %v3711 = vld [vmem:[#allocation10 + $0x708] sm:$0xff]
    %v3712 = vld [vmem:[#allocation10 + $0x710] sm:$0xff]
    %v3713 = vld [vmem:[#allocation10 + $0x718] sm:$0xff]
    %v3714 = vld [vmem:[#allocation10 + $0x720] sm:$0xff]
    %v3715 = vld [vmem:[#allocation10 + $0x728] sm:$0xff]
    %v3716 = vld [vmem:[#allocation10 + $0x730] sm:$0xff]
    %v3717 = vld [vmem:[#allocation10 + $0x738] sm:$0xff]
    %v3718 = vld [vmem:[#allocation10 + $0x740] sm:$0xff]
    %v3719 = vld [vmem:[#allocation10 + $0x748] sm:$0xff]
    %v3720 = vld [vmem:[#allocation10 + $0x750] sm:$0xff]
    %v3721 = vld [vmem:[#allocation10 + $0x758] sm:$0xff]
    %v3722 = vld [vmem:[#allocation10 + $0x760] sm:$0xff]
    %v3723 = vld [vmem:[#allocation10 + $0x768] sm:$0xff]
    %v3724 = vld [vmem:[#allocation10 + $0x770] sm:$0xff]
    %v3725 = vld [vmem:[#allocation10 + $0x778] sm:$0xff]
    %v3726 = vld [vmem:[#allocation10 + $0x780] sm:$0xff]
    %v3727 = vld [vmem:[#allocation10 + $0x788] sm:$0xff]
    %v3728 = vld [vmem:[#allocation10 + $0x790] sm:$0xff]
    %v3729 = vld [vmem:[#allocation10 + $0x798] sm:$0xff]
    %v3730 = vld [vmem:[#allocation10 + $0x7a0] sm:$0xff]
    %v3731 = vld [vmem:[#allocation10 + $0x7a8] sm:$0xff]
    %v3732 = vld [vmem:[#allocation10 + $0x7b0] sm:$0xff]
    %v3733 = vld [vmem:[#allocation10 + $0x7b8] sm:$0xff]
    %v3734 = vld [vmem:[#allocation10 + $0x7c0] sm:$0xff]
    %v3735 = vld [vmem:[#allocation10 + $0x7c8] sm:$0xff]
    %v3736 = vld [vmem:[#allocation10 + $0x7d0] sm:$0xff]
    %v3737 = vld [vmem:[#allocation10 + $0x7d8] sm:$0xff]
    %v3738 = vld [vmem:[#allocation10 + $0x7e0] sm:$0xff]
    %v3739 = vld [vmem:[#allocation10 + $0x7e8] sm:$0xff]
    %v3740 = vld [vmem:[#allocation10 + $0x7f0] sm:$0xff]
    %v3741 = vld [vmem:[#allocation10 + $0x7f8] sm:$0xff]
    %v3742 = vld [vmem:[#allocation10 + $0x800] sm:$0xff]
    %v3743 = vld [vmem:[#allocation10 + $0x808] sm:$0xff]
    %v3744 = vld [vmem:[#allocation10 + $0x810] sm:$0xff]
    %v3745 = vld [vmem:[#allocation10 + $0x818] sm:$0xff]
    %v3746 = vld [vmem:[#allocation10 + $0x820] sm:$0xff]
    %v3747 = vld [vmem:[#allocation10 + $0x828] sm:$0xff]
    %v3748 = vld [vmem:[#allocation10 + $0x830] sm:$0xff]
    %v3749 = vld [vmem:[#allocation10 + $0x838] sm:$0xff]
    %v3750 = vld [vmem:[#allocation10 + $0x840] sm:$0xff]
    %v3751 = vld [vmem:[#allocation10 + $0x848] sm:$0xff]
    %v3752 = vld [vmem:[#allocation10 + $0x850] sm:$0xff]
    %v3753 = vld [vmem:[#allocation10 + $0x858] sm:$0xff]
    %v3754 = vld [vmem:[#allocation10 + $0x860] sm:$0xff]
    %v3755 = vld [vmem:[#allocation10 + $0x868] sm:$0xff]
    %v3756 = vld [vmem:[#allocation10 + $0x870] sm:$0xff]
    %v3757 = vld [vmem:[#allocation10 + $0x878] sm:$0xff]
    %v3758 = vld [vmem:[#allocation10 + $0x880] sm:$0xff]
    %v3759 = vld [vmem:[#allocation10 + $0x888] sm:$0xff]
    %v3760 = vld [vmem:[#allocation10 + $0x890] sm:$0xff]
    %v3761 = vld [vmem:[#allocation10 + $0x898] sm:$0xff]
    %v3762 = vld [vmem:[#allocation10 + $0x8a0] sm:$0xff]
    %v3763 = vld [vmem:[#allocation10 + $0x8a8] sm:$0xff]
    %v3764 = vld [vmem:[#allocation10 + $0x8b0] sm:$0xff]
    %v3765 = vld [vmem:[#allocation10 + $0x8b8] sm:$0xff]
    %v3766 = vld [vmem:[#allocation10 + $0x8c0] sm:$0xff]
    %v3767 = vld [vmem:[#allocation10 + $0x8c8] sm:$0xff]
    %v3768 = vld [vmem:[#allocation10 + $0x8d0] sm:$0xff]
    %v3769 = vld [vmem:[#allocation10 + $0x8d8] sm:$0xff]
    %v3770 = vld [vmem:[#allocation10 + $0x8e0] sm:$0xff]
    %v3771 = vld [vmem:[#allocation10 + $0x8e8] sm:$0xff]
    %v3772 = vld [vmem:[#allocation10 + $0x8f0] sm:$0xff]
    %v3773 = vld [vmem:[#allocation10 + $0x8f8] sm:$0xff]
    %v3774 = vld [vmem:[#allocation10 + $0x900] sm:$0xff]
    %v3775 = vld [vmem:[#allocation10 + $0x908] sm:$0xff]
    %v3776 = vld [vmem:[#allocation10 + $0x910] sm:$0xff]
    %v3777 = vld [vmem:[#allocation10 + $0x918] sm:$0xff]
    %v3778 = vld [vmem:[#allocation10 + $0x920] sm:$0xff]
    %v3779 = vld [vmem:[#allocation10 + $0x928] sm:$0xff]
    %v3780 = vld [vmem:[#allocation10 + $0x930] sm:$0xff]
    %v3781 = vld [vmem:[#allocation10 + $0x938] sm:$0xff]
    %v3782 = vld [vmem:[#allocation10 + $0x940] sm:$0xff]
    %v3783 = vld [vmem:[#allocation10 + $0x948] sm:$0xff]
    %v3784 = vld [vmem:[#allocation10 + $0x950] sm:$0xff]
    %v3785 = vld [vmem:[#allocation10 + $0x958] sm:$0xff]
    %v3786 = vld [vmem:[#allocation10 + $0x960] sm:$0xff]
    %v3787 = vld [vmem:[#allocation10 + $0x968] sm:$0xff]
    %v3788 = vld [vmem:[#allocation10 + $0x970] sm:$0xff]
    %v3789 = vld [vmem:[#allocation10 + $0x978] sm:$0xff]
    %v3790 = vld [vmem:[#allocation10 + $0x980] sm:$0xff]
    %v3791 = vld [vmem:[#allocation10 + $0x988] sm:$0xff]
    %v3792 = vld [vmem:[#allocation10 + $0x990] sm:$0xff]
    %v3793 = vld [vmem:[#allocation10 + $0x998] sm:$0xff]
    %v3794 = vld [vmem:[#allocation10 + $0x9a0] sm:$0xff]
    %v3795 = vld [vmem:[#allocation10 + $0x9a8] sm:$0xff]
    %v3796 = vld [vmem:[#allocation10 + $0x9b0] sm:$0xff]
    %v3797 = vld [vmem:[#allocation10 + $0x9b8] sm:$0xff]
    %v3798 = vld [vmem:[#allocation10 + $0x9c0] sm:$0xff]
    %v3799 = vld [vmem:[#allocation10 + $0x9c8] sm:$0xff]
    %v3800 = vld [vmem:[#allocation10 + $0x9d0] sm:$0xff]
    %v3801 = vld [vmem:[#allocation10 + $0x9d8] sm:$0xff]
    %v3802 = vld [vmem:[#allocation10 + $0x9e0] sm:$0xff]
    %v3803 = vld [vmem:[#allocation10 + $0x9e8] sm:$0xff]
    %v3804 = vld [vmem:[#allocation10 + $0x9f0] sm:$0xff]
    %v3805 = vld [vmem:[#allocation10 + $0x9f8] sm:$0xff]
    %v3806 = vld [vmem:[#allocation10 + $0xa00] sm:$0xff]
    %v3807 = vld [vmem:[#allocation10 + $0xa08] sm:$0xff]
    %v3808 = vld [vmem:[#allocation10 + $0xa10] sm:$0xff]
    %v3809 = vld [vmem:[#allocation10 + $0xa18] sm:$0xff]
    %v3810 = vld [vmem:[#allocation10 + $0xa20] sm:$0xff]
    %v3811 = vld [vmem:[#allocation10 + $0xa28] sm:$0xff]
    %v3812 = vld [vmem:[#allocation10 + $0xa30] sm:$0xff]
    %v3813 = vld [vmem:[#allocation10 + $0xa38] sm:$0xff]
    %v3814 = vld [vmem:[#allocation10 + $0xa40] sm:$0xff]
    %v3815 = vld [vmem:[#allocation10 + $0xa48] sm:$0xff]
    %v3816 = vld [vmem:[#allocation10 + $0xa50] sm:$0xff]
    %v3817 = vld [vmem:[#allocation10 + $0xa58] sm:$0xff]
    %v3818 = vld [vmem:[#allocation10 + $0xa60] sm:$0xff]
    %v3819 = vld [vmem:[#allocation10 + $0xa68] sm:$0xff]
    %v3820 = vld [vmem:[#allocation10 + $0xa70] sm:$0xff]
    %v3821 = vld [vmem:[#allocation10 + $0xa78] sm:$0xff]
    %v3822 = vld [vmem:[#allocation10 + $0xa80] sm:$0xff]
    %v3823 = vld [vmem:[#allocation10 + $0xa88] sm:$0xff]
    %v3824 = vld [vmem:[#allocation10 + $0xa90] sm:$0xff]
    %v3825 = vld [vmem:[#allocation10 + $0xa98] sm:$0xff]
    %v3826 = vld [vmem:[#allocation10 + $0xaa0] sm:$0xff]
    %v3827 = vld [vmem:[#allocation10 + $0xaa8] sm:$0xff]
    %v3828 = vld [vmem:[#allocation10 + $0xab0] sm:$0xff]
    %v3829 = vld [vmem:[#allocation10 + $0xab8] sm:$0xff]
    %v3830 = vld [vmem:[#allocation10 + $0xac0] sm:$0xff]
    %v3831 = vld [vmem:[#allocation10 + $0xac8] sm:$0xff]
    %v3832 = vld [vmem:[#allocation10 + $0xad0] sm:$0xff]
    %v3833 = vld [vmem:[#allocation10 + $0xad8] sm:$0xff]
    %v3834 = vld [vmem:[#allocation10 + $0xae0] sm:$0xff]
    %v3835 = vld [vmem:[#allocation10 + $0xae8] sm:$0xff]
    %v3836 = vld [vmem:[#allocation10 + $0xaf0] sm:$0xff]
    %v3837 = vld [vmem:[#allocation10 + $0xaf8] sm:$0xff]
    %v3838 = vld [vmem:[#allocation10 + $0xb00] sm:$0xff]
    %v3839 = vld [vmem:[#allocation10 + $0xb08] sm:$0xff]
    %v3840 = vld [vmem:[#allocation10 + $0xb10] sm:$0xff]
    %v3841 = vld [vmem:[#allocation10 + $0xb18] sm:$0xff]
    %v3842 = vld [vmem:[#allocation10 + $0xb20] sm:$0xff]
    %v3843 = vld [vmem:[#allocation10 + $0xb28] sm:$0xff]
    %v3844 = vld [vmem:[#allocation10 + $0xb30] sm:$0xff]
    %v3845 = vld [vmem:[#allocation10 + $0xb38] sm:$0xff]
    %v3846 = vld [vmem:[#allocation10 + $0xb40] sm:$0xff]
    %v3847 = vld [vmem:[#allocation10 + $0xb48] sm:$0xff]
    %v3848 = vld [vmem:[#allocation10 + $0xb50] sm:$0xff]
    %v3849 = vld [vmem:[#allocation10 + $0xb58] sm:$0xff]
    %v3850 = vld [vmem:[#allocation10 + $0xb60] sm:$0xff]
    %v3851 = vld [vmem:[#allocation10 + $0xb68] sm:$0xff]
    %v3852 = vld [vmem:[#allocation10 + $0xb70] sm:$0xff]
    %v3853 = vld [vmem:[#allocation10 + $0xb78] sm:$0xff]
    %v3854 = vld [vmem:[#allocation10 + $0xb80] sm:$0xff]
    %v3855 = vld [vmem:[#allocation10 + $0xb88] sm:$0xff]
    %v3856 = vld [vmem:[#allocation10 + $0xb90] sm:$0xff]
    %v3857 = vld [vmem:[#allocation10 + $0xb98] sm:$0xff]
    %v3858 = vld [vmem:[#allocation10 + $0xba0] sm:$0xff]
    %v3859 = vld [vmem:[#allocation10 + $0xba8] sm:$0xff]
    %v3860 = vld [vmem:[#allocation10 + $0xbb0] sm:$0xff]
    %v3861 = vld [vmem:[#allocation10 + $0xbb8] sm:$0xff]
    %v3862 = vld [vmem:[#allocation10 + $0xbc0] sm:$0xff]
    %v3863 = vld [vmem:[#allocation10 + $0xbc8] sm:$0xff]
    %v3864 = vld [vmem:[#allocation10 + $0xbd0] sm:$0xff]
    %v3865 = vld [vmem:[#allocation10 + $0xbd8] sm:$0xff]
    %v3866 = vld [vmem:[#allocation10 + $0xbe0] sm:$0xff]
    %v3867 = vld [vmem:[#allocation10 + $0xbe8] sm:$0xff]
    %v3868 = vld [vmem:[#allocation10 + $0xbf0] sm:$0xff]
    %v3869 = vld [vmem:[#allocation10 + $0xbf8] sm:$0xff]
    %v3870 = vld [vmem:[#allocation10 + $0xc00] sm:$0xff]
    %v3871 = vld [vmem:[#allocation10 + $0xc08] sm:$0xff]
    %v3872 = vld [vmem:[#allocation10 + $0xc10] sm:$0xff]
    %v3873 = vld [vmem:[#allocation10 + $0xc18] sm:$0xff]
    %v3874 = vld [vmem:[#allocation10 + $0xc20] sm:$0xff]
    %v3875 = vld [vmem:[#allocation10 + $0xc28] sm:$0xff]
    %v3876 = vld [vmem:[#allocation10 + $0xc30] sm:$0xff]
    %v3877 = vld [vmem:[#allocation10 + $0xc38] sm:$0xff]
    %v3878 = vld [vmem:[#allocation10 + $0xc40] sm:$0xff]
    %v3879 = vld [vmem:[#allocation10 + $0xc48] sm:$0xff]
    %v3880 = vld [vmem:[#allocation10 + $0xc50] sm:$0xff]
    %v3881 = vld [vmem:[#allocation10 + $0xc58] sm:$0xff]
    %v3882 = vld [vmem:[#allocation10 + $0xc60] sm:$0xff]
    %v3883 = vld [vmem:[#allocation10 + $0xc68] sm:$0xff]
    %v3884 = vld [vmem:[#allocation10 + $0xc70] sm:$0xff]
    %v3885 = vld [vmem:[#allocation10 + $0xc78] sm:$0xff]
    %v3886 = vld [vmem:[#allocation10 + $0xc80] sm:$0xff]
    %v3887 = vld [vmem:[#allocation10 + $0xc88] sm:$0xff]
    %v3888 = vld [vmem:[#allocation10 + $0xc90] sm:$0xff]
    %v3889 = vld [vmem:[#allocation10 + $0xc98] sm:$0xff]
    %v3890 = vld [vmem:[#allocation10 + $0xca0] sm:$0xff]
    %v3891 = vld [vmem:[#allocation10 + $0xca8] sm:$0xff]
    %v3892 = vld [vmem:[#allocation10 + $0xcb0] sm:$0xff]
    %v3893 = vld [vmem:[#allocation10 + $0xcb8] sm:$0xff]
    %v3894 = vld [vmem:[#allocation10 + $0xcc0] sm:$0xff]
    %v3895 = vld [vmem:[#allocation10 + $0xcc8] sm:$0xff]
    %v3896 = vld [vmem:[#allocation10 + $0xcd0] sm:$0xff]
    %v3897 = vld [vmem:[#allocation10 + $0xcd8] sm:$0xff]
    %v3898 = vld [vmem:[#allocation10 + $0xce0] sm:$0xff]
    %v3899 = vld [vmem:[#allocation10 + $0xce8] sm:$0xff]
    %v3900 = vld [vmem:[#allocation10 + $0xcf0] sm:$0xff]
    %v3901 = vld [vmem:[#allocation10 + $0xcf8] sm:$0xff]
    %v3902 = vld [vmem:[#allocation10 + $0xd00] sm:$0xff]
    %v3903 = vld [vmem:[#allocation10 + $0xd08] sm:$0xff]
    %v3904 = vld [vmem:[#allocation10 + $0xd10] sm:$0xff]
    %v3905 = vld [vmem:[#allocation10 + $0xd18] sm:$0xff]
    %v3906 = vld [vmem:[#allocation10 + $0xd20] sm:$0xff]
    %v3907 = vld [vmem:[#allocation10 + $0xd28] sm:$0xff]
    %v3908 = vld [vmem:[#allocation10 + $0xd30] sm:$0xff]
    %v3909 = vld [vmem:[#allocation10 + $0xd38] sm:$0xff]
    %v3910 = vld [vmem:[#allocation10 + $0xd40] sm:$0xff]
    %v3911 = vld [vmem:[#allocation10 + $0xd48] sm:$0xff]
    %v3912 = vld [vmem:[#allocation10 + $0xd50] sm:$0xff]
    %v3913 = vld [vmem:[#allocation10 + $0xd58] sm:$0xff]
    %v3914 = vld [vmem:[#allocation10 + $0xd60] sm:$0xff]
    %v3915 = vld [vmem:[#allocation10 + $0xd68] sm:$0xff]
    %v3916 = vld [vmem:[#allocation10 + $0xd70] sm:$0xff]
    %v3917 = vld [vmem:[#allocation10 + $0xd78] sm:$0xff]
    %v3918 = vld [vmem:[#allocation10 + $0xd80] sm:$0xff]
    %v3919 = vld [vmem:[#allocation10 + $0xd88] sm:$0xff]
    %v3920 = vld [vmem:[#allocation10 + $0xd90] sm:$0xff]
    %v3921 = vld [vmem:[#allocation10 + $0xd98] sm:$0xff]
    %v3922 = vld [vmem:[#allocation10 + $0xda0] sm:$0xff]
    %v3923 = vld [vmem:[#allocation10 + $0xda8] sm:$0xff]
    %v3924 = vld [vmem:[#allocation10 + $0xdb0] sm:$0xff]
    %v3925 = vld [vmem:[#allocation10 + $0xdb8] sm:$0xff]
    %v3926 = vld [vmem:[#allocation10 + $0xdc0] sm:$0xff]
    %v3927 = vld [vmem:[#allocation10 + $0xdc8] sm:$0xff]
    %v3928 = vld [vmem:[#allocation10 + $0xdd0] sm:$0xff]
    %v3929 = vld [vmem:[#allocation10 + $0xdd8] sm:$0xff]
    %v3930 = vld [vmem:[#allocation10 + $0xde0] sm:$0xff]
    %v3931 = vld [vmem:[#allocation10 + $0xde8] sm:$0xff]
    %v3932 = vld [vmem:[#allocation10 + $0xdf0] sm:$0xff]
    %v3933 = vld [vmem:[#allocation10 + $0xdf8] sm:$0xff]
    %v3934 = vld [vmem:[#allocation10 + $0xe00] sm:$0xff]
    %v3935 = vld [vmem:[#allocation10 + $0xe08] sm:$0xff]
    %v3936 = vld [vmem:[#allocation10 + $0xe10] sm:$0xff]
    %v3937 = vld [vmem:[#allocation10 + $0xe18] sm:$0xff]
    %v3938 = vld [vmem:[#allocation10 + $0xe20] sm:$0xff]
    %v3939 = vld [vmem:[#allocation10 + $0xe28] sm:$0xff]
    %v3940 = vld [vmem:[#allocation10 + $0xe30] sm:$0xff]
    %v3941 = vld [vmem:[#allocation10 + $0xe38] sm:$0xff]
    %v3942 = vld [vmem:[#allocation10 + $0xe40] sm:$0xff]
    %v3943 = vld [vmem:[#allocation10 + $0xe48] sm:$0xff]
    %v3944 = vld [vmem:[#allocation10 + $0xe50] sm:$0xff]
    %v3945 = vld [vmem:[#allocation10 + $0xe58] sm:$0xff]
    %v3946 = vld [vmem:[#allocation10 + $0xe60] sm:$0xff]
    %v3947 = vld [vmem:[#allocation10 + $0xe68] sm:$0xff]
    %v3948 = vld [vmem:[#allocation10 + $0xe70] sm:$0xff]
    %v3949 = vld [vmem:[#allocation10 + $0xe78] sm:$0xff]
    %v3950 = vld [vmem:[#allocation10 + $0xe80] sm:$0xff]
    %v3951 = vld [vmem:[#allocation10 + $0xe88] sm:$0xff]
    %v3952 = vld [vmem:[#allocation10 + $0xe90] sm:$0xff]
    %v3953 = vld [vmem:[#allocation10 + $0xe98] sm:$0xff]
    %v3954 = vld [vmem:[#allocation10 + $0xea0] sm:$0xff]
    %v3955 = vld [vmem:[#allocation10 + $0xea8] sm:$0xff]
    %v3956 = vld [vmem:[#allocation10 + $0xeb0] sm:$0xff]
    %v3957 = vld [vmem:[#allocation10 + $0xeb8] sm:$0xff]
    %v3958 = vld [vmem:[#allocation10 + $0xec0] sm:$0xff]
    %v3959 = vld [vmem:[#allocation10 + $0xec8] sm:$0xff]
    %v3960 = vld [vmem:[#allocation10 + $0xed0] sm:$0xff]
    %v3961 = vld [vmem:[#allocation10 + $0xed8] sm:$0xff]
    %v3962 = vld [vmem:[#allocation10 + $0xee0] sm:$0xff]
    %v3963 = vld [vmem:[#allocation10 + $0xee8] sm:$0xff]
    %v3964 = vld [vmem:[#allocation10 + $0xef0] sm:$0xff]
    %v3965 = vld [vmem:[#allocation10 + $0xef8] sm:$0xff]
    %v3966 = vld [vmem:[#allocation10 + $0xf00] sm:$0xff]
    %v3967 = vld [vmem:[#allocation10 + $0xf08] sm:$0xff]
    %v3968 = vld [vmem:[#allocation10 + $0xf10] sm:$0xff]
    %v3969 = vld [vmem:[#allocation10 + $0xf18] sm:$0xff]
    %v3970 = vld [vmem:[#allocation10 + $0xf20] sm:$0xff]
    %v3971 = vld [vmem:[#allocation10 + $0xf28] sm:$0xff]
    %v3972 = vld [vmem:[#allocation10 + $0xf30] sm:$0xff]
    %v3973 = vld [vmem:[#allocation10 + $0xf38] sm:$0xff]
    %v3974 = vld [vmem:[#allocation10 + $0xf40] sm:$0xff]
    %v3975 = vld [vmem:[#allocation10 + $0xf48] sm:$0xff]
    %v3976 = vld [vmem:[#allocation10 + $0xf50] sm:$0xff]
    %v3977 = vld [vmem:[#allocation10 + $0xf58] sm:$0xff]
    %v3978 = vld [vmem:[#allocation10 + $0xf60] sm:$0xff]
    %v3979 = vld [vmem:[#allocation10 + $0xf68] sm:$0xff]
    %v3980 = vld [vmem:[#allocation10 + $0xf70] sm:$0xff]
    %v3981 = vld [vmem:[#allocation10 + $0xf78] sm:$0xff]
    %v3982 = vld [vmem:[#allocation10 + $0xf80] sm:$0xff]
    %v3983 = vld [vmem:[#allocation10 + $0xf88] sm:$0xff]
    %v3984 = vld [vmem:[#allocation10 + $0xf90] sm:$0xff]
    %v3985 = vld [vmem:[#allocation10 + $0xf98] sm:$0xff]
    %v3986 = vld [vmem:[#allocation10 + $0xfa0] sm:$0xff]
    %v3987 = vld [vmem:[#allocation10 + $0xfa8] sm:$0xff]
    %v3988 = vld [vmem:[#allocation10 + $0xfb0] sm:$0xff]
    %v3989 = vld [vmem:[#allocation10 + $0xfb8] sm:$0xff]
    %v3990 = vld [vmem:[#allocation10 + $0xfc0] sm:$0xff]
    %v3991 = vld [vmem:[#allocation10 + $0xfc8] sm:$0xff]
    %v3992 = vld [vmem:[#allocation10 + $0xfd0] sm:$0xff]
    %v3993 = vld [vmem:[#allocation10 + $0xfd8] sm:$0xff]
    %v3994 = vld [vmem:[#allocation10 + $0xfe0] sm:$0xff]
    %v3995 = vld [vmem:[#allocation10 + $0xfe8] sm:$0xff]
    %v3996 = vld [vmem:[#allocation10 + $0xff0] sm:$0xff]
    %v3997 = vld [vmem:[#allocation10 + $0xff8] sm:$0xff]
    %v3998 = vld [vmem:[#allocation10 + $0x1000] sm:$0xff]
    %v3999 = vld [vmem:[#allocation10 + $0x1008] sm:$0xff]
    %v4000 = vld [vmem:[#allocation10 + $0x1010] sm:$0xff]
    %v4001 = vld [vmem:[#allocation10 + $0x1018] sm:$0xff]
    %v4002 = vld [vmem:[#allocation10 + $0x1020] sm:$0xff]
    %v4003 = vld [vmem:[#allocation10 + $0x1028] sm:$0xff]
    %v4004 = vld [vmem:[#allocation10 + $0x1030] sm:$0xff]
    %v4005 = vld [vmem:[#allocation10 + $0x1038] sm:$0xff]
    %v4006 = vld [vmem:[#allocation10 + $0x1040] sm:$0xff]
    %v4007 = vld [vmem:[#allocation10 + $0x1048] sm:$0xff]
    %v4008 = vld [vmem:[#allocation10 + $0x1050] sm:$0xff]
    %v4009 = vld [vmem:[#allocation10 + $0x1058] sm:$0xff]
    %v4010 = vld [vmem:[#allocation10 + $0x1060] sm:$0xff]
    %v4011 = vld [vmem:[#allocation10 + $0x1068] sm:$0xff]
    %v4012 = vld [vmem:[#allocation10 + $0x1070] sm:$0xff]
    %v4013 = vld [vmem:[#allocation10 + $0x1078] sm:$0xff]
    %v4014 = vld [vmem:[#allocation10 + $0x1080] sm:$0xff]
    %v4015 = vld [vmem:[#allocation10 + $0x1088] sm:$0xff]
    %v4016 = vld [vmem:[#allocation10 + $0x1090] sm:$0xff]
    %v4017 = vld [vmem:[#allocation10 + $0x1098] sm:$0xff]
    %v4018 = vld [vmem:[#allocation10 + $0x10a0] sm:$0xff]
    %v4019 = vld [vmem:[#allocation10 + $0x10a8] sm:$0xff]
    %v4020 = vld [vmem:[#allocation10 + $0x10b0] sm:$0xff]
    %v4021 = vld [vmem:[#allocation10 + $0x10b8] sm:$0xff]
    %v4022 = vld [vmem:[#allocation10 + $0x10c0] sm:$0xff]
    %v4023 = vld [vmem:[#allocation10 + $0x10c8] sm:$0xff]
    %v4024 = vld [vmem:[#allocation10 + $0x10d0] sm:$0xff]
    %v4025 = vld [vmem:[#allocation10 + $0x10d8] sm:$0xff]
    %v4026 = vld [vmem:[#allocation10 + $0x10e0] sm:$0xff]
    %v4027 = vld [vmem:[#allocation10 + $0x10e8] sm:$0xff]
    %v4028 = vld [vmem:[#allocation10 + $0x10f0] sm:$0xff]
    %v4029 = vld [vmem:[#allocation10 + $0x10f8] sm:$0xff]
    %v4030 = vld [vmem:[#allocation10 + $0x1100] sm:$0xff]
    %v4031 = vld [vmem:[#allocation10 + $0x1108] sm:$0xff]
    %v4032 = vld [vmem:[#allocation10 + $0x1110] sm:$0xff]
    %v4033 = vld [vmem:[#allocation10 + $0x1118] sm:$0xff]
    %v4034 = vld [vmem:[#allocation10 + $0x1120] sm:$0xff]
    %v4035 = vld [vmem:[#allocation10 + $0x1128] sm:$0xff]
    %v4036 = vld [vmem:[#allocation10 + $0x1130] sm:$0xff]
    %v4037 = vld [vmem:[#allocation10 + $0x1138] sm:$0xff]
    %v4038 = vld [vmem:[#allocation10 + $0x1140] sm:$0xff]
    %v4039 = vld [vmem:[#allocation10 + $0x1148] sm:$0xff]
    %v4040 = vld [vmem:[#allocation10 + $0x1150] sm:$0xff]
    %v4041 = vld [vmem:[#allocation10 + $0x1158] sm:$0xff]
    %v4042 = vld [vmem:[#allocation10 + $0x1160] sm:$0xff]
    %v4043 = vld [vmem:[#allocation10 + $0x1168] sm:$0xff]
    %v4044 = vld [vmem:[#allocation10 + $0x1170] sm:$0xff]
    %v4045 = vld [vmem:[#allocation10 + $0x1178] sm:$0xff]
    %v4046 = vld [vmem:[#allocation10 + $0x1180] sm:$0xff]
    %v4047 = vld [vmem:[#allocation10 + $0x1188] sm:$0xff]
    %v4048 = vld [vmem:[#allocation10 + $0x1190] sm:$0xff]
    %v4049 = vld [vmem:[#allocation10 + $0x1198] sm:$0xff]
    %v4050 = vld [vmem:[#allocation10 + $0x11a0] sm:$0xff]
    %v4051 = vld [vmem:[#allocation10 + $0x11a8] sm:$0xff]
    %v4052 = vld [vmem:[#allocation10 + $0x11b0] sm:$0xff]
    %v4053 = vld [vmem:[#allocation10 + $0x11b8] sm:$0xff]
    %v4054 = vld [vmem:[#allocation10 + $0x11c0] sm:$0xff]
    %v4055 = vld [vmem:[#allocation10 + $0x11c8] sm:$0xff]
    %v4056 = vld [vmem:[#allocation10 + $0x11d0] sm:$0xff]
    %v4057 = vld [vmem:[#allocation10 + $0x11d8] sm:$0xff]
    %v4058 = vld [vmem:[#allocation10 + $0x11e0] sm:$0xff]
    %v4059 = vld [vmem:[#allocation10 + $0x11e8] sm:$0xff]
    %v4060 = vld [vmem:[#allocation10 + $0x11f0] sm:$0xff]
    %v4061 = vld [vmem:[#allocation10 + $0x11f8] sm:$0xff]
    %v4062 = vld [vmem:[#allocation11] sm:$0x3f]
    %v4064 = vperm.slane %v4062, 0
    %v4065 = vperm.slane %v4062, 1
    %v4066 = vperm.slane %v4062, 2
    %v4067 = vperm.slane %v4062, 3
    %v4068 = vperm.slane %v4062, 4
    %v4069 = vperm.slane %v4062, 5
    %4076 = vmatpush.msra.mxu0 %v3576
    %4077 = vmatpush.msra.mxu0 %v3570
    %4078 = vmatpush.msra.mxu0 %v3564
    %4079 = vmatpush.msra.mxu0 %v3558
    %4080 = vmatpush.msra.mxu0 %v3552
    %4081 = vmatpush.msra.mxu0 %v3546
    %4082 = vmatpush.msra.mxu0 %v3540
    %4083 = vmatpush.msra.mxu0 %v3534
    %4084 = vmatpush.msra.mxu0 %v3528
    %4085 = vmatpush.msra.mxu0 %v3522
    %4086 = vmatpush.msra.mxu0 %v3516
    %4087 = vmatpush.msra.mxu0 %v3510
    %4088 = vmatpush.msra.mxu0 %v3504
    %4089 = vmatpush.msra.mxu0 %v3498
    %4090 = vmatpush.msra.mxu0 %v3492
    %4091 = vmatpush.msra.mxu0 %v3486
    %4092 = vmatmul.f32.gmra.mxu0 %v3261
    %v4093 = vpop.f32.mrf.mxu0
    %v4094 = vadd.f32 %v4064, %v4093
    %4095 = vmatmul.f32.gmra.mxu0 %v3384
    %v4096 = vpop.f32.mrf.mxu0
    %v4097 = vadd.f32 %v4064, %v4096
    %4098 = vdwg.mxu0
    %4099 = vmatpush.msra.mxu0 %v3672
    %4100 = vmatpush.msra.mxu0 %v3666
    %4101 = vmatpush.msra.mxu0 %v3660
    %4102 = vmatpush.msra.mxu0 %v3654
    %4103 = vmatpush.msra.mxu0 %v3648
    %4104 = vmatpush.msra.mxu0 %v3642
    %4105 = vmatpush.msra.mxu0 %v3636
    %4106 = vmatpush.msra.mxu0 %v3630
    %4107 = vmatpush.msra.mxu0 %v3624
    %4108 = vmatpush.msra.mxu0 %v3618
    %4109 = vmatpush.msra.mxu0 %v3612
    %4110 = vmatpush.msra.mxu0 %v3606
    %4111 = vmatpush.msra.mxu0 %v3600
    %4112 = vmatpush.msra.mxu0 %v3594
    %4113 = vmatpush.msra.mxu0 %v3588
    %4114 = vmatpush.msra.mxu0 %v3582
    %4115 = vmatmul.f32.gmra.mxu0 %v3281
    %v4116 = vpop.f32.mrf.mxu0
    %v4117 = vadd.f32 %v4094, %v4116
    %4118 = vmatmul.f32.gmra.mxu0 %v3404
    %v4119 = vpop.f32.mrf.mxu0
    %v4120 = vadd.f32 %v4097, %v4119
    %4121 = vdwg.mxu0
    %4122 = vmatpush.msra.mxu0 %v3768
    %4123 = vmatpush.msra.mxu0 %v3762
    %4124 = vmatpush.msra.mxu0 %v3756
    %4125 = vmatpush.msra.mxu0 %v3750
    %4126 = vmatpush.msra.mxu0 %v3744
    %4127 = vmatpush.msra.mxu0 %v3738
    %4128 = vmatpush.msra.mxu0 %v3732
    %4129 = vmatpush.msra.mxu0 %v3726
    %4130 = vmatpush.msra.mxu0 %v3720
    %4131 = vmatpush.msra.mxu0 %v3714
    %4132 = vmatpush.msra.mxu0 %v3708
    %4133 = vmatpush.msra.mxu0 %v3702
    %4134 = vmatpush.msra.mxu0 %v3696
    %4135 = vmatpush.msra.mxu0 %v3690
    %4136 = vmatpush.msra.mxu0 %v3684
    %4137 = vmatpush.msra.mxu0 %v3678
    %4138 = vmatmul.f32.gmra.mxu0 %v3301
    %v4139 = vpop.f32.mrf.mxu0
    %v4140 = vadd.f32 %v4117, %v4139
    %4141 = vmatmul.f32.gmra.mxu0 %v3424
    %v4142 = vpop.f32.mrf.mxu0
    %v4143 = vadd.f32 %v4120, %v4142
    %4144 = vdwg.mxu0
    %4145 = vmatpush.msra.mxu0 %v3864
    %4146 = vmatpush.msra.mxu0 %v3858
    %4147 = vmatpush.msra.mxu0 %v3852
    %4148 = vmatpush.msra.mxu0 %v3846
    %4149 = vmatpush.msra.mxu0 %v3840
    %4150 = vmatpush.msra.mxu0 %v3834
    %4151 = vmatpush.msra.mxu0 %v3828
    %4152 = vmatpush.msra.mxu0 %v3822
    %4153 = vmatpush.msra.mxu0 %v3816
    %4154 = vmatpush.msra.mxu0 %v3810
    %4155 = vmatpush.msra.mxu0 %v3804
    %4156 = vmatpush.msra.mxu0 %v3798
    %4157 = vmatpush.msra.mxu0 %v3792
    %4158 = vmatpush.msra.mxu0 %v3786
    %4159 = vmatpush.msra.mxu0 %v3780
    %4160 = vmatpush.msra.mxu0 %v3774
    %4161 = vmatmul.f32.gmra.mxu0 %v3321
    %v4162 = vpop.f32.mrf.mxu0
    %v4163 = vadd.f32 %v4140, %v4162
    %4164 = vmatmul.f32.gmra.mxu0 %v3444
    %v4165 = vpop.f32.mrf.mxu0
    %v4166 = vadd.f32 %v4143, %v4165
    %4167 = vdwg.mxu0
    %4168 = vmatpush.msra.mxu0 %v3960
    %4169 = vmatpush.msra.mxu0 %v3954
    %4170 = vmatpush.msra.mxu0 %v3948
    %4171 = vmatpush.msra.mxu0 %v3942
    %4172 = vmatpush.msra.mxu0 %v3936
    %4173 = vmatpush.msra.mxu0 %v3930
    %4174 = vmatpush.msra.mxu0 %v3924
    %4175 = vmatpush.msra.mxu0 %v3918
    %4176 = vmatpush.msra.mxu0 %v3912
    %4177 = vmatpush.msra.mxu0 %v3906
    %4178 = vmatpush.msra.mxu0 %v3900
    %4179 = vmatpush.msra.mxu0 %v3894
    %4180 = vmatpush.msra.mxu0 %v3888
    %4181 = vmatpush.msra.mxu0 %v3882
    %4182 = vmatpush.msra.mxu0 %v3876
    %4183 = vmatpush.msra.mxu0 %v3870
    %4184 = vmatmul.f32.gmra.mxu0 %v3341
    %v4185 = vpop.f32.mrf.mxu0
    %v4186 = vadd.f32 %v4163, %v4185
    %4187 = vmatmul.f32.gmra.mxu0 %v3464
    %v4188 = vpop.f32.mrf.mxu0
    %v4189 = vadd.f32 %v4166, %v4188
    %4190 = vdwg.mxu0
    %4191 = vmatpush.msra.mxu0 %v4056
    %4192 = vmatpush.msra.mxu0 %v4050
    %4193 = vmatpush.msra.mxu0 %v4044
    %4194 = vmatpush.msra.mxu0 %v4038
    %4195 = vmatpush.msra.mxu0 %v4032
    %4196 = vmatpush.msra.mxu0 %v4026
    %4197 = vmatpush.msra.mxu0 %v4020
    %4198 = vmatpush.msra.mxu0 %v4014
    %4199 = vmatpush.msra.mxu0 %v4008
    %4200 = vmatpush.msra.mxu0 %v4002
    %4201 = vmatpush.msra.mxu0 %v3996
    %4202 = vmatpush.msra.mxu0 %v3990
    %4203 = vmatpush.msra.mxu0 %v3984
    %4204 = vmatpush.msra.mxu0 %v3978
    %4205 = vmatpush.msra.mxu0 %v3972
    %4206 = vmatpush.msra.mxu0 %v3966
    %4207 = vmatmul.f32.gmra.mxu0 %v3361
    %v4208 = vpop.f32.mrf.mxu0
    %v4209 = vadd.f32 %v4186, %v4208
    %4210 = vmatmul.f32.gmra.mxu0 %v3484
    %v4211 = vpop.f32.mrf.mxu0
    %v4212 = vadd.f32 %v4189, %v4211
    %4213 = vdwg.mxu0
    %4214 = vmatpush.msra.mxu0 %v3577
    %4215 = vmatpush.msra.mxu0 %v3571
    %4216 = vmatpush.msra.mxu0 %v3565
    %4217 = vmatpush.msra.mxu0 %v3559
    %4218 = vmatpush.msra.mxu0 %v3553
    %4219 = vmatpush.msra.mxu0 %v3547
    %4220 = vmatpush.msra.mxu0 %v3541
    %4221 = vmatpush.msra.mxu0 %v3535
    %4222 = vmatpush.msra.mxu0 %v3529
    %4223 = vmatpush.msra.mxu0 %v3523
    %4224 = vmatpush.msra.mxu0 %v3517
    %4225 = vmatpush.msra.mxu0 %v3511
    %4226 = vmatpush.msra.mxu0 %v3505
    %4227 = vmatpush.msra.mxu0 %v3499
    %4228 = vmatpush.msra.mxu0 %v3493
    %4229 = vmatpush.msra.mxu0 %v3487
    %4230 = vmatmul.f32.gmra.mxu0 %v3261
    %v4231 = vpop.f32.mrf.mxu0
    %v4232 = vadd.f32 %v4065, %v4231
    %4233 = vmatmul.f32.gmra.mxu0 %v3384
    %v4234 = vpop.f32.mrf.mxu0
    %v4235 = vadd.f32 %v4065, %v4234
    %4236 = vdwg.mxu0
    %4237 = vmatpush.msra.mxu0 %v3673
    %4238 = vmatpush.msra.mxu0 %v3667
    %4239 = vmatpush.msra.mxu0 %v3661
    %4240 = vmatpush.msra.mxu0 %v3655
    %4241 = vmatpush.msra.mxu0 %v3649
    %4242 = vmatpush.msra.mxu0 %v3643
    %4243 = vmatpush.msra.mxu0 %v3637
    %4244 = vmatpush.msra.mxu0 %v3631
    %4245 = vmatpush.msra.mxu0 %v3625
    %4246 = vmatpush.msra.mxu0 %v3619
    %4247 = vmatpush.msra.mxu0 %v3613
    %4248 = vmatpush.msra.mxu0 %v3607
    %4249 = vmatpush.msra.mxu0 %v3601
    %4250 = vmatpush.msra.mxu0 %v3595
    %4251 = vmatpush.msra.mxu0 %v3589
    %4252 = vmatpush.msra.mxu0 %v3583
    %4253 = vmatmul.f32.gmra.mxu0 %v3281
    %v4254 = vpop.f32.mrf.mxu0
    %v4255 = vadd.f32 %v4232, %v4254
    %4256 = vmatmul.f32.gmra.mxu0 %v3404
    %v4257 = vpop.f32.mrf.mxu0
    %v4258 = vadd.f32 %v4235, %v4257
    %4259 = vdwg.mxu0
    %4260 = vmatpush.msra.mxu0 %v3769
    %4261 = vmatpush.msra.mxu0 %v3763
    %4262 = vmatpush.msra.mxu0 %v3757
    %4263 = vmatpush.msra.mxu0 %v3751
    %4264 = vmatpush.msra.mxu0 %v3745
    %4265 = vmatpush.msra.mxu0 %v3739
    %4266 = vmatpush.msra.mxu0 %v3733
    %4267 = vmatpush.msra.mxu0 %v3727
    %4268 = vmatpush.msra.mxu0 %v3721
    %4269 = vmatpush.msra.mxu0 %v3715
    %4270 = vmatpush.msra.mxu0 %v3709
    %4271 = vmatpush.msra.mxu0 %v3703
    %4272 = vmatpush.msra.mxu0 %v3697
    %4273 = vmatpush.msra.mxu0 %v3691
    %4274 = vmatpush.msra.mxu0 %v3685
    %4275 = vmatpush.msra.mxu0 %v3679
    %4276 = vmatmul.f32.gmra.mxu0 %v3301
    %v4277 = vpop.f32.mrf.mxu0
    %v4278 = vadd.f32 %v4255, %v4277
    %4279 = vmatmul.f32.gmra.mxu0 %v3424
    %v4280 = vpop.f32.mrf.mxu0
    %v4281 = vadd.f32 %v4258, %v4280
    %4282 = vdwg.mxu0
    %4283 = vmatpush.msra.mxu0 %v3865
    %4284 = vmatpush.msra.mxu0 %v3859
    %4285 = vmatpush.msra.mxu0 %v3853
    %4286 = vmatpush.msra.mxu0 %v3847
    %4287 = vmatpush.msra.mxu0 %v3841
    %4288 = vmatpush.msra.mxu0 %v3835
    %4289 = vmatpush.msra.mxu0 %v3829
    %4290 = vmatpush.msra.mxu0 %v3823
    %4291 = vmatpush.msra.mxu0 %v3817
    %4292 = vmatpush.msra.mxu0 %v3811
    %4293 = vmatpush.msra.mxu0 %v3805
    %4294 = vmatpush.msra.mxu0 %v3799
    %4295 = vmatpush.msra.mxu0 %v3793
    %4296 = vmatpush.msra.mxu0 %v3787
    %4297 = vmatpush.msra.mxu0 %v3781
    %4298 = vmatpush.msra.mxu0 %v3775
    %4299 = vmatmul.f32.gmra.mxu0 %v3321
    %v4300 = vpop.f32.mrf.mxu0
    %v4301 = vadd.f32 %v4278, %v4300
    %4302 = vmatmul.f32.gmra.mxu0 %v3444
    %v4303 = vpop.f32.mrf.mxu0
    %v4304 = vadd.f32 %v4281, %v4303
    %4305 = vdwg.mxu0
    %4306 = vmatpush.msra.mxu0 %v3961
    %4307 = vmatpush.msra.mxu0 %v3955
    %4308 = vmatpush.msra.mxu0 %v3949
    %4309 = vmatpush.msra.mxu0 %v3943
    %4310 = vmatpush.msra.mxu0 %v3937
    %4311 = vmatpush.msra.mxu0 %v3931
    %4312 = vmatpush.msra.mxu0 %v3925
    %4313 = vmatpush.msra.mxu0 %v3919
    %4314 = vmatpush.msra.mxu0 %v3913
    %4315 = vmatpush.msra.mxu0 %v3907
    %4316 = vmatpush.msra.mxu0 %v3901
    %4317 = vmatpush.msra.mxu0 %v3895
    %4318 = vmatpush.msra.mxu0 %v3889
    %4319 = vmatpush.msra.mxu0 %v3883
    %4320 = vmatpush.msra.mxu0 %v3877
    %4321 = vmatpush.msra.mxu0 %v3871
    %4322 = vmatmul.f32.gmra.mxu0 %v3341
    %v4323 = vpop.f32.mrf.mxu0
    %v4324 = vadd.f32 %v4301, %v4323
    %4325 = vmatmul.f32.gmra.mxu0 %v3464
    %v4326 = vpop.f32.mrf.mxu0
    %v4327 = vadd.f32 %v4304, %v4326
    %4328 = vdwg.mxu0
    %4329 = vmatpush.msra.mxu0 %v4057
    %4330 = vmatpush.msra.mxu0 %v4051
    %4331 = vmatpush.msra.mxu0 %v4045
    %4332 = vmatpush.msra.mxu0 %v4039
    %4333 = vmatpush.msra.mxu0 %v4033
    %4334 = vmatpush.msra.mxu0 %v4027
    %4335 = vmatpush.msra.mxu0 %v4021
    %4336 = vmatpush.msra.mxu0 %v4015
    %4337 = vmatpush.msra.mxu0 %v4009
    %4338 = vmatpush.msra.mxu0 %v4003
    %4339 = vmatpush.msra.mxu0 %v3997
    %4340 = vmatpush.msra.mxu0 %v3991
    %4341 = vmatpush.msra.mxu0 %v3985
    %4342 = vmatpush.msra.mxu0 %v3979
    %4343 = vmatpush.msra.mxu0 %v3973
    %4344 = vmatpush.msra.mxu0 %v3967
    %4345 = vmatmul.f32.gmra.mxu0 %v3361
    %v4346 = vpop.f32.mrf.mxu0
    %v4347 = vadd.f32 %v4324, %v4346
    %4348 = vmatmul.f32.gmra.mxu0 %v3484
    %v4349 = vpop.f32.mrf.mxu0
    %v4350 = vadd.f32 %v4327, %v4349
    %4351 = vdwg.mxu0
    %4352 = vmatpush.msra.mxu0 %v3578
    %4353 = vmatpush.msra.mxu0 %v3572
    %4354 = vmatpush.msra.mxu0 %v3566
    %4355 = vmatpush.msra.mxu0 %v3560
    %4356 = vmatpush.msra.mxu0 %v3554
    %4357 = vmatpush.msra.mxu0 %v3548
    %4358 = vmatpush.msra.mxu0 %v3542
    %4359 = vmatpush.msra.mxu0 %v3536
    %4360 = vmatpush.msra.mxu0 %v3530
    %4361 = vmatpush.msra.mxu0 %v3524
    %4362 = vmatpush.msra.mxu0 %v3518
    %4363 = vmatpush.msra.mxu0 %v3512
    %4364 = vmatpush.msra.mxu0 %v3506
    %4365 = vmatpush.msra.mxu0 %v3500
    %4366 = vmatpush.msra.mxu0 %v3494
    %4367 = vmatpush.msra.mxu0 %v3488
    %4368 = vmatmul.f32.gmra.mxu0 %v3261
    %v4369 = vpop.f32.mrf.mxu0
    %v4370 = vadd.f32 %v4066, %v4369
    %4371 = vmatmul.f32.gmra.mxu0 %v3384
    %v4372 = vpop.f32.mrf.mxu0
    %v4373 = vadd.f32 %v4066, %v4372
    %4374 = vdwg.mxu0
    %4375 = vmatpush.msra.mxu0 %v3674
    %4376 = vmatpush.msra.mxu0 %v3668
    %4377 = vmatpush.msra.mxu0 %v3662
    %4378 = vmatpush.msra.mxu0 %v3656
    %4379 = vmatpush.msra.mxu0 %v3650
    %4380 = vmatpush.msra.mxu0 %v3644
    %4381 = vmatpush.msra.mxu0 %v3638
    %4382 = vmatpush.msra.mxu0 %v3632
    %4383 = vmatpush.msra.mxu0 %v3626
    %4384 = vmatpush.msra.mxu0 %v3620
    %4385 = vmatpush.msra.mxu0 %v3614
    %4386 = vmatpush.msra.mxu0 %v3608
    %4387 = vmatpush.msra.mxu0 %v3602
    %4388 = vmatpush.msra.mxu0 %v3596
    %4389 = vmatpush.msra.mxu0 %v3590
    %4390 = vmatpush.msra.mxu0 %v3584
    %4391 = vmatmul.f32.gmra.mxu0 %v3281
    %v4392 = vpop.f32.mrf.mxu0
    %v4393 = vadd.f32 %v4370, %v4392
    %4394 = vmatmul.f32.gmra.mxu0 %v3404
    %v4395 = vpop.f32.mrf.mxu0
    %v4396 = vadd.f32 %v4373, %v4395
    %4397 = vdwg.mxu0
    %4398 = vmatpush.msra.mxu0 %v3770
    %4399 = vmatpush.msra.mxu0 %v3764
    %4400 = vmatpush.msra.mxu0 %v3758
    %4401 = vmatpush.msra.mxu0 %v3752
    %4402 = vmatpush.msra.mxu0 %v3746
    %4403 = vmatpush.msra.mxu0 %v3740
    %4404 = vmatpush.msra.mxu0 %v3734
    %4405 = vmatpush.msra.mxu0 %v3728
    %4406 = vmatpush.msra.mxu0 %v3722
    %4407 = vmatpush.msra.mxu0 %v3716
    %4408 = vmatpush.msra.mxu0 %v3710
    %4409 = vmatpush.msra.mxu0 %v3704
    %4410 = vmatpush.msra.mxu0 %v3698
    %4411 = vmatpush.msra.mxu0 %v3692
    %4412 = vmatpush.msra.mxu0 %v3686
    %4413 = vmatpush.msra.mxu0 %v3680
    %4414 = vmatmul.f32.gmra.mxu0 %v3301
    %v4415 = vpop.f32.mrf.mxu0
    %v4416 = vadd.f32 %v4393, %v4415
    %4417 = vmatmul.f32.gmra.mxu0 %v3424
    %v4418 = vpop.f32.mrf.mxu0
    %v4419 = vadd.f32 %v4396, %v4418
    %4420 = vdwg.mxu0
    %4421 = vmatpush.msra.mxu0 %v3866
    %4422 = vmatpush.msra.mxu0 %v3860
    %4423 = vmatpush.msra.mxu0 %v3854
    %4424 = vmatpush.msra.mxu0 %v3848
    %4425 = vmatpush.msra.mxu0 %v3842
    %4426 = vmatpush.msra.mxu0 %v3836
    %4427 = vmatpush.msra.mxu0 %v3830
    %4428 = vmatpush.msra.mxu0 %v3824
    %4429 = vmatpush.msra.mxu0 %v3818
    %4430 = vmatpush.msra.mxu0 %v3812
    %4431 = vmatpush.msra.mxu0 %v3806
    %4432 = vmatpush.msra.mxu0 %v3800
    %4433 = vmatpush.msra.mxu0 %v3794
    %4434 = vmatpush.msra.mxu0 %v3788
    %4435 = vmatpush.msra.mxu0 %v3782
    %4436 = vmatpush.msra.mxu0 %v3776
    %4437 = vmatmul.f32.gmra.mxu0 %v3321
    %v4438 = vpop.f32.mrf.mxu0
    %v4439 = vadd.f32 %v4416, %v4438
    %4440 = vmatmul.f32.gmra.mxu0 %v3444
    %v4441 = vpop.f32.mrf.mxu0
    %v4442 = vadd.f32 %v4419, %v4441
    %4443 = vdwg.mxu0
    %4444 = vmatpush.msra.mxu0 %v3962
    %4445 = vmatpush.msra.mxu0 %v3956
    %4446 = vmatpush.msra.mxu0 %v3950
    %4447 = vmatpush.msra.mxu0 %v3944
    %4448 = vmatpush.msra.mxu0 %v3938
    %4449 = vmatpush.msra.mxu0 %v3932
    %4450 = vmatpush.msra.mxu0 %v3926
    %4451 = vmatpush.msra.mxu0 %v3920
    %4452 = vmatpush.msra.mxu0 %v3914
    %4453 = vmatpush.msra.mxu0 %v3908
    %4454 = vmatpush.msra.mxu0 %v3902
    %4455 = vmatpush.msra.mxu0 %v3896
    %4456 = vmatpush.msra.mxu0 %v3890
    %4457 = vmatpush.msra.mxu0 %v3884
    %4458 = vmatpush.msra.mxu0 %v3878
    %4459 = vmatpush.msra.mxu0 %v3872
    %4460 = vmatmul.f32.gmra.mxu0 %v3341
    %v4461 = vpop.f32.mrf.mxu0
    %v4462 = vadd.f32 %v4439, %v4461
    %4463 = vmatmul.f32.gmra.mxu0 %v3464
    %v4464 = vpop.f32.mrf.mxu0
    %v4465 = vadd.f32 %v4442, %v4464
    %4466 = vdwg.mxu0
    %4467 = vmatpush.msra.mxu0 %v4058
    %4468 = vmatpush.msra.mxu0 %v4052
    %4469 = vmatpush.msra.mxu0 %v4046
    %4470 = vmatpush.msra.mxu0 %v4040
    %4471 = vmatpush.msra.mxu0 %v4034
    %4472 = vmatpush.msra.mxu0 %v4028
    %4473 = vmatpush.msra.mxu0 %v4022
    %4474 = vmatpush.msra.mxu0 %v4016
    %4475 = vmatpush.msra.mxu0 %v4010
    %4476 = vmatpush.msra.mxu0 %v4004
    %4477 = vmatpush.msra.mxu0 %v3998
    %4478 = vmatpush.msra.mxu0 %v3992
    %4479 = vmatpush.msra.mxu0 %v3986
    %4480 = vmatpush.msra.mxu0 %v3980
    %4481 = vmatpush.msra.mxu0 %v3974
    %4482 = vmatpush.msra.mxu0 %v3968
    %4483 = vmatmul.f32.gmra.mxu0 %v3361
    %v4484 = vpop.f32.mrf.mxu0
    %v4485 = vadd.f32 %v4462, %v4484
    %4486 = vmatmul.f32.gmra.mxu0 %v3484
    %v4487 = vpop.f32.mrf.mxu0
    %v4488 = vadd.f32 %v4465, %v4487
    %4489 = vdwg.mxu0
    %4490 = vmatpush.msra.mxu0 %v3579
    %4491 = vmatpush.msra.mxu0 %v3573
    %4492 = vmatpush.msra.mxu0 %v3567
    %4493 = vmatpush.msra.mxu0 %v3561
    %4494 = vmatpush.msra.mxu0 %v3555
    %4495 = vmatpush.msra.mxu0 %v3549
    %4496 = vmatpush.msra.mxu0 %v3543
    %4497 = vmatpush.msra.mxu0 %v3537
    %4498 = vmatpush.msra.mxu0 %v3531
    %4499 = vmatpush.msra.mxu0 %v3525
    %4500 = vmatpush.msra.mxu0 %v3519
    %4501 = vmatpush.msra.mxu0 %v3513
    %4502 = vmatpush.msra.mxu0 %v3507
    %4503 = vmatpush.msra.mxu0 %v3501
    %4504 = vmatpush.msra.mxu0 %v3495
    %4505 = vmatpush.msra.mxu0 %v3489
    %4506 = vmatmul.f32.gmra.mxu0 %v3261
    %v4507 = vpop.f32.mrf.mxu0
    %v4508 = vadd.f32 %v4067, %v4507
    %4509 = vmatmul.f32.gmra.mxu0 %v3384
    %v4510 = vpop.f32.mrf.mxu0
    %v4511 = vadd.f32 %v4067, %v4510
    %4512 = vdwg.mxu0
    %4513 = vmatpush.msra.mxu0 %v3675
    %4514 = vmatpush.msra.mxu0 %v3669
    %4515 = vmatpush.msra.mxu0 %v3663
    %4516 = vmatpush.msra.mxu0 %v3657
    %4517 = vmatpush.msra.mxu0 %v3651
    %4518 = vmatpush.msra.mxu0 %v3645
    %4519 = vmatpush.msra.mxu0 %v3639
    %4520 = vmatpush.msra.mxu0 %v3633
    %4521 = vmatpush.msra.mxu0 %v3627
    %4522 = vmatpush.msra.mxu0 %v3621
    %4523 = vmatpush.msra.mxu0 %v3615
    %4524 = vmatpush.msra.mxu0 %v3609
    %4525 = vmatpush.msra.mxu0 %v3603
    %4526 = vmatpush.msra.mxu0 %v3597
    %4527 = vmatpush.msra.mxu0 %v3591
    %4528 = vmatpush.msra.mxu0 %v3585
    %4529 = vmatmul.f32.gmra.mxu0 %v3281
    %v4530 = vpop.f32.mrf.mxu0
    %v4531 = vadd.f32 %v4508, %v4530
    %4532 = vmatmul.f32.gmra.mxu0 %v3404
    %v4533 = vpop.f32.mrf.mxu0
    %v4534 = vadd.f32 %v4511, %v4533
    %4535 = vdwg.mxu0
    %4536 = vmatpush.msra.mxu0 %v3771
    %4537 = vmatpush.msra.mxu0 %v3765
    %4538 = vmatpush.msra.mxu0 %v3759
    %4539 = vmatpush.msra.mxu0 %v3753
    %4540 = vmatpush.msra.mxu0 %v3747
    %4541 = vmatpush.msra.mxu0 %v3741
    %4542 = vmatpush.msra.mxu0 %v3735
    %4543 = vmatpush.msra.mxu0 %v3729
    %4544 = vmatpush.msra.mxu0 %v3723
    %4545 = vmatpush.msra.mxu0 %v3717
    %4546 = vmatpush.msra.mxu0 %v3711
    %4547 = vmatpush.msra.mxu0 %v3705
    %4548 = vmatpush.msra.mxu0 %v3699
    %4549 = vmatpush.msra.mxu0 %v3693
    %4550 = vmatpush.msra.mxu0 %v3687
    %4551 = vmatpush.msra.mxu0 %v3681
    %4552 = vmatmul.f32.gmra.mxu0 %v3301
    %v4553 = vpop.f32.mrf.mxu0
    %v4554 = vadd.f32 %v4531, %v4553
    %4555 = vmatmul.f32.gmra.mxu0 %v3424
    %v4556 = vpop.f32.mrf.mxu0
    %v4557 = vadd.f32 %v4534, %v4556
    %4558 = vdwg.mxu0
    %4559 = vmatpush.msra.mxu0 %v3867
    %4560 = vmatpush.msra.mxu0 %v3861
    %4561 = vmatpush.msra.mxu0 %v3855
    %4562 = vmatpush.msra.mxu0 %v3849
    %4563 = vmatpush.msra.mxu0 %v3843
    %4564 = vmatpush.msra.mxu0 %v3837
    %4565 = vmatpush.msra.mxu0 %v3831
    %4566 = vmatpush.msra.mxu0 %v3825
    %4567 = vmatpush.msra.mxu0 %v3819
    %4568 = vmatpush.msra.mxu0 %v3813
    %4569 = vmatpush.msra.mxu0 %v3807
    %4570 = vmatpush.msra.mxu0 %v3801
    %4571 = vmatpush.msra.mxu0 %v3795
    %4572 = vmatpush.msra.mxu0 %v3789
    %4573 = vmatpush.msra.mxu0 %v3783
    %4574 = vmatpush.msra.mxu0 %v3777
    %4575 = vmatmul.f32.gmra.mxu0 %v3321
    %v4576 = vpop.f32.mrf.mxu0
    %v4577 = vadd.f32 %v4554, %v4576
    %4578 = vmatmul.f32.gmra.mxu0 %v3444
    %v4579 = vpop.f32.mrf.mxu0
    %v4580 = vadd.f32 %v4557, %v4579
    %4581 = vdwg.mxu0
    %4582 = vmatpush.msra.mxu0 %v3963
    %4583 = vmatpush.msra.mxu0 %v3957
    %4584 = vmatpush.msra.mxu0 %v3951
    %4585 = vmatpush.msra.mxu0 %v3945
    %4586 = vmatpush.msra.mxu0 %v3939
    %4587 = vmatpush.msra.mxu0 %v3933
    %4588 = vmatpush.msra.mxu0 %v3927
    %4589 = vmatpush.msra.mxu0 %v3921
    %4590 = vmatpush.msra.mxu0 %v3915
    %4591 = vmatpush.msra.mxu0 %v3909
    %4592 = vmatpush.msra.mxu0 %v3903
    %4593 = vmatpush.msra.mxu0 %v3897
    %4594 = vmatpush.msra.mxu0 %v3891
    %4595 = vmatpush.msra.mxu0 %v3885
    %4596 = vmatpush.msra.mxu0 %v3879
    %4597 = vmatpush.msra.mxu0 %v3873
    %4598 = vmatmul.f32.gmra.mxu0 %v3341
    %v4599 = vpop.f32.mrf.mxu0
    %v4600 = vadd.f32 %v4577, %v4599
    %4601 = vmatmul.f32.gmra.mxu0 %v3464
    %v4602 = vpop.f32.mrf.mxu0
    %v4603 = vadd.f32 %v4580, %v4602
    %4604 = vdwg.mxu0
    %4605 = vmatpush.msra.mxu0 %v4059
    %4606 = vmatpush.msra.mxu0 %v4053
    %4607 = vmatpush.msra.mxu0 %v4047
    %4608 = vmatpush.msra.mxu0 %v4041
    %4609 = vmatpush.msra.mxu0 %v4035
    %4610 = vmatpush.msra.mxu0 %v4029
    %4611 = vmatpush.msra.mxu0 %v4023
    %4612 = vmatpush.msra.mxu0 %v4017
    %4613 = vmatpush.msra.mxu0 %v4011
    %4614 = vmatpush.msra.mxu0 %v4005
    %4615 = vmatpush.msra.mxu0 %v3999
    %4616 = vmatpush.msra.mxu0 %v3993
    %4617 = vmatpush.msra.mxu0 %v3987
    %4618 = vmatpush.msra.mxu0 %v3981
    %4619 = vmatpush.msra.mxu0 %v3975
    %4620 = vmatpush.msra.mxu0 %v3969
    %4621 = vmatmul.f32.gmra.mxu0 %v3361
    %v4622 = vpop.f32.mrf.mxu0
    %v4623 = vadd.f32 %v4600, %v4622
    %4624 = vmatmul.f32.gmra.mxu0 %v3484
    %v4625 = vpop.f32.mrf.mxu0
    %v4626 = vadd.f32 %v4603, %v4625
    %4627 = vdwg.mxu0
    %4628 = vmatpush.msra.mxu0 %v3580
    %4629 = vmatpush.msra.mxu0 %v3574
    %4630 = vmatpush.msra.mxu0 %v3568
    %4631 = vmatpush.msra.mxu0 %v3562
    %4632 = vmatpush.msra.mxu0 %v3556
    %4633 = vmatpush.msra.mxu0 %v3550
    %4634 = vmatpush.msra.mxu0 %v3544
    %4635 = vmatpush.msra.mxu0 %v3538
    %4636 = vmatpush.msra.mxu0 %v3532
    %4637 = vmatpush.msra.mxu0 %v3526
    %4638 = vmatpush.msra.mxu0 %v3520
    %4639 = vmatpush.msra.mxu0 %v3514
    %4640 = vmatpush.msra.mxu0 %v3508
    %4641 = vmatpush.msra.mxu0 %v3502
    %4642 = vmatpush.msra.mxu0 %v3496
    %4643 = vmatpush.msra.mxu0 %v3490
    %4644 = vmatmul.f32.gmra.mxu0 %v3261
    %v4645 = vpop.f32.mrf.mxu0
    %v4646 = vadd.f32 %v4068, %v4645
    %4647 = vmatmul.f32.gmra.mxu0 %v3384
    %v4648 = vpop.f32.mrf.mxu0
    %v4649 = vadd.f32 %v4068, %v4648
    %4650 = vdwg.mxu0
    %4651 = vmatpush.msra.mxu0 %v3676
    %4652 = vmatpush.msra.mxu0 %v3670
    %4653 = vmatpush.msra.mxu0 %v3664
    %4654 = vmatpush.msra.mxu0 %v3658
    %4655 = vmatpush.msra.mxu0 %v3652
    %4656 = vmatpush.msra.mxu0 %v3646
    %4657 = vmatpush.msra.mxu0 %v3640
    %4658 = vmatpush.msra.mxu0 %v3634
    %4659 = vmatpush.msra.mxu0 %v3628
    %4660 = vmatpush.msra.mxu0 %v3622
    %4661 = vmatpush.msra.mxu0 %v3616
    %4662 = vmatpush.msra.mxu0 %v3610
    %4663 = vmatpush.msra.mxu0 %v3604
    %4664 = vmatpush.msra.mxu0 %v3598
    %4665 = vmatpush.msra.mxu0 %v3592
    %4666 = vmatpush.msra.mxu0 %v3586
    %4667 = vmatmul.f32.gmra.mxu0 %v3281
    %v4668 = vpop.f32.mrf.mxu0
    %v4669 = vadd.f32 %v4646, %v4668
    %4670 = vmatmul.f32.gmra.mxu0 %v3404
    %v4671 = vpop.f32.mrf.mxu0
    %v4672 = vadd.f32 %v4649, %v4671
    %4673 = vdwg.mxu0
    %4674 = vmatpush.msra.mxu0 %v3772
    %4675 = vmatpush.msra.mxu0 %v3766
    %4676 = vmatpush.msra.mxu0 %v3760
    %4677 = vmatpush.msra.mxu0 %v3754
    %4678 = vmatpush.msra.mxu0 %v3748
    %4679 = vmatpush.msra.mxu0 %v3742
    %4680 = vmatpush.msra.mxu0 %v3736
    %4681 = vmatpush.msra.mxu0 %v3730
    %4682 = vmatpush.msra.mxu0 %v3724
    %4683 = vmatpush.msra.mxu0 %v3718
    %4684 = vmatpush.msra.mxu0 %v3712
    %4685 = vmatpush.msra.mxu0 %v3706
    %4686 = vmatpush.msra.mxu0 %v3700
    %4687 = vmatpush.msra.mxu0 %v3694
    %4688 = vmatpush.msra.mxu0 %v3688
    %4689 = vmatpush.msra.mxu0 %v3682
    %4690 = vmatmul.f32.gmra.mxu0 %v3301
    %v4691 = vpop.f32.mrf.mxu0
    %v4692 = vadd.f32 %v4669, %v4691
    %4693 = vmatmul.f32.gmra.mxu0 %v3424
    %v4694 = vpop.f32.mrf.mxu0
    %v4695 = vadd.f32 %v4672, %v4694
    %4696 = vdwg.mxu0
    %4697 = vmatpush.msra.mxu0 %v3868
    %4698 = vmatpush.msra.mxu0 %v3862
    %4699 = vmatpush.msra.mxu0 %v3856
    %4700 = vmatpush.msra.mxu0 %v3850
    %4701 = vmatpush.msra.mxu0 %v3844
    %4702 = vmatpush.msra.mxu0 %v3838
    %4703 = vmatpush.msra.mxu0 %v3832
    %4704 = vmatpush.msra.mxu0 %v3826
    %4705 = vmatpush.msra.mxu0 %v3820
    %4706 = vmatpush.msra.mxu0 %v3814
    %4707 = vmatpush.msra.mxu0 %v3808
    %4708 = vmatpush.msra.mxu0 %v3802
    %4709 = vmatpush.msra.mxu0 %v3796
    %4710 = vmatpush.msra.mxu0 %v3790
    %4711 = vmatpush.msra.mxu0 %v3784
    %4712 = vmatpush.msra.mxu0 %v3778
    %4713 = vmatmul.f32.gmra.mxu0 %v3321
    %v4714 = vpop.f32.mrf.mxu0
    %v4715 = vadd.f32 %v4692, %v4714
    %4716 = vmatmul.f32.gmra.mxu0 %v3444
    %v4717 = vpop.f32.mrf.mxu0
    %v4718 = vadd.f32 %v4695, %v4717
    %4719 = vdwg.mxu0
    %4720 = vmatpush.msra.mxu0 %v3964
    %4721 = vmatpush.msra.mxu0 %v3958
    %4722 = vmatpush.msra.mxu0 %v3952
    %4723 = vmatpush.msra.mxu0 %v3946
    %4724 = vmatpush.msra.mxu0 %v3940
    %4725 = vmatpush.msra.mxu0 %v3934
    %4726 = vmatpush.msra.mxu0 %v3928
    %4727 = vmatpush.msra.mxu0 %v3922
    %4728 = vmatpush.msra.mxu0 %v3916
    %4729 = vmatpush.msra.mxu0 %v3910
    %4730 = vmatpush.msra.mxu0 %v3904
    %4731 = vmatpush.msra.mxu0 %v3898
    %4732 = vmatpush.msra.mxu0 %v3892
    %4733 = vmatpush.msra.mxu0 %v3886
    %4734 = vmatpush.msra.mxu0 %v3880
    %4735 = vmatpush.msra.mxu0 %v3874
    %4736 = vmatmul.f32.gmra.mxu0 %v3341
    %v4737 = vpop.f32.mrf.mxu0
    %v4738 = vadd.f32 %v4715, %v4737
    %4739 = vmatmul.f32.gmra.mxu0 %v3464
    %v4740 = vpop.f32.mrf.mxu0
    %v4741 = vadd.f32 %v4718, %v4740
    %4742 = vdwg.mxu0
    %4743 = vmatpush.msra.mxu0 %v4060
    %4744 = vmatpush.msra.mxu0 %v4054
    %4745 = vmatpush.msra.mxu0 %v4048
    %4746 = vmatpush.msra.mxu0 %v4042
    %4747 = vmatpush.msra.mxu0 %v4036
    %4748 = vmatpush.msra.mxu0 %v4030
    %4749 = vmatpush.msra.mxu0 %v4024
    %4750 = vmatpush.msra.mxu0 %v4018
    %4751 = vmatpush.msra.mxu0 %v4012
    %4752 = vmatpush.msra.mxu0 %v4006
    %4753 = vmatpush.msra.mxu0 %v4000
    %4754 = vmatpush.msra.mxu0 %v3994
    %4755 = vmatpush.msra.mxu0 %v3988
    %4756 = vmatpush.msra.mxu0 %v3982
    %4757 = vmatpush.msra.mxu0 %v3976
    %4758 = vmatpush.msra.mxu0 %v3970
    %4759 = vmatmul.f32.gmra.mxu0 %v3361
    %v4760 = vpop.f32.mrf.mxu0
    %v4761 = vadd.f32 %v4738, %v4760
    %4762 = vmatmul.f32.gmra.mxu0 %v3484
    %v4763 = vpop.f32.mrf.mxu0
    %v4764 = vadd.f32 %v4741, %v4763
    %4765 = vdwg.mxu0
    %4766 = vmatpush.msra.mxu0 %v3581
    %4767 = vmatpush.msra.mxu0 %v3575
    %4768 = vmatpush.msra.mxu0 %v3569
    %4769 = vmatpush.msra.mxu0 %v3563
    %4770 = vmatpush.msra.mxu0 %v3557
    %4771 = vmatpush.msra.mxu0 %v3551
    %4772 = vmatpush.msra.mxu0 %v3545
    %4773 = vmatpush.msra.mxu0 %v3539
    %4774 = vmatpush.msra.mxu0 %v3533
    %4775 = vmatpush.msra.mxu0 %v3527
    %4776 = vmatpush.msra.mxu0 %v3521
    %4777 = vmatpush.msra.mxu0 %v3515
    %4778 = vmatpush.msra.mxu0 %v3509
    %4779 = vmatpush.msra.mxu0 %v3503
    %4780 = vmatpush.msra.mxu0 %v3497
    %4781 = vmatpush.msra.mxu0 %v3491
    %4782 = vmatmul.f32.gmra.mxu0 %v3261
    %v4783 = vpop.f32.mrf.mxu0
    %v4784 = vadd.f32 %v4069, %v4783
    %4785 = vmatmul.f32.gmra.mxu0 %v3384
    %v4786 = vpop.f32.mrf.mxu0
    %v4787 = vadd.f32 %v4069, %v4786
    %4788 = vdwg.mxu0
    %4789 = vmatpush.msra.mxu0 %v3677
    %4790 = vmatpush.msra.mxu0 %v3671
    %4791 = vmatpush.msra.mxu0 %v3665
    %4792 = vmatpush.msra.mxu0 %v3659
    %4793 = vmatpush.msra.mxu0 %v3653
    %4794 = vmatpush.msra.mxu0 %v3647
    %4795 = vmatpush.msra.mxu0 %v3641
    %4796 = vmatpush.msra.mxu0 %v3635
    %4797 = vmatpush.msra.mxu0 %v3629
    %4798 = vmatpush.msra.mxu0 %v3623
    %4799 = vmatpush.msra.mxu0 %v3617
    %4800 = vmatpush.msra.mxu0 %v3611
    %4801 = vmatpush.msra.mxu0 %v3605
    %4802 = vmatpush.msra.mxu0 %v3599
    %4803 = vmatpush.msra.mxu0 %v3593
    %4804 = vmatpush.msra.mxu0 %v3587
    %4805 = vmatmul.f32.gmra.mxu0 %v3281
    %v4806 = vpop.f32.mrf.mxu0
    %v4807 = vadd.f32 %v4784, %v4806
    %4808 = vmatmul.f32.gmra.mxu0 %v3404
    %v4809 = vpop.f32.mrf.mxu0
    %v4810 = vadd.f32 %v4787, %v4809
    %4811 = vdwg.mxu0
    %4812 = vmatpush.msra.mxu0 %v3773
    %4813 = vmatpush.msra.mxu0 %v3767
    %4814 = vmatpush.msra.mxu0 %v3761
    %4815 = vmatpush.msra.mxu0 %v3755
    %4816 = vmatpush.msra.mxu0 %v3749
    %4817 = vmatpush.msra.mxu0 %v3743
    %4818 = vmatpush.msra.mxu0 %v3737
    %4819 = vmatpush.msra.mxu0 %v3731
    %4820 = vmatpush.msra.mxu0 %v3725
    %4821 = vmatpush.msra.mxu0 %v3719
    %4822 = vmatpush.msra.mxu0 %v3713
    %4823 = vmatpush.msra.mxu0 %v3707
    %4824 = vmatpush.msra.mxu0 %v3701
    %4825 = vmatpush.msra.mxu0 %v3695
    %4826 = vmatpush.msra.mxu0 %v3689
    %4827 = vmatpush.msra.mxu0 %v3683
    %4828 = vmatmul.f32.gmra.mxu0 %v3301
    %v4829 = vpop.f32.mrf.mxu0
    %v4830 = vadd.f32 %v4807, %v4829
    %4831 = vmatmul.f32.gmra.mxu0 %v3424
    %v4832 = vpop.f32.mrf.mxu0
    %v4833 = vadd.f32 %v4810, %v4832
    %4834 = vdwg.mxu0
    %4835 = vmatpush.msra.mxu0 %v3869
    %4836 = vmatpush.msra.mxu0 %v3863
    %4837 = vmatpush.msra.mxu0 %v3857
    %4838 = vmatpush.msra.mxu0 %v3851
    %4839 = vmatpush.msra.mxu0 %v3845
    %4840 = vmatpush.msra.mxu0 %v3839
    %4841 = vmatpush.msra.mxu0 %v3833
    %4842 = vmatpush.msra.mxu0 %v3827
    %4843 = vmatpush.msra.mxu0 %v3821
    %4844 = vmatpush.msra.mxu0 %v3815
    %4845 = vmatpush.msra.mxu0 %v3809
    %4846 = vmatpush.msra.mxu0 %v3803
    %4847 = vmatpush.msra.mxu0 %v3797
    %4848 = vmatpush.msra.mxu0 %v3791
    %4849 = vmatpush.msra.mxu0 %v3785
    %4850 = vmatpush.msra.mxu0 %v3779
    %4851 = vmatmul.f32.gmra.mxu0 %v3321
    %v4852 = vpop.f32.mrf.mxu0
    %v4853 = vadd.f32 %v4830, %v4852
    %4854 = vmatmul.f32.gmra.mxu0 %v3444
    %v4855 = vpop.f32.mrf.mxu0
    %v4856 = vadd.f32 %v4833, %v4855
    %4857 = vdwg.mxu0
    %4858 = vmatpush.msra.mxu0 %v3965
    %4859 = vmatpush.msra.mxu0 %v3959
    %4860 = vmatpush.msra.mxu0 %v3953
    %4861 = vmatpush.msra.mxu0 %v3947
    %4862 = vmatpush.msra.mxu0 %v3941
    %4863 = vmatpush.msra.mxu0 %v3935
    %4864 = vmatpush.msra.mxu0 %v3929
    %4865 = vmatpush.msra.mxu0 %v3923
    %4866 = vmatpush.msra.mxu0 %v3917
    %4867 = vmatpush.msra.mxu0 %v3911
    %4868 = vmatpush.msra.mxu0 %v3905
    %4869 = vmatpush.msra.mxu0 %v3899
    %4870 = vmatpush.msra.mxu0 %v3893
    %4871 = vmatpush.msra.mxu0 %v3887
    %4872 = vmatpush.msra.mxu0 %v3881
    %4873 = vmatpush.msra.mxu0 %v3875
    %4874 = vmatmul.f32.gmra.mxu0 %v3341
    %v4875 = vpop.f32.mrf.mxu0
    %v4876 = vadd.f32 %v4853, %v4875
    %4877 = vmatmul.f32.gmra.mxu0 %v3464
    %v4878 = vpop.f32.mrf.mxu0
    %v4879 = vadd.f32 %v4856, %v4878
    %4880 = vdwg.mxu0
    %4881 = vmatpush.msra.mxu0 %v4061
    %4882 = vmatpush.msra.mxu0 %v4055
    %4883 = vmatpush.msra.mxu0 %v4049
    %4884 = vmatpush.msra.mxu0 %v4043
    %4885 = vmatpush.msra.mxu0 %v4037
    %4886 = vmatpush.msra.mxu0 %v4031
    %4887 = vmatpush.msra.mxu0 %v4025
    %4888 = vmatpush.msra.mxu0 %v4019
    %4889 = vmatpush.msra.mxu0 %v4013
    %4890 = vmatpush.msra.mxu0 %v4007
    %4891 = vmatpush.msra.mxu0 %v4001
    %4892 = vmatpush.msra.mxu0 %v3995
    %4893 = vmatpush.msra.mxu0 %v3989
    %4894 = vmatpush.msra.mxu0 %v3983
    %4895 = vmatpush.msra.mxu0 %v3977
    %4896 = vmatpush.msra.mxu0 %v3971
    %4897 = vmatmul.f32.gmra.mxu0 %v3361
    %v4898 = vpop.f32.mrf.mxu0
    %v4899 = vadd.f32 %v4876, %v4898
    %4900 = vmatmul.f32.gmra.mxu0 %v3484
    %v4901 = vpop.f32.mrf.mxu0
    %v4902 = vadd.f32 %v4879, %v4901
    %4903 = vdwg.mxu0
    %v4904 = vld [vmem:[#allocation5] sm:$0x3]
    %v4905 = vld [vmem:[#allocation5 + $0x2] sm:$0x3]
    %vm4906 = vnez %v4904
    %vm4907 = vnez %v4905
    %v4908 = vsel %vm4906, 16843009, 0
    %v4909 = vsel %vm4907, 16843009, 0
    %v4910 = vunpack.c.0.s8 %v4908
    %v4911 = vunpack.c.0.s8 %v4909
    %vm4912 = vcmp.ne.s32.totalorder %v4910, 0
    %vm4913 = vcmp.ne.s32.totalorder %v4911, 0
    %v4914 = vsel %vm4912, -1e+09, %v3117
    %v4915 = vsel %vm4913, -1e+09, %v3237
    %v4916 = vsel %vm3239, %v4914, -inf
    %4917 = vmax.xlane.f32.xlu0 %v4916
    %v4918 = vpop.xlane.xlu0 %4917
    %v4919 = vsel %vm3239, %v4915, -inf
    %4920 = vmax.xlane.f32.xlu0 %v4919
    %v4921 = vpop.xlane.xlu0 %4920
    %v4922 = vsub.f32 %v4914, %v4918
    %v4923 = vsub.f32 %v4915, %v4921
    %v4924 = vmul.f32 %v4922, 1.442695
    %v4925 = vpow.pop %v4924
    %v4926 = vmul.f32 %v4923, 1.442695
    %v4927 = vpow.pop %v4926
    %v4928 = vsel %vm3239, %v4925, 0.0
    %4929 = vadd.xlane.f32.xlu0 %v4928
    %v4930 = vpop.xlane.xlu0 %4929
    %v4931 = vsel %vm3239, %v4927, 0.0
    %4932 = vadd.xlane.f32.xlu0 %v4931
    %v4933 = vpop.xlane.xlu0 %4932
    %v4934 = vrcp.pop %v4930
    %v4935 = vmul.f32 %v4930, %v4934
    %v4936 = vsub.f32 1.0, %v4935
    %v4937 = vmul.f32 %v4934, %v4936
    %v4938 = vadd.f32 %v4934, %v4937
    %vm4939 = vweird.f32 %v4930
    %vm4940 = vweird.f32 %v4934
    %vm4941 = vmor %vm4939, %vm4940
    %v4942 = vsel %vm4941, %v4934, %v4938
    %v4943 = vand.u32 2147483647, %v4930
    %vm4944 = vcmp.eq.f32.partialorder %v4943, 8.507059e+37
    %v4945 = vand.u32 %v4930, 2147483648
    %v4946 = vor.u32 1.1754944e-38, %v4945
    %v4947 = vsel %vm4944, %v4946, %v4942
    %v4948 = vmul.f32 %v4925, %v4947
    %v4949 = vrcp.pop %v4933
    %v4950 = vmul.f32 %v4933, %v4949
    %v4951 = vsub.f32 1.0, %v4950
    %v4952 = vmul.f32 %v4949, %v4951
    %v4953 = vadd.f32 %v4949, %v4952
    %vm4954 = vweird.f32 %v4933
    %vm4955 = vweird.f32 %v4949
    %vm4956 = vmor %vm4954, %vm4955
    %v4957 = vsel %vm4956, %v4949, %v4953
    %v4958 = vand.u32 2147483647, %v4933
    %vm4959 = vcmp.eq.f32.partialorder %v4958, 8.507059e+37
    %v4960 = vand.u32 %v4933, 2147483648
    %v4961 = vor.u32 1.1754944e-38, %v4960
    %v4962 = vsel %vm4959, %v4961, %v4957
    %v4963 = vmul.f32 %v4927, %v4962
    %v4965 = vsel %vm3239, %v4948, 0
    %4967 = vmatpush.msra.mxu0 0.0
    %4968 = vmatpush.msra.mxu0 0.0
    %4969 = vmatpush.msra.mxu0 0.0
    %4970 = vmatpush.msra.mxu0 0.0
    %4971 = vmatpush.msra.mxu0 0.0
    %4972 = vmatpush.msra.mxu0 0.0
    %4973 = vmatpush.msra.mxu0 0.0
    %4974 = vmatpush.msra.mxu0 0.0
    %4975 = vmatpush.msra.mxu0 0.0
    %4976 = vmatpush.msra.mxu0 0.0
    %4977 = vmatpush.msra.mxu0 0.0
    %4978 = vmatpush.msra.mxu0 0.0
    %4979 = vmatpush.msra.mxu0 0.0
    %4980 = vmatpush.msra.mxu0 0.0
    %4981 = vmatpush.msra.mxu0 0.0
    %4982 = vmatpush.msra.mxu0 %v4209
    %4983 = vmatmul.f32.gmra.mxu0 %v4965
    %v4984 = vpop.f32.mrf.mxu0
    %v4985 = vadd.f32 0.0, %v4984
    %4986 = vdwg.mxu0
    %4987 = vmatpush.msra.mxu0 0.0
    %4988 = vmatpush.msra.mxu0 0.0
    %4989 = vmatpush.msra.mxu0 0.0
    %4990 = vmatpush.msra.mxu0 0.0
    %4991 = vmatpush.msra.mxu0 0.0
    %4992 = vmatpush.msra.mxu0 0.0
    %4993 = vmatpush.msra.mxu0 0.0
    %4994 = vmatpush.msra.mxu0 0.0
    %4995 = vmatpush.msra.mxu0 0.0
    %4996 = vmatpush.msra.mxu0 0.0
    %4997 = vmatpush.msra.mxu0 0.0
    %4998 = vmatpush.msra.mxu0 0.0
    %4999 = vmatpush.msra.mxu0 0.0
    %5000 = vmatpush.msra.mxu0 0.0
    %5001 = vmatpush.msra.mxu0 0.0
    %5002 = vmatpush.msra.mxu0 %v4347
    %5003 = vmatmul.f32.gmra.mxu0 %v4965
    %v5004 = vpop.f32.mrf.mxu0
    %v5005 = vadd.f32 0.0, %v5004
    %5006 = vdwg.mxu0
    %5007 = vmatpush.msra.mxu0 0.0
    %5008 = vmatpush.msra.mxu0 0.0
    %5009 = vmatpush.msra.mxu0 0.0
    %5010 = vmatpush.msra.mxu0 0.0
    %5011 = vmatpush.msra.mxu0 0.0
    %5012 = vmatpush.msra.mxu0 0.0
    %5013 = vmatpush.msra.mxu0 0.0
    %5014 = vmatpush.msra.mxu0 0.0
    %5015 = vmatpush.msra.mxu0 0.0
    %5016 = vmatpush.msra.mxu0 0.0
    %5017 = vmatpush.msra.mxu0 0.0
    %5018 = vmatpush.msra.mxu0 0.0
    %5019 = vmatpush.msra.mxu0 0.0
    %5020 = vmatpush.msra.mxu0 0.0
    %5021 = vmatpush.msra.mxu0 0.0
    %5022 = vmatpush.msra.mxu0 %v4485
    %5023 = vmatmul.f32.gmra.mxu0 %v4965
    %v5024 = vpop.f32.mrf.mxu0
    %v5025 = vadd.f32 0.0, %v5024
    %5026 = vdwg.mxu0
    %5027 = vmatpush.msra.mxu0 0.0
    %5028 = vmatpush.msra.mxu0 0.0
    %5029 = vmatpush.msra.mxu0 0.0
    %5030 = vmatpush.msra.mxu0 0.0
    %5031 = vmatpush.msra.mxu0 0.0
    %5032 = vmatpush.msra.mxu0 0.0
    %5033 = vmatpush.msra.mxu0 0.0
    %5034 = vmatpush.msra.mxu0 0.0
    %5035 = vmatpush.msra.mxu0 0.0
    %5036 = vmatpush.msra.mxu0 0.0
    %5037 = vmatpush.msra.mxu0 0.0
    %5038 = vmatpush.msra.mxu0 0.0
    %5039 = vmatpush.msra.mxu0 0.0
    %5040 = vmatpush.msra.mxu0 0.0
    %5041 = vmatpush.msra.mxu0 0.0
    %5042 = vmatpush.msra.mxu0 %v4623
    %5043 = vmatmul.f32.gmra.mxu0 %v4965
    %v5044 = vpop.f32.mrf.mxu0
    %v5045 = vadd.f32 0.0, %v5044
    %5046 = vdwg.mxu0
    %5047 = vmatpush.msra.mxu0 0.0
    %5048 = vmatpush.msra.mxu0 0.0
    %5049 = vmatpush.msra.mxu0 0.0
    %5050 = vmatpush.msra.mxu0 0.0
    %5051 = vmatpush.msra.mxu0 0.0
    %5052 = vmatpush.msra.mxu0 0.0
    %5053 = vmatpush.msra.mxu0 0.0
    %5054 = vmatpush.msra.mxu0 0.0
    %5055 = vmatpush.msra.mxu0 0.0
    %5056 = vmatpush.msra.mxu0 0.0
    %5057 = vmatpush.msra.mxu0 0.0
    %5058 = vmatpush.msra.mxu0 0.0
    %5059 = vmatpush.msra.mxu0 0.0
    %5060 = vmatpush.msra.mxu0 0.0
    %5061 = vmatpush.msra.mxu0 0.0
    %5062 = vmatpush.msra.mxu0 %v4761
    %5063 = vmatmul.f32.gmra.mxu0 %v4965
    %v5064 = vpop.f32.mrf.mxu0
    %v5065 = vadd.f32 0.0, %v5064
    %5066 = vdwg.mxu0
    %5067 = vmatpush.msra.mxu0 0.0
    %5068 = vmatpush.msra.mxu0 0.0
    %5069 = vmatpush.msra.mxu0 0.0
    %5070 = vmatpush.msra.mxu0 0.0
    %5071 = vmatpush.msra.mxu0 0.0
    %5072 = vmatpush.msra.mxu0 0.0
    %5073 = vmatpush.msra.mxu0 0.0
    %5074 = vmatpush.msra.mxu0 0.0
    %5075 = vmatpush.msra.mxu0 0.0
    %5076 = vmatpush.msra.mxu0 0.0
    %5077 = vmatpush.msra.mxu0 0.0
    %5078 = vmatpush.msra.mxu0 0.0
    %5079 = vmatpush.msra.mxu0 0.0
    %5080 = vmatpush.msra.mxu0 0.0
    %5081 = vmatpush.msra.mxu0 0.0
    %5082 = vmatpush.msra.mxu0 %v4899
    %5083 = vmatmul.f32.gmra.mxu0 %v4965
    %v5084 = vpop.f32.mrf.mxu0
    %v5085 = vadd.f32 0.0, %v5084
    %5086 = vdwg.mxu0
    %v5088 = vsel %vm3239, %v4963, 0
    %5090 = vmatpush.msra.mxu0 0.0
    %5091 = vmatpush.msra.mxu0 0.0
    %5092 = vmatpush.msra.mxu0 0.0
    %5093 = vmatpush.msra.mxu0 0.0
    %5094 = vmatpush.msra.mxu0 0.0
    %5095 = vmatpush.msra.mxu0 0.0
    %5096 = vmatpush.msra.mxu0 0.0
    %5097 = vmatpush.msra.mxu0 0.0
    %5098 = vmatpush.msra.mxu0 0.0
    %5099 = vmatpush.msra.mxu0 0.0
    %5100 = vmatpush.msra.mxu0 0.0
    %5101 = vmatpush.msra.mxu0 0.0
    %5102 = vmatpush.msra.mxu0 0.0
    %5103 = vmatpush.msra.mxu0 0.0
    %5104 = vmatpush.msra.mxu0 0.0
    %5105 = vmatpush.msra.mxu0 %v4212
    %5106 = vmatmul.f32.gmra.mxu0 %v5088
    %v5107 = vpop.f32.mrf.mxu0
    %v5108 = vadd.f32 0.0, %v5107
    %5109 = vdwg.mxu0
    %5110 = vmatpush.msra.mxu0 0.0
    %5111 = vmatpush.msra.mxu0 0.0
    %5112 = vmatpush.msra.mxu0 0.0
    %5113 = vmatpush.msra.mxu0 0.0
    %5114 = vmatpush.msra.mxu0 0.0
    %5115 = vmatpush.msra.mxu0 0.0
    %5116 = vmatpush.msra.mxu0 0.0
    %5117 = vmatpush.msra.mxu0 0.0
    %5118 = vmatpush.msra.mxu0 0.0
    %5119 = vmatpush.msra.mxu0 0.0
    %5120 = vmatpush.msra.mxu0 0.0
    %5121 = vmatpush.msra.mxu0 0.0
    %5122 = vmatpush.msra.mxu0 0.0
    %5123 = vmatpush.msra.mxu0 0.0
    %5124 = vmatpush.msra.mxu0 0.0
    %5125 = vmatpush.msra.mxu0 %v4350
    %5126 = vmatmul.f32.gmra.mxu0 %v5088
    %v5127 = vpop.f32.mrf.mxu0
    %v5128 = vadd.f32 0.0, %v5127
    %5129 = vdwg.mxu0
    %5130 = vmatpush.msra.mxu0 0.0
    %5131 = vmatpush.msra.mxu0 0.0
    %5132 = vmatpush.msra.mxu0 0.0
    %5133 = vmatpush.msra.mxu0 0.0
    %5134 = vmatpush.msra.mxu0 0.0
    %5135 = vmatpush.msra.mxu0 0.0
    %5136 = vmatpush.msra.mxu0 0.0
    %5137 = vmatpush.msra.mxu0 0.0
    %5138 = vmatpush.msra.mxu0 0.0
    %5139 = vmatpush.msra.mxu0 0.0
    %5140 = vmatpush.msra.mxu0 0.0
    %5141 = vmatpush.msra.mxu0 0.0
    %5142 = vmatpush.msra.mxu0 0.0
    %5143 = vmatpush.msra.mxu0 0.0
    %5144 = vmatpush.msra.mxu0 0.0
    %5145 = vmatpush.msra.mxu0 %v4488
    %5146 = vmatmul.f32.gmra.mxu0 %v5088
    %v5147 = vpop.f32.mrf.mxu0
    %v5148 = vadd.f32 0.0, %v5147
    %5149 = vdwg.mxu0
    %5150 = vmatpush.msra.mxu0 0.0
    %5151 = vmatpush.msra.mxu0 0.0
    %5152 = vmatpush.msra.mxu0 0.0
    %5153 = vmatpush.msra.mxu0 0.0
    %5154 = vmatpush.msra.mxu0 0.0
    %5155 = vmatpush.msra.mxu0 0.0
    %5156 = vmatpush.msra.mxu0 0.0
    %5157 = vmatpush.msra.mxu0 0.0
    %5158 = vmatpush.msra.mxu0 0.0
    %5159 = vmatpush.msra.mxu0 0.0
    %5160 = vmatpush.msra.mxu0 0.0
    %5161 = vmatpush.msra.mxu0 0.0
    %5162 = vmatpush.msra.mxu0 0.0
    %5163 = vmatpush.msra.mxu0 0.0
    %5164 = vmatpush.msra.mxu0 0.0
    %5165 = vmatpush.msra.mxu0 %v4626
    %5166 = vmatmul.f32.gmra.mxu0 %v5088
    %v5167 = vpop.f32.mrf.mxu0
    %v5168 = vadd.f32 0.0, %v5167
    %5169 = vdwg.mxu0
    %5170 = vmatpush.msra.mxu0 0.0
    %5171 = vmatpush.msra.mxu0 0.0
    %5172 = vmatpush.msra.mxu0 0.0
    %5173 = vmatpush.msra.mxu0 0.0
    %5174 = vmatpush.msra.mxu0 0.0
    %5175 = vmatpush.msra.mxu0 0.0
    %5176 = vmatpush.msra.mxu0 0.0
    %5177 = vmatpush.msra.mxu0 0.0
    %5178 = vmatpush.msra.mxu0 0.0
    %5179 = vmatpush.msra.mxu0 0.0
    %5180 = vmatpush.msra.mxu0 0.0
    %5181 = vmatpush.msra.mxu0 0.0
    %5182 = vmatpush.msra.mxu0 0.0
    %5183 = vmatpush.msra.mxu0 0.0
    %5184 = vmatpush.msra.mxu0 0.0
    %5185 = vmatpush.msra.mxu0 %v4764
    %5186 = vmatmul.f32.gmra.mxu0 %v5088
    %v5187 = vpop.f32.mrf.mxu0
    %v5188 = vadd.f32 0.0, %v5187
    %5189 = vdwg.mxu0
    %5190 = vmatpush.msra.mxu0 0.0
    %5191 = vmatpush.msra.mxu0 0.0
    %5192 = vmatpush.msra.mxu0 0.0
    %5193 = vmatpush.msra.mxu0 0.0
    %5194 = vmatpush.msra.mxu0 0.0
    %5195 = vmatpush.msra.mxu0 0.0
    %5196 = vmatpush.msra.mxu0 0.0
    %5197 = vmatpush.msra.mxu0 0.0
    %5198 = vmatpush.msra.mxu0 0.0
    %5199 = vmatpush.msra.mxu0 0.0
    %5200 = vmatpush.msra.mxu0 0.0
    %5201 = vmatpush.msra.mxu0 0.0
    %5202 = vmatpush.msra.mxu0 0.0
    %5203 = vmatpush.msra.mxu0 0.0
    %5204 = vmatpush.msra.mxu0 0.0
    %5205 = vmatpush.msra.mxu0 %v4902
    %5206 = vmatmul.f32.gmra.mxu0 %v5088
    %v5207 = vpop.f32.mrf.mxu0
    %v5208 = vadd.f32 0.0, %v5207
    %5209 = vdwg.mxu0
    %v5210 = vld [vmem:[#allocation13] sm:$0xff]
    %v5211 = vld [vmem:[#allocation13 + $0x8] sm:$0xff]
    %v5212 = vld [vmem:[#allocation13 + $0x10] sm:$0xff]
    %v5213 = vld [vmem:[#allocation13 + $0x18] sm:$0xff]
    %v5214 = vld [vmem:[#allocation13 + $0x20] sm:$0xff]
    %v5215 = vld [vmem:[#allocation13 + $0x28] sm:$0xff]
    %v5216 = vld [vmem:[#allocation13 + $0x30] sm:$0xff]
    %v5217 = vld [vmem:[#allocation13 + $0x38] sm:$0xff]
    %v5218 = vld [vmem:[#allocation13 + $0x40] sm:$0xff]
    %v5219 = vld [vmem:[#allocation13 + $0x48] sm:$0xff]
    %v5220 = vld [vmem:[#allocation13 + $0x50] sm:$0xff]
    %v5221 = vld [vmem:[#allocation13 + $0x58] sm:$0xff]
    %v5222 = vld [vmem:[#allocation13 + $0x60] sm:$0xff]
    %v5223 = vld [vmem:[#allocation13 + $0x68] sm:$0xff]
    %v5224 = vld [vmem:[#allocation13 + $0x70] sm:$0xff]
    %v5225 = vld [vmem:[#allocation13 + $0x78] sm:$0xff]
    %v5226 = vld [vmem:[#allocation13 + $0x80] sm:$0xff]
    %v5227 = vld [vmem:[#allocation13 + $0x88] sm:$0xff]
    %v5228 = vld [vmem:[#allocation13 + $0x90] sm:$0xff]
    %v5229 = vld [vmem:[#allocation13 + $0x98] sm:$0xff]
    %v5230 = vld [vmem:[#allocation13 + $0xa0] sm:$0xff]
    %v5231 = vld [vmem:[#allocation13 + $0xa8] sm:$0xff]
    %v5232 = vld [vmem:[#allocation13 + $0xb0] sm:$0xff]
    %v5233 = vld [vmem:[#allocation13 + $0xb8] sm:$0xff]
    %v5234 = vld [vmem:[#allocation13 + $0xc0] sm:$0xff]
    %v5235 = vld [vmem:[#allocation13 + $0xc8] sm:$0xff]
    %v5236 = vld [vmem:[#allocation13 + $0xd0] sm:$0xff]
    %v5237 = vld [vmem:[#allocation13 + $0xd8] sm:$0xff]
    %v5238 = vld [vmem:[#allocation13 + $0xe0] sm:$0xff]
    %v5239 = vld [vmem:[#allocation13 + $0xe8] sm:$0xff]
    %v5240 = vld [vmem:[#allocation13 + $0xf0] sm:$0xff]
    %v5241 = vld [vmem:[#allocation13 + $0xf8] sm:$0xff]
    %v5242 = vld [vmem:[#allocation13 + $0x100] sm:$0xff]
    %v5243 = vld [vmem:[#allocation13 + $0x108] sm:$0xff]
    %v5244 = vld [vmem:[#allocation13 + $0x110] sm:$0xff]
    %v5245 = vld [vmem:[#allocation13 + $0x118] sm:$0xff]
    %v5246 = vld [vmem:[#allocation13 + $0x120] sm:$0xff]
    %v5247 = vld [vmem:[#allocation13 + $0x128] sm:$0xff]
    %v5248 = vld [vmem:[#allocation13 + $0x130] sm:$0xff]
    %v5249 = vld [vmem:[#allocation13 + $0x138] sm:$0xff]
    %v5250 = vld [vmem:[#allocation13 + $0x140] sm:$0xff]
    %v5251 = vld [vmem:[#allocation13 + $0x148] sm:$0xff]
    %v5252 = vld [vmem:[#allocation13 + $0x150] sm:$0xff]
    %v5253 = vld [vmem:[#allocation13 + $0x158] sm:$0xff]
    %v5254 = vld [vmem:[#allocation13 + $0x160] sm:$0xff]
    %v5255 = vld [vmem:[#allocation13 + $0x168] sm:$0xff]
    %v5256 = vld [vmem:[#allocation13 + $0x170] sm:$0xff]
    %v5257 = vld [vmem:[#allocation13 + $0x178] sm:$0xff]
    %v5258 = vld [vmem:[#allocation13 + $0x180] sm:$0xff]
    %v5259 = vld [vmem:[#allocation13 + $0x188] sm:$0xff]
    %v5260 = vld [vmem:[#allocation13 + $0x190] sm:$0xff]
    %v5261 = vld [vmem:[#allocation13 + $0x198] sm:$0xff]
    %v5262 = vld [vmem:[#allocation13 + $0x1a0] sm:$0xff]
    %v5263 = vld [vmem:[#allocation13 + $0x1a8] sm:$0xff]
    %v5264 = vld [vmem:[#allocation13 + $0x1b0] sm:$0xff]
    %v5265 = vld [vmem:[#allocation13 + $0x1b8] sm:$0xff]
    %v5266 = vld [vmem:[#allocation13 + $0x1c0] sm:$0xff]
    %v5267 = vld [vmem:[#allocation13 + $0x1c8] sm:$0xff]
    %v5268 = vld [vmem:[#allocation13 + $0x1d0] sm:$0xff]
    %v5269 = vld [vmem:[#allocation13 + $0x1d8] sm:$0xff]
    %v5270 = vld [vmem:[#allocation13 + $0x1e0] sm:$0xff]
    %v5271 = vld [vmem:[#allocation13 + $0x1e8] sm:$0xff]
    %v5272 = vld [vmem:[#allocation13 + $0x1f0] sm:$0xff]
    %v5273 = vld [vmem:[#allocation13 + $0x1f8] sm:$0xff]
    %v5274 = vld [vmem:[#allocation13 + $0x200] sm:$0xff]
    %v5275 = vld [vmem:[#allocation13 + $0x208] sm:$0xff]
    %v5276 = vld [vmem:[#allocation13 + $0x210] sm:$0xff]
    %v5277 = vld [vmem:[#allocation13 + $0x218] sm:$0xff]
    %v5278 = vld [vmem:[#allocation13 + $0x220] sm:$0xff]
    %v5279 = vld [vmem:[#allocation13 + $0x228] sm:$0xff]
    %v5280 = vld [vmem:[#allocation13 + $0x230] sm:$0xff]
    %v5281 = vld [vmem:[#allocation13 + $0x238] sm:$0xff]
    %v5282 = vld [vmem:[#allocation13 + $0x240] sm:$0xff]
    %v5283 = vld [vmem:[#allocation13 + $0x248] sm:$0xff]
    %v5284 = vld [vmem:[#allocation13 + $0x250] sm:$0xff]
    %v5285 = vld [vmem:[#allocation13 + $0x258] sm:$0xff]
    %v5286 = vld [vmem:[#allocation13 + $0x260] sm:$0xff]
    %v5287 = vld [vmem:[#allocation13 + $0x268] sm:$0xff]
    %v5288 = vld [vmem:[#allocation13 + $0x270] sm:$0xff]
    %v5289 = vld [vmem:[#allocation13 + $0x278] sm:$0xff]
    %v5290 = vld [vmem:[#allocation13 + $0x280] sm:$0xff]
    %v5291 = vld [vmem:[#allocation13 + $0x288] sm:$0xff]
    %v5292 = vld [vmem:[#allocation13 + $0x290] sm:$0xff]
    %v5293 = vld [vmem:[#allocation13 + $0x298] sm:$0xff]
    %v5294 = vld [vmem:[#allocation13 + $0x2a0] sm:$0xff]
    %v5295 = vld [vmem:[#allocation13 + $0x2a8] sm:$0xff]
    %v5296 = vld [vmem:[#allocation13 + $0x2b0] sm:$0xff]
    %v5297 = vld [vmem:[#allocation13 + $0x2b8] sm:$0xff]
    %v5298 = vld [vmem:[#allocation13 + $0x2c0] sm:$0xff]
    %v5299 = vld [vmem:[#allocation13 + $0x2c8] sm:$0xff]
    %v5300 = vld [vmem:[#allocation13 + $0x2d0] sm:$0xff]
    %v5301 = vld [vmem:[#allocation13 + $0x2d8] sm:$0xff]
    %v5302 = vld [vmem:[#allocation13 + $0x2e0] sm:$0xff]
    %v5303 = vld [vmem:[#allocation13 + $0x2e8] sm:$0xff]
    %v5304 = vld [vmem:[#allocation13 + $0x2f0] sm:$0xff]
    %v5305 = vld [vmem:[#allocation13 + $0x2f8] sm:$0xff]
    %v5306 = vld [vmem:[#allocation13 + $0x300] sm:$0xff]
    %v5307 = vld [vmem:[#allocation13 + $0x308] sm:$0xff]
    %v5308 = vld [vmem:[#allocation13 + $0x310] sm:$0xff]
    %v5309 = vld [vmem:[#allocation13 + $0x318] sm:$0xff]
    %v5310 = vld [vmem:[#allocation13 + $0x320] sm:$0xff]
    %v5311 = vld [vmem:[#allocation13 + $0x328] sm:$0xff]
    %v5312 = vld [vmem:[#allocation13 + $0x330] sm:$0xff]
    %v5313 = vld [vmem:[#allocation13 + $0x338] sm:$0xff]
    %v5314 = vld [vmem:[#allocation13 + $0x340] sm:$0xff]
    %v5315 = vld [vmem:[#allocation13 + $0x348] sm:$0xff]
    %v5316 = vld [vmem:[#allocation13 + $0x350] sm:$0xff]
    %v5317 = vld [vmem:[#allocation13 + $0x358] sm:$0xff]
    %v5318 = vld [vmem:[#allocation13 + $0x360] sm:$0xff]
    %v5319 = vld [vmem:[#allocation13 + $0x368] sm:$0xff]
    %v5320 = vld [vmem:[#allocation13 + $0x370] sm:$0xff]
    %v5321 = vld [vmem:[#allocation13 + $0x378] sm:$0xff]
    %v5322 = vld [vmem:[#allocation13 + $0x380] sm:$0xff]
    %v5323 = vld [vmem:[#allocation13 + $0x388] sm:$0xff]
    %v5324 = vld [vmem:[#allocation13 + $0x390] sm:$0xff]
    %v5325 = vld [vmem:[#allocation13 + $0x398] sm:$0xff]
    %v5326 = vld [vmem:[#allocation13 + $0x3a0] sm:$0xff]
    %v5327 = vld [vmem:[#allocation13 + $0x3a8] sm:$0xff]
    %v5328 = vld [vmem:[#allocation13 + $0x3b0] sm:$0xff]
    %v5329 = vld [vmem:[#allocation13 + $0x3b8] sm:$0xff]
    %v5330 = vld [vmem:[#allocation13 + $0x3c0] sm:$0xff]
    %v5331 = vld [vmem:[#allocation13 + $0x3c8] sm:$0xff]
    %v5332 = vld [vmem:[#allocation13 + $0x3d0] sm:$0xff]
    %v5333 = vld [vmem:[#allocation13 + $0x3d8] sm:$0xff]
    %v5334 = vld [vmem:[#allocation13 + $0x3e0] sm:$0xff]
    %v5335 = vld [vmem:[#allocation13 + $0x3e8] sm:$0xff]
    %v5336 = vld [vmem:[#allocation13 + $0x3f0] sm:$0xff]
    %v5337 = vld [vmem:[#allocation13 + $0x3f8] sm:$0xff]
    %v5338 = vld [vmem:[#allocation13 + $0x400] sm:$0xff]
    %v5339 = vld [vmem:[#allocation13 + $0x408] sm:$0xff]
    %v5340 = vld [vmem:[#allocation13 + $0x410] sm:$0xff]
    %v5341 = vld [vmem:[#allocation13 + $0x418] sm:$0xff]
    %v5342 = vld [vmem:[#allocation13 + $0x420] sm:$0xff]
    %v5343 = vld [vmem:[#allocation13 + $0x428] sm:$0xff]
    %v5344 = vld [vmem:[#allocation13 + $0x430] sm:$0xff]
    %v5345 = vld [vmem:[#allocation13 + $0x438] sm:$0xff]
    %v5346 = vld [vmem:[#allocation13 + $0x440] sm:$0xff]
    %v5347 = vld [vmem:[#allocation13 + $0x448] sm:$0xff]
    %v5348 = vld [vmem:[#allocation13 + $0x450] sm:$0xff]
    %v5349 = vld [vmem:[#allocation13 + $0x458] sm:$0xff]
    %v5350 = vld [vmem:[#allocation13 + $0x460] sm:$0xff]
    %v5351 = vld [vmem:[#allocation13 + $0x468] sm:$0xff]
    %v5352 = vld [vmem:[#allocation13 + $0x470] sm:$0xff]
    %v5353 = vld [vmem:[#allocation13 + $0x478] sm:$0xff]
    %v5354 = vld [vmem:[#allocation13 + $0x480] sm:$0xff]
    %v5355 = vld [vmem:[#allocation13 + $0x488] sm:$0xff]
    %v5356 = vld [vmem:[#allocation13 + $0x490] sm:$0xff]
    %v5357 = vld [vmem:[#allocation13 + $0x498] sm:$0xff]
    %v5358 = vld [vmem:[#allocation13 + $0x4a0] sm:$0xff]
    %v5359 = vld [vmem:[#allocation13 + $0x4a8] sm:$0xff]
    %v5360 = vld [vmem:[#allocation13 + $0x4b0] sm:$0xff]
    %v5361 = vld [vmem:[#allocation13 + $0x4b8] sm:$0xff]
    %v5362 = vld [vmem:[#allocation13 + $0x4c0] sm:$0xff]
    %v5363 = vld [vmem:[#allocation13 + $0x4c8] sm:$0xff]
    %v5364 = vld [vmem:[#allocation13 + $0x4d0] sm:$0xff]
    %v5365 = vld [vmem:[#allocation13 + $0x4d8] sm:$0xff]
    %v5366 = vld [vmem:[#allocation13 + $0x4e0] sm:$0xff]
    %v5367 = vld [vmem:[#allocation13 + $0x4e8] sm:$0xff]
    %v5368 = vld [vmem:[#allocation13 + $0x4f0] sm:$0xff]
    %v5369 = vld [vmem:[#allocation13 + $0x4f8] sm:$0xff]
    %v5370 = vld [vmem:[#allocation13 + $0x500] sm:$0xff]
    %v5371 = vld [vmem:[#allocation13 + $0x508] sm:$0xff]
    %v5372 = vld [vmem:[#allocation13 + $0x510] sm:$0xff]
    %v5373 = vld [vmem:[#allocation13 + $0x518] sm:$0xff]
    %v5374 = vld [vmem:[#allocation13 + $0x520] sm:$0xff]
    %v5375 = vld [vmem:[#allocation13 + $0x528] sm:$0xff]
    %v5376 = vld [vmem:[#allocation13 + $0x530] sm:$0xff]
    %v5377 = vld [vmem:[#allocation13 + $0x538] sm:$0xff]
    %v5378 = vld [vmem:[#allocation13 + $0x540] sm:$0xff]
    %v5379 = vld [vmem:[#allocation13 + $0x548] sm:$0xff]
    %v5380 = vld [vmem:[#allocation13 + $0x550] sm:$0xff]
    %v5381 = vld [vmem:[#allocation13 + $0x558] sm:$0xff]
    %v5382 = vld [vmem:[#allocation13 + $0x560] sm:$0xff]
    %v5383 = vld [vmem:[#allocation13 + $0x568] sm:$0xff]
    %v5384 = vld [vmem:[#allocation13 + $0x570] sm:$0xff]
    %v5385 = vld [vmem:[#allocation13 + $0x578] sm:$0xff]
    %v5386 = vld [vmem:[#allocation13 + $0x580] sm:$0xff]
    %v5387 = vld [vmem:[#allocation13 + $0x588] sm:$0xff]
    %v5388 = vld [vmem:[#allocation13 + $0x590] sm:$0xff]
    %v5389 = vld [vmem:[#allocation13 + $0x598] sm:$0xff]
    %v5390 = vld [vmem:[#allocation13 + $0x5a0] sm:$0xff]
    %v5391 = vld [vmem:[#allocation13 + $0x5a8] sm:$0xff]
    %v5392 = vld [vmem:[#allocation13 + $0x5b0] sm:$0xff]
    %v5393 = vld [vmem:[#allocation13 + $0x5b8] sm:$0xff]
    %v5394 = vld [vmem:[#allocation13 + $0x5c0] sm:$0xff]
    %v5395 = vld [vmem:[#allocation13 + $0x5c8] sm:$0xff]
    %v5396 = vld [vmem:[#allocation13 + $0x5d0] sm:$0xff]
    %v5397 = vld [vmem:[#allocation13 + $0x5d8] sm:$0xff]
    %v5398 = vld [vmem:[#allocation13 + $0x5e0] sm:$0xff]
    %v5399 = vld [vmem:[#allocation13 + $0x5e8] sm:$0xff]
    %v5400 = vld [vmem:[#allocation13 + $0x5f0] sm:$0xff]
    %v5401 = vld [vmem:[#allocation13 + $0x5f8] sm:$0xff]
    %v5402 = vld [vmem:[#allocation13 + $0x600] sm:$0xff]
    %v5403 = vld [vmem:[#allocation13 + $0x608] sm:$0xff]
    %v5404 = vld [vmem:[#allocation13 + $0x610] sm:$0xff]
    %v5405 = vld [vmem:[#allocation13 + $0x618] sm:$0xff]
    %v5406 = vld [vmem:[#allocation13 + $0x620] sm:$0xff]
    %v5407 = vld [vmem:[#allocation13 + $0x628] sm:$0xff]
    %v5408 = vld [vmem:[#allocation13 + $0x630] sm:$0xff]
    %v5409 = vld [vmem:[#allocation13 + $0x638] sm:$0xff]
    %v5410 = vld [vmem:[#allocation13 + $0x640] sm:$0xff]
    %v5411 = vld [vmem:[#allocation13 + $0x648] sm:$0xff]
    %v5412 = vld [vmem:[#allocation13 + $0x650] sm:$0xff]
    %v5413 = vld [vmem:[#allocation13 + $0x658] sm:$0xff]
    %v5414 = vld [vmem:[#allocation13 + $0x660] sm:$0xff]
    %v5415 = vld [vmem:[#allocation13 + $0x668] sm:$0xff]
    %v5416 = vld [vmem:[#allocation13 + $0x670] sm:$0xff]
    %v5417 = vld [vmem:[#allocation13 + $0x678] sm:$0xff]
    %v5418 = vld [vmem:[#allocation13 + $0x680] sm:$0xff]
    %v5419 = vld [vmem:[#allocation13 + $0x688] sm:$0xff]
    %v5420 = vld [vmem:[#allocation13 + $0x690] sm:$0xff]
    %v5421 = vld [vmem:[#allocation13 + $0x698] sm:$0xff]
    %v5422 = vld [vmem:[#allocation13 + $0x6a0] sm:$0xff]
    %v5423 = vld [vmem:[#allocation13 + $0x6a8] sm:$0xff]
    %v5424 = vld [vmem:[#allocation13 + $0x6b0] sm:$0xff]
    %v5425 = vld [vmem:[#allocation13 + $0x6b8] sm:$0xff]
    %v5426 = vld [vmem:[#allocation13 + $0x6c0] sm:$0xff]
    %v5427 = vld [vmem:[#allocation13 + $0x6c8] sm:$0xff]
    %v5428 = vld [vmem:[#allocation13 + $0x6d0] sm:$0xff]
    %v5429 = vld [vmem:[#allocation13 + $0x6d8] sm:$0xff]
    %v5430 = vld [vmem:[#allocation13 + $0x6e0] sm:$0xff]
    %v5431 = vld [vmem:[#allocation13 + $0x6e8] sm:$0xff]
    %v5432 = vld [vmem:[#allocation13 + $0x6f0] sm:$0xff]
    %v5433 = vld [vmem:[#allocation13 + $0x6f8] sm:$0xff]
    %v5434 = vld [vmem:[#allocation13 + $0x700] sm:$0xff]
    %v5435 = vld [vmem:[#allocation13 + $0x708] sm:$0xff]
    %v5436 = vld [vmem:[#allocation13 + $0x710] sm:$0xff]
    %v5437 = vld [vmem:[#allocation13 + $0x718] sm:$0xff]
    %v5438 = vld [vmem:[#allocation13 + $0x720] sm:$0xff]
    %v5439 = vld [vmem:[#allocation13 + $0x728] sm:$0xff]
    %v5440 = vld [vmem:[#allocation13 + $0x730] sm:$0xff]
    %v5441 = vld [vmem:[#allocation13 + $0x738] sm:$0xff]
    %v5442 = vld [vmem:[#allocation13 + $0x740] sm:$0xff]
    %v5443 = vld [vmem:[#allocation13 + $0x748] sm:$0xff]
    %v5444 = vld [vmem:[#allocation13 + $0x750] sm:$0xff]
    %v5445 = vld [vmem:[#allocation13 + $0x758] sm:$0xff]
    %v5446 = vld [vmem:[#allocation13 + $0x760] sm:$0xff]
    %v5447 = vld [vmem:[#allocation13 + $0x768] sm:$0xff]
    %v5448 = vld [vmem:[#allocation13 + $0x770] sm:$0xff]
    %v5449 = vld [vmem:[#allocation13 + $0x778] sm:$0xff]
    %v5450 = vld [vmem:[#allocation13 + $0x780] sm:$0xff]
    %v5451 = vld [vmem:[#allocation13 + $0x788] sm:$0xff]
    %v5452 = vld [vmem:[#allocation13 + $0x790] sm:$0xff]
    %v5453 = vld [vmem:[#allocation13 + $0x798] sm:$0xff]
    %v5454 = vld [vmem:[#allocation13 + $0x7a0] sm:$0xff]
    %v5455 = vld [vmem:[#allocation13 + $0x7a8] sm:$0xff]
    %v5456 = vld [vmem:[#allocation13 + $0x7b0] sm:$0xff]
    %v5457 = vld [vmem:[#allocation13 + $0x7b8] sm:$0xff]
    %v5458 = vld [vmem:[#allocation13 + $0x7c0] sm:$0xff]
    %v5459 = vld [vmem:[#allocation13 + $0x7c8] sm:$0xff]
    %v5460 = vld [vmem:[#allocation13 + $0x7d0] sm:$0xff]
    %v5461 = vld [vmem:[#allocation13 + $0x7d8] sm:$0xff]
    %v5462 = vld [vmem:[#allocation13 + $0x7e0] sm:$0xff]
    %v5463 = vld [vmem:[#allocation13 + $0x7e8] sm:$0xff]
    %v5464 = vld [vmem:[#allocation13 + $0x7f0] sm:$0xff]
    %v5465 = vld [vmem:[#allocation13 + $0x7f8] sm:$0xff]
    %v5466 = vld [vmem:[#allocation13 + $0x800] sm:$0xff]
    %v5467 = vld [vmem:[#allocation13 + $0x808] sm:$0xff]
    %v5468 = vld [vmem:[#allocation13 + $0x810] sm:$0xff]
    %v5469 = vld [vmem:[#allocation13 + $0x818] sm:$0xff]
    %v5470 = vld [vmem:[#allocation13 + $0x820] sm:$0xff]
    %v5471 = vld [vmem:[#allocation13 + $0x828] sm:$0xff]
    %v5472 = vld [vmem:[#allocation13 + $0x830] sm:$0xff]
    %v5473 = vld [vmem:[#allocation13 + $0x838] sm:$0xff]
    %v5474 = vld [vmem:[#allocation13 + $0x840] sm:$0xff]
    %v5475 = vld [vmem:[#allocation13 + $0x848] sm:$0xff]
    %v5476 = vld [vmem:[#allocation13 + $0x850] sm:$0xff]
    %v5477 = vld [vmem:[#allocation13 + $0x858] sm:$0xff]
    %v5478 = vld [vmem:[#allocation13 + $0x860] sm:$0xff]
    %v5479 = vld [vmem:[#allocation13 + $0x868] sm:$0xff]
    %v5480 = vld [vmem:[#allocation13 + $0x870] sm:$0xff]
    %v5481 = vld [vmem:[#allocation13 + $0x878] sm:$0xff]
    %v5482 = vld [vmem:[#allocation13 + $0x880] sm:$0xff]
    %v5483 = vld [vmem:[#allocation13 + $0x888] sm:$0xff]
    %v5484 = vld [vmem:[#allocation13 + $0x890] sm:$0xff]
    %v5485 = vld [vmem:[#allocation13 + $0x898] sm:$0xff]
    %v5486 = vld [vmem:[#allocation13 + $0x8a0] sm:$0xff]
    %v5487 = vld [vmem:[#allocation13 + $0x8a8] sm:$0xff]
    %v5488 = vld [vmem:[#allocation13 + $0x8b0] sm:$0xff]
    %v5489 = vld [vmem:[#allocation13 + $0x8b8] sm:$0xff]
    %v5490 = vld [vmem:[#allocation13 + $0x8c0] sm:$0xff]
    %v5491 = vld [vmem:[#allocation13 + $0x8c8] sm:$0xff]
    %v5492 = vld [vmem:[#allocation13 + $0x8d0] sm:$0xff]
    %v5493 = vld [vmem:[#allocation13 + $0x8d8] sm:$0xff]
    %v5494 = vld [vmem:[#allocation13 + $0x8e0] sm:$0xff]
    %v5495 = vld [vmem:[#allocation13 + $0x8e8] sm:$0xff]
    %v5496 = vld [vmem:[#allocation13 + $0x8f0] sm:$0xff]
    %v5497 = vld [vmem:[#allocation13 + $0x8f8] sm:$0xff]
    %v5498 = vld [vmem:[#allocation13 + $0x900] sm:$0xff]
    %v5499 = vld [vmem:[#allocation13 + $0x908] sm:$0xff]
    %v5500 = vld [vmem:[#allocation13 + $0x910] sm:$0xff]
    %v5501 = vld [vmem:[#allocation13 + $0x918] sm:$0xff]
    %v5502 = vld [vmem:[#allocation13 + $0x920] sm:$0xff]
    %v5503 = vld [vmem:[#allocation13 + $0x928] sm:$0xff]
    %v5504 = vld [vmem:[#allocation13 + $0x930] sm:$0xff]
    %v5505 = vld [vmem:[#allocation13 + $0x938] sm:$0xff]
    %v5506 = vld [vmem:[#allocation13 + $0x940] sm:$0xff]
    %v5507 = vld [vmem:[#allocation13 + $0x948] sm:$0xff]
    %v5508 = vld [vmem:[#allocation13 + $0x950] sm:$0xff]
    %v5509 = vld [vmem:[#allocation13 + $0x958] sm:$0xff]
    %v5510 = vld [vmem:[#allocation13 + $0x960] sm:$0xff]
    %v5511 = vld [vmem:[#allocation13 + $0x968] sm:$0xff]
    %v5512 = vld [vmem:[#allocation13 + $0x970] sm:$0xff]
    %v5513 = vld [vmem:[#allocation13 + $0x978] sm:$0xff]
    %v5514 = vld [vmem:[#allocation13 + $0x980] sm:$0xff]
    %v5515 = vld [vmem:[#allocation13 + $0x988] sm:$0xff]
    %v5516 = vld [vmem:[#allocation13 + $0x990] sm:$0xff]
    %v5517 = vld [vmem:[#allocation13 + $0x998] sm:$0xff]
    %v5518 = vld [vmem:[#allocation13 + $0x9a0] sm:$0xff]
    %v5519 = vld [vmem:[#allocation13 + $0x9a8] sm:$0xff]
    %v5520 = vld [vmem:[#allocation13 + $0x9b0] sm:$0xff]
    %v5521 = vld [vmem:[#allocation13 + $0x9b8] sm:$0xff]
    %v5522 = vld [vmem:[#allocation13 + $0x9c0] sm:$0xff]
    %v5523 = vld [vmem:[#allocation13 + $0x9c8] sm:$0xff]
    %v5524 = vld [vmem:[#allocation13 + $0x9d0] sm:$0xff]
    %v5525 = vld [vmem:[#allocation13 + $0x9d8] sm:$0xff]
    %v5526 = vld [vmem:[#allocation13 + $0x9e0] sm:$0xff]
    %v5527 = vld [vmem:[#allocation13 + $0x9e8] sm:$0xff]
    %v5528 = vld [vmem:[#allocation13 + $0x9f0] sm:$0xff]
    %v5529 = vld [vmem:[#allocation13 + $0x9f8] sm:$0xff]
    %v5530 = vld [vmem:[#allocation13 + $0xa00] sm:$0xff]
    %v5531 = vld [vmem:[#allocation13 + $0xa08] sm:$0xff]
    %v5532 = vld [vmem:[#allocation13 + $0xa10] sm:$0xff]
    %v5533 = vld [vmem:[#allocation13 + $0xa18] sm:$0xff]
    %v5534 = vld [vmem:[#allocation13 + $0xa20] sm:$0xff]
    %v5535 = vld [vmem:[#allocation13 + $0xa28] sm:$0xff]
    %v5536 = vld [vmem:[#allocation13 + $0xa30] sm:$0xff]
    %v5537 = vld [vmem:[#allocation13 + $0xa38] sm:$0xff]
    %v5538 = vld [vmem:[#allocation13 + $0xa40] sm:$0xff]
    %v5539 = vld [vmem:[#allocation13 + $0xa48] sm:$0xff]
    %v5540 = vld [vmem:[#allocation13 + $0xa50] sm:$0xff]
    %v5541 = vld [vmem:[#allocation13 + $0xa58] sm:$0xff]
    %v5542 = vld [vmem:[#allocation13 + $0xa60] sm:$0xff]
    %v5543 = vld [vmem:[#allocation13 + $0xa68] sm:$0xff]
    %v5544 = vld [vmem:[#allocation13 + $0xa70] sm:$0xff]
    %v5545 = vld [vmem:[#allocation13 + $0xa78] sm:$0xff]
    %v5546 = vld [vmem:[#allocation13 + $0xa80] sm:$0xff]
    %v5547 = vld [vmem:[#allocation13 + $0xa88] sm:$0xff]
    %v5548 = vld [vmem:[#allocation13 + $0xa90] sm:$0xff]
    %v5549 = vld [vmem:[#allocation13 + $0xa98] sm:$0xff]
    %v5550 = vld [vmem:[#allocation13 + $0xaa0] sm:$0xff]
    %v5551 = vld [vmem:[#allocation13 + $0xaa8] sm:$0xff]
    %v5552 = vld [vmem:[#allocation13 + $0xab0] sm:$0xff]
    %v5553 = vld [vmem:[#allocation13 + $0xab8] sm:$0xff]
    %v5554 = vld [vmem:[#allocation13 + $0xac0] sm:$0xff]
    %v5555 = vld [vmem:[#allocation13 + $0xac8] sm:$0xff]
    %v5556 = vld [vmem:[#allocation13 + $0xad0] sm:$0xff]
    %v5557 = vld [vmem:[#allocation13 + $0xad8] sm:$0xff]
    %v5558 = vld [vmem:[#allocation13 + $0xae0] sm:$0xff]
    %v5559 = vld [vmem:[#allocation13 + $0xae8] sm:$0xff]
    %v5560 = vld [vmem:[#allocation13 + $0xaf0] sm:$0xff]
    %v5561 = vld [vmem:[#allocation13 + $0xaf8] sm:$0xff]
    %v5562 = vld [vmem:[#allocation13 + $0xb00] sm:$0xff]
    %v5563 = vld [vmem:[#allocation13 + $0xb08] sm:$0xff]
    %v5564 = vld [vmem:[#allocation13 + $0xb10] sm:$0xff]
    %v5565 = vld [vmem:[#allocation13 + $0xb18] sm:$0xff]
    %v5566 = vld [vmem:[#allocation13 + $0xb20] sm:$0xff]
    %v5567 = vld [vmem:[#allocation13 + $0xb28] sm:$0xff]
    %v5568 = vld [vmem:[#allocation13 + $0xb30] sm:$0xff]
    %v5569 = vld [vmem:[#allocation13 + $0xb38] sm:$0xff]
    %v5570 = vld [vmem:[#allocation13 + $0xb40] sm:$0xff]
    %v5571 = vld [vmem:[#allocation13 + $0xb48] sm:$0xff]
    %v5572 = vld [vmem:[#allocation13 + $0xb50] sm:$0xff]
    %v5573 = vld [vmem:[#allocation13 + $0xb58] sm:$0xff]
    %v5574 = vld [vmem:[#allocation13 + $0xb60] sm:$0xff]
    %v5575 = vld [vmem:[#allocation13 + $0xb68] sm:$0xff]
    %v5576 = vld [vmem:[#allocation13 + $0xb70] sm:$0xff]
    %v5577 = vld [vmem:[#allocation13 + $0xb78] sm:$0xff]
    %v5578 = vld [vmem:[#allocation13 + $0xb80] sm:$0xff]
    %v5579 = vld [vmem:[#allocation13 + $0xb88] sm:$0xff]
    %v5580 = vld [vmem:[#allocation13 + $0xb90] sm:$0xff]
    %v5581 = vld [vmem:[#allocation13 + $0xb98] sm:$0xff]
    %v5582 = vld [vmem:[#allocation13 + $0xba0] sm:$0xff]
    %v5583 = vld [vmem:[#allocation13 + $0xba8] sm:$0xff]
    %v5584 = vld [vmem:[#allocation13 + $0xbb0] sm:$0xff]
    %v5585 = vld [vmem:[#allocation13 + $0xbb8] sm:$0xff]
    %v5586 = vld [vmem:[#allocation13 + $0xbc0] sm:$0xff]
    %v5587 = vld [vmem:[#allocation13 + $0xbc8] sm:$0xff]
    %v5588 = vld [vmem:[#allocation13 + $0xbd0] sm:$0xff]
    %v5589 = vld [vmem:[#allocation13 + $0xbd8] sm:$0xff]
    %v5590 = vld [vmem:[#allocation13 + $0xbe0] sm:$0xff]
    %v5591 = vld [vmem:[#allocation13 + $0xbe8] sm:$0xff]
    %v5592 = vld [vmem:[#allocation13 + $0xbf0] sm:$0xff]
    %v5593 = vld [vmem:[#allocation13 + $0xbf8] sm:$0xff]
    %v5594 = vld [vmem:[#allocation13 + $0xc00] sm:$0xff]
    %v5595 = vld [vmem:[#allocation13 + $0xc08] sm:$0xff]
    %v5596 = vld [vmem:[#allocation13 + $0xc10] sm:$0xff]
    %v5597 = vld [vmem:[#allocation13 + $0xc18] sm:$0xff]
    %v5598 = vld [vmem:[#allocation13 + $0xc20] sm:$0xff]
    %v5599 = vld [vmem:[#allocation13 + $0xc28] sm:$0xff]
    %v5600 = vld [vmem:[#allocation13 + $0xc30] sm:$0xff]
    %v5601 = vld [vmem:[#allocation13 + $0xc38] sm:$0xff]
    %v5602 = vld [vmem:[#allocation13 + $0xc40] sm:$0xff]
    %v5603 = vld [vmem:[#allocation13 + $0xc48] sm:$0xff]
    %v5604 = vld [vmem:[#allocation13 + $0xc50] sm:$0xff]
    %v5605 = vld [vmem:[#allocation13 + $0xc58] sm:$0xff]
    %v5606 = vld [vmem:[#allocation13 + $0xc60] sm:$0xff]
    %v5607 = vld [vmem:[#allocation13 + $0xc68] sm:$0xff]
    %v5608 = vld [vmem:[#allocation13 + $0xc70] sm:$0xff]
    %v5609 = vld [vmem:[#allocation13 + $0xc78] sm:$0xff]
    %v5610 = vld [vmem:[#allocation13 + $0xc80] sm:$0xff]
    %v5611 = vld [vmem:[#allocation13 + $0xc88] sm:$0xff]
    %v5612 = vld [vmem:[#allocation13 + $0xc90] sm:$0xff]
    %v5613 = vld [vmem:[#allocation13 + $0xc98] sm:$0xff]
    %v5614 = vld [vmem:[#allocation13 + $0xca0] sm:$0xff]
    %v5615 = vld [vmem:[#allocation13 + $0xca8] sm:$0xff]
    %v5616 = vld [vmem:[#allocation13 + $0xcb0] sm:$0xff]
    %v5617 = vld [vmem:[#allocation13 + $0xcb8] sm:$0xff]
    %v5618 = vld [vmem:[#allocation13 + $0xcc0] sm:$0xff]
    %v5619 = vld [vmem:[#allocation13 + $0xcc8] sm:$0xff]
    %v5620 = vld [vmem:[#allocation13 + $0xcd0] sm:$0xff]
    %v5621 = vld [vmem:[#allocation13 + $0xcd8] sm:$0xff]
    %v5622 = vld [vmem:[#allocation13 + $0xce0] sm:$0xff]
    %v5623 = vld [vmem:[#allocation13 + $0xce8] sm:$0xff]
    %v5624 = vld [vmem:[#allocation13 + $0xcf0] sm:$0xff]
    %v5625 = vld [vmem:[#allocation13 + $0xcf8] sm:$0xff]
    %v5626 = vld [vmem:[#allocation13 + $0xd00] sm:$0xff]
    %v5627 = vld [vmem:[#allocation13 + $0xd08] sm:$0xff]
    %v5628 = vld [vmem:[#allocation13 + $0xd10] sm:$0xff]
    %v5629 = vld [vmem:[#allocation13 + $0xd18] sm:$0xff]
    %v5630 = vld [vmem:[#allocation13 + $0xd20] sm:$0xff]
    %v5631 = vld [vmem:[#allocation13 + $0xd28] sm:$0xff]
    %v5632 = vld [vmem:[#allocation13 + $0xd30] sm:$0xff]
    %v5633 = vld [vmem:[#allocation13 + $0xd38] sm:$0xff]
    %v5634 = vld [vmem:[#allocation13 + $0xd40] sm:$0xff]
    %v5635 = vld [vmem:[#allocation13 + $0xd48] sm:$0xff]
    %v5636 = vld [vmem:[#allocation13 + $0xd50] sm:$0xff]
    %v5637 = vld [vmem:[#allocation13 + $0xd58] sm:$0xff]
    %v5638 = vld [vmem:[#allocation13 + $0xd60] sm:$0xff]
    %v5639 = vld [vmem:[#allocation13 + $0xd68] sm:$0xff]
    %v5640 = vld [vmem:[#allocation13 + $0xd70] sm:$0xff]
    %v5641 = vld [vmem:[#allocation13 + $0xd78] sm:$0xff]
    %v5642 = vld [vmem:[#allocation13 + $0xd80] sm:$0xff]
    %v5643 = vld [vmem:[#allocation13 + $0xd88] sm:$0xff]
    %v5644 = vld [vmem:[#allocation13 + $0xd90] sm:$0xff]
    %v5645 = vld [vmem:[#allocation13 + $0xd98] sm:$0xff]
    %v5646 = vld [vmem:[#allocation13 + $0xda0] sm:$0xff]
    %v5647 = vld [vmem:[#allocation13 + $0xda8] sm:$0xff]
    %v5648 = vld [vmem:[#allocation13 + $0xdb0] sm:$0xff]
    %v5649 = vld [vmem:[#allocation13 + $0xdb8] sm:$0xff]
    %v5650 = vld [vmem:[#allocation13 + $0xdc0] sm:$0xff]
    %v5651 = vld [vmem:[#allocation13 + $0xdc8] sm:$0xff]
    %v5652 = vld [vmem:[#allocation13 + $0xdd0] sm:$0xff]
    %v5653 = vld [vmem:[#allocation13 + $0xdd8] sm:$0xff]
    %v5654 = vld [vmem:[#allocation13 + $0xde0] sm:$0xff]
    %v5655 = vld [vmem:[#allocation13 + $0xde8] sm:$0xff]
    %v5656 = vld [vmem:[#allocation13 + $0xdf0] sm:$0xff]
    %v5657 = vld [vmem:[#allocation13 + $0xdf8] sm:$0xff]
    %v5658 = vld [vmem:[#allocation13 + $0xe00] sm:$0xff]
    %v5659 = vld [vmem:[#allocation13 + $0xe08] sm:$0xff]
    %v5660 = vld [vmem:[#allocation13 + $0xe10] sm:$0xff]
    %v5661 = vld [vmem:[#allocation13 + $0xe18] sm:$0xff]
    %v5662 = vld [vmem:[#allocation13 + $0xe20] sm:$0xff]
    %v5663 = vld [vmem:[#allocation13 + $0xe28] sm:$0xff]
    %v5664 = vld [vmem:[#allocation13 + $0xe30] sm:$0xff]
    %v5665 = vld [vmem:[#allocation13 + $0xe38] sm:$0xff]
    %v5666 = vld [vmem:[#allocation13 + $0xe40] sm:$0xff]
    %v5667 = vld [vmem:[#allocation13 + $0xe48] sm:$0xff]
    %v5668 = vld [vmem:[#allocation13 + $0xe50] sm:$0xff]
    %v5669 = vld [vmem:[#allocation13 + $0xe58] sm:$0xff]
    %v5670 = vld [vmem:[#allocation13 + $0xe60] sm:$0xff]
    %v5671 = vld [vmem:[#allocation13 + $0xe68] sm:$0xff]
    %v5672 = vld [vmem:[#allocation13 + $0xe70] sm:$0xff]
    %v5673 = vld [vmem:[#allocation13 + $0xe78] sm:$0xff]
    %v5674 = vld [vmem:[#allocation13 + $0xe80] sm:$0xff]
    %v5675 = vld [vmem:[#allocation13 + $0xe88] sm:$0xff]
    %v5676 = vld [vmem:[#allocation13 + $0xe90] sm:$0xff]
    %v5677 = vld [vmem:[#allocation13 + $0xe98] sm:$0xff]
    %v5678 = vld [vmem:[#allocation13 + $0xea0] sm:$0xff]
    %v5679 = vld [vmem:[#allocation13 + $0xea8] sm:$0xff]
    %v5680 = vld [vmem:[#allocation13 + $0xeb0] sm:$0xff]
    %v5681 = vld [vmem:[#allocation13 + $0xeb8] sm:$0xff]
    %v5682 = vld [vmem:[#allocation13 + $0xec0] sm:$0xff]
    %v5683 = vld [vmem:[#allocation13 + $0xec8] sm:$0xff]
    %v5684 = vld [vmem:[#allocation13 + $0xed0] sm:$0xff]
    %v5685 = vld [vmem:[#allocation13 + $0xed8] sm:$0xff]
    %v5686 = vld [vmem:[#allocation13 + $0xee0] sm:$0xff]
    %v5687 = vld [vmem:[#allocation13 + $0xee8] sm:$0xff]
    %v5688 = vld [vmem:[#allocation13 + $0xef0] sm:$0xff]
    %v5689 = vld [vmem:[#allocation13 + $0xef8] sm:$0xff]
    %v5690 = vld [vmem:[#allocation13 + $0xf00] sm:$0xff]
    %v5691 = vld [vmem:[#allocation13 + $0xf08] sm:$0xff]
    %v5692 = vld [vmem:[#allocation13 + $0xf10] sm:$0xff]
    %v5693 = vld [vmem:[#allocation13 + $0xf18] sm:$0xff]
    %v5694 = vld [vmem:[#allocation13 + $0xf20] sm:$0xff]
    %v5695 = vld [vmem:[#allocation13 + $0xf28] sm:$0xff]
    %v5696 = vld [vmem:[#allocation13 + $0xf30] sm:$0xff]
    %v5697 = vld [vmem:[#allocation13 + $0xf38] sm:$0xff]
    %v5698 = vld [vmem:[#allocation13 + $0xf40] sm:$0xff]
    %v5699 = vld [vmem:[#allocation13 + $0xf48] sm:$0xff]
    %v5700 = vld [vmem:[#allocation13 + $0xf50] sm:$0xff]
    %v5701 = vld [vmem:[#allocation13 + $0xf58] sm:$0xff]
    %v5702 = vld [vmem:[#allocation13 + $0xf60] sm:$0xff]
    %v5703 = vld [vmem:[#allocation13 + $0xf68] sm:$0xff]
    %v5704 = vld [vmem:[#allocation13 + $0xf70] sm:$0xff]
    %v5705 = vld [vmem:[#allocation13 + $0xf78] sm:$0xff]
    %v5706 = vld [vmem:[#allocation13 + $0xf80] sm:$0xff]
    %v5707 = vld [vmem:[#allocation13 + $0xf88] sm:$0xff]
    %v5708 = vld [vmem:[#allocation13 + $0xf90] sm:$0xff]
    %v5709 = vld [vmem:[#allocation13 + $0xf98] sm:$0xff]
    %v5710 = vld [vmem:[#allocation13 + $0xfa0] sm:$0xff]
    %v5711 = vld [vmem:[#allocation13 + $0xfa8] sm:$0xff]
    %v5712 = vld [vmem:[#allocation13 + $0xfb0] sm:$0xff]
    %v5713 = vld [vmem:[#allocation13 + $0xfb8] sm:$0xff]
    %v5714 = vld [vmem:[#allocation13 + $0xfc0] sm:$0xff]
    %v5715 = vld [vmem:[#allocation13 + $0xfc8] sm:$0xff]
    %v5716 = vld [vmem:[#allocation13 + $0xfd0] sm:$0xff]
    %v5717 = vld [vmem:[#allocation13 + $0xfd8] sm:$0xff]
    %v5718 = vld [vmem:[#allocation13 + $0xfe0] sm:$0xff]
    %v5719 = vld [vmem:[#allocation13 + $0xfe8] sm:$0xff]
    %v5720 = vld [vmem:[#allocation13 + $0xff0] sm:$0xff]
    %v5721 = vld [vmem:[#allocation13 + $0xff8] sm:$0xff]
    %v5722 = vld [vmem:[#allocation13 + $0x1000] sm:$0xff]
    %v5723 = vld [vmem:[#allocation13 + $0x1008] sm:$0xff]
    %v5724 = vld [vmem:[#allocation13 + $0x1010] sm:$0xff]
    %v5725 = vld [vmem:[#allocation13 + $0x1018] sm:$0xff]
    %v5726 = vld [vmem:[#allocation13 + $0x1020] sm:$0xff]
    %v5727 = vld [vmem:[#allocation13 + $0x1028] sm:$0xff]
    %v5728 = vld [vmem:[#allocation13 + $0x1030] sm:$0xff]
    %v5729 = vld [vmem:[#allocation13 + $0x1038] sm:$0xff]
    %v5730 = vld [vmem:[#allocation13 + $0x1040] sm:$0xff]
    %v5731 = vld [vmem:[#allocation13 + $0x1048] sm:$0xff]
    %v5732 = vld [vmem:[#allocation13 + $0x1050] sm:$0xff]
    %v5733 = vld [vmem:[#allocation13 + $0x1058] sm:$0xff]
    %v5734 = vld [vmem:[#allocation13 + $0x1060] sm:$0xff]
    %v5735 = vld [vmem:[#allocation13 + $0x1068] sm:$0xff]
    %v5736 = vld [vmem:[#allocation13 + $0x1070] sm:$0xff]
    %v5737 = vld [vmem:[#allocation13 + $0x1078] sm:$0xff]
    %v5738 = vld [vmem:[#allocation13 + $0x1080] sm:$0xff]
    %v5739 = vld [vmem:[#allocation13 + $0x1088] sm:$0xff]
    %v5740 = vld [vmem:[#allocation13 + $0x1090] sm:$0xff]
    %v5741 = vld [vmem:[#allocation13 + $0x1098] sm:$0xff]
    %v5742 = vld [vmem:[#allocation13 + $0x10a0] sm:$0xff]
    %v5743 = vld [vmem:[#allocation13 + $0x10a8] sm:$0xff]
    %v5744 = vld [vmem:[#allocation13 + $0x10b0] sm:$0xff]
    %v5745 = vld [vmem:[#allocation13 + $0x10b8] sm:$0xff]
    %v5746 = vld [vmem:[#allocation13 + $0x10c0] sm:$0xff]
    %v5747 = vld [vmem:[#allocation13 + $0x10c8] sm:$0xff]
    %v5748 = vld [vmem:[#allocation13 + $0x10d0] sm:$0xff]
    %v5749 = vld [vmem:[#allocation13 + $0x10d8] sm:$0xff]
    %v5750 = vld [vmem:[#allocation13 + $0x10e0] sm:$0xff]
    %v5751 = vld [vmem:[#allocation13 + $0x10e8] sm:$0xff]
    %v5752 = vld [vmem:[#allocation13 + $0x10f0] sm:$0xff]
    %v5753 = vld [vmem:[#allocation13 + $0x10f8] sm:$0xff]
    %v5754 = vld [vmem:[#allocation13 + $0x1100] sm:$0xff]
    %v5755 = vld [vmem:[#allocation13 + $0x1108] sm:$0xff]
    %v5756 = vld [vmem:[#allocation13 + $0x1110] sm:$0xff]
    %v5757 = vld [vmem:[#allocation13 + $0x1118] sm:$0xff]
    %v5758 = vld [vmem:[#allocation13 + $0x1120] sm:$0xff]
    %v5759 = vld [vmem:[#allocation13 + $0x1128] sm:$0xff]
    %v5760 = vld [vmem:[#allocation13 + $0x1130] sm:$0xff]
    %v5761 = vld [vmem:[#allocation13 + $0x1138] sm:$0xff]
    %v5762 = vld [vmem:[#allocation13 + $0x1140] sm:$0xff]
    %v5763 = vld [vmem:[#allocation13 + $0x1148] sm:$0xff]
    %v5764 = vld [vmem:[#allocation13 + $0x1150] sm:$0xff]
    %v5765 = vld [vmem:[#allocation13 + $0x1158] sm:$0xff]
    %v5766 = vld [vmem:[#allocation13 + $0x1160] sm:$0xff]
    %v5767 = vld [vmem:[#allocation13 + $0x1168] sm:$0xff]
    %v5768 = vld [vmem:[#allocation13 + $0x1170] sm:$0xff]
    %v5769 = vld [vmem:[#allocation13 + $0x1178] sm:$0xff]
    %v5770 = vld [vmem:[#allocation13 + $0x1180] sm:$0xff]
    %v5771 = vld [vmem:[#allocation13 + $0x1188] sm:$0xff]
    %v5772 = vld [vmem:[#allocation13 + $0x1190] sm:$0xff]
    %v5773 = vld [vmem:[#allocation13 + $0x1198] sm:$0xff]
    %v5774 = vld [vmem:[#allocation13 + $0x11a0] sm:$0xff]
    %v5775 = vld [vmem:[#allocation13 + $0x11a8] sm:$0xff]
    %v5776 = vld [vmem:[#allocation13 + $0x11b0] sm:$0xff]
    %v5777 = vld [vmem:[#allocation13 + $0x11b8] sm:$0xff]
    %v5778 = vld [vmem:[#allocation13 + $0x11c0] sm:$0xff]
    %v5779 = vld [vmem:[#allocation13 + $0x11c8] sm:$0xff]
    %v5780 = vld [vmem:[#allocation13 + $0x11d0] sm:$0xff]
    %v5781 = vld [vmem:[#allocation13 + $0x11d8] sm:$0xff]
    %v5782 = vld [vmem:[#allocation13 + $0x11e0] sm:$0xff]
    %v5783 = vld [vmem:[#allocation13 + $0x11e8] sm:$0xff]
    %v5784 = vld [vmem:[#allocation13 + $0x11f0] sm:$0xff]
    %v5785 = vld [vmem:[#allocation13 + $0x11f8] sm:$0xff]
    %v5786 = vld [vmem:[#allocation14] sm:$0x3f]
    %v5788 = vperm.slane %v5786, 0
    %v5789 = vperm.slane %v5786, 1
    %v5790 = vperm.slane %v5786, 2
    %v5791 = vperm.slane %v5786, 3
    %v5792 = vperm.slane %v5786, 4
    %v5793 = vperm.slane %v5786, 5
    %5800 = vmatpush.msra.mxu0 %v5300
    %5801 = vmatpush.msra.mxu0 %v5294
    %5802 = vmatpush.msra.mxu0 %v5288
    %5803 = vmatpush.msra.mxu0 %v5282
    %5804 = vmatpush.msra.mxu0 %v5276
    %5805 = vmatpush.msra.mxu0 %v5270
    %5806 = vmatpush.msra.mxu0 %v5264
    %5807 = vmatpush.msra.mxu0 %v5258
    %5808 = vmatpush.msra.mxu0 %v5252
    %5809 = vmatpush.msra.mxu0 %v5246
    %5810 = vmatpush.msra.mxu0 %v5240
    %5811 = vmatpush.msra.mxu0 %v5234
    %5812 = vmatpush.msra.mxu0 %v5228
    %5813 = vmatpush.msra.mxu0 %v5222
    %5814 = vmatpush.msra.mxu0 %v5216
    %5815 = vmatpush.msra.mxu0 %v5210
    %5816 = vmatmul.f32.gmra.mxu0 %v4985
    %v5817 = vpop.f32.mrf.mxu0
    %v5818 = vadd.f32 %v5788, %v5817
    %5819 = vmatmul.f32.gmra.mxu0 %v5108
    %v5820 = vpop.f32.mrf.mxu0
    %v5821 = vadd.f32 %v5788, %v5820
    %5822 = vdwg.mxu0
    %5823 = vmatpush.msra.mxu0 %v5396
    %5824 = vmatpush.msra.mxu0 %v5390
    %5825 = vmatpush.msra.mxu0 %v5384
    %5826 = vmatpush.msra.mxu0 %v5378
    %5827 = vmatpush.msra.mxu0 %v5372
    %5828 = vmatpush.msra.mxu0 %v5366
    %5829 = vmatpush.msra.mxu0 %v5360
    %5830 = vmatpush.msra.mxu0 %v5354
    %5831 = vmatpush.msra.mxu0 %v5348
    %5832 = vmatpush.msra.mxu0 %v5342
    %5833 = vmatpush.msra.mxu0 %v5336
    %5834 = vmatpush.msra.mxu0 %v5330
    %5835 = vmatpush.msra.mxu0 %v5324
    %5836 = vmatpush.msra.mxu0 %v5318
    %5837 = vmatpush.msra.mxu0 %v5312
    %5838 = vmatpush.msra.mxu0 %v5306
    %5839 = vmatmul.f32.gmra.mxu0 %v5005
    %v5840 = vpop.f32.mrf.mxu0
    %v5841 = vadd.f32 %v5818, %v5840
    %5842 = vmatmul.f32.gmra.mxu0 %v5128
    %v5843 = vpop.f32.mrf.mxu0
    %v5844 = vadd.f32 %v5821, %v5843
    %5845 = vdwg.mxu0
    %5846 = vmatpush.msra.mxu0 %v5492
    %5847 = vmatpush.msra.mxu0 %v5486
    %5848 = vmatpush.msra.mxu0 %v5480
    %5849 = vmatpush.msra.mxu0 %v5474
    %5850 = vmatpush.msra.mxu0 %v5468
    %5851 = vmatpush.msra.mxu0 %v5462
    %5852 = vmatpush.msra.mxu0 %v5456
    %5853 = vmatpush.msra.mxu0 %v5450
    %5854 = vmatpush.msra.mxu0 %v5444
    %5855 = vmatpush.msra.mxu0 %v5438
    %5856 = vmatpush.msra.mxu0 %v5432
    %5857 = vmatpush.msra.mxu0 %v5426
    %5858 = vmatpush.msra.mxu0 %v5420
    %5859 = vmatpush.msra.mxu0 %v5414
    %5860 = vmatpush.msra.mxu0 %v5408
    %5861 = vmatpush.msra.mxu0 %v5402
    %5862 = vmatmul.f32.gmra.mxu0 %v5025
    %v5863 = vpop.f32.mrf.mxu0
    %v5864 = vadd.f32 %v5841, %v5863
    %5865 = vmatmul.f32.gmra.mxu0 %v5148
    %v5866 = vpop.f32.mrf.mxu0
    %v5867 = vadd.f32 %v5844, %v5866
    %5868 = vdwg.mxu0
    %5869 = vmatpush.msra.mxu0 %v5588
    %5870 = vmatpush.msra.mxu0 %v5582
    %5871 = vmatpush.msra.mxu0 %v5576
    %5872 = vmatpush.msra.mxu0 %v5570
    %5873 = vmatpush.msra.mxu0 %v5564
    %5874 = vmatpush.msra.mxu0 %v5558
    %5875 = vmatpush.msra.mxu0 %v5552
    %5876 = vmatpush.msra.mxu0 %v5546
    %5877 = vmatpush.msra.mxu0 %v5540
    %5878 = vmatpush.msra.mxu0 %v5534
    %5879 = vmatpush.msra.mxu0 %v5528
    %5880 = vmatpush.msra.mxu0 %v5522
    %5881 = vmatpush.msra.mxu0 %v5516
    %5882 = vmatpush.msra.mxu0 %v5510
    %5883 = vmatpush.msra.mxu0 %v5504
    %5884 = vmatpush.msra.mxu0 %v5498
    %5885 = vmatmul.f32.gmra.mxu0 %v5045
    %v5886 = vpop.f32.mrf.mxu0
    %v5887 = vadd.f32 %v5864, %v5886
    %5888 = vmatmul.f32.gmra.mxu0 %v5168
    %v5889 = vpop.f32.mrf.mxu0
    %v5890 = vadd.f32 %v5867, %v5889
    %5891 = vdwg.mxu0
    %5892 = vmatpush.msra.mxu0 %v5684
    %5893 = vmatpush.msra.mxu0 %v5678
    %5894 = vmatpush.msra.mxu0 %v5672
    %5895 = vmatpush.msra.mxu0 %v5666
    %5896 = vmatpush.msra.mxu0 %v5660
    %5897 = vmatpush.msra.mxu0 %v5654
    %5898 = vmatpush.msra.mxu0 %v5648
    %5899 = vmatpush.msra.mxu0 %v5642
    %5900 = vmatpush.msra.mxu0 %v5636
    %5901 = vmatpush.msra.mxu0 %v5630
    %5902 = vmatpush.msra.mxu0 %v5624
    %5903 = vmatpush.msra.mxu0 %v5618
    %5904 = vmatpush.msra.mxu0 %v5612
    %5905 = vmatpush.msra.mxu0 %v5606
    %5906 = vmatpush.msra.mxu0 %v5600
    %5907 = vmatpush.msra.mxu0 %v5594
    %5908 = vmatmul.f32.gmra.mxu0 %v5065
    %v5909 = vpop.f32.mrf.mxu0
    %v5910 = vadd.f32 %v5887, %v5909
    %5911 = vmatmul.f32.gmra.mxu0 %v5188
    %v5912 = vpop.f32.mrf.mxu0
    %v5913 = vadd.f32 %v5890, %v5912
    %5914 = vdwg.mxu0
    %5915 = vmatpush.msra.mxu0 %v5780
    %5916 = vmatpush.msra.mxu0 %v5774
    %5917 = vmatpush.msra.mxu0 %v5768
    %5918 = vmatpush.msra.mxu0 %v5762
    %5919 = vmatpush.msra.mxu0 %v5756
    %5920 = vmatpush.msra.mxu0 %v5750
    %5921 = vmatpush.msra.mxu0 %v5744
    %5922 = vmatpush.msra.mxu0 %v5738
    %5923 = vmatpush.msra.mxu0 %v5732
    %5924 = vmatpush.msra.mxu0 %v5726
    %5925 = vmatpush.msra.mxu0 %v5720
    %5926 = vmatpush.msra.mxu0 %v5714
    %5927 = vmatpush.msra.mxu0 %v5708
    %5928 = vmatpush.msra.mxu0 %v5702
    %5929 = vmatpush.msra.mxu0 %v5696
    %5930 = vmatpush.msra.mxu0 %v5690
    %5931 = vmatmul.f32.gmra.mxu0 %v5085
    %v5932 = vpop.f32.mrf.mxu0
    %v5933 = vadd.f32 %v5910, %v5932
    %5934 = vmatmul.f32.gmra.mxu0 %v5208
    %v5935 = vpop.f32.mrf.mxu0
    %v5936 = vadd.f32 %v5913, %v5935
    %5937 = vdwg.mxu0
    %5938 = vmatpush.msra.mxu0 %v5301
    %5939 = vmatpush.msra.mxu0 %v5295
    %5940 = vmatpush.msra.mxu0 %v5289
    %5941 = vmatpush.msra.mxu0 %v5283
    %5942 = vmatpush.msra.mxu0 %v5277
    %5943 = vmatpush.msra.mxu0 %v5271
    %5944 = vmatpush.msra.mxu0 %v5265
    %5945 = vmatpush.msra.mxu0 %v5259
    %5946 = vmatpush.msra.mxu0 %v5253
    %5947 = vmatpush.msra.mxu0 %v5247
    %5948 = vmatpush.msra.mxu0 %v5241
    %5949 = vmatpush.msra.mxu0 %v5235
    %5950 = vmatpush.msra.mxu0 %v5229
    %5951 = vmatpush.msra.mxu0 %v5223
    %5952 = vmatpush.msra.mxu0 %v5217
    %5953 = vmatpush.msra.mxu0 %v5211
    %5954 = vmatmul.f32.gmra.mxu0 %v4985
    %v5955 = vpop.f32.mrf.mxu0
    %v5956 = vadd.f32 %v5789, %v5955
    %5957 = vmatmul.f32.gmra.mxu0 %v5108
    %v5958 = vpop.f32.mrf.mxu0
    %v5959 = vadd.f32 %v5789, %v5958
    %5960 = vdwg.mxu0
    %5961 = vmatpush.msra.mxu0 %v5397
    %5962 = vmatpush.msra.mxu0 %v5391
    %5963 = vmatpush.msra.mxu0 %v5385
    %5964 = vmatpush.msra.mxu0 %v5379
    %5965 = vmatpush.msra.mxu0 %v5373
    %5966 = vmatpush.msra.mxu0 %v5367
    %5967 = vmatpush.msra.mxu0 %v5361
    %5968 = vmatpush.msra.mxu0 %v5355
    %5969 = vmatpush.msra.mxu0 %v5349
    %5970 = vmatpush.msra.mxu0 %v5343
    %5971 = vmatpush.msra.mxu0 %v5337
    %5972 = vmatpush.msra.mxu0 %v5331
    %5973 = vmatpush.msra.mxu0 %v5325
    %5974 = vmatpush.msra.mxu0 %v5319
    %5975 = vmatpush.msra.mxu0 %v5313
    %5976 = vmatpush.msra.mxu0 %v5307
    %5977 = vmatmul.f32.gmra.mxu0 %v5005
    %v5978 = vpop.f32.mrf.mxu0
    %v5979 = vadd.f32 %v5956, %v5978
    %5980 = vmatmul.f32.gmra.mxu0 %v5128
    %v5981 = vpop.f32.mrf.mxu0
    %v5982 = vadd.f32 %v5959, %v5981
    %5983 = vdwg.mxu0
    %5984 = vmatpush.msra.mxu0 %v5493
    %5985 = vmatpush.msra.mxu0 %v5487
    %5986 = vmatpush.msra.mxu0 %v5481
    %5987 = vmatpush.msra.mxu0 %v5475
    %5988 = vmatpush.msra.mxu0 %v5469
    %5989 = vmatpush.msra.mxu0 %v5463
    %5990 = vmatpush.msra.mxu0 %v5457
    %5991 = vmatpush.msra.mxu0 %v5451
    %5992 = vmatpush.msra.mxu0 %v5445
    %5993 = vmatpush.msra.mxu0 %v5439
    %5994 = vmatpush.msra.mxu0 %v5433
    %5995 = vmatpush.msra.mxu0 %v5427
    %5996 = vmatpush.msra.mxu0 %v5421
    %5997 = vmatpush.msra.mxu0 %v5415
    %5998 = vmatpush.msra.mxu0 %v5409
    %5999 = vmatpush.msra.mxu0 %v5403
    %6000 = vmatmul.f32.gmra.mxu0 %v5025
    %v6001 = vpop.f32.mrf.mxu0
    %v6002 = vadd.f32 %v5979, %v6001
    %6003 = vmatmul.f32.gmra.mxu0 %v5148
    %v6004 = vpop.f32.mrf.mxu0
    %v6005 = vadd.f32 %v5982, %v6004
    %6006 = vdwg.mxu0
    %6007 = vmatpush.msra.mxu0 %v5589
    %6008 = vmatpush.msra.mxu0 %v5583
    %6009 = vmatpush.msra.mxu0 %v5577
    %6010 = vmatpush.msra.mxu0 %v5571
    %6011 = vmatpush.msra.mxu0 %v5565
    %6012 = vmatpush.msra.mxu0 %v5559
    %6013 = vmatpush.msra.mxu0 %v5553
    %6014 = vmatpush.msra.mxu0 %v5547
    %6015 = vmatpush.msra.mxu0 %v5541
    %6016 = vmatpush.msra.mxu0 %v5535
    %6017 = vmatpush.msra.mxu0 %v5529
    %6018 = vmatpush.msra.mxu0 %v5523
    %6019 = vmatpush.msra.mxu0 %v5517
    %6020 = vmatpush.msra.mxu0 %v5511
    %6021 = vmatpush.msra.mxu0 %v5505
    %6022 = vmatpush.msra.mxu0 %v5499
    %6023 = vmatmul.f32.gmra.mxu0 %v5045
    %v6024 = vpop.f32.mrf.mxu0
    %v6025 = vadd.f32 %v6002, %v6024
    %6026 = vmatmul.f32.gmra.mxu0 %v5168
    %v6027 = vpop.f32.mrf.mxu0
    %v6028 = vadd.f32 %v6005, %v6027
    %6029 = vdwg.mxu0
    %6030 = vmatpush.msra.mxu0 %v5685
    %6031 = vmatpush.msra.mxu0 %v5679
    %6032 = vmatpush.msra.mxu0 %v5673
    %6033 = vmatpush.msra.mxu0 %v5667
    %6034 = vmatpush.msra.mxu0 %v5661
    %6035 = vmatpush.msra.mxu0 %v5655
    %6036 = vmatpush.msra.mxu0 %v5649
    %6037 = vmatpush.msra.mxu0 %v5643
    %6038 = vmatpush.msra.mxu0 %v5637
    %6039 = vmatpush.msra.mxu0 %v5631
    %6040 = vmatpush.msra.mxu0 %v5625
    %6041 = vmatpush.msra.mxu0 %v5619
    %6042 = vmatpush.msra.mxu0 %v5613
    %6043 = vmatpush.msra.mxu0 %v5607
    %6044 = vmatpush.msra.mxu0 %v5601
    %6045 = vmatpush.msra.mxu0 %v5595
    %6046 = vmatmul.f32.gmra.mxu0 %v5065
    %v6047 = vpop.f32.mrf.mxu0
    %v6048 = vadd.f32 %v6025, %v6047
    %6049 = vmatmul.f32.gmra.mxu0 %v5188
    %v6050 = vpop.f32.mrf.mxu0
    %v6051 = vadd.f32 %v6028, %v6050
    %6052 = vdwg.mxu0
    %6053 = vmatpush.msra.mxu0 %v5781
    %6054 = vmatpush.msra.mxu0 %v5775
    %6055 = vmatpush.msra.mxu0 %v5769
    %6056 = vmatpush.msra.mxu0 %v5763
    %6057 = vmatpush.msra.mxu0 %v5757
    %6058 = vmatpush.msra.mxu0 %v5751
    %6059 = vmatpush.msra.mxu0 %v5745
    %6060 = vmatpush.msra.mxu0 %v5739
    %6061 = vmatpush.msra.mxu0 %v5733
    %6062 = vmatpush.msra.mxu0 %v5727
    %6063 = vmatpush.msra.mxu0 %v5721
    %6064 = vmatpush.msra.mxu0 %v5715
    %6065 = vmatpush.msra.mxu0 %v5709
    %6066 = vmatpush.msra.mxu0 %v5703
    %6067 = vmatpush.msra.mxu0 %v5697
    %6068 = vmatpush.msra.mxu0 %v5691
    %6069 = vmatmul.f32.gmra.mxu0 %v5085
    %v6070 = vpop.f32.mrf.mxu0
    %v6071 = vadd.f32 %v6048, %v6070
    %6072 = vmatmul.f32.gmra.mxu0 %v5208
    %v6073 = vpop.f32.mrf.mxu0
    %v6074 = vadd.f32 %v6051, %v6073
    %6075 = vdwg.mxu0
    %6076 = vmatpush.msra.mxu0 %v5302
    %6077 = vmatpush.msra.mxu0 %v5296
    %6078 = vmatpush.msra.mxu0 %v5290
    %6079 = vmatpush.msra.mxu0 %v5284
    %6080 = vmatpush.msra.mxu0 %v5278
    %6081 = vmatpush.msra.mxu0 %v5272
    %6082 = vmatpush.msra.mxu0 %v5266
    %6083 = vmatpush.msra.mxu0 %v5260
    %6084 = vmatpush.msra.mxu0 %v5254
    %6085 = vmatpush.msra.mxu0 %v5248
    %6086 = vmatpush.msra.mxu0 %v5242
    %6087 = vmatpush.msra.mxu0 %v5236
    %6088 = vmatpush.msra.mxu0 %v5230
    %6089 = vmatpush.msra.mxu0 %v5224
    %6090 = vmatpush.msra.mxu0 %v5218
    %6091 = vmatpush.msra.mxu0 %v5212
    %6092 = vmatmul.f32.gmra.mxu0 %v4985
    %v6093 = vpop.f32.mrf.mxu0
    %v6094 = vadd.f32 %v5790, %v6093
    %6095 = vmatmul.f32.gmra.mxu0 %v5108
    %v6096 = vpop.f32.mrf.mxu0
    %v6097 = vadd.f32 %v5790, %v6096
    %6098 = vdwg.mxu0
    %6099 = vmatpush.msra.mxu0 %v5398
    %6100 = vmatpush.msra.mxu0 %v5392
    %6101 = vmatpush.msra.mxu0 %v5386
    %6102 = vmatpush.msra.mxu0 %v5380
    %6103 = vmatpush.msra.mxu0 %v5374
    %6104 = vmatpush.msra.mxu0 %v5368
    %6105 = vmatpush.msra.mxu0 %v5362
    %6106 = vmatpush.msra.mxu0 %v5356
    %6107 = vmatpush.msra.mxu0 %v5350
    %6108 = vmatpush.msra.mxu0 %v5344
    %6109 = vmatpush.msra.mxu0 %v5338
    %6110 = vmatpush.msra.mxu0 %v5332
    %6111 = vmatpush.msra.mxu0 %v5326
    %6112 = vmatpush.msra.mxu0 %v5320
    %6113 = vmatpush.msra.mxu0 %v5314
    %6114 = vmatpush.msra.mxu0 %v5308
    %6115 = vmatmul.f32.gmra.mxu0 %v5005
    %v6116 = vpop.f32.mrf.mxu0
    %v6117 = vadd.f32 %v6094, %v6116
    %6118 = vmatmul.f32.gmra.mxu0 %v5128
    %v6119 = vpop.f32.mrf.mxu0
    %v6120 = vadd.f32 %v6097, %v6119
    %6121 = vdwg.mxu0
    %6122 = vmatpush.msra.mxu0 %v5494
    %6123 = vmatpush.msra.mxu0 %v5488
    %6124 = vmatpush.msra.mxu0 %v5482
    %6125 = vmatpush.msra.mxu0 %v5476
    %6126 = vmatpush.msra.mxu0 %v5470
    %6127 = vmatpush.msra.mxu0 %v5464
    %6128 = vmatpush.msra.mxu0 %v5458
    %6129 = vmatpush.msra.mxu0 %v5452
    %6130 = vmatpush.msra.mxu0 %v5446
    %6131 = vmatpush.msra.mxu0 %v5440
    %6132 = vmatpush.msra.mxu0 %v5434
    %6133 = vmatpush.msra.mxu0 %v5428
    %6134 = vmatpush.msra.mxu0 %v5422
    %6135 = vmatpush.msra.mxu0 %v5416
    %6136 = vmatpush.msra.mxu0 %v5410
    %6137 = vmatpush.msra.mxu0 %v5404
    %6138 = vmatmul.f32.gmra.mxu0 %v5025
    %v6139 = vpop.f32.mrf.mxu0
    %v6140 = vadd.f32 %v6117, %v6139
    %6141 = vmatmul.f32.gmra.mxu0 %v5148
    %v6142 = vpop.f32.mrf.mxu0
    %v6143 = vadd.f32 %v6120, %v6142
    %6144 = vdwg.mxu0
    %6145 = vmatpush.msra.mxu0 %v5590
    %6146 = vmatpush.msra.mxu0 %v5584
    %6147 = vmatpush.msra.mxu0 %v5578
    %6148 = vmatpush.msra.mxu0 %v5572
    %6149 = vmatpush.msra.mxu0 %v5566
    %6150 = vmatpush.msra.mxu0 %v5560
    %6151 = vmatpush.msra.mxu0 %v5554
    %6152 = vmatpush.msra.mxu0 %v5548
    %6153 = vmatpush.msra.mxu0 %v5542
    %6154 = vmatpush.msra.mxu0 %v5536
    %6155 = vmatpush.msra.mxu0 %v5530
    %6156 = vmatpush.msra.mxu0 %v5524
    %6157 = vmatpush.msra.mxu0 %v5518
    %6158 = vmatpush.msra.mxu0 %v5512
    %6159 = vmatpush.msra.mxu0 %v5506
    %6160 = vmatpush.msra.mxu0 %v5500
    %6161 = vmatmul.f32.gmra.mxu0 %v5045
    %v6162 = vpop.f32.mrf.mxu0
    %v6163 = vadd.f32 %v6140, %v6162
    %6164 = vmatmul.f32.gmra.mxu0 %v5168
    %v6165 = vpop.f32.mrf.mxu0
    %v6166 = vadd.f32 %v6143, %v6165
    %6167 = vdwg.mxu0
    %6168 = vmatpush.msra.mxu0 %v5686
    %6169 = vmatpush.msra.mxu0 %v5680
    %6170 = vmatpush.msra.mxu0 %v5674
    %6171 = vmatpush.msra.mxu0 %v5668
    %6172 = vmatpush.msra.mxu0 %v5662
    %6173 = vmatpush.msra.mxu0 %v5656
    %6174 = vmatpush.msra.mxu0 %v5650
    %6175 = vmatpush.msra.mxu0 %v5644
    %6176 = vmatpush.msra.mxu0 %v5638
    %6177 = vmatpush.msra.mxu0 %v5632
    %6178 = vmatpush.msra.mxu0 %v5626
    %6179 = vmatpush.msra.mxu0 %v5620
    %6180 = vmatpush.msra.mxu0 %v5614
    %6181 = vmatpush.msra.mxu0 %v5608
    %6182 = vmatpush.msra.mxu0 %v5602
    %6183 = vmatpush.msra.mxu0 %v5596
    %6184 = vmatmul.f32.gmra.mxu0 %v5065
    %v6185 = vpop.f32.mrf.mxu0
    %v6186 = vadd.f32 %v6163, %v6185
    %6187 = vmatmul.f32.gmra.mxu0 %v5188
    %v6188 = vpop.f32.mrf.mxu0
    %v6189 = vadd.f32 %v6166, %v6188
    %6190 = vdwg.mxu0
    %6191 = vmatpush.msra.mxu0 %v5782
    %6192 = vmatpush.msra.mxu0 %v5776
    %6193 = vmatpush.msra.mxu0 %v5770
    %6194 = vmatpush.msra.mxu0 %v5764
    %6195 = vmatpush.msra.mxu0 %v5758
    %6196 = vmatpush.msra.mxu0 %v5752
    %6197 = vmatpush.msra.mxu0 %v5746
    %6198 = vmatpush.msra.mxu0 %v5740
    %6199 = vmatpush.msra.mxu0 %v5734
    %6200 = vmatpush.msra.mxu0 %v5728
    %6201 = vmatpush.msra.mxu0 %v5722
    %6202 = vmatpush.msra.mxu0 %v5716
    %6203 = vmatpush.msra.mxu0 %v5710
    %6204 = vmatpush.msra.mxu0 %v5704
    %6205 = vmatpush.msra.mxu0 %v5698
    %6206 = vmatpush.msra.mxu0 %v5692
    %6207 = vmatmul.f32.gmra.mxu0 %v5085
    %v6208 = vpop.f32.mrf.mxu0
    %v6209 = vadd.f32 %v6186, %v6208
    %6210 = vmatmul.f32.gmra.mxu0 %v5208
    %v6211 = vpop.f32.mrf.mxu0
    %v6212 = vadd.f32 %v6189, %v6211
    %6213 = vdwg.mxu0
    %6214 = vmatpush.msra.mxu0 %v5303
    %6215 = vmatpush.msra.mxu0 %v5297
    %6216 = vmatpush.msra.mxu0 %v5291
    %6217 = vmatpush.msra.mxu0 %v5285
    %6218 = vmatpush.msra.mxu0 %v5279
    %6219 = vmatpush.msra.mxu0 %v5273
    %6220 = vmatpush.msra.mxu0 %v5267
    %6221 = vmatpush.msra.mxu0 %v5261
    %6222 = vmatpush.msra.mxu0 %v5255
    %6223 = vmatpush.msra.mxu0 %v5249
    %6224 = vmatpush.msra.mxu0 %v5243
    %6225 = vmatpush.msra.mxu0 %v5237
    %6226 = vmatpush.msra.mxu0 %v5231
    %6227 = vmatpush.msra.mxu0 %v5225
    %6228 = vmatpush.msra.mxu0 %v5219
    %6229 = vmatpush.msra.mxu0 %v5213
    %6230 = vmatmul.f32.gmra.mxu0 %v4985
    %v6231 = vpop.f32.mrf.mxu0
    %v6232 = vadd.f32 %v5791, %v6231
    %6233 = vmatmul.f32.gmra.mxu0 %v5108
    %v6234 = vpop.f32.mrf.mxu0
    %v6235 = vadd.f32 %v5791, %v6234
    %6236 = vdwg.mxu0
    %6237 = vmatpush.msra.mxu0 %v5399
    %6238 = vmatpush.msra.mxu0 %v5393
    %6239 = vmatpush.msra.mxu0 %v5387
    %6240 = vmatpush.msra.mxu0 %v5381
    %6241 = vmatpush.msra.mxu0 %v5375
    %6242 = vmatpush.msra.mxu0 %v5369
    %6243 = vmatpush.msra.mxu0 %v5363
    %6244 = vmatpush.msra.mxu0 %v5357
    %6245 = vmatpush.msra.mxu0 %v5351
    %6246 = vmatpush.msra.mxu0 %v5345
    %6247 = vmatpush.msra.mxu0 %v5339
    %6248 = vmatpush.msra.mxu0 %v5333
    %6249 = vmatpush.msra.mxu0 %v5327
    %6250 = vmatpush.msra.mxu0 %v5321
    %6251 = vmatpush.msra.mxu0 %v5315
    %6252 = vmatpush.msra.mxu0 %v5309
    %6253 = vmatmul.f32.gmra.mxu0 %v5005
    %v6254 = vpop.f32.mrf.mxu0
    %v6255 = vadd.f32 %v6232, %v6254
    %6256 = vmatmul.f32.gmra.mxu0 %v5128
    %v6257 = vpop.f32.mrf.mxu0
    %v6258 = vadd.f32 %v6235, %v6257
    %6259 = vdwg.mxu0
    %6260 = vmatpush.msra.mxu0 %v5495
    %6261 = vmatpush.msra.mxu0 %v5489
    %6262 = vmatpush.msra.mxu0 %v5483
    %6263 = vmatpush.msra.mxu0 %v5477
    %6264 = vmatpush.msra.mxu0 %v5471
    %6265 = vmatpush.msra.mxu0 %v5465
    %6266 = vmatpush.msra.mxu0 %v5459
    %6267 = vmatpush.msra.mxu0 %v5453
    %6268 = vmatpush.msra.mxu0 %v5447
    %6269 = vmatpush.msra.mxu0 %v5441
    %6270 = vmatpush.msra.mxu0 %v5435
    %6271 = vmatpush.msra.mxu0 %v5429
    %6272 = vmatpush.msra.mxu0 %v5423
    %6273 = vmatpush.msra.mxu0 %v5417
    %6274 = vmatpush.msra.mxu0 %v5411
    %6275 = vmatpush.msra.mxu0 %v5405
    %6276 = vmatmul.f32.gmra.mxu0 %v5025
    %v6277 = vpop.f32.mrf.mxu0
    %v6278 = vadd.f32 %v6255, %v6277
    %6279 = vmatmul.f32.gmra.mxu0 %v5148
    %v6280 = vpop.f32.mrf.mxu0
    %v6281 = vadd.f32 %v6258, %v6280
    %6282 = vdwg.mxu0
    %6283 = vmatpush.msra.mxu0 %v5591
    %6284 = vmatpush.msra.mxu0 %v5585
    %6285 = vmatpush.msra.mxu0 %v5579
    %6286 = vmatpush.msra.mxu0 %v5573
    %6287 = vmatpush.msra.mxu0 %v5567
    %6288 = vmatpush.msra.mxu0 %v5561
    %6289 = vmatpush.msra.mxu0 %v5555
    %6290 = vmatpush.msra.mxu0 %v5549
    %6291 = vmatpush.msra.mxu0 %v5543
    %6292 = vmatpush.msra.mxu0 %v5537
    %6293 = vmatpush.msra.mxu0 %v5531
    %6294 = vmatpush.msra.mxu0 %v5525
    %6295 = vmatpush.msra.mxu0 %v5519
    %6296 = vmatpush.msra.mxu0 %v5513
    %6297 = vmatpush.msra.mxu0 %v5507
    %6298 = vmatpush.msra.mxu0 %v5501
    %6299 = vmatmul.f32.gmra.mxu0 %v5045
    %v6300 = vpop.f32.mrf.mxu0
    %v6301 = vadd.f32 %v6278, %v6300
    %6302 = vmatmul.f32.gmra.mxu0 %v5168
    %v6303 = vpop.f32.mrf.mxu0
    %v6304 = vadd.f32 %v6281, %v6303
    %6305 = vdwg.mxu0
    %6306 = vmatpush.msra.mxu0 %v5687
    %6307 = vmatpush.msra.mxu0 %v5681
    %6308 = vmatpush.msra.mxu0 %v5675
    %6309 = vmatpush.msra.mxu0 %v5669
    %6310 = vmatpush.msra.mxu0 %v5663
    %6311 = vmatpush.msra.mxu0 %v5657
    %6312 = vmatpush.msra.mxu0 %v5651
    %6313 = vmatpush.msra.mxu0 %v5645
    %6314 = vmatpush.msra.mxu0 %v5639
    %6315 = vmatpush.msra.mxu0 %v5633
    %6316 = vmatpush.msra.mxu0 %v5627
    %6317 = vmatpush.msra.mxu0 %v5621
    %6318 = vmatpush.msra.mxu0 %v5615
    %6319 = vmatpush.msra.mxu0 %v5609
    %6320 = vmatpush.msra.mxu0 %v5603
    %6321 = vmatpush.msra.mxu0 %v5597
    %6322 = vmatmul.f32.gmra.mxu0 %v5065
    %v6323 = vpop.f32.mrf.mxu0
    %v6324 = vadd.f32 %v6301, %v6323
    %6325 = vmatmul.f32.gmra.mxu0 %v5188
    %v6326 = vpop.f32.mrf.mxu0
    %v6327 = vadd.f32 %v6304, %v6326
    %6328 = vdwg.mxu0
    %6329 = vmatpush.msra.mxu0 %v5783
    %6330 = vmatpush.msra.mxu0 %v5777
    %6331 = vmatpush.msra.mxu0 %v5771
    %6332 = vmatpush.msra.mxu0 %v5765
    %6333 = vmatpush.msra.mxu0 %v5759
    %6334 = vmatpush.msra.mxu0 %v5753
    %6335 = vmatpush.msra.mxu0 %v5747
    %6336 = vmatpush.msra.mxu0 %v5741
    %6337 = vmatpush.msra.mxu0 %v5735
    %6338 = vmatpush.msra.mxu0 %v5729
    %6339 = vmatpush.msra.mxu0 %v5723
    %6340 = vmatpush.msra.mxu0 %v5717
    %6341 = vmatpush.msra.mxu0 %v5711
    %6342 = vmatpush.msra.mxu0 %v5705
    %6343 = vmatpush.msra.mxu0 %v5699
    %6344 = vmatpush.msra.mxu0 %v5693
    %6345 = vmatmul.f32.gmra.mxu0 %v5085
    %v6346 = vpop.f32.mrf.mxu0
    %v6347 = vadd.f32 %v6324, %v6346
    %6348 = vmatmul.f32.gmra.mxu0 %v5208
    %v6349 = vpop.f32.mrf.mxu0
    %v6350 = vadd.f32 %v6327, %v6349
    %6351 = vdwg.mxu0
    %6352 = vmatpush.msra.mxu0 %v5304
    %6353 = vmatpush.msra.mxu0 %v5298
    %6354 = vmatpush.msra.mxu0 %v5292
    %6355 = vmatpush.msra.mxu0 %v5286
    %6356 = vmatpush.msra.mxu0 %v5280
    %6357 = vmatpush.msra.mxu0 %v5274
    %6358 = vmatpush.msra.mxu0 %v5268
    %6359 = vmatpush.msra.mxu0 %v5262
    %6360 = vmatpush.msra.mxu0 %v5256
    %6361 = vmatpush.msra.mxu0 %v5250
    %6362 = vmatpush.msra.mxu0 %v5244
    %6363 = vmatpush.msra.mxu0 %v5238
    %6364 = vmatpush.msra.mxu0 %v5232
    %6365 = vmatpush.msra.mxu0 %v5226
    %6366 = vmatpush.msra.mxu0 %v5220
    %6367 = vmatpush.msra.mxu0 %v5214
    %6368 = vmatmul.f32.gmra.mxu0 %v4985
    %v6369 = vpop.f32.mrf.mxu0
    %v6370 = vadd.f32 %v5792, %v6369
    %6371 = vmatmul.f32.gmra.mxu0 %v5108
    %v6372 = vpop.f32.mrf.mxu0
    %v6373 = vadd.f32 %v5792, %v6372
    %6374 = vdwg.mxu0
    %6375 = vmatpush.msra.mxu0 %v5400
    %6376 = vmatpush.msra.mxu0 %v5394
    %6377 = vmatpush.msra.mxu0 %v5388
    %6378 = vmatpush.msra.mxu0 %v5382
    %6379 = vmatpush.msra.mxu0 %v5376
    %6380 = vmatpush.msra.mxu0 %v5370
    %6381 = vmatpush.msra.mxu0 %v5364
    %6382 = vmatpush.msra.mxu0 %v5358
    %6383 = vmatpush.msra.mxu0 %v5352
    %6384 = vmatpush.msra.mxu0 %v5346
    %6385 = vmatpush.msra.mxu0 %v5340
    %6386 = vmatpush.msra.mxu0 %v5334
    %6387 = vmatpush.msra.mxu0 %v5328
    %6388 = vmatpush.msra.mxu0 %v5322
    %6389 = vmatpush.msra.mxu0 %v5316
    %6390 = vmatpush.msra.mxu0 %v5310
    %6391 = vmatmul.f32.gmra.mxu0 %v5005
    %v6392 = vpop.f32.mrf.mxu0
    %v6393 = vadd.f32 %v6370, %v6392
    %6394 = vmatmul.f32.gmra.mxu0 %v5128
    %v6395 = vpop.f32.mrf.mxu0
    %v6396 = vadd.f32 %v6373, %v6395
    %6397 = vdwg.mxu0
    %6398 = vmatpush.msra.mxu0 %v5496
    %6399 = vmatpush.msra.mxu0 %v5490
    %6400 = vmatpush.msra.mxu0 %v5484
    %6401 = vmatpush.msra.mxu0 %v5478
    %6402 = vmatpush.msra.mxu0 %v5472
    %6403 = vmatpush.msra.mxu0 %v5466
    %6404 = vmatpush.msra.mxu0 %v5460
    %6405 = vmatpush.msra.mxu0 %v5454
    %6406 = vmatpush.msra.mxu0 %v5448
    %6407 = vmatpush.msra.mxu0 %v5442
    %6408 = vmatpush.msra.mxu0 %v5436
    %6409 = vmatpush.msra.mxu0 %v5430
    %6410 = vmatpush.msra.mxu0 %v5424
    %6411 = vmatpush.msra.mxu0 %v5418
    %6412 = vmatpush.msra.mxu0 %v5412
    %6413 = vmatpush.msra.mxu0 %v5406
    %6414 = vmatmul.f32.gmra.mxu0 %v5025
    %v6415 = vpop.f32.mrf.mxu0
    %v6416 = vadd.f32 %v6393, %v6415
    %6417 = vmatmul.f32.gmra.mxu0 %v5148
    %v6418 = vpop.f32.mrf.mxu0
    %v6419 = vadd.f32 %v6396, %v6418
    %6420 = vdwg.mxu0
    %6421 = vmatpush.msra.mxu0 %v5592
    %6422 = vmatpush.msra.mxu0 %v5586
    %6423 = vmatpush.msra.mxu0 %v5580
    %6424 = vmatpush.msra.mxu0 %v5574
    %6425 = vmatpush.msra.mxu0 %v5568
    %6426 = vmatpush.msra.mxu0 %v5562
    %6427 = vmatpush.msra.mxu0 %v5556
    %6428 = vmatpush.msra.mxu0 %v5550
    %6429 = vmatpush.msra.mxu0 %v5544
    %6430 = vmatpush.msra.mxu0 %v5538
    %6431 = vmatpush.msra.mxu0 %v5532
    %6432 = vmatpush.msra.mxu0 %v5526
    %6433 = vmatpush.msra.mxu0 %v5520
    %6434 = vmatpush.msra.mxu0 %v5514
    %6435 = vmatpush.msra.mxu0 %v5508
    %6436 = vmatpush.msra.mxu0 %v5502
    %6437 = vmatmul.f32.gmra.mxu0 %v5045
    %v6438 = vpop.f32.mrf.mxu0
    %v6439 = vadd.f32 %v6416, %v6438
    %6440 = vmatmul.f32.gmra.mxu0 %v5168
    %v6441 = vpop.f32.mrf.mxu0
    %v6442 = vadd.f32 %v6419, %v6441
    %6443 = vdwg.mxu0
    %6444 = vmatpush.msra.mxu0 %v5688
    %6445 = vmatpush.msra.mxu0 %v5682
    %6446 = vmatpush.msra.mxu0 %v5676
    %6447 = vmatpush.msra.mxu0 %v5670
    %6448 = vmatpush.msra.mxu0 %v5664
    %6449 = vmatpush.msra.mxu0 %v5658
    %6450 = vmatpush.msra.mxu0 %v5652
    %6451 = vmatpush.msra.mxu0 %v5646
    %6452 = vmatpush.msra.mxu0 %v5640
    %6453 = vmatpush.msra.mxu0 %v5634
    %6454 = vmatpush.msra.mxu0 %v5628
    %6455 = vmatpush.msra.mxu0 %v5622
    %6456 = vmatpush.msra.mxu0 %v5616
    %6457 = vmatpush.msra.mxu0 %v5610
    %6458 = vmatpush.msra.mxu0 %v5604
    %6459 = vmatpush.msra.mxu0 %v5598
    %6460 = vmatmul.f32.gmra.mxu0 %v5065
    %v6461 = vpop.f32.mrf.mxu0
    %v6462 = vadd.f32 %v6439, %v6461
    %6463 = vmatmul.f32.gmra.mxu0 %v5188
    %v6464 = vpop.f32.mrf.mxu0
    %v6465 = vadd.f32 %v6442, %v6464
    %6466 = vdwg.mxu0
    %6467 = vmatpush.msra.mxu0 %v5784
    %6468 = vmatpush.msra.mxu0 %v5778
    %6469 = vmatpush.msra.mxu0 %v5772
    %6470 = vmatpush.msra.mxu0 %v5766
    %6471 = vmatpush.msra.mxu0 %v5760
    %6472 = vmatpush.msra.mxu0 %v5754
    %6473 = vmatpush.msra.mxu0 %v5748
    %6474 = vmatpush.msra.mxu0 %v5742
    %6475 = vmatpush.msra.mxu0 %v5736
    %6476 = vmatpush.msra.mxu0 %v5730
    %6477 = vmatpush.msra.mxu0 %v5724
    %6478 = vmatpush.msra.mxu0 %v5718
    %6479 = vmatpush.msra.mxu0 %v5712
    %6480 = vmatpush.msra.mxu0 %v5706
    %6481 = vmatpush.msra.mxu0 %v5700
    %6482 = vmatpush.msra.mxu0 %v5694
    %6483 = vmatmul.f32.gmra.mxu0 %v5085
    %v6484 = vpop.f32.mrf.mxu0
    %v6485 = vadd.f32 %v6462, %v6484
    %6486 = vmatmul.f32.gmra.mxu0 %v5208
    %v6487 = vpop.f32.mrf.mxu0
    %v6488 = vadd.f32 %v6465, %v6487
    %6489 = vdwg.mxu0
    %6490 = vmatpush.msra.mxu0 %v5305
    %6491 = vmatpush.msra.mxu0 %v5299
    %6492 = vmatpush.msra.mxu0 %v5293
    %6493 = vmatpush.msra.mxu0 %v5287
    %6494 = vmatpush.msra.mxu0 %v5281
    %6495 = vmatpush.msra.mxu0 %v5275
    %6496 = vmatpush.msra.mxu0 %v5269
    %6497 = vmatpush.msra.mxu0 %v5263
    %6498 = vmatpush.msra.mxu0 %v5257
    %6499 = vmatpush.msra.mxu0 %v5251
    %6500 = vmatpush.msra.mxu0 %v5245
    %6501 = vmatpush.msra.mxu0 %v5239
    %6502 = vmatpush.msra.mxu0 %v5233
    %6503 = vmatpush.msra.mxu0 %v5227
    %6504 = vmatpush.msra.mxu0 %v5221
    %6505 = vmatpush.msra.mxu0 %v5215
    %6506 = vmatmul.f32.gmra.mxu0 %v4985
    %v6507 = vpop.f32.mrf.mxu0
    %v6508 = vadd.f32 %v5793, %v6507
    %6509 = vmatmul.f32.gmra.mxu0 %v5108
    %v6510 = vpop.f32.mrf.mxu0
    %v6511 = vadd.f32 %v5793, %v6510
    %6512 = vdwg.mxu0
    %6513 = vmatpush.msra.mxu0 %v5401
    %6514 = vmatpush.msra.mxu0 %v5395
    %6515 = vmatpush.msra.mxu0 %v5389
    %6516 = vmatpush.msra.mxu0 %v5383
    %6517 = vmatpush.msra.mxu0 %v5377
    %6518 = vmatpush.msra.mxu0 %v5371
    %6519 = vmatpush.msra.mxu0 %v5365
    %6520 = vmatpush.msra.mxu0 %v5359
    %6521 = vmatpush.msra.mxu0 %v5353
    %6522 = vmatpush.msra.mxu0 %v5347
    %6523 = vmatpush.msra.mxu0 %v5341
    %6524 = vmatpush.msra.mxu0 %v5335
    %6525 = vmatpush.msra.mxu0 %v5329
    %6526 = vmatpush.msra.mxu0 %v5323
    %6527 = vmatpush.msra.mxu0 %v5317
    %6528 = vmatpush.msra.mxu0 %v5311
    %6529 = vmatmul.f32.gmra.mxu0 %v5005
    %v6530 = vpop.f32.mrf.mxu0
    %v6531 = vadd.f32 %v6508, %v6530
    %6532 = vmatmul.f32.gmra.mxu0 %v5128
    %v6533 = vpop.f32.mrf.mxu0
    %v6534 = vadd.f32 %v6511, %v6533
    %6535 = vdwg.mxu0
    %6536 = vmatpush.msra.mxu0 %v5497
    %6537 = vmatpush.msra.mxu0 %v5491
    %6538 = vmatpush.msra.mxu0 %v5485
    %6539 = vmatpush.msra.mxu0 %v5479
    %6540 = vmatpush.msra.mxu0 %v5473
    %6541 = vmatpush.msra.mxu0 %v5467
    %6542 = vmatpush.msra.mxu0 %v5461
    %6543 = vmatpush.msra.mxu0 %v5455
    %6544 = vmatpush.msra.mxu0 %v5449
    %6545 = vmatpush.msra.mxu0 %v5443
    %6546 = vmatpush.msra.mxu0 %v5437
    %6547 = vmatpush.msra.mxu0 %v5431
    %6548 = vmatpush.msra.mxu0 %v5425
    %6549 = vmatpush.msra.mxu0 %v5419
    %6550 = vmatpush.msra.mxu0 %v5413
    %6551 = vmatpush.msra.mxu0 %v5407
    %6552 = vmatmul.f32.gmra.mxu0 %v5025
    %v6553 = vpop.f32.mrf.mxu0
    %v6554 = vadd.f32 %v6531, %v6553
    %6555 = vmatmul.f32.gmra.mxu0 %v5148
    %v6556 = vpop.f32.mrf.mxu0
    %v6557 = vadd.f32 %v6534, %v6556
    %6558 = vdwg.mxu0
    %6559 = vmatpush.msra.mxu0 %v5593
    %6560 = vmatpush.msra.mxu0 %v5587
    %6561 = vmatpush.msra.mxu0 %v5581
    %6562 = vmatpush.msra.mxu0 %v5575
    %6563 = vmatpush.msra.mxu0 %v5569
    %6564 = vmatpush.msra.mxu0 %v5563
    %6565 = vmatpush.msra.mxu0 %v5557
    %6566 = vmatpush.msra.mxu0 %v5551
    %6567 = vmatpush.msra.mxu0 %v5545
    %6568 = vmatpush.msra.mxu0 %v5539
    %6569 = vmatpush.msra.mxu0 %v5533
    %6570 = vmatpush.msra.mxu0 %v5527
    %6571 = vmatpush.msra.mxu0 %v5521
    %6572 = vmatpush.msra.mxu0 %v5515
    %6573 = vmatpush.msra.mxu0 %v5509
    %6574 = vmatpush.msra.mxu0 %v5503
    %6575 = vmatmul.f32.gmra.mxu0 %v5045
    %v6576 = vpop.f32.mrf.mxu0
    %v6577 = vadd.f32 %v6554, %v6576
    %6578 = vmatmul.f32.gmra.mxu0 %v5168
    %v6579 = vpop.f32.mrf.mxu0
    %v6580 = vadd.f32 %v6557, %v6579
    %6581 = vdwg.mxu0
    %6582 = vmatpush.msra.mxu0 %v5689
    %6583 = vmatpush.msra.mxu0 %v5683
    %6584 = vmatpush.msra.mxu0 %v5677
    %6585 = vmatpush.msra.mxu0 %v5671
    %6586 = vmatpush.msra.mxu0 %v5665
    %6587 = vmatpush.msra.mxu0 %v5659
    %6588 = vmatpush.msra.mxu0 %v5653
    %6589 = vmatpush.msra.mxu0 %v5647
    %6590 = vmatpush.msra.mxu0 %v5641
    %6591 = vmatpush.msra.mxu0 %v5635
    %6592 = vmatpush.msra.mxu0 %v5629
    %6593 = vmatpush.msra.mxu0 %v5623
    %6594 = vmatpush.msra.mxu0 %v5617
    %6595 = vmatpush.msra.mxu0 %v5611
    %6596 = vmatpush.msra.mxu0 %v5605
    %6597 = vmatpush.msra.mxu0 %v5599
    %6598 = vmatmul.f32.gmra.mxu0 %v5065
    %v6599 = vpop.f32.mrf.mxu0
    %v6600 = vadd.f32 %v6577, %v6599
    %6601 = vmatmul.f32.gmra.mxu0 %v5188
    %v6602 = vpop.f32.mrf.mxu0
    %v6603 = vadd.f32 %v6580, %v6602
    %6604 = vdwg.mxu0
    %6605 = vmatpush.msra.mxu0 %v5785
    %6606 = vmatpush.msra.mxu0 %v5779
    %6607 = vmatpush.msra.mxu0 %v5773
    %6608 = vmatpush.msra.mxu0 %v5767
    %6609 = vmatpush.msra.mxu0 %v5761
    %6610 = vmatpush.msra.mxu0 %v5755
    %6611 = vmatpush.msra.mxu0 %v5749
    %6612 = vmatpush.msra.mxu0 %v5743
    %6613 = vmatpush.msra.mxu0 %v5737
    %6614 = vmatpush.msra.mxu0 %v5731
    %6615 = vmatpush.msra.mxu0 %v5725
    %6616 = vmatpush.msra.mxu0 %v5719
    %6617 = vmatpush.msra.mxu0 %v5713
    %6618 = vmatpush.msra.mxu0 %v5707
    %6619 = vmatpush.msra.mxu0 %v5701
    %6620 = vmatpush.msra.mxu0 %v5695
    %6621 = vmatmul.f32.gmra.mxu0 %v5085
    %v6622 = vpop.f32.mrf.mxu0
    %v6623 = vadd.f32 %v6600, %v6622
    %6624 = vmatmul.f32.gmra.mxu0 %v5208
    %v6625 = vpop.f32.mrf.mxu0
    %v6626 = vadd.f32 %v6603, %v6625
    %6627 = vdwg.mxu0
    %v6628 = vadd.f32 %v4209, %v5933
    %v6629 = vadd.f32 %v4347, %v6071
    %v6630 = vadd.f32 %v4485, %v6209
    %v6631 = vadd.f32 %v4623, %v6347
    %v6632 = vadd.f32 %v4761, %v6485
    %v6633 = vadd.f32 %v4899, %v6623
    %v6634 = vadd.f32 %v4212, %v5936
    %v6635 = vadd.f32 %v4350, %v6074
    %v6636 = vadd.f32 %v4488, %v6212
    %v6637 = vadd.f32 %v4626, %v6350
    %v6638 = vadd.f32 %v4764, %v6488
    %v6639 = vadd.f32 %v4902, %v6626
    %6640 = vst [vmem:[#allocation16] sm:$0xff] %v6628
    %6641 = vst [vmem:[#allocation16 + $0x8] sm:$0xff] %v6629
    %6642 = vst [vmem:[#allocation16 + $0x10] sm:$0xff] %v6630
    %6643 = vst [vmem:[#allocation16 + $0x18] sm:$0xff] %v6631
    %6644 = vst [vmem:[#allocation16 + $0x20] sm:$0xff] %v6632
    %6645 = vst [vmem:[#allocation16 + $0x28] sm:$0xff] %v6633
    %6646 = vst [vmem:[#allocation16 + $0x30] sm:$0xff] %v6634
    %6647 = vst [vmem:[#allocation16 + $0x38] sm:$0xff] %v6635
    %6648 = vst [vmem:[#allocation16 + $0x40] sm:$0xff] %v6636
    %6649 = vst [vmem:[#allocation16 + $0x48] sm:$0xff] %v6637
    %6650 = vst [vmem:[#allocation16 + $0x50] sm:$0xff] %v6638
    %6651 = vst [vmem:[#allocation16 + $0x58] sm:$0xff] %v6639
    // Predicated region
    $region66: #{tpu_custom_call.1} parent=1 // pred_check
      _
    $region67: #{tpu_custom_call.1} parent=1 // pred_check_branch
      %6653 = sbr.rel (0) target = $region69
    $region68: #{tpu_custom_call.1} parent=1 // pred_region
      %6655 = vsyncadd [#allocation4], 0
      %s6656 = sshll.u32 [#allocation16], 4
      %s6657 = int_to_ptr.vmem [resolvable:$true] %s6656
      %s6658 = sshll.u32 %s8, 4
      %s6659 = int_to_ptr.hbm [resolvable:$true] %s6658
      %6664 = dma.vmem_to_hbm [thread:$0]  %s6657, 1536, %s6659, [#allocation4], 768, 768, 48
    $region69: #{tpu_custom_call.1} parent=1 // pred_fallthru
      _
    // Predicated region
    $region70: #{tpu_custom_call.1} parent=1 // pred_check
      _
    $region71: #{tpu_custom_call.1} parent=1 // pred_check_branch
      %6666 = sbr.rel (0) target = $region73
    $region72: #{tpu_custom_call.1} parent=1 // pred_region
      %6668 = dma.done [#allocation4], 1536
    $region73: #{tpu_custom_call.1} parent=1 // pred_fallthru
      _
    %6669 = vsyncpa [#allocation3], 1
    %6670 = vsyncpa [#allocation6], 1
    %6671 = vsyncpa [#allocation9], 1
    %6672 = vsyncpa [#allocation12], 1
    %6673 = vsyncpa [#allocation15], 1
    %6674 = vsyncpa [#allocation4], 1

</llo_original>
